<compile_context>
chip_gen: v7x
topology: tpu7x:2x2x1
jax: 0.10.0
libtpu: 0.0.40
codegen_flags: <defaults>
</compile_context>

<pallas_src>
import math

import numpy as np
import jax
import jax.numpy as jnp
from jax import lax
from jax.experimental import pallas as pl
from jax.experimental.pallas import tpu as pltpu


# --------------------------------------------------------------------------
# Generation-aware sizing helpers
# --------------------------------------------------------------------------

_LANE = 128      # lane width (last dim alignment for H)
_SUBLANE = 16    # bf16-packed sublane rows (second-to-last dim alignment for B)


def _round_up(x, m):
    return ((x + m - 1) // m) * m


_VMEM_CAP_CACHE = [None]


def _vmem_capacity_bytes():
    if _VMEM_CAP_CACHE[0] is None:
        cap = 0
        try:
            cap = int(getattr(pltpu.get_tpu_info(), "vmem_capacity_bytes", 0) or 0)
        except Exception:
            cap = 0
        if cap <= 0:
            cap = 64 * 1024 * 1024   # conservative fallback (v7x per-core VMEM)
        _VMEM_CAP_CACHE[0] = cap
    return _VMEM_CAP_CACHE[0]


def _vmem_budget_bytes():
    # ~25% headroom for compiler-internal scratch / semaphores.
    return (_vmem_capacity_bytes() * 3) // 4


def _choose_tile_m(M):
    """Row tile for the pipelined GEMMs over M = T*Bp (512 small-VMEM / 1024 big)."""
    target = 1024 if _vmem_budget_bytes() >= 96 * 1024 * 1024 else 512
    return M if M <= target else target


def _choose_t_chunk(T, Bp, Hp):
    """Largest chunk of timesteps whose double-buffered blocks fit the VMEM budget."""
    Gp = 4 * Hp
    budget = _vmem_budget_bytes()
    # per-timestep: 2 dirs x (gx bf16 + out bf16), each double-buffered.
    per_t = 2 * 2 * Bp * Gp * 2 + 2 * 2 * Bp * Hp * 2
    fixed = 2 * 2 * Hp * Gp * 2 + 4 * Bp * Hp * 4   # whh (x2 bufs) + f32 scratch
    cap = int(min(T, max(1, (budget - fixed) // per_t)))
    # Chunk must divide T exactly: padded timesteps would contaminate the
    # reverse-direction carry.
    for d in range(cap, 0, -1):
        if T % d == 0:
            return d
    return 1


# --------------------------------------------------------------------------
# Pallas kernels
# --------------------------------------------------------------------------

def _proj_single_kernel(x_ref, wf_ref, wb_ref, bf_ref, bb_ref, gxf_ref, gxb_ref):
    """Layer-0 input projection (tile of M rows): gx = x @ W_ih^T + (b_ih+b_hh)."""
    x = x_ref[...]
    gxf_ref[...] = (jnp.dot(x, wf_ref[...], preferred_element_type=jnp.float32)
                    + bf_ref[...]).astype(gxf_ref.dtype)
    gxb_ref[...] = (jnp.dot(x, wb_ref[...], preferred_element_type=jnp.float32)
                    + bb_ref[...]).astype(gxb_ref.dtype)


def proj_single_pallas(x_2d, wf, wb, bf, bb, tile_m, vmem_limit):
    M, E = x_2d.shape
    G = wf.shape[1]

    def row(i):
        return (i, 0)

    def const(i):
        return (0, 0)

    return pl.pallas_call(
        _proj_single_kernel,
        grid=(M // tile_m,),
        in_specs=[pl.BlockSpec((tile_m, E), row),
                  pl.BlockSpec((E, G), const),
                  pl.BlockSpec((E, G), const),
                  pl.BlockSpec((1, G), const),
                  pl.BlockSpec((1, G), const)],
        out_specs=(pl.BlockSpec((tile_m, G), row),
                   pl.BlockSpec((tile_m, G), row)),
        out_shape=(jax.ShapeDtypeStruct((M, G), jnp.bfloat16),
                   jax.ShapeDtypeStruct((M, G), jnp.bfloat16)),
        compiler_params=pltpu.CompilerParams(
            dimension_semantics=("parallel",), vmem_limit_bytes=vmem_limit),
    )(x_2d, wf, wb, bf, bb)


def _proj_dual_kernel(hf_ref, hb_ref, wf_ref, wb_ref, bf_ref, bb_ref,
                      gxf_ref, gxb_ref):
    """Deep-layer input projection: concat(hf,hb)@W realized as split dots."""
    H = hf_ref.shape[1]
    hf = hf_ref[...]
    hb = hb_ref[...]
    gxf_ref[...] = (jnp.dot(hf, wf_ref[0:H, :], preferred_element_type=jnp.float32)
                    + jnp.dot(hb, wf_ref[H:2 * H, :], preferred_element_type=jnp.float32)
                    + bf_ref[...]).astype(gxf_ref.dtype)
    gxb_ref[...] = (jnp.dot(hf, wb_ref[0:H, :], preferred_element_type=jnp.float32)
                    + jnp.dot(hb, wb_ref[H:2 * H, :], preferred_element_type=jnp.float32)
                    + bb_ref[...]).astype(gxb_ref.dtype)


def proj_dual_pallas(hf_2d, hb_2d, wf, wb, bf, bb, tile_m, vmem_limit):
    M, H = hf_2d.shape
    G = wf.shape[1]

    def row(i):
        return (i, 0)

    def const(i):
        return (0, 0)

    return pl.pallas_call(
        _proj_dual_kernel,
        grid=(M // tile_m,),
        in_specs=[pl.BlockSpec((tile_m, H), row),
                  pl.BlockSpec((tile_m, H), row),
                  pl.BlockSpec((2 * H, G), const),
                  pl.BlockSpec((2 * H, G), const),
                  pl.BlockSpec((1, G), const),
                  pl.BlockSpec((1, G), const)],
        out_specs=(pl.BlockSpec((tile_m, G), row),
                   pl.BlockSpec((tile_m, G), row)),
        out_shape=(jax.ShapeDtypeStruct((M, G), jnp.bfloat16),
                   jax.ShapeDtypeStruct((M, G), jnp.bfloat16)),
        compiler_params=pltpu.CompilerParams(
            dimension_semantics=("parallel",), vmem_limit_bytes=vmem_limit),
    )(hf_2d, hb_2d, wf, wb, bf, bb)


def _bilstm_rec_kernel(gxf_ref, gxb_ref, whh_f_ref, whh_b_ref,
                       outf_ref, outb_ref, hf_ref, cf_ref, hb_ref, cb_ref):
    """Fused bidirectional LSTM recurrence over one T-chunk.

    gxf/gxb : (Tc, Bp, 4Hp) bf16 precomputed gates (bias folded; gxb block is
              the time-REVERSED chunk via the BlockSpec index_map)
    whh_*   : (Hp, 4Hp) bf16
    outf/outb: (Tc, Bp, Hp) bf16
    hf/cf/hb/cb: (Bp, Hp) f32 VMEM scratch, carried across grid steps.
    """
    Tc = gxf_ref.shape[0]
    Hp = whh_f_ref.shape[0]

    @pl.when(pl.program_id(0) == 0)
    def _init():
        hf_ref[...] = jnp.zeros_like(hf_ref)
        cf_ref[...] = jnp.zeros_like(cf_ref)
        hb_ref[...] = jnp.zeros_like(hb_ref)
        cb_ref[...] = jnp.zeros_like(cb_ref)

    whh_f = whh_f_ref[...]
    whh_b = whh_b_ref[...]

    def cell(gates, c):
        # Gate column order (i, f, o, g): one fused sigmoid over [0, 3Hp).
        sig = jax.nn.sigmoid(gates[:, 0:3 * Hp])
        i = sig[:, 0:Hp]
        f = sig[:, Hp:2 * Hp]
        o = sig[:, 2 * Hp:3 * Hp]
        g = jnp.tanh(gates[:, 3 * Hp:4 * Hp])
        c_new = f * c + i * g
        h_new = o * jnp.tanh(c_new)
        return h_new, c_new

    def step(t, carry):
        hf, cf, hb, cb = carry
        tb = Tc - 1 - t
        # Forward direction.
        gf = gxf_ref[t].astype(jnp.float32) + jnp.dot(
            hf.astype(jnp.bfloat16), whh_f, preferred_element_type=jnp.float32)
        hf, cf = cell(gf, cf)
        outf_ref[t] = hf.astype(outf_ref.dtype)
        # Backward direction (reversal via indexing, no data movement).
        gb = gxb_ref[tb].astype(jnp.float32) + jnp.dot(
            hb.astype(jnp.bfloat16), whh_b, preferred_element_type=jnp.float32)
        hb, cb = cell(gb, cb)
        outb_ref[tb] = hb.astype(outb_ref.dtype)
        return (hf, cf, hb, cb)

    carry = (hf_ref[...], cf_ref[...], hb_ref[...], cb_ref[...])
    if Tc % 2 == 0:
        # Manual 2x unroll: lets the scheduler overlap one direction's W_hh
        # matmul with the other direction's sigmoid/tanh tail.
        def step2(tt, c):
            return step(2 * tt + 1, step(2 * tt, c))
        carry = lax.fori_loop(0, Tc // 2, step2, carry)
    else:
        carry = lax.fori_loop(0, Tc, step, carry)
    hf, cf, hb, cb = carry
    hf_ref[...] = hf
    cf_ref[...] = cf
    hb_ref[...] = hb
    cb_ref[...] = cb


def bilstm_rec_pallas(gxf, gxb, whh_f, whh_b, t_chunk, vmem_limit):
    T, Bp, G = gxf.shape
    Hp = whh_f.shape[0]
    nc = T // t_chunk

    def fwd_map(i):
        return (i, 0, 0)

    def rev_map(i):
        return (nc - 1 - i, 0, 0)

    def const_map(i):
        return (0, 0)

    return pl.pallas_call(
        _bilstm_rec_kernel,
        grid=(nc,),
        in_specs=[pl.BlockSpec((t_chunk, Bp, G), fwd_map),
                  pl.BlockSpec((t_chunk, Bp, G), rev_map),
                  pl.BlockSpec((Hp, G), const_map),
                  pl.BlockSpec((Hp, G), const_map)],
        out_specs=(pl.BlockSpec((t_chunk, Bp, Hp), fwd_map),
                   pl.BlockSpec((t_chunk, Bp, Hp), rev_map)),
        out_shape=(jax.ShapeDtypeStruct((T, Bp, Hp), jnp.bfloat16),
                   jax.ShapeDtypeStruct((T, Bp, Hp), jnp.bfloat16)),
        scratch_shapes=[pltpu.VMEM((Bp, Hp), jnp.float32),
                        pltpu.VMEM((Bp, Hp), jnp.float32),
                        pltpu.VMEM((Bp, Hp), jnp.float32),
                        pltpu.VMEM((Bp, Hp), jnp.float32)],
        compiler_params=pltpu.CompilerParams(
            dimension_semantics=("arbitrary",), vmem_limit_bytes=vmem_limit),
    )(gxf, gxb, whh_f, whh_b)


def _fc_dual_kernel(hf_ref, hb_ref, w_ref, b_ref, o_ref):
    """Emission head: concat(hf, hb) @ fc_w^T + b, without materializing concat."""
    H = hf_ref.shape[1]
    o_ref[...] = (jnp.dot(hf_ref[...], w_ref[0:H, :], preferred_element_type=jnp.float32)
                  + jnp.dot(hb_ref[...], w_ref[H:2 * H, :], preferred_element_type=jnp.float32)
                  + b_ref[...])


def fc_dual_pallas(hf_2d, hb_2d, w_t, b_2d, tile_m, vmem_limit):
    M, H = hf_2d.shape
    K = w_t.shape[1]

    def row(i):
        return (i, 0)

    def const(i):
        return (0, 0)

    return pl.pallas_call(
        _fc_dual_kernel,
        grid=(M // tile_m,),
        in_specs=[pl.BlockSpec((tile_m, H), row),
                  pl.BlockSpec((tile_m, H), row),
                  pl.BlockSpec((2 * H, K), const),
                  pl.BlockSpec((1, K), const)],
        out_specs=pl.BlockSpec((tile_m, K), row),
        out_shape=jax.ShapeDtypeStruct((M, K), jnp.float32),
        compiler_params=pltpu.CompilerParams(
            dimension_semantics=("parallel",), vmem_limit_bytes=vmem_limit),
    )(hf_2d, hb_2d, w_t, b_2d)


def _viterbi_kernel(em_ref, start_ref, trans_t_ref, end_ref, bp_ref, score_ref):
    """CRF Viterbi forward recursion (f32), whole sequence in one invocation."""
    T, B, K = em_ref.shape
    trans_t = trans_t_ref[...]

    bp_ref[0] = jnp.zeros((B, K), jnp.int32)
    score0 = start_ref[...] + em_ref[0]                      # (B, K)

    def body(t, score):
        # cand[b, next, prev] = score[b, prev] + trans[prev, next]
        cand = score[:, None, :] + trans_t[None, :, :]       # (B, K, K)
        best = jnp.max(cand, axis=-1)                        # (B, K)
        iota = lax.broadcasted_iota(jnp.int32, cand.shape, 2)
        idx = jnp.min(jnp.where(cand >= best[..., None], iota, K), axis=-1)
        bp_ref[t] = idx
        return best + em_ref[t]

    score = lax.fori_loop(1, T, body, score0)
    score_ref[...] = score + end_ref[...]


def viterbi_pallas(emissions_tbk, start_2d, trans_t, end_2d, vmem_limit):
    T, B, K = emissions_tbk.shape
    return pl.pallas_call(
        _viterbi_kernel,
        out_shape=(jax.ShapeDtypeStruct((T, B, K), jnp.int32),
                   jax.ShapeDtypeStruct((B, K), jnp.float32)),
        compiler_params=pltpu.CompilerParams(vmem_limit_bytes=vmem_limit),
    )(emissions_tbk, start_2d, trans_t, end_2d)


# --------------------------------------------------------------------------
# Glue (embedding gather, layer stacking, Viterbi backtrace)
# --------------------------------------------------------------------------

def viterbi_backtrace(bp, final_score):
    """bp: (T, B, K) int32 backpointers, final_score: (B, K).  Returns (B, T)."""
    last = jnp.argmax(final_score, axis=-1).astype(jnp.int32)        # (B,)

    def step(tag, bp_t):
        prev = jnp.take_along_axis(bp_t, tag[:, None], axis=-1)[:, 0]
        return prev, prev

    _, prevs = lax.scan(step, last, bp[1:][::-1])
    tags = jnp.concatenate([prevs[::-1], last[None]], axis=0)        # (T, B)
    return tags.T


def model_forward(prep, token_ids):
    """Pallas implementation of LSTM.forward(token_ids, tags=None) (decode path)."""
    emb = prep["embedding"][token_ids]                     # (B, T, E) gather (JAX glue)
    B, T, E = emb.shape
    Bp = _round_up(max(B, _SUBLANE), _SUBLANE)             # sublane/packing alignment
    x = jnp.transpose(emb, (1, 0, 2))                      # time-major (T, B, E)
    x = jnp.pad(x, ((0, 0), (0, Bp - B), (0, 0))).astype(jnp.bfloat16)

    M0 = T * Bp
    tile_m = _choose_tile_m(M0)
    Mp = _round_up(M0, tile_m)
    vmem_limit = _vmem_budget_bytes()

    def pad_rows(a):
        return a if Mp == M0 else jnp.pad(a, ((0, Mp - M0), (0, 0)))

    hf_2d = hb_2d = None
    for li, (fwd_p, bwd_p) in enumerate(prep["lstm"]):
        wih_f, whh_f, b_f = fwd_p
        wih_b, whh_b, b_b = bwd_p
        Hp = whh_f.shape[0]
        Gp = 4 * Hp
        if li == 0:
            gxf, gxb = proj_single_pallas(pad_rows(x.reshape(M0, E)),
                                          wih_f, wih_b, b_f, b_b, tile_m, vmem_limit)
        else:
            gxf, gxb = proj_dual_pallas(pad_rows(hf_2d), pad_rows(hb_2d),
                                        wih_f, wih_b, b_f, b_b, tile_m, vmem_limit)
        gxf = gxf[:M0].reshape(T, Bp, Gp)
        gxb = gxb[:M0].reshape(T, Bp, Gp)
        t_chunk = _choose_t_chunk(T, Bp, Hp)
        outf, outb = bilstm_rec_pallas(gxf, gxb, whh_f, whh_b, t_chunk, vmem_limit)
        hf_2d = outf.reshape(M0, Hp)
        hb_2d = outb.reshape(M0, Hp)
        # TODO(synk): inter-layer dropout / post-LSTM dropout(0.3) are identity
        # in eval mode; training-mode dropout not implemented.

    K = prep["fc_w_t"].shape[1]
    em2d = fc_dual_pallas(pad_rows(hf_2d), pad_rows(hb_2d),
                          prep["fc_w_t"], prep["fc_b"], tile_m, vmem_limit)
    emissions = em2d[:M0].reshape(T, Bp, K)                # (T, Bp, K) f32

    bp, final = viterbi_pallas(emissions, prep["crf_start"],
                               prep["crf_trans_t"], prep["crf_end"], vmem_limit)
    tags = viterbi_backtrace(bp, final)[:B]                # (B, T)
    return tags, emissions[:, :B, :]


# --------------------------------------------------------------------------
# Parameter prep (padding / gate reorder / transpose / bf16 cast)
# --------------------------------------------------------------------------

def _reorder_pad_gate_rows(w, H, Hp):
    """(4H, D) rows in PyTorch gate order (i,f,g,o) -> (4Hp, D), order (i,f,o,g)."""
    gi, gf, gg, go = w[0:H], w[H:2 * H], w[2 * H:3 * H], w[3 * H:4 * H]
    pad = lambda m: jnp.pad(m, ((0, Hp - H), (0, 0)))
    return jnp.concatenate([pad(gi), pad(gf), pad(go), pad(gg)], axis=0)


def _reorder_pad_gate_vec(b, H, Hp):
    gi, gf, gg, go = b[0:H], b[H:2 * H], b[2 * H:3 * H], b[3 * H:4 * H]
    pad = lambda v: jnp.pad(v, (0, Hp - H))
    return jnp.concatenate([pad(gi), pad(gf), pad(go), pad(gg)], axis=0)


def _pad_concat_cols(w, H, Hp):
    """(R, 2H) -> (R, 2Hp): pad the fwd / bwd input halves independently."""
    wf = jnp.pad(w[:, 0:H], ((0, 0), (0, Hp - H)))
    wb = jnp.pad(w[:, H:2 * H], ((0, 0), (0, Hp - H)))
    return jnp.concatenate([wf, wb], axis=1)


def prepare_params(params):
    """Pad H to a lane multiple, reorder gates to (i,f,o,g), fold b_ih+b_hh,
    transpose for right-multiplication and cast MXU operands to bf16.
    Zero padding is value-preserving (padded hidden units stay exactly 0)."""
    H = params["lstm"][0][0][1].shape[1]
    Hp = _round_up(H, _LANE)
    prep = {"embedding": params["embedding"]}

    layers = []
    for li, dirs in enumerate(params["lstm"]):
        pdirs = []
        for (wih, whh, bih, bhh) in dirs:
            if li == 0:
                wih_p = _reorder_pad_gate_rows(wih, H, Hp)                        # (4Hp, E)
            else:
                wih_p = _reorder_pad_gate_rows(_pad_concat_cols(wih, H, Hp), H, Hp)  # (4Hp, 2Hp)
            whh_p = _reorder_pad_gate_rows(
                jnp.pad(whh, ((0, 0), (0, Hp - H))), H, Hp)                       # (4Hp, Hp)
            b_p = _reorder_pad_gate_vec(bih + bhh, H, Hp)                         # (4Hp,)
            pdirs.append((jnp.transpose(wih_p).astype(jnp.bfloat16),
                          jnp.transpose(whh_p).astype(jnp.bfloat16),
                          b_p.reshape(1, 4 * Hp).astype(jnp.float32)))
        layers.append(tuple(pdirs))
    prep["lstm"] = layers

    fc_w = params["fc_w"]                                                          # (K, 2H)
    K = fc_w.shape[0]
    prep["fc_w_t"] = jnp.transpose(_pad_concat_cols(fc_w, H, Hp)).astype(jnp.bfloat16)  # (2Hp, K)
    prep["fc_b"] = params["fc_b"].reshape(1, K).astype(jnp.float32)

    prep["crf_start"] = params["crf_start"].reshape(1, K).astype(jnp.float32)
    prep["crf_end"] = params["crf_end"].reshape(1, K).astype(jnp.float32)
    prep["crf_trans_t"] = jnp.transpose(params["crf_trans"]).astype(jnp.float32)
    return prep


# --------------------------------------------------------------------------
# Pure-JAX reference (same dtype policy: bf16 MXU operands, f32 accumulate)
# --------------------------------------------------------------------------

def _bilstm_dir_ref(x_tbd, wih, whh, b):
    T, B, D = x_tbd.shape
    H = whh.shape[1]
    wih_bf = wih.astype(jnp.bfloat16)
    whh_bf = whh.astype(jnp.bfloat16)
    gx = (jnp.dot(x_tbd.reshape(T * B, D), wih_bf.T,
                  preferred_element_type=jnp.float32) + b[None, :])
    gx = gx.astype(jnp.bfloat16).reshape(T, B, 4 * H)

    def step(carry, gx_t):
        h, c = carry
        gates = gx_t.astype(jnp.float32) + jnp.dot(
            h.astype(jnp.bfloat16), whh_bf.T, preferred_element_type=jnp.float32)
        i, f, g, o = jnp.split(gates, 4, axis=-1)
        i, f, o = jax.nn.sigmoid(i), jax.nn.sigmoid(f), jax.nn.sigmoid(o)
        g = jnp.tanh(g)
        c = f * c + i * g
        h = o * jnp.tanh(c)
        return (h, c), h

    init = (jnp.zeros((B, H), jnp.float32), jnp.zeros((B, H), jnp.float32))
    _, hs = lax.scan(step, init, gx)
    return hs


def model_forward_ref(params, token_ids):
    emb = params["embedding"][token_ids]
    x = jnp.transpose(emb, (1, 0, 2)).astype(jnp.bfloat16)
    for (wih_f, whh_f, bih_f, bhh_f), (wih_r, whh_r, bih_r, bhh_r) in params["lstm"]:
        out_f = _bilstm_dir_ref(x, wih_f, whh_f, bih_f + bhh_f)
        out_b = _bilstm_dir_ref(x[::-1], wih_r, whh_r, bih_r + bhh_r)[::-1]
        x = jnp.concatenate([out_f, out_b], axis=-1).astype(jnp.bfloat16)
    T, B, F = x.shape
    fc_w_bf = params["fc_w"].astype(jnp.bfloat16)
    em = (jnp.dot(x.reshape(T * B, F), fc_w_bf.T, preferred_element_type=jnp.float32)
          + params["fc_b"][None, :]).reshape(T, B, -1)

    trans = params["crf_trans"]
    score = params["crf_start"][None, :] + em[0]

    def fwd_step(score, em_t):
        cand = score[:, :, None] + trans[None, :, :]     # (B, prev, next)
        best = jnp.max(cand, axis=1)
        idx = jnp.argmax(cand, axis=1).astype(jnp.int32)
        return best + em_t, idx

    score, hist = lax.scan(fwd_step, score, em[1:])
    score = score + params["crf_end"][None, :]
    bp = jnp.concatenate(
        [jnp.zeros((1,) + hist.shape[1:], jnp.int32), hist], axis=0)
    return viterbi_backtrace(bp, score), em


# --------------------------------------------------------------------------
# Deterministic parameter init (shapes per nn.Module __init__)
# --------------------------------------------------------------------------

def init_params(key, vocab, tagset, emb_dim, hidden, num_layers):
    keys = iter(jax.random.split(key, 128))
    params = {}
    params["embedding"] = jax.random.normal(next(keys), (vocab, emb_dim), jnp.float32)

    std = 1.0 / math.sqrt(hidden)
    lstm_layers = []
    in_dim = emb_dim
    for _ in range(num_layers):
        dirs = []
        for _ in range(2):  # bidirectional
            wih = jax.random.uniform(next(keys), (4 * hidden, in_dim), jnp.float32, -std, std)
            whh = jax.random.uniform(next(keys), (4 * hidden, hidden), jnp.float32, -std, std)
            bih = jax.random.uniform(next(keys), (4 * hidden,), jnp.float32, -std, std)
            bhh = jax.random.uniform(next(keys), (4 * hidden,), jnp.float32, -std, std)
            dirs.append((wih, whh, bih, bhh))
        lstm_layers.append(tuple(dirs))
        in_dim = 2 * hidden
    params["lstm"] = lstm_layers

    fstd = 1.0 / math.sqrt(2 * hidden)
    params["fc_w"] = jax.random.uniform(next(keys), (tagset, 2 * hidden), jnp.float32, -fstd, fstd)
    params["fc_b"] = jax.random.uniform(next(keys), (tagset,), jnp.float32, -fstd, fstd)

    params["crf_start"] = jax.random.uniform(next(keys), (tagset,), jnp.float32, -0.1, 0.1)
    params["crf_end"] = jax.random.uniform(next(keys), (tagset,), jnp.float32, -0.1, 0.1)
    params["crf_trans"] = jax.random.uniform(next(keys), (tagset, tagset), jnp.float32, -0.1, 0.1)
    return params


# --------------------------------------------------------------------------

if __name__ == "__main__":
    B, T = 2, 8
    vocab_size, tagset_size = 50, 8
    embedding_dim, hidden_dim, num_layers = 16, 32, 2

    key = jax.random.PRNGKey(0)
    pkey, tkey = jax.random.split(key)
    params = init_params(pkey, vocab_size, tagset_size,
                         embedding_dim, hidden_dim, num_layers)
    prep = prepare_params(params)
    token_ids = jax.random.randint(tkey, (B, T), 0, vocab_size, dtype=jnp.int32)

    fwd = jax.jit(model_forward)
    tags, emissions = fwd(prep, token_ids)
    jax.block_until_ready((tags, emissions))

    tags_ref, em_ref = model_forward_ref(params, token_ids)
    np.testing.assert_allclose(np.asarray(emissions), np.asarray(em_ref),
                               atol=5e-3, rtol=5e-3)
    np.testing.assert_array_equal(np.asarray(tags), np.asarray(tags_ref))

    print("KERNEL_OK")
</pallas_src>

<mosaic_0001>
module attributes {stable_mosaic.version = 11 : i64} {
  func.func @_proj_single_kernel(%arg0: i32, %arg1: memref<128x16xbf16, #tpu.memory_space<vmem>>, %arg2: memref<16x512xbf16, #tpu.memory_space<vmem>>, %arg3: memref<16x512xbf16, #tpu.memory_space<vmem>>, %arg4: memref<1x512xf32, #tpu.memory_space<vmem>>, %arg5: memref<1x512xf32, #tpu.memory_space<vmem>>, %arg6: memref<128x512xbf16, #tpu.memory_space<vmem>>, %arg7: memref<128x512xbf16, #tpu.memory_space<vmem>>) attributes {dimension_semantics = [#tpu.dimension_semantics<parallel>], iteration_bounds = array<i64: 1>, scalar_prefetch = 0 : i64, scratch_operands = 0 : i64, tpu.core_type = #tpu.core_type<tc>, window_params = [{transform_indices = @transform_0, window_bounds = array<i64: 128, 16>}, {pipeline_mode = #tpu.pipeline_mode<synchronous>, transform_indices = @transform_1, window_bounds = array<i64: 16, 512>}, {pipeline_mode = #tpu.pipeline_mode<synchronous>, transform_indices = @transform_2, window_bounds = array<i64: 16, 512>}, {pipeline_mode = #tpu.pipeline_mode<synchronous>, transform_indices = @transform_3, window_bounds = array<i64: 1, 512>}, {pipeline_mode = #tpu.pipeline_mode<synchronous>, transform_indices = @transform_4, window_bounds = array<i64: 1, 512>}, {transform_indices = @transform_5, window_bounds = array<i64: 128, 512>}, {transform_indices = @transform_6, window_bounds = array<i64: 128, 512>}]} {
    %c0 = arith.constant 0 : index
    %c0_0 = arith.constant 0 : index
    %0 = vector.load %arg1[%c0, %c0_0] : memref<128x16xbf16, #tpu.memory_space<vmem>>, vector<128x16xbf16>
    %c0_1 = arith.constant 0 : index
    %c0_2 = arith.constant 0 : index
    %1 = vector.load %arg2[%c0_1, %c0_2] : memref<16x512xbf16, #tpu.memory_space<vmem>>, vector<16x512xbf16>
    %cst = arith.constant dense<0.000000e+00> : vector<128x512xf32>
    %2 = tpu.matmul %0, %1, %cst {dimension_numbers = #tpu.dot_dimension_numbers<[1], [0], [0], [1], [0, 0, 1, 1], [], []>} : vector<128x16xbf16>, vector<16x512xbf16>, vector<128x512xf32> -> vector<128x512xf32>
    %c0_3 = arith.constant 0 : index
    %c0_4 = arith.constant 0 : index
    %3 = vector.load %arg4[%c0_3, %c0_4] : memref<1x512xf32, #tpu.memory_space<vmem>>, vector<1x512xf32>
    %4 = vector.broadcast %3 : vector<1x512xf32> to vector<128x512xf32>
    %5 = arith.addf %2, %4 : vector<128x512xf32>
    %6 = arith.truncf %5 : vector<128x512xf32> to vector<128x512xbf16>
    %c0_5 = arith.constant 0 : index
    %c0_6 = arith.constant 0 : index
    %7 = vector.load %arg6[%c0_5, %c0_6] : memref<128x512xbf16, #tpu.memory_space<vmem>>, vector<128x512xbf16>
    tpu.vector_store %arg6[%c0_5, %c0_6], %6 {strides = array<i32>} : memref<128x512xbf16, #tpu.memory_space<vmem>>, vector<128x512xbf16>,
    %c0_7 = arith.constant 0 : index
    %c0_8 = arith.constant 0 : index
    %8 = vector.load %arg3[%c0_7, %c0_8] : memref<16x512xbf16, #tpu.memory_space<vmem>>, vector<16x512xbf16>
    %cst_9 = arith.constant dense<0.000000e+00> : vector<128x512xf32>
    %9 = tpu.matmul %0, %8, %cst_9 {dimension_numbers = #tpu.dot_dimension_numbers<[1], [0], [0], [1], [0, 0, 1, 1], [], []>} : vector<128x16xbf16>, vector<16x512xbf16>, vector<128x512xf32> -> vector<128x512xf32>
    %c0_10 = arith.constant 0 : index
    %c0_11 = arith.constant 0 : index
    %10 = vector.load %arg5[%c0_10, %c0_11] : memref<1x512xf32, #tpu.memory_space<vmem>>, vector<1x512xf32>
    %11 = vector.broadcast %10 : vector<1x512xf32> to vector<128x512xf32>
    %12 = arith.addf %9, %11 : vector<128x512xf32>
    %13 = arith.truncf %12 : vector<128x512xf32> to vector<128x512xbf16>
    %c0_12 = arith.constant 0 : index
    %c0_13 = arith.constant 0 : index
    %14 = vector.load %arg7[%c0_12, %c0_13] : memref<128x512xbf16, #tpu.memory_space<vmem>>, vector<128x512xbf16>
    tpu.vector_store %arg7[%c0_12, %c0_13], %13 {strides = array<i32>} : memref<128x512xbf16, #tpu.memory_space<vmem>>, vector<128x512xbf16>,
    return
  }
  func.func @transform_0(%arg0: i32) -> (i32, i32) {
    %c0_i32 = arith.constant 0 : i32
    %c0_i32_0 = arith.constant 0 : i32
    return %arg0, %c0_i32 : i32, i32
  }
  func.func @transform_1(%arg0: i32) -> (i32, i32) {
    %c0_i32 = arith.constant 0 : i32
    %c0_i32_0 = arith.constant 0 : i32
    %c0_i32_1 = arith.constant 0 : i32
    return %c0_i32, %c0_i32_0 : i32, i32
  }
  func.func @transform_2(%arg0: i32) -> (i32, i32) {
    %c0_i32 = arith.constant 0 : i32
    %c0_i32_0 = arith.constant 0 : i32
    %c0_i32_1 = arith.constant 0 : i32
    return %c0_i32, %c0_i32_0 : i32, i32
  }
  func.func @transform_3(%arg0: i32) -> (i32, i32) {
    %c0_i32 = arith.constant 0 : i32
    %c0_i32_0 = arith.constant 0 : i32
    %c0_i32_1 = arith.constant 0 : i32
    return %c0_i32, %c0_i32_0 : i32, i32
  }
  func.func @transform_4(%arg0: i32) -> (i32, i32) {
    %c0_i32 = arith.constant 0 : i32
    %c0_i32_0 = arith.constant 0 : i32
    %c0_i32_1 = arith.constant 0 : i32
    return %c0_i32, %c0_i32_0 : i32, i32
  }
  func.func @transform_5(%arg0: i32) -> (i32, i32) {
    %c0_i32 = arith.constant 0 : i32
    %c0_i32_0 = arith.constant 0 : i32
    return %arg0, %c0_i32 : i32, i32
  }
  func.func @transform_6(%arg0: i32) -> (i32, i32) {
    %c0_i32 = arith.constant 0 : i32
    %c0_i32_0 = arith.constant 0 : i32
    return %arg0, %c0_i32 : i32, i32
  }
}

module attributes {stable_mosaic.version = 11 : i64} {
  func.func @_bilstm_rec_kernel(%arg0: i32, %arg1: memref<8x16x512xbf16, #tpu.memory_space<vmem>>, %arg2: memref<8x16x512xbf16, #tpu.memory_space<vmem>>, %arg3: memref<128x512xbf16, #tpu.memory_space<vmem>>, %arg4: memref<128x512xbf16, #tpu.memory_space<vmem>>, %arg5: memref<8x16x128xbf16, #tpu.memory_space<vmem>>, %arg6: memref<8x16x128xbf16, #tpu.memory_space<vmem>>, %arg7: memref<16x128xf32, #tpu.memory_space<vmem>>, %arg8: memref<16x128xf32, #tpu.memory_space<vmem>>, %arg9: memref<16x128xf32, #tpu.memory_space<vmem>>, %arg10: memref<16x128xf32, #tpu.memory_space<vmem>>) attributes {dimension_semantics = [#tpu.dimension_semantics<arbitrary>], iteration_bounds = array<i64: 1>, scalar_prefetch = 0 : i64, scratch_operands = 4 : i64, tpu.core_type = #tpu.core_type<tc>, window_params = [{transform_indices = @transform_0, window_bounds = array<i64: 8, 16, 512>}, {transform_indices = @transform_1, window_bounds = array<i64: 8, 16, 512>}, {pipeline_mode = #tpu.pipeline_mode<synchronous>, transform_indices = @transform_2, window_bounds = array<i64: 128, 512>}, {pipeline_mode = #tpu.pipeline_mode<synchronous>, transform_indices = @transform_3, window_bounds = array<i64: 128, 512>}, {transform_indices = @transform_4, window_bounds = array<i64: 8, 16, 128>}, {transform_indices = @transform_5, window_bounds = array<i64: 8, 16, 128>}]} {
    %c0_i32 = arith.constant 0 : i32
    %0 = arith.cmpi eq, %arg0, %c0_i32 : i32
    %1 = arith.extui %0 : i1 to i32
    %c0_i32_0 = arith.constant 0 : i32
    %2 = arith.cmpi ne, %1, %c0_i32_0 : i32
    scf.if %2 {
      %cst = arith.constant 0.000000e+00 : f32
      %15 = vector.broadcast %cst : f32 to vector<16x128xf32>
      %c0_22 = arith.constant 0 : index
      %c0_23 = arith.constant 0 : index
      %16 = vector.load %arg7[%c0_22, %c0_23] : memref<16x128xf32, #tpu.memory_space<vmem>>, vector<16x128xf32>
      tpu.vector_store %arg7[%c0_22, %c0_23], %15 {strides = array<i32>} : memref<16x128xf32, #tpu.memory_space<vmem>>, vector<16x128xf32>,
      %cst_24 = arith.constant 0.000000e+00 : f32
      %17 = vector.broadcast %cst_24 : f32 to vector<16x128xf32>
      %c0_25 = arith.constant 0 : index
      %c0_26 = arith.constant 0 : index
      %18 = vector.load %arg8[%c0_25, %c0_26] : memref<16x128xf32, #tpu.memory_space<vmem>>, vector<16x128xf32>
      tpu.vector_store %arg8[%c0_25, %c0_26], %17 {strides = array<i32>} : memref<16x128xf32, #tpu.memory_space<vmem>>, vector<16x128xf32>,
      %cst_27 = arith.constant 0.000000e+00 : f32
      %19 = vector.broadcast %cst_27 : f32 to vector<16x128xf32>
      %c0_28 = arith.constant 0 : index
      %c0_29 = arith.constant 0 : index
      %20 = vector.load %arg9[%c0_28, %c0_29] : memref<16x128xf32, #tpu.memory_space<vmem>>, vector<16x128xf32>
      tpu.vector_store %arg9[%c0_28, %c0_29], %19 {strides = array<i32>} : memref<16x128xf32, #tpu.memory_space<vmem>>, vector<16x128xf32>,
      %cst_30 = arith.constant 0.000000e+00 : f32
      %21 = vector.broadcast %cst_30 : f32 to vector<16x128xf32>
      %c0_31 = arith.constant 0 : index
      %c0_32 = arith.constant 0 : index
      %22 = vector.load %arg10[%c0_31, %c0_32] : memref<16x128xf32, #tpu.memory_space<vmem>>, vector<16x128xf32>
      tpu.vector_store %arg10[%c0_31, %c0_32], %21 {strides = array<i32>} : memref<16x128xf32, #tpu.memory_space<vmem>>, vector<16x128xf32>,
    } else {
    }
    %c0 = arith.constant 0 : index
    %c0_1 = arith.constant 0 : index
    %3 = vector.load %arg3[%c0, %c0_1] : memref<128x512xbf16, #tpu.memory_space<vmem>>, vector<128x512xbf16>
    %c0_2 = arith.constant 0 : index
    %c0_3 = arith.constant 0 : index
    %4 = vector.load %arg4[%c0_2, %c0_3] : memref<128x512xbf16, #tpu.memory_space<vmem>>, vector<128x512xbf16>
    %c0_4 = arith.constant 0 : index
    %c0_5 = arith.constant 0 : index
    %5 = vector.load %arg7[%c0_4, %c0_5] : memref<16x128xf32, #tpu.memory_space<vmem>>, vector<16x128xf32>
    %c0_6 = arith.constant 0 : index
    %c0_7 = arith.constant 0 : index
    %6 = vector.load %arg8[%c0_6, %c0_7] : memref<16x128xf32, #tpu.memory_space<vmem>>, vector<16x128xf32>
    %c0_8 = arith.constant 0 : index
    %c0_9 = arith.constant 0 : index
    %7 = vector.load %arg9[%c0_8, %c0_9] : memref<16x128xf32, #tpu.memory_space<vmem>>, vector<16x128xf32>
    %c0_10 = arith.constant 0 : index
    %c0_11 = arith.constant 0 : index
    %8 = vector.load %arg10[%c0_10, %c0_11] : memref<16x128xf32, #tpu.memory_space<vmem>>, vector<16x128xf32>
    %c0_i32_12 = arith.constant 0 : i32
    %c4_i32 = arith.constant 4 : i32
    %9 = arith.addi %c0_i32_12, %c4_i32 : i32
    %c1_i32 = arith.constant 1 : i32
    %10:4 = scf.for %arg11 = %c0_i32_12 to %9 step %c1_i32 iter_args(%arg12 = %5, %arg13 = %6, %arg14 = %7, %arg15 = %8) -> (vector<16x128xf32>, vector<16x128xf32>, vector<16x128xf32>, vector<16x128xf32>)  : i32 {
      %c2_i32 = arith.constant 2 : i32
      %15 = arith.muli %c2_i32, %arg11 : i32
      %c1_i32_22 = arith.constant 1 : i32
      %16 = arith.addi %15, %c1_i32_22 : i32
      %c2_i32_23 = arith.constant 2 : i32
      %17 = arith.muli %c2_i32_23, %arg11 : i32
      %c7_i32 = arith.constant 7 : i32
      %18 = arith.subi %c7_i32, %17 : i32
      %19 = arith.index_cast %17 : i32 to index
      %c0_24 = arith.constant 0 : index
      %c0_25 = arith.constant 0 : index
      %20 = vector.load %arg1[%19, %c0_24, %c0_25] : memref<8x16x512xbf16, #tpu.memory_space<vmem>>, vector<1x16x512xbf16>
      %21 = vector.shape_cast %20 : vector<1x16x512xbf16> to vector<16x512xbf16>
      %22 = arith.extf %21 : vector<16x512xbf16> to vector<16x512xf32>
      %23 = arith.truncf %arg12 : vector<16x128xf32> to vector<16x128xbf16>
      %cst = arith.constant dense<0.000000e+00> : vector<16x512xf32>
      %24 = tpu.matmul %23, %3, %cst {dimension_numbers = #tpu.dot_dimension_numbers<[1], [0], [0], [1], [0, 0, 1, 1], [], []>} : vector<16x128xbf16>, vector<128x512xbf16>, vector<16x512xf32> -> vector<16x512xf32>
      %25 = arith.addf %22, %24 : vector<16x512xf32>
      %26 = vector.extract_strided_slice %25 {offsets = [0, 0], sizes = [16, 384], strides = [1, 1]} : vector<16x512xf32> to vector<16x384xf32>
      %27 = arith.negf %26 : vector<16x384xf32>
      %28 = math.exp %27 : vector<16x384xf32>
      %cst_26 = arith.constant 1.000000e+00 : f32
      %29 = vector.broadcast %cst_26 : f32 to vector<16x384xf32>
      %30 = arith.addf %29, %28 : vector<16x384xf32>
      %31 = arith.divf %29, %30 : vector<16x384xf32>
      %32 = vector.extract_strided_slice %31 {offsets = [0, 0], sizes = [16, 128], strides = [1, 1]} : vector<16x384xf32> to vector<16x128xf32>
      %33 = vector.extract_strided_slice %31 {offsets = [0, 128], sizes = [16, 128], strides = [1, 1]} : vector<16x384xf32> to vector<16x128xf32>
      %34 = vector.extract_strided_slice %31 {offsets = [0, 256], sizes = [16, 128], strides = [1, 1]} : vector<16x384xf32> to vector<16x128xf32>
      %35 = vector.extract_strided_slice %25 {offsets = [0, 384], sizes = [16, 128], strides = [1, 1]} : vector<16x512xf32> to vector<16x128xf32>
      %36 = math.tanh %35 : vector<16x128xf32>
      %37 = arith.mulf %33, %arg13 : vector<16x128xf32>
      %38 = arith.mulf %32, %36 : vector<16x128xf32>
      %39 = arith.addf %37, %38 : vector<16x128xf32>
      %40 = math.tanh %39 : vector<16x128xf32>
      %41 = arith.mulf %34, %40 : vector<16x128xf32>
      %42 = arith.truncf %41 : vector<16x128xf32> to vector<16x128xbf16>
      %43 = arith.index_cast %17 : i32 to index
      %c0_27 = arith.constant 0 : index
      %c0_28 = arith.constant 0 : index
      %44 = vector.load %arg5[%43, %c0_27, %c0_28] : memref<8x16x128xbf16, #tpu.memory_space<vmem>>, vector<1x16x128xbf16>
      %45 = vector.shape_cast %44 : vector<1x16x128xbf16> to vector<16x128xbf16>
      %46 = vector.shape_cast %42 : vector<16x128xbf16> to vector<1x16x128xbf16>
      tpu.vector_store %arg5[%43, %c0_27, %c0_28], %46 {strides = array<i32>} : memref<8x16x128xbf16, #tpu.memory_space<vmem>>, vector<1x16x128xbf16>,
      %47 = arith.index_cast %18 : i32 to index
      %c0_29 = arith.constant 0 : index
      %c0_30 = arith.constant 0 : index
      %48 = vector.load %arg2[%47, %c0_29, %c0_30] : memref<8x16x512xbf16, #tpu.memory_space<vmem>>, vector<1x16x512xbf16>
      %49 = vector.shape_cast %48 : vector<1x16x512xbf16> to vector<16x512xbf16>
      %50 = arith.extf %49 : vector<16x512xbf16> to vector<16x512xf32>
      %51 = arith.truncf %arg14 : vector<16x128xf32> to vector<16x128xbf16>
      %cst_31 = arith.constant dense<0.000000e+00> : vector<16x512xf32>
      %52 = tpu.matmul %51, %4, %cst_31 {dimension_numbers = #tpu.dot_dimension_numbers<[1], [0], [0], [1], [0, 0, 1, 1], [], []>} : vector<16x128xbf16>, vector<128x512xbf16>, vector<16x512xf32> -> vector<16x512xf32>
      %53 = arith.addf %50, %52 : vector<16x512xf32>
      %54 = vector.extract_strided_slice %53 {offsets = [0, 0], sizes = [16, 384], strides = [1, 1]} : vector<16x512xf32> to vector<16x384xf32>
      %55 = arith.negf %54 : vector<16x384xf32>
      %56 = math.exp %55 : vector<16x384xf32>
      %cst_32 = arith.constant 1.000000e+00 : f32
      %57 = vector.broadcast %cst_32 : f32 to vector<16x384xf32>
      %58 = arith.addf %57, %56 : vector<16x384xf32>
      %59 = arith.divf %57, %58 : vector<16x384xf32>
      %60 = vector.extract_strided_slice %59 {offsets = [0, 0], sizes = [16, 128], strides = [1, 1]} : vector<16x384xf32> to vector<16x128xf32>
      %61 = vector.extract_strided_slice %59 {offsets = [0, 128], sizes = [16, 128], strides = [1, 1]} : vector<16x384xf32> to vector<16x128xf32>
      %62 = vector.extract_strided_slice %59 {offsets = [0, 256], sizes = [16, 128], strides = [1, 1]} : vector<16x384xf32> to vector<16x128xf32>
      %63 = vector.extract_strided_slice %53 {offsets = [0, 384], sizes = [16, 128], strides = [1, 1]} : vector<16x512xf32> to vector<16x128xf32>
      %64 = math.tanh %63 : vector<16x128xf32>
      %65 = arith.mulf %61, %arg15 : vector<16x128xf32>
      %66 = arith.mulf %60, %64 : vector<16x128xf32>
      %67 = arith.addf %65, %66 : vector<16x128xf32>
      %68 = math.tanh %67 : vector<16x128xf32>
      %69 = arith.mulf %62, %68 : vector<16x128xf32>
      %70 = arith.truncf %69 : vector<16x128xf32> to vector<16x128xbf16>
      %71 = arith.index_cast %18 : i32 to index
      %c0_33 = arith.constant 0 : index
      %c0_34 = arith.constant 0 : index
      %72 = vector.load %arg6[%71, %c0_33, %c0_34] : memref<8x16x128xbf16, #tpu.memory_space<vmem>>, vector<1x16x128xbf16>
      %73 = vector.shape_cast %72 : vector<1x16x128xbf16> to vector<16x128xbf16>
      %74 = vector.shape_cast %70 : vector<16x128xbf16> to vector<1x16x128xbf16>
      tpu.vector_store %arg6[%71, %c0_33, %c0_34], %74 {strides = array<i32>} : memref<8x16x128xbf16, #tpu.memory_space<vmem>>, vector<1x16x128xbf16>,
      %c7_i32_35 = arith.constant 7 : i32
      %75 = arith.subi %c7_i32_35, %16 : i32
      %76 = arith.index_cast %16 : i32 to index
      %c0_36 = arith.constant 0 : index
      %c0_37 = arith.constant 0 : index
      %77 = vector.load %arg1[%76, %c0_36, %c0_37] : memref<8x16x512xbf16, #tpu.memory_space<vmem>>, vector<1x16x512xbf16>
      %78 = vector.shape_cast %77 : vector<1x16x512xbf16> to vector<16x512xbf16>
      %79 = arith.extf %78 : vector<16x512xbf16> to vector<16x512xf32>
      %80 = arith.truncf %41 : vector<16x128xf32> to vector<16x128xbf16>
      %cst_38 = arith.constant dense<0.000000e+00> : vector<16x512xf32>
      %81 = tpu.matmul %80, %3, %cst_38 {dimension_numbers = #tpu.dot_dimension_numbers<[1], [0], [0], [1], [0, 0, 1, 1], [], []>} : vector<16x128xbf16>, vector<128x512xbf16>, vector<16x512xf32> -> vector<16x512xf32>
      %82 = arith.addf %79, %81 : vector<16x512xf32>
      %83 = vector.extract_strided_slice %82 {offsets = [0, 0], sizes = [16, 384], strides = [1, 1]} : vector<16x512xf32> to vector<16x384xf32>
      %84 = arith.negf %83 : vector<16x384xf32>
      %85 = math.exp %84 : vector<16x384xf32>
      %cst_39 = arith.constant 1.000000e+00 : f32
      %86 = vector.broadcast %cst_39 : f32 to vector<16x384xf32>
      %87 = arith.addf %86, %85 : vector<16x384xf32>
      %88 = arith.divf %86, %87 : vector<16x384xf32>
      %89 = vector.extract_strided_slice %88 {offsets = [0, 0], sizes = [16, 128], strides = [1, 1]} : vector<16x384xf32> to vector<16x128xf32>
      %90 = vector.extract_strided_slice %88 {offsets = [0, 128], sizes = [16, 128], strides = [1, 1]} : vector<16x384xf32> to vector<16x128xf32>
      %91 = vector.extract_strided_slice %88 {offsets = [0, 256], sizes = [16, 128], strides = [1, 1]} : vector<16x384xf32> to vector<16x128xf32>
      %92 = vector.extract_strided_slice %82 {offsets = [0, 384], sizes = [16, 128], strides = [1, 1]} : vector<16x512xf32> to vector<16x128xf32>
      %93 = math.tanh %92 : vector<16x128xf32>
      %94 = arith.mulf %90, %39 : vector<16x128xf32>
      %95 = arith.mulf %89, %93 : vector<16x128xf32>
      %96 = arith.addf %94, %95 : vector<16x128xf32>
      %97 = math.tanh %96 : vector<16x128xf32>
      %98 = arith.mulf %91, %97 : vector<16x128xf32>
      %99 = arith.truncf %98 : vector<16x128xf32> to vector<16x128xbf16>
      %100 = arith.index_cast %16 : i32 to index
      %c0_40 = arith.constant 0 : index
      %c0_41 = arith.constant 0 : index
      %101 = vector.load %arg5[%100, %c0_40, %c0_41] : memref<8x16x128xbf16, #tpu.memory_space<vmem>>, vector<1x16x128xbf16>
      %102 = vector.shape_cast %101 : vector<1x16x128xbf16> to vector<16x128xbf16>
      %103 = vector.shape_cast %99 : vector<16x128xbf16> to vector<1x16x128xbf16>
      tpu.vector_store %arg5[%100, %c0_40, %c0_41], %103 {strides = array<i32>} : memref<8x16x128xbf16, #tpu.memory_space<vmem>>, vector<1x16x128xbf16>,
      %104 = arith.index_cast %75 : i32 to index
      %c0_42 = arith.constant 0 : index
      %c0_43 = arith.constant 0 : index
      %105 = vector.load %arg2[%104, %c0_42, %c0_43] : memref<8x16x512xbf16, #tpu.memory_space<vmem>>, vector<1x16x512xbf16>
      %106 = vector.shape_cast %105 : vector<1x16x512xbf16> to vector<16x512xbf16>
      %107 = arith.extf %106 : vector<16x512xbf16> to vector<16x512xf32>
      %108 = arith.truncf %69 : vector<16x128xf32> to vector<16x128xbf16>
      %cst_44 = arith.constant dense<0.000000e+00> : vector<16x512xf32>
      %109 = tpu.matmul %108, %4, %cst_44 {dimension_numbers = #tpu.dot_dimension_numbers<[1], [0], [0], [1], [0, 0, 1, 1], [], []>} : vector<16x128xbf16>, vector<128x512xbf16>, vector<16x512xf32> -> vector<16x512xf32>
      %110 = arith.addf %107, %109 : vector<16x512xf32>
      %111 = vector.extract_strided_slice %110 {offsets = [0, 0], sizes = [16, 384], strides = [1, 1]} : vector<16x512xf32> to vector<16x384xf32>
      %112 = arith.negf %111 : vector<16x384xf32>
      %113 = math.exp %112 : vector<16x384xf32>
      %cst_45 = arith.constant 1.000000e+00 : f32
      %114 = vector.broadcast %cst_45 : f32 to vector<16x384xf32>
      %115 = arith.addf %114, %113 : vector<16x384xf32>
      %116 = arith.divf %114, %115 : vector<16x384xf32>
      %117 = vector.extract_strided_slice %116 {offsets = [0, 0], sizes = [16, 128], strides = [1, 1]} : vector<16x384xf32> to vector<16x128xf32>
      %118 = vector.extract_strided_slice %116 {offsets = [0, 128], sizes = [16, 128], strides = [1, 1]} : vector<16x384xf32> to vector<16x128xf32>
      %119 = vector.extract_strided_slice %116 {offsets = [0, 256], sizes = [16, 128], strides = [1, 1]} : vector<16x384xf32> to vector<16x128xf32>
      %120 = vector.extract_strided_slice %110 {offsets = [0, 384], sizes = [16, 128], strides = [1, 1]} : vector<16x512xf32> to vector<16x128xf32>
      %121 = math.tanh %120 : vector<16x128xf32>
      %122 = arith.mulf %118, %67 : vector<16x128xf32>
      %123 = arith.mulf %117, %121 : vector<16x128xf32>
      %124 = arith.addf %122, %123 : vector<16x128xf32>
      %125 = math.tanh %124 : vector<16x128xf32>
      %126 = arith.mulf %119, %125 : vector<16x128xf32>
      %127 = arith.truncf %126 : vector<16x128xf32> to vector<16x128xbf16>
      %128 = arith.index_cast %75 : i32 to index
      %c0_46 = arith.constant 0 : index
      %c0_47 = arith.constant 0 : index
      %129 = vector.load %arg6[%128, %c0_46, %c0_47] : memref<8x16x128xbf16, #tpu.memory_space<vmem>>, vector<1x16x128xbf16>
      %130 = vector.shape_cast %129 : vector<1x16x128xbf16> to vector<16x128xbf16>
      %131 = vector.shape_cast %127 : vector<16x128xbf16> to vector<1x16x128xbf16>
      tpu.vector_store %arg6[%128, %c0_46, %c0_47], %131 {strides = array<i32>} : memref<8x16x128xbf16, #tpu.memory_space<vmem>>, vector<1x16x128xbf16>,
      scf.yield %98, %96, %126, %124 : vector<16x128xf32>, vector<16x128xf32>, vector<16x128xf32>, vector<16x128xf32>
    }
    %c4_i32_13 = arith.constant 4 : i32
    %c0_14 = arith.constant 0 : index
    %c0_15 = arith.constant 0 : index
    %11 = vector.load %arg7[%c0_14, %c0_15] : memref<16x128xf32, #tpu.memory_space<vmem>>, vector<16x128xf32>
    tpu.vector_store %arg7[%c0_14, %c0_15], %10#0 {strides = array<i32>} : memref<16x128xf32, #tpu.memory_space<vmem>>, vector<16x128xf32>,
    %c0_16 = arith.constant 0 : index
    %c0_17 = arith.constant 0 : index
    %12 = vector.load %arg8[%c0_16, %c0_17] : memref<16x128xf32, #tpu.memory_space<vmem>>, vector<16x128xf32>
    tpu.vector_store %arg8[%c0_16, %c0_17], %10#1 {strides = array<i32>} : memref<16x128xf32, #tpu.memory_space<vmem>>, vector<16x128xf32>,
    %c0_18 = arith.constant 0 : index
    %c0_19 = arith.constant 0 : index
    %13 = vector.load %arg9[%c0_18, %c0_19] : memref<16x128xf32, #tpu.memory_space<vmem>>, vector<16x128xf32>
    tpu.vector_store %arg9[%c0_18, %c0_19], %10#2 {strides = array<i32>} : memref<16x128xf32, #tpu.memory_space<vmem>>, vector<16x128xf32>,
    %c0_20 = arith.constant 0 : index
    %c0_21 = arith.constant 0 : index
    %14 = vector.load %arg10[%c0_20, %c0_21] : memref<16x128xf32, #tpu.memory_space<vmem>>, vector<16x128xf32>
    tpu.vector_store %arg10[%c0_20, %c0_21], %10#3 {strides = array<i32>} : memref<16x128xf32, #tpu.memory_space<vmem>>, vector<16x128xf32>,
    return
  }
  func.func @transform_0(%arg0: i32) -> (i32, i32, i32) {
    %c0_i32 = arith.constant 0 : i32
    %c0_i32_0 = arith.constant 0 : i32
    %c0_i32_1 = arith.constant 0 : i32
    return %arg0, %c0_i32, %c0_i32_0 : i32, i32, i32
  }
  func.func @transform_1(%arg0: i32) -> (i32, i32, i32) {
    %c0_i32 = arith.constant 0 : i32
    %0 = arith.subi %c0_i32, %arg0 : i32
    %c0_i32_0 = arith.constant 0 : i32
    %c0_i32_1 = arith.constant 0 : i32
    %c0_i32_2 = arith.constant 0 : i32
    return %0, %c0_i32_0, %c0_i32_1 : i32, i32, i32
  }
  func.func @transform_2(%arg0: i32) -> (i32, i32) {
    %c0_i32 = arith.constant 0 : i32
    %c0_i32_0 = arith.constant 0 : i32
    %c0_i32_1 = arith.constant 0 : i32
    return %c0_i32, %c0_i32_0 : i32, i32
  }
  func.func @transform_3(%arg0: i32) -> (i32, i32) {
    %c0_i32 = arith.constant 0 : i32
    %c0_i32_0 = arith.constant 0 : i32
    %c0_i32_1 = arith.constant 0 : i32
    return %c0_i32, %c0_i32_0 : i32, i32
  }
  func.func @transform_4(%arg0: i32) -> (i32, i32, i32) {
    %c0_i32 = arith.constant 0 : i32
    %c0_i32_0 = arith.constant 0 : i32
    %c0_i32_1 = arith.constant 0 : i32
    return %arg0, %c0_i32, %c0_i32_0 : i32, i32, i32
  }
  func.func @transform_5(%arg0: i32) -> (i32, i32, i32) {
    %c0_i32 = arith.constant 0 : i32
    %0 = arith.subi %c0_i32, %arg0 : i32
    %c0_i32_0 = arith.constant 0 : i32
    %c0_i32_1 = arith.constant 0 : i32
    %c0_i32_2 = arith.constant 0 : i32
    return %0, %c0_i32_0, %c0_i32_1 : i32, i32, i32
  }
}

module attributes {stable_mosaic.version = 11 : i64} {
  func.func @_proj_dual_kernel(%arg0: i32, %arg1: memref<128x128xbf16, #tpu.memory_space<vmem>>, %arg2: memref<128x128xbf16, #tpu.memory_space<vmem>>, %arg3: memref<256x512xbf16, #tpu.memory_space<vmem>>, %arg4: memref<256x512xbf16, #tpu.memory_space<vmem>>, %arg5: memref<1x512xf32, #tpu.memory_space<vmem>>, %arg6: memref<1x512xf32, #tpu.memory_space<vmem>>, %arg7: memref<128x512xbf16, #tpu.memory_space<vmem>>, %arg8: memref<128x512xbf16, #tpu.memory_space<vmem>>) attributes {dimension_semantics = [#tpu.dimension_semantics<parallel>], iteration_bounds = array<i64: 1>, scalar_prefetch = 0 : i64, scratch_operands = 0 : i64, tpu.core_type = #tpu.core_type<tc>, window_params = [{transform_indices = @transform_0, window_bounds = array<i64: 128, 128>}, {transform_indices = @transform_1, window_bounds = array<i64: 128, 128>}, {pipeline_mode = #tpu.pipeline_mode<synchronous>, transform_indices = @transform_2, window_bounds = array<i64: 256, 512>}, {pipeline_mode = #tpu.pipeline_mode<synchronous>, transform_indices = @transform_3, window_bounds = array<i64: 256, 512>}, {pipeline_mode = #tpu.pipeline_mode<synchronous>, transform_indices = @transform_4, window_bounds = array<i64: 1, 512>}, {pipeline_mode = #tpu.pipeline_mode<synchronous>, transform_indices = @transform_5, window_bounds = array<i64: 1, 512>}, {transform_indices = @transform_6, window_bounds = array<i64: 128, 512>}, {transform_indices = @transform_7, window_bounds = array<i64: 128, 512>}]} {
    %c0 = arith.constant 0 : index
    %c0_0 = arith.constant 0 : index
    %0 = vector.load %arg1[%c0, %c0_0] : memref<128x128xbf16, #tpu.memory_space<vmem>>, vector<128x128xbf16>
    %c0_1 = arith.constant 0 : index
    %c0_2 = arith.constant 0 : index
    %1 = vector.load %arg2[%c0_1, %c0_2] : memref<128x128xbf16, #tpu.memory_space<vmem>>, vector<128x128xbf16>
    %c0_3 = arith.constant 0 : index
    %c0_4 = arith.constant 0 : index
    %2 = vector.load %arg3[%c0_3, %c0_4] : memref<256x512xbf16, #tpu.memory_space<vmem>>, vector<128x512xbf16>
    %cst = arith.constant dense<0.000000e+00> : vector<128x512xf32>
    %3 = tpu.matmul %0, %2, %cst {dimension_numbers = #tpu.dot_dimension_numbers<[1], [0], [0], [1], [0, 0, 1, 1], [], []>} : vector<128x128xbf16>, vector<128x512xbf16>, vector<128x512xf32> -> vector<128x512xf32>
    %c128 = arith.constant 128 : index
    %c0_5 = arith.constant 0 : index
    %4 = vector.load %arg3[%c128, %c0_5] : memref<256x512xbf16, #tpu.memory_space<vmem>>, vector<128x512xbf16>
    %cst_6 = arith.constant dense<0.000000e+00> : vector<128x512xf32>
    %5 = tpu.matmul %1, %4, %cst_6 {dimension_numbers = #tpu.dot_dimension_numbers<[1], [0], [0], [1], [0, 0, 1, 1], [], []>} : vector<128x128xbf16>, vector<128x512xbf16>, vector<128x512xf32> -> vector<128x512xf32>
    %6 = arith.addf %3, %5 : vector<128x512xf32>
    %c0_7 = arith.constant 0 : index
    %c0_8 = arith.constant 0 : index
    %7 = vector.load %arg5[%c0_7, %c0_8] : memref<1x512xf32, #tpu.memory_space<vmem>>, vector<1x512xf32>
    %8 = vector.broadcast %7 : vector<1x512xf32> to vector<128x512xf32>
    %9 = arith.addf %6, %8 : vector<128x512xf32>
    %10 = arith.truncf %9 : vector<128x512xf32> to vector<128x512xbf16>
    %c0_9 = arith.constant 0 : index
    %c0_10 = arith.constant 0 : index
    %11 = vector.load %arg7[%c0_9, %c0_10] : memref<128x512xbf16, #tpu.memory_space<vmem>>, vector<128x512xbf16>
    tpu.vector_store %arg7[%c0_9, %c0_10], %10 {strides = array<i32>} : memref<128x512xbf16, #tpu.memory_space<vmem>>, vector<128x512xbf16>,
    %c0_11 = arith.constant 0 : index
    %c0_12 = arith.constant 0 : index
    %12 = vector.load %arg4[%c0_11, %c0_12] : memref<256x512xbf16, #tpu.memory_space<vmem>>, vector<128x512xbf16>
    %cst_13 = arith.constant dense<0.000000e+00> : vector<128x512xf32>
    %13 = tpu.matmul %0, %12, %cst_13 {dimension_numbers = #tpu.dot_dimension_numbers<[1], [0], [0], [1], [0, 0, 1, 1], [], []>} : vector<128x128xbf16>, vector<128x512xbf16>, vector<128x512xf32> -> vector<128x512xf32>
    %c128_14 = arith.constant 128 : index
    %c0_15 = arith.constant 0 : index
    %14 = vector.load %arg4[%c128_14, %c0_15] : memref<256x512xbf16, #tpu.memory_space<vmem>>, vector<128x512xbf16>
    %cst_16 = arith.constant dense<0.000000e+00> : vector<128x512xf32>
    %15 = tpu.matmul %1, %14, %cst_16 {dimension_numbers = #tpu.dot_dimension_numbers<[1], [0], [0], [1], [0, 0, 1, 1], [], []>} : vector<128x128xbf16>, vector<128x512xbf16>, vector<128x512xf32> -> vector<128x512xf32>
    %16 = arith.addf %13, %15 : vector<128x512xf32>
    %c0_17 = arith.constant 0 : index
    %c0_18 = arith.constant 0 : index
    %17 = vector.load %arg6[%c0_17, %c0_18] : memref<1x512xf32, #tpu.memory_space<vmem>>, vector<1x512xf32>
    %18 = vector.broadcast %17 : vector<1x512xf32> to vector<128x512xf32>
    %19 = arith.addf %16, %18 : vector<128x512xf32>
    %20 = arith.truncf %19 : vector<128x512xf32> to vector<128x512xbf16>
    %c0_19 = arith.constant 0 : index
    %c0_20 = arith.constant 0 : index
    %21 = vector.load %arg8[%c0_19, %c0_20] : memref<128x512xbf16, #tpu.memory_space<vmem>>, vector<128x512xbf16>
    tpu.vector_store %arg8[%c0_19, %c0_20], %20 {strides = array<i32>} : memref<128x512xbf16, #tpu.memory_space<vmem>>, vector<128x512xbf16>,
    return
  }
  func.func @transform_0(%arg0: i32) -> (i32, i32) {
    %c0_i32 = arith.constant 0 : i32
    %c0_i32_0 = arith.constant 0 : i32
    return %arg0, %c0_i32 : i32, i32
  }
  func.func @transform_1(%arg0: i32) -> (i32, i32) {
    %c0_i32 = arith.constant 0 : i32
    %c0_i32_0 = arith.constant 0 : i32
    return %arg0, %c0_i32 : i32, i32
  }
  func.func @transform_2(%arg0: i32) -> (i32, i32) {
    %c0_i32 = arith.constant 0 : i32
    %c0_i32_0 = arith.constant 0 : i32
    %c0_i32_1 = arith.constant 0 : i32
    return %c0_i32, %c0_i32_0 : i32, i32
  }
  func.func @transform_3(%arg0: i32) -> (i32, i32) {
    %c0_i32 = arith.constant 0 : i32
    %c0_i32_0 = arith.constant 0 : i32
    %c0_i32_1 = arith.constant 0 : i32
    return %c0_i32, %c0_i32_0 : i32, i32
  }
  func.func @transform_4(%arg0: i32) -> (i32, i32) {
    %c0_i32 = arith.constant 0 : i32
    %c0_i32_0 = arith.constant 0 : i32
    %c0_i32_1 = arith.constant 0 : i32
    return %c0_i32, %c0_i32_0 : i32, i32
  }
  func.func @transform_5(%arg0: i32) -> (i32, i32) {
    %c0_i32 = arith.constant 0 : i32
    %c0_i32_0 = arith.constant 0 : i32
    %c0_i32_1 = arith.constant 0 : i32
    return %c0_i32, %c0_i32_0 : i32, i32
  }
  func.func @transform_6(%arg0: i32) -> (i32, i32) {
    %c0_i32 = arith.constant 0 : i32
    %c0_i32_0 = arith.constant 0 : i32
    return %arg0, %c0_i32 : i32, i32
  }
  func.func @transform_7(%arg0: i32) -> (i32, i32) {
    %c0_i32 = arith.constant 0 : i32
    %c0_i32_0 = arith.constant 0 : i32
    return %arg0, %c0_i32 : i32, i32
  }
}

module attributes {stable_mosaic.version = 11 : i64} {
  func.func @_bilstm_rec_kernel(%arg0: i32, %arg1: memref<8x16x512xbf16, #tpu.memory_space<vmem>>, %arg2: memref<8x16x512xbf16, #tpu.memory_space<vmem>>, %arg3: memref<128x512xbf16, #tpu.memory_space<vmem>>, %arg4: memref<128x512xbf16, #tpu.memory_space<vmem>>, %arg5: memref<8x16x128xbf16, #tpu.memory_space<vmem>>, %arg6: memref<8x16x128xbf16, #tpu.memory_space<vmem>>, %arg7: memref<16x128xf32, #tpu.memory_space<vmem>>, %arg8: memref<16x128xf32, #tpu.memory_space<vmem>>, %arg9: memref<16x128xf32, #tpu.memory_space<vmem>>, %arg10: memref<16x128xf32, #tpu.memory_space<vmem>>) attributes {dimension_semantics = [#tpu.dimension_semantics<arbitrary>], iteration_bounds = array<i64: 1>, scalar_prefetch = 0 : i64, scratch_operands = 4 : i64, tpu.core_type = #tpu.core_type<tc>, window_params = [{transform_indices = @transform_0, window_bounds = array<i64: 8, 16, 512>}, {transform_indices = @transform_1, window_bounds = array<i64: 8, 16, 512>}, {pipeline_mode = #tpu.pipeline_mode<synchronous>, transform_indices = @transform_2, window_bounds = array<i64: 128, 512>}, {pipeline_mode = #tpu.pipeline_mode<synchronous>, transform_indices = @transform_3, window_bounds = array<i64: 128, 512>}, {transform_indices = @transform_4, window_bounds = array<i64: 8, 16, 128>}, {transform_indices = @transform_5, window_bounds = array<i64: 8, 16, 128>}]} {
    %c0_i32 = arith.constant 0 : i32
    %0 = arith.cmpi eq, %arg0, %c0_i32 : i32
    %1 = arith.extui %0 : i1 to i32
    %c0_i32_0 = arith.constant 0 : i32
    %2 = arith.cmpi ne, %1, %c0_i32_0 : i32
    scf.if %2 {
      %cst = arith.constant 0.000000e+00 : f32
      %15 = vector.broadcast %cst : f32 to vector<16x128xf32>
      %c0_22 = arith.constant 0 : index
      %c0_23 = arith.constant 0 : index
      %16 = vector.load %arg7[%c0_22, %c0_23] : memref<16x128xf32, #tpu.memory_space<vmem>>, vector<16x128xf32>
      tpu.vector_store %arg7[%c0_22, %c0_23], %15 {strides = array<i32>} : memref<16x128xf32, #tpu.memory_space<vmem>>, vector<16x128xf32>,
      %cst_24 = arith.constant 0.000000e+00 : f32
      %17 = vector.broadcast %cst_24 : f32 to vector<16x128xf32>
      %c0_25 = arith.constant 0 : index
      %c0_26 = arith.constant 0 : index
      %18 = vector.load %arg8[%c0_25, %c0_26] : memref<16x128xf32, #tpu.memory_space<vmem>>, vector<16x128xf32>
      tpu.vector_store %arg8[%c0_25, %c0_26], %17 {strides = array<i32>} : memref<16x128xf32, #tpu.memory_space<vmem>>, vector<16x128xf32>,
      %cst_27 = arith.constant 0.000000e+00 : f32
      %19 = vector.broadcast %cst_27 : f32 to vector<16x128xf32>
      %c0_28 = arith.constant 0 : index
      %c0_29 = arith.constant 0 : index
      %20 = vector.load %arg9[%c0_28, %c0_29] : memref<16x128xf32, #tpu.memory_space<vmem>>, vector<16x128xf32>
      tpu.vector_store %arg9[%c0_28, %c0_29], %19 {strides = array<i32>} : memref<16x128xf32, #tpu.memory_space<vmem>>, vector<16x128xf32>,
      %cst_30 = arith.constant 0.000000e+00 : f32
      %21 = vector.broadcast %cst_30 : f32 to vector<16x128xf32>
      %c0_31 = arith.constant 0 : index
      %c0_32 = arith.constant 0 : index
      %22 = vector.load %arg10[%c0_31, %c0_32] : memref<16x128xf32, #tpu.memory_space<vmem>>, vector<16x128xf32>
      tpu.vector_store %arg10[%c0_31, %c0_32], %21 {strides = array<i32>} : memref<16x128xf32, #tpu.memory_space<vmem>>, vector<16x128xf32>,
    } else {
    }
    %c0 = arith.constant 0 : index
    %c0_1 = arith.constant 0 : index
    %3 = vector.load %arg3[%c0, %c0_1] : memref<128x512xbf16, #tpu.memory_space<vmem>>, vector<128x512xbf16>
    %c0_2 = arith.constant 0 : index
    %c0_3 = arith.constant 0 : index
    %4 = vector.load %arg4[%c0_2, %c0_3] : memref<128x512xbf16, #tpu.memory_space<vmem>>, vector<128x512xbf16>
    %c0_4 = arith.constant 0 : index
    %c0_5 = arith.constant 0 : index
    %5 = vector.load %arg7[%c0_4, %c0_5] : memref<16x128xf32, #tpu.memory_space<vmem>>, vector<16x128xf32>
    %c0_6 = arith.constant 0 : index
    %c0_7 = arith.constant 0 : index
    %6 = vector.load %arg8[%c0_6, %c0_7] : memref<16x128xf32, #tpu.memory_space<vmem>>, vector<16x128xf32>
    %c0_8 = arith.constant 0 : index
    %c0_9 = arith.constant 0 : index
    %7 = vector.load %arg9[%c0_8, %c0_9] : memref<16x128xf32, #tpu.memory_space<vmem>>, vector<16x128xf32>
    %c0_10 = arith.constant 0 : index
    %c0_11 = arith.constant 0 : index
    %8 = vector.load %arg10[%c0_10, %c0_11] : memref<16x128xf32, #tpu.memory_space<vmem>>, vector<16x128xf32>
    %c0_i32_12 = arith.constant 0 : i32
    %c4_i32 = arith.constant 4 : i32
    %9 = arith.addi %c0_i32_12, %c4_i32 : i32
    %c1_i32 = arith.constant 1 : i32
    %10:4 = scf.for %arg11 = %c0_i32_12 to %9 step %c1_i32 iter_args(%arg12 = %5, %arg13 = %6, %arg14 = %7, %arg15 = %8) -> (vector<16x128xf32>, vector<16x128xf32>, vector<16x128xf32>, vector<16x128xf32>)  : i32 {
      %c2_i32 = arith.constant 2 : i32
      %15 = arith.muli %c2_i32, %arg11 : i32
      %c1_i32_22 = arith.constant 1 : i32
      %16 = arith.addi %15, %c1_i32_22 : i32
      %c2_i32_23 = arith.constant 2 : i32
      %17 = arith.muli %c2_i32_23, %arg11 : i32
      %c7_i32 = arith.constant 7 : i32
      %18 = arith.subi %c7_i32, %17 : i32
      %19 = arith.index_cast %17 : i32 to index
      %c0_24 = arith.constant 0 : index
      %c0_25 = arith.constant 0 : index
      %20 = vector.load %arg1[%19, %c0_24, %c0_25] : memref<8x16x512xbf16, #tpu.memory_space<vmem>>, vector<1x16x512xbf16>
      %21 = vector.shape_cast %20 : vector<1x16x512xbf16> to vector<16x512xbf16>
      %22 = arith.extf %21 : vector<16x512xbf16> to vector<16x512xf32>
      %23 = arith.truncf %arg12 : vector<16x128xf32> to vector<16x128xbf16>
      %cst = arith.constant dense<0.000000e+00> : vector<16x512xf32>
      %24 = tpu.matmul %23, %3, %cst {dimension_numbers = #tpu.dot_dimension_numbers<[1], [0], [0], [1], [0, 0, 1, 1], [], []>} : vector<16x128xbf16>, vector<128x512xbf16>, vector<16x512xf32> -> vector<16x512xf32>
      %25 = arith.addf %22, %24 : vector<16x512xf32>
      %26 = vector.extract_strided_slice %25 {offsets = [0, 0], sizes = [16, 384], strides = [1, 1]} : vector<16x512xf32> to vector<16x384xf32>
      %27 = arith.negf %26 : vector<16x384xf32>
      %28 = math.exp %27 : vector<16x384xf32>
      %cst_26 = arith.constant 1.000000e+00 : f32
      %29 = vector.broadcast %cst_26 : f32 to vector<16x384xf32>
      %30 = arith.addf %29, %28 : vector<16x384xf32>
      %31 = arith.divf %29, %30 : vector<16x384xf32>
      %32 = vector.extract_strided_slice %31 {offsets = [0, 0], sizes = [16, 128], strides = [1, 1]} : vector<16x384xf32> to vector<16x128xf32>
      %33 = vector.extract_strided_slice %31 {offsets = [0, 128], sizes = [16, 128], strides = [1, 1]} : vector<16x384xf32> to vector<16x128xf32>
      %34 = vector.extract_strided_slice %31 {offsets = [0, 256], sizes = [16, 128], strides = [1, 1]} : vector<16x384xf32> to vector<16x128xf32>
      %35 = vector.extract_strided_slice %25 {offsets = [0, 384], sizes = [16, 128], strides = [1, 1]} : vector<16x512xf32> to vector<16x128xf32>
      %36 = math.tanh %35 : vector<16x128xf32>
      %37 = arith.mulf %33, %arg13 : vector<16x128xf32>
      %38 = arith.mulf %32, %36 : vector<16x128xf32>
      %39 = arith.addf %37, %38 : vector<16x128xf32>
      %40 = math.tanh %39 : vector<16x128xf32>
      %41 = arith.mulf %34, %40 : vector<16x128xf32>
      %42 = arith.truncf %41 : vector<16x128xf32> to vector<16x128xbf16>
      %43 = arith.index_cast %17 : i32 to index
      %c0_27 = arith.constant 0 : index
      %c0_28 = arith.constant 0 : index
      %44 = vector.load %arg5[%43, %c0_27, %c0_28] : memref<8x16x128xbf16, #tpu.memory_space<vmem>>, vector<1x16x128xbf16>
      %45 = vector.shape_cast %44 : vector<1x16x128xbf16> to vector<16x128xbf16>
      %46 = vector.shape_cast %42 : vector<16x128xbf16> to vector<1x16x128xbf16>
      tpu.vector_store %arg5[%43, %c0_27, %c0_28], %46 {strides = array<i32>} : memref<8x16x128xbf16, #tpu.memory_space<vmem>>, vector<1x16x128xbf16>,
      %47 = arith.index_cast %18 : i32 to index
      %c0_29 = arith.constant 0 : index
      %c0_30 = arith.constant 0 : index
      %48 = vector.load %arg2[%47, %c0_29, %c0_30] : memref<8x16x512xbf16, #tpu.memory_space<vmem>>, vector<1x16x512xbf16>
      %49 = vector.shape_cast %48 : vector<1x16x512xbf16> to vector<16x512xbf16>
      %50 = arith.extf %49 : vector<16x512xbf16> to vector<16x512xf32>
      %51 = arith.truncf %arg14 : vector<16x128xf32> to vector<16x128xbf16>
      %cst_31 = arith.constant dense<0.000000e+00> : vector<16x512xf32>
      %52 = tpu.matmul %51, %4, %cst_31 {dimension_numbers = #tpu.dot_dimension_numbers<[1], [0], [0], [1], [0, 0, 1, 1], [], []>} : vector<16x128xbf16>, vector<128x512xbf16>, vector<16x512xf32> -> vector<16x512xf32>
      %53 = arith.addf %50, %52 : vector<16x512xf32>
      %54 = vector.extract_strided_slice %53 {offsets = [0, 0], sizes = [16, 384], strides = [1, 1]} : vector<16x512xf32> to vector<16x384xf32>
      %55 = arith.negf %54 : vector<16x384xf32>
      %56 = math.exp %55 : vector<16x384xf32>
      %cst_32 = arith.constant 1.000000e+00 : f32
      %57 = vector.broadcast %cst_32 : f32 to vector<16x384xf32>
      %58 = arith.addf %57, %56 : vector<16x384xf32>
      %59 = arith.divf %57, %58 : vector<16x384xf32>
      %60 = vector.extract_strided_slice %59 {offsets = [0, 0], sizes = [16, 128], strides = [1, 1]} : vector<16x384xf32> to vector<16x128xf32>
      %61 = vector.extract_strided_slice %59 {offsets = [0, 128], sizes = [16, 128], strides = [1, 1]} : vector<16x384xf32> to vector<16x128xf32>
      %62 = vector.extract_strided_slice %59 {offsets = [0, 256], sizes = [16, 128], strides = [1, 1]} : vector<16x384xf32> to vector<16x128xf32>
      %63 = vector.extract_strided_slice %53 {offsets = [0, 384], sizes = [16, 128], strides = [1, 1]} : vector<16x512xf32> to vector<16x128xf32>
      %64 = math.tanh %63 : vector<16x128xf32>
      %65 = arith.mulf %61, %arg15 : vector<16x128xf32>
      %66 = arith.mulf %60, %64 : vector<16x128xf32>
      %67 = arith.addf %65, %66 : vector<16x128xf32>
      %68 = math.tanh %67 : vector<16x128xf32>
      %69 = arith.mulf %62, %68 : vector<16x128xf32>
      %70 = arith.truncf %69 : vector<16x128xf32> to vector<16x128xbf16>
      %71 = arith.index_cast %18 : i32 to index
      %c0_33 = arith.constant 0 : index
      %c0_34 = arith.constant 0 : index
      %72 = vector.load %arg6[%71, %c0_33, %c0_34] : memref<8x16x128xbf16, #tpu.memory_space<vmem>>, vector<1x16x128xbf16>
      %73 = vector.shape_cast %72 : vector<1x16x128xbf16> to vector<16x128xbf16>
      %74 = vector.shape_cast %70 : vector<16x128xbf16> to vector<1x16x128xbf16>
      tpu.vector_store %arg6[%71, %c0_33, %c0_34], %74 {strides = array<i32>} : memref<8x16x128xbf16, #tpu.memory_space<vmem>>, vector<1x16x128xbf16>,
      %c7_i32_35 = arith.constant 7 : i32
      %75 = arith.subi %c7_i32_35, %16 : i32
      %76 = arith.index_cast %16 : i32 to index
      %c0_36 = arith.constant 0 : index
      %c0_37 = arith.constant 0 : index
      %77 = vector.load %arg1[%76, %c0_36, %c0_37] : memref<8x16x512xbf16, #tpu.memory_space<vmem>>, vector<1x16x512xbf16>
      %78 = vector.shape_cast %77 : vector<1x16x512xbf16> to vector<16x512xbf16>
      %79 = arith.extf %78 : vector<16x512xbf16> to vector<16x512xf32>
      %80 = arith.truncf %41 : vector<16x128xf32> to vector<16x128xbf16>
      %cst_38 = arith.constant dense<0.000000e+00> : vector<16x512xf32>
      %81 = tpu.matmul %80, %3, %cst_38 {dimension_numbers = #tpu.dot_dimension_numbers<[1], [0], [0], [1], [0, 0, 1, 1], [], []>} : vector<16x128xbf16>, vector<128x512xbf16>, vector<16x512xf32> -> vector<16x512xf32>
      %82 = arith.addf %79, %81 : vector<16x512xf32>
      %83 = vector.extract_strided_slice %82 {offsets = [0, 0], sizes = [16, 384], strides = [1, 1]} : vector<16x512xf32> to vector<16x384xf32>
      %84 = arith.negf %83 : vector<16x384xf32>
      %85 = math.exp %84 : vector<16x384xf32>
      %cst_39 = arith.constant 1.000000e+00 : f32
      %86 = vector.broadcast %cst_39 : f32 to vector<16x384xf32>
      %87 = arith.addf %86, %85 : vector<16x384xf32>
      %88 = arith.divf %86, %87 : vector<16x384xf32>
      %89 = vector.extract_strided_slice %88 {offsets = [0, 0], sizes = [16, 128], strides = [1, 1]} : vector<16x384xf32> to vector<16x128xf32>
      %90 = vector.extract_strided_slice %88 {offsets = [0, 128], sizes = [16, 128], strides = [1, 1]} : vector<16x384xf32> to vector<16x128xf32>
      %91 = vector.extract_strided_slice %88 {offsets = [0, 256], sizes = [16, 128], strides = [1, 1]} : vector<16x384xf32> to vector<16x128xf32>
      %92 = vector.extract_strided_slice %82 {offsets = [0, 384], sizes = [16, 128], strides = [1, 1]} : vector<16x512xf32> to vector<16x128xf32>
      %93 = math.tanh %92 : vector<16x128xf32>
      %94 = arith.mulf %90, %39 : vector<16x128xf32>
      %95 = arith.mulf %89, %93 : vector<16x128xf32>
      %96 = arith.addf %94, %95 : vector<16x128xf32>
      %97 = math.tanh %96 : vector<16x128xf32>
      %98 = arith.mulf %91, %97 : vector<16x128xf32>
      %99 = arith.truncf %98 : vector<16x128xf32> to vector<16x128xbf16>
      %100 = arith.index_cast %16 : i32 to index
      %c0_40 = arith.constant 0 : index
      %c0_41 = arith.constant 0 : index
      %101 = vector.load %arg5[%100, %c0_40, %c0_41] : memref<8x16x128xbf16, #tpu.memory_space<vmem>>, vector<1x16x128xbf16>
      %102 = vector.shape_cast %101 : vector<1x16x128xbf16> to vector<16x128xbf16>
      %103 = vector.shape_cast %99 : vector<16x128xbf16> to vector<1x16x128xbf16>
      tpu.vector_store %arg5[%100, %c0_40, %c0_41], %103 {strides = array<i32>} : memref<8x16x128xbf16, #tpu.memory_space<vmem>>, vector<1x16x128xbf16>,
      %104 = arith.index_cast %75 : i32 to index
      %c0_42 = arith.constant 0 : index
      %c0_43 = arith.constant 0 : index
      %105 = vector.load %arg2[%104, %c0_42, %c0_43] : memref<8x16x512xbf16, #tpu.memory_space<vmem>>, vector<1x16x512xbf16>
      %106 = vector.shape_cast %105 : vector<1x16x512xbf16> to vector<16x512xbf16>
      %107 = arith.extf %106 : vector<16x512xbf16> to vector<16x512xf32>
      %108 = arith.truncf %69 : vector<16x128xf32> to vector<16x128xbf16>
      %cst_44 = arith.constant dense<0.000000e+00> : vector<16x512xf32>
      %109 = tpu.matmul %108, %4, %cst_44 {dimension_numbers = #tpu.dot_dimension_numbers<[1], [0], [0], [1], [0, 0, 1, 1], [], []>} : vector<16x128xbf16>, vector<128x512xbf16>, vector<16x512xf32> -> vector<16x512xf32>
      %110 = arith.addf %107, %109 : vector<16x512xf32>
      %111 = vector.extract_strided_slice %110 {offsets = [0, 0], sizes = [16, 384], strides = [1, 1]} : vector<16x512xf32> to vector<16x384xf32>
      %112 = arith.negf %111 : vector<16x384xf32>
      %113 = math.exp %112 : vector<16x384xf32>
      %cst_45 = arith.constant 1.000000e+00 : f32
      %114 = vector.broadcast %cst_45 : f32 to vector<16x384xf32>
      %115 = arith.addf %114, %113 : vector<16x384xf32>
      %116 = arith.divf %114, %115 : vector<16x384xf32>
      %117 = vector.extract_strided_slice %116 {offsets = [0, 0], sizes = [16, 128], strides = [1, 1]} : vector<16x384xf32> to vector<16x128xf32>
      %118 = vector.extract_strided_slice %116 {offsets = [0, 128], sizes = [16, 128], strides = [1, 1]} : vector<16x384xf32> to vector<16x128xf32>
      %119 = vector.extract_strided_slice %116 {offsets = [0, 256], sizes = [16, 128], strides = [1, 1]} : vector<16x384xf32> to vector<16x128xf32>
      %120 = vector.extract_strided_slice %110 {offsets = [0, 384], sizes = [16, 128], strides = [1, 1]} : vector<16x512xf32> to vector<16x128xf32>
      %121 = math.tanh %120 : vector<16x128xf32>
      %122 = arith.mulf %118, %67 : vector<16x128xf32>
      %123 = arith.mulf %117, %121 : vector<16x128xf32>
      %124 = arith.addf %122, %123 : vector<16x128xf32>
      %125 = math.tanh %124 : vector<16x128xf32>
      %126 = arith.mulf %119, %125 : vector<16x128xf32>
      %127 = arith.truncf %126 : vector<16x128xf32> to vector<16x128xbf16>
      %128 = arith.index_cast %75 : i32 to index
      %c0_46 = arith.constant 0 : index
      %c0_47 = arith.constant 0 : index
      %129 = vector.load %arg6[%128, %c0_46, %c0_47] : memref<8x16x128xbf16, #tpu.memory_space<vmem>>, vector<1x16x128xbf16>
      %130 = vector.shape_cast %129 : vector<1x16x128xbf16> to vector<16x128xbf16>
      %131 = vector.shape_cast %127 : vector<16x128xbf16> to vector<1x16x128xbf16>
      tpu.vector_store %arg6[%128, %c0_46, %c0_47], %131 {strides = array<i32>} : memref<8x16x128xbf16, #tpu.memory_space<vmem>>, vector<1x16x128xbf16>,
      scf.yield %98, %96, %126, %124 : vector<16x128xf32>, vector<16x128xf32>, vector<16x128xf32>, vector<16x128xf32>
    }
    %c4_i32_13 = arith.constant 4 : i32
    %c0_14 = arith.constant 0 : index
    %c0_15 = arith.constant 0 : index
    %11 = vector.load %arg7[%c0_14, %c0_15] : memref<16x128xf32, #tpu.memory_space<vmem>>, vector<16x128xf32>
    tpu.vector_store %arg7[%c0_14, %c0_15], %10#0 {strides = array<i32>} : memref<16x128xf32, #tpu.memory_space<vmem>>, vector<16x128xf32>,
    %c0_16 = arith.constant 0 : index
    %c0_17 = arith.constant 0 : index
    %12 = vector.load %arg8[%c0_16, %c0_17] : memref<16x128xf32, #tpu.memory_space<vmem>>, vector<16x128xf32>
    tpu.vector_store %arg8[%c0_16, %c0_17], %10#1 {strides = array<i32>} : memref<16x128xf32, #tpu.memory_space<vmem>>, vector<16x128xf32>,
    %c0_18 = arith.constant 0 : index
    %c0_19 = arith.constant 0 : index
    %13 = vector.load %arg9[%c0_18, %c0_19] : memref<16x128xf32, #tpu.memory_space<vmem>>, vector<16x128xf32>
    tpu.vector_store %arg9[%c0_18, %c0_19], %10#2 {strides = array<i32>} : memref<16x128xf32, #tpu.memory_space<vmem>>, vector<16x128xf32>,
    %c0_20 = arith.constant 0 : index
    %c0_21 = arith.constant 0 : index
    %14 = vector.load %arg10[%c0_20, %c0_21] : memref<16x128xf32, #tpu.memory_space<vmem>>, vector<16x128xf32>
    tpu.vector_store %arg10[%c0_20, %c0_21], %10#3 {strides = array<i32>} : memref<16x128xf32, #tpu.memory_space<vmem>>, vector<16x128xf32>,
    return
  }
  func.func @transform_0(%arg0: i32) -> (i32, i32, i32) {
    %c0_i32 = arith.constant 0 : i32
    %c0_i32_0 = arith.constant 0 : i32
    %c0_i32_1 = arith.constant 0 : i32
    return %arg0, %c0_i32, %c0_i32_0 : i32, i32, i32
  }
  func.func @transform_1(%arg0: i32) -> (i32, i32, i32) {
    %c0_i32 = arith.constant 0 : i32
    %0 = arith.subi %c0_i32, %arg0 : i32
    %c0_i32_0 = arith.constant 0 : i32
    %c0_i32_1 = arith.constant 0 : i32
    %c0_i32_2 = arith.constant 0 : i32
    return %0, %c0_i32_0, %c0_i32_1 : i32, i32, i32
  }
  func.func @transform_2(%arg0: i32) -> (i32, i32) {
    %c0_i32 = arith.constant 0 : i32
    %c0_i32_0 = arith.constant 0 : i32
    %c0_i32_1 = arith.constant 0 : i32
    return %c0_i32, %c0_i32_0 : i32, i32
  }
  func.func @transform_3(%arg0: i32) -> (i32, i32) {
    %c0_i32 = arith.constant 0 : i32
    %c0_i32_0 = arith.constant 0 : i32
    %c0_i32_1 = arith.constant 0 : i32
    return %c0_i32, %c0_i32_0 : i32, i32
  }
  func.func @transform_4(%arg0: i32) -> (i32, i32, i32) {
    %c0_i32 = arith.constant 0 : i32
    %c0_i32_0 = arith.constant 0 : i32
    %c0_i32_1 = arith.constant 0 : i32
    return %arg0, %c0_i32, %c0_i32_0 : i32, i32, i32
  }
  func.func @transform_5(%arg0: i32) -> (i32, i32, i32) {
    %c0_i32 = arith.constant 0 : i32
    %0 = arith.subi %c0_i32, %arg0 : i32
    %c0_i32_0 = arith.constant 0 : i32
    %c0_i32_1 = arith.constant 0 : i32
    %c0_i32_2 = arith.constant 0 : i32
    return %0, %c0_i32_0, %c0_i32_1 : i32, i32, i32
  }
}

module attributes {stable_mosaic.version = 11 : i64} {
  func.func @_viterbi_kernel(%arg0: memref<8x16x8xf32, #tpu.memory_space<vmem>>, %arg1: memref<1x8xf32, #tpu.memory_space<vmem>>, %arg2: memref<8x8xf32, #tpu.memory_space<vmem>>, %arg3: memref<1x8xf32, #tpu.memory_space<vmem>>, %arg4: memref<8x16x8xi32, #tpu.memory_space<vmem>>, %arg5: memref<16x8xf32, #tpu.memory_space<vmem>>) attributes {dimension_semantics = [], scalar_prefetch = 0 : i64, scratch_operands = 0 : i64, tpu.core_type = #tpu.core_type<tc>} {
    %c0 = arith.constant 0 : index
    %c0_0 = arith.constant 0 : index
    %0 = vector.load %arg2[%c0, %c0_0] : memref<8x8xf32, #tpu.memory_space<vmem>>, vector<8x8xf32>
    %c0_i32 = arith.constant 0 : i32
    %1 = vector.broadcast %c0_i32 : i32 to vector<16x8xi32>
    %c0_1 = arith.constant 0 : index
    %c0_2 = arith.constant 0 : index
    %c0_3 = arith.constant 0 : index
    %2 = vector.load %arg4[%c0_1, %c0_2, %c0_3] : memref<8x16x8xi32, #tpu.memory_space<vmem>>, vector<1x16x8xi32>
    %3 = vector.shape_cast %2 : vector<1x16x8xi32> to vector<16x8xi32>
    %4 = vector.shape_cast %1 : vector<16x8xi32> to vector<1x16x8xi32>
    tpu.vector_store %arg4[%c0_1, %c0_2, %c0_3], %4 {strides = array<i32>} : memref<8x16x8xi32, #tpu.memory_space<vmem>>, vector<1x16x8xi32>,
    %c0_4 = arith.constant 0 : index
    %c0_5 = arith.constant 0 : index
    %5 = vector.load %arg1[%c0_4, %c0_5] : memref<1x8xf32, #tpu.memory_space<vmem>>, vector<1x8xf32>
    %c0_6 = arith.constant 0 : index
    %c0_7 = arith.constant 0 : index
    %c0_8 = arith.constant 0 : index
    %6 = vector.load %arg0[%c0_6, %c0_7, %c0_8] : memref<8x16x8xf32, #tpu.memory_space<vmem>>, vector<1x16x8xf32>
    %7 = vector.shape_cast %6 : vector<1x16x8xf32> to vector<16x8xf32>
    %8 = vector.broadcast %5 : vector<1x8xf32> to vector<16x8xf32>
    %9 = arith.addf %8, %7 : vector<16x8xf32>
    %c1_i32 = arith.constant 1 : i32
    %c7_i32 = arith.constant 7 : i32
    %10 = arith.addi %c1_i32, %c7_i32 : i32
    %c1_i32_9 = arith.constant 1 : i32
    %11 = scf.for %arg6 = %c1_i32 to %10 step %c1_i32_9 iter_args(%arg7 = %9) -> (vector<16x8xf32>)  : i32 {
      %16 = vector.shape_cast %arg7 : vector<16x8xf32> to vector<16x1x8xf32>
      %17 = vector.shape_cast %0 : vector<8x8xf32> to vector<1x8x8xf32>
      %18 = vector.broadcast %16 : vector<16x1x8xf32> to vector<16x8x8xf32>
      %19 = vector.broadcast %17 : vector<1x8x8xf32> to vector<16x8x8xf32>
      %20 = arith.addf %18, %19 : vector<16x8x8xf32>
      %cst = arith.constant dense<0xFF800000> : vector<16x8xf32>
      %21 = vector.multi_reduction <maximumf>, %20, %cst [2] : vector<16x8x8xf32> to vector<16x8xf32>
      %22 = tpu.iota {dimensions = array<i32: 2>} : vector<16x8x8xi32>
      %23 = vector.shape_cast %21 : vector<16x8xf32> to vector<16x8x1xf32>
      %24 = vector.broadcast %23 : vector<16x8x1xf32> to vector<16x8x8xf32>
      %25 = arith.cmpf oge, %20, %24 : vector<16x8x8xf32>
      %c8_i32 = arith.constant 8 : i32
      %26 = vector.broadcast %c8_i32 : i32 to vector<16x8x8xi32>
      %27 = arith.select %25, %22, %26 : vector<16x8x8xi1>, vector<16x8x8xi32>
      %cst_15 = arith.constant dense<2147483647> : vector<16x8xi32>
      %28 = vector.multi_reduction <minsi>, %27, %cst_15 [2] : vector<16x8x8xi32> to vector<16x8xi32>
      %29 = arith.index_cast %arg6 : i32 to index
      %c0_16 = arith.constant 0 : index
      %c0_17 = arith.constant 0 : index
      %30 = vector.load %arg4[%29, %c0_16, %c0_17] : memref<8x16x8xi32, #tpu.memory_space<vmem>>, vector<1x16x8xi32>
      %31 = vector.shape_cast %30 : vector<1x16x8xi32> to vector<16x8xi32>
      %32 = vector.shape_cast %28 : vector<16x8xi32> to vector<1x16x8xi32>
      tpu.vector_store %arg4[%29, %c0_16, %c0_17], %32 {strides = array<i32>} : memref<8x16x8xi32, #tpu.memory_space<vmem>>, vector<1x16x8xi32>,
      %33 = arith.index_cast %arg6 : i32 to index
      %c0_18 = arith.constant 0 : index
      %c0_19 = arith.constant 0 : index
      %34 = vector.load %arg0[%33, %c0_18, %c0_19] : memref<8x16x8xf32, #tpu.memory_space<vmem>>, vector<1x16x8xf32>
      %35 = vector.shape_cast %34 : vector<1x16x8xf32> to vector<16x8xf32>
      %36 = arith.addf %21, %35 : vector<16x8xf32>
      scf.yield %36 : vector<16x8xf32>
    }
    %c7_i32_10 = arith.constant 7 : i32
    %c0_11 = arith.constant 0 : index
    %c0_12 = arith.constant 0 : index
    %12 = vector.load %arg3[%c0_11, %c0_12] : memref<1x8xf32, #tpu.memory_space<vmem>>, vector<1x8xf32>
    %13 = vector.broadcast %12 : vector<1x8xf32> to vector<16x8xf32>
    %14 = arith.addf %11, %13 : vector<16x8xf32>
    %c0_13 = arith.constant 0 : index
    %c0_14 = arith.constant 0 : index
    %15 = vector.load %arg5[%c0_13, %c0_14] : memref<16x8xf32, #tpu.memory_space<vmem>>, vector<16x8xf32>
    tpu.vector_store %arg5[%c0_13, %c0_14], %14 {strides = array<i32>} : memref<16x8xf32, #tpu.memory_space<vmem>>, vector<16x8xf32>,
    return
  }
}

module attributes {stable_mosaic.version = 11 : i64} {
  func.func @_fc_dual_kernel(%arg0: i32, %arg1: memref<128x128xbf16, #tpu.memory_space<vmem>>, %arg2: memref<128x128xbf16, #tpu.memory_space<vmem>>, %arg3: memref<256x8xbf16, #tpu.memory_space<vmem>>, %arg4: memref<1x8xf32, #tpu.memory_space<vmem>>, %arg5: memref<128x8xf32, #tpu.memory_space<vmem>>) attributes {dimension_semantics = [#tpu.dimension_semantics<parallel>], iteration_bounds = array<i64: 1>, scalar_prefetch = 0 : i64, scratch_operands = 0 : i64, tpu.core_type = #tpu.core_type<tc>, window_params = [{transform_indices = @transform_0, window_bounds = array<i64: 128, 128>}, {transform_indices = @transform_1, window_bounds = array<i64: 128, 128>}, {pipeline_mode = #tpu.pipeline_mode<synchronous>, transform_indices = @transform_2, window_bounds = array<i64: 256, 8>}, {pipeline_mode = #tpu.pipeline_mode<synchronous>, transform_indices = @transform_3, window_bounds = array<i64: 1, 8>}, {transform_indices = @transform_4, window_bounds = array<i64: 128, 8>}]} {
    %c0 = arith.constant 0 : index
    %c0_0 = arith.constant 0 : index
    %0 = vector.load %arg1[%c0, %c0_0] : memref<128x128xbf16, #tpu.memory_space<vmem>>, vector<128x128xbf16>
    %c0_1 = arith.constant 0 : index
    %c0_2 = arith.constant 0 : index
    %1 = vector.load %arg3[%c0_1, %c0_2] : memref<256x8xbf16, #tpu.memory_space<vmem>>, vector<128x8xbf16>
    %cst = arith.constant dense<0.000000e+00> : vector<128x8xf32>
    %2 = tpu.matmul %0, %1, %cst {dimension_numbers = #tpu.dot_dimension_numbers<[1], [0], [0], [1], [0, 0, 1, 1], [], []>} : vector<128x128xbf16>, vector<128x8xbf16>, vector<128x8xf32> -> vector<128x8xf32>
    %c0_3 = arith.constant 0 : index
    %c0_4 = arith.constant 0 : index
    %3 = vector.load %arg2[%c0_3, %c0_4] : memref<128x128xbf16, #tpu.memory_space<vmem>>, vector<128x128xbf16>
    %c128 = arith.constant 128 : index
    %c0_5 = arith.constant 0 : index
    %4 = vector.load %arg3[%c128, %c0_5] : memref<256x8xbf16, #tpu.memory_space<vmem>>, vector<128x8xbf16>
    %cst_6 = arith.constant dense<0.000000e+00> : vector<128x8xf32>
    %5 = tpu.matmul %3, %4, %cst_6 {dimension_numbers = #tpu.dot_dimension_numbers<[1], [0], [0], [1], [0, 0, 1, 1], [], []>} : vector<128x128xbf16>, vector<128x8xbf16>, vector<128x8xf32> -> vector<128x8xf32>
    %6 = arith.addf %2, %5 : vector<128x8xf32>
    %c0_7 = arith.constant 0 : index
    %c0_8 = arith.constant 0 : index
    %7 = vector.load %arg4[%c0_7, %c0_8] : memref<1x8xf32, #tpu.memory_space<vmem>>, vector<1x8xf32>
    %8 = vector.broadcast %7 : vector<1x8xf32> to vector<128x8xf32>
    %9 = arith.addf %6, %8 : vector<128x8xf32>
    %c0_9 = arith.constant 0 : index
    %c0_10 = arith.constant 0 : index
    %10 = vector.load %arg5[%c0_9, %c0_10] : memref<128x8xf32, #tpu.memory_space<vmem>>, vector<128x8xf32>
    tpu.vector_store %arg5[%c0_9, %c0_10], %9 {strides = array<i32>} : memref<128x8xf32, #tpu.memory_space<vmem>>, vector<128x8xf32>,
    return
  }
  func.func @transform_0(%arg0: i32) -> (i32, i32) {
    %c0_i32 = arith.constant 0 : i32
    %c0_i32_0 = arith.constant 0 : i32
    return %arg0, %c0_i32 : i32, i32
  }
  func.func @transform_1(%arg0: i32) -> (i32, i32) {
    %c0_i32 = arith.constant 0 : i32
    %c0_i32_0 = arith.constant 0 : i32
    return %arg0, %c0_i32 : i32, i32
  }
  func.func @transform_2(%arg0: i32) -> (i32, i32) {
    %c0_i32 = arith.constant 0 : i32
    %c0_i32_0 = arith.constant 0 : i32
    %c0_i32_1 = arith.constant 0 : i32
    return %c0_i32, %c0_i32_0 : i32, i32
  }
  func.func @transform_3(%arg0: i32) -> (i32, i32) {
    %c0_i32 = arith.constant 0 : i32
    %c0_i32_0 = arith.constant 0 : i32
    %c0_i32_1 = arith.constant 0 : i32
    return %c0_i32, %c0_i32_0 : i32, i32
  }
  func.func @transform_4(%arg0: i32) -> (i32, i32) {
    %c0_i32 = arith.constant 0 : i32
    %c0_i32_0 = arith.constant 0 : i32
    return %arg0, %c0_i32 : i32, i32
  }
}

</mosaic_0001>

<llo_original>
// kernel: model_forward.7
$region0: #{model_forward.7}
  #allocation0 [shape = 'u32[]', space=smem, size = 0x4, offset = 0x4, fixed_abs, tag = 'smem constant byte address 0x4 - core index']
  #allocation1 [shape = 'u32[144,128]{1,0:T(1,128)}', space=vmem, size = 0x12000, scoped, tag = 'internal scratch']
  #allocation2 [shape = 'f32[16,128]{1,0:T(8,128)}', space=vmem, size = 0x2000, scoped, tag = 'scratch operand']
  #allocation3 [shape = 'f32[16,128]{1,0:T(8,128)}', space=vmem, size = 0x2000, scoped, tag = 'scratch operand']
  #allocation4 [shape = 'f32[16,128]{1,0:T(8,128)}', space=vmem, size = 0x2000, scoped, tag = 'scratch operand']
  #allocation5 [shape = 'f32[16,128]{1,0:T(8,128)}', space=vmem, size = 0x2000, scoped, tag = 'scratch operand']
  %s0 = inlined_call_operand.vmem [shape: bf16[8,16,512], index: 0, kind: input, shape index: {}]
  %s1 = inlined_call_operand.vmem [shape: bf16[8,16,512], index: 1, kind: input, shape index: {}]
  %s2 = inlined_call_operand.vmem [shape: bf16[128,512], index: 2, kind: input, shape index: {}]
  %s3 = inlined_call_operand.hbm [shape: bf16[128,512], index: 3, kind: input, shape index: {}]
  %s4 = inlined_call_operand.vmem [shape: bf16[8,16,128], index: 4, kind: output, shape index: {0}]
  %s5 = inlined_call_operand.vmem [shape: bf16[8,16,128], index: 5, kind: output, shape index: {1}]
  %6 = xla_tuple %s4, %s5
  %s7 = sld [smem:[#allocation0]]
  $region49: #{model_forward.7} parent=0
    _
  %s9 = ssub.s32 1, %s7
  %s10 = scalar_select 0, %s9, %s7
  $region1: #{model_forward.7} parent=0
    #allocation6 [shape = 'u8[131072]{0}', space=vmem, size = 0x20000, scoped, tag = 'input window, operand 3, single buffered']
    #allocation7 [shape = 's32[1]{0}', space=sflag, size = 0x4, scoped, tag = 'scoped memory for model_forward.7']
    %11 = vsyncpa [#allocation7], 0
    // Predicated region
    $region2: #{model_forward.7} parent=1 // pred_check
      _
    $region3: #{model_forward.7} parent=1 // pred_check_branch
      %13 = sbr.rel (0) target = $region5
    $region4: #{model_forward.7} parent=1 // pred_region
      _
    $region5: #{model_forward.7} parent=1 // pred_fallthru
      _
    // Predicated region
    $region6: #{model_forward.7} parent=1 // pred_check
      _
    $region7: #{model_forward.7} parent=1 // pred_check_branch
      %15 = sbr.rel (0) target = $region9
    $region8: #{model_forward.7} parent=1 // pred_region
      %s16 = ssub.s32 0, 0
      %s17 = smul.u32 8, %s16
      %p18 = scmp.lt.s32.totalorder %s17, 7
      %s19 = scalar_select %p18, %s17, 7
      %s20 = smul.addr %s19, 8
      %s21 = smul.addr %s20, 4
      %s22 = scalar_lea.vmem %s1, %s21
      %s23 = ssub.s32 0, 0
      %s24 = smul.u32 8, %s23
    $region9: #{model_forward.7} parent=1 // pred_fallthru
      _
    // Predicated region
    $region10: #{model_forward.7} parent=1 // pred_check
      _
    $region11: #{model_forward.7} parent=1 // pred_check_branch
      %26 = sbr.rel (0) target = $region13
    $region12: #{model_forward.7} parent=1 // pred_region
      _
    $region13: #{model_forward.7} parent=1 // pred_fallthru
      _
    // Predicated region
    $region14: #{model_forward.7} parent=1 // pred_check
      _
    $region15: #{model_forward.7} parent=1 // pred_check_branch
      %28 = sbr.rel (0) target = $region17
    $region16: #{model_forward.7} parent=1 // pred_region
      %s30 = ssub.s32 4096, 4096
      %31 = vsyncadd [#allocation7], %s30
      %s32 = sshll.u32 [#allocation6], 4
      %s33 = int_to_ptr.vmem [resolvable:$true] %s32
      %38 = dma.hbm_to_vmem [thread:$0]  %s3, 4096, %s33, [#allocation7], 256, 256, 16
    $region17: #{model_forward.7} parent=1 // pred_fallthru
      _
    // Predicated region
    $region18: #{model_forward.7} parent=1 // pred_check
      _
    $region19: #{model_forward.7} parent=1 // pred_check_branch
      %40 = sbr.rel (0) target = $region21
    $region20: #{model_forward.7} parent=1 // pred_region
      %41 = dma.done [#allocation7], 4096
    $region21: #{model_forward.7} parent=1 // pred_fallthru
      _
    %s42 = ssub.s32 0, 0
    %s43 = smul.u32 8, %s42
    %p44 = scmp.lt.s32.totalorder %s43, 7
    %s45 = scalar_select %p44, %s43, 7
    %s46 = smul.addr %s45, 8
    %s47 = smul.addr %s46, 4
    %s48 = scalar_lea.vmem %s1, %s47
    %s49 = ssub.s32 0, 0
    %s50 = smul.u32 8, %s49
    %p51 = scmp.lt.s32.totalorder %s50, 7
    %s52 = scalar_select %p51, %s50, 7
    %s53 = smul.addr %s52, 2
    %s54 = smul.addr %s53, 4
    %s55 = scalar_lea.vmem %s5, %s54
    %s56 = ssub.s32 0, 0
    %s57 = smul.u32 8, %s56
    %p58 = scmp.lt.s32.totalorder %s57, 7
    %s59 = scalar_select %p58, %s57, 7
    %s60 = smul.addr %s59, 8
    %s61 = smul.addr %s60, 4
    %s62 = scalar_lea.vmem %s1, %s61
    %s63 = ssub.s32 0, 0
    %s64 = smul.u32 8, %s63
    %s65 = ssub.s32 0, 0
    %s66 = smul.u32 8, %s65
    %p67 = scmp.lt.s32.totalorder %s66, 7
    %s68 = scalar_select %p67, %s66, 7
    %s69 = smul.addr %s68, 2
    %s70 = smul.addr %s69, 4
    %s71 = scalar_lea.vmem %s5, %s70
    %s72 = ssub.s32 0, 0
    %s73 = smul.u32 8, %s72
    %p75 = scmp.eq.s32.totalorder 0, 0
    // Predicated region
    $region22: #{model_forward.7} parent=1 // pred_check
      %p76 = pneg %p75
    $region23: #{model_forward.7} parent=1 // pred_check_branch
      %78 = sbr.rel (%p76) target = $region25
    $region24: #{model_forward.7} parent=1 // pred_region
      %79 = vst [vmem:[#allocation2] sm:$0xff] 0.0
      %80 = vst [vmem:[#allocation2 + $0x8] sm:$0xff] 0.0
      %81 = vst [vmem:[#allocation3] sm:$0xff] 0.0
      %82 = vst [vmem:[#allocation3 + $0x8] sm:$0xff] 0.0
      %83 = vst [vmem:[#allocation4] sm:$0xff] 0.0
      %84 = vst [vmem:[#allocation4 + $0x8] sm:$0xff] 0.0
      %85 = vst [vmem:[#allocation5] sm:$0xff] 0.0
      %86 = vst [vmem:[#allocation5 + $0x8] sm:$0xff] 0.0
    $region25: #{model_forward.7} parent=1 // pred_fallthru
      _
    %v87 = vld [vmem:[%s2] sm:$0xff]
    %v88 = vld [vmem:[%s2 + $0x8] sm:$0xff]
    %v89 = vld [vmem:[%s2 + $0x10] sm:$0xff]
    %v90 = vld [vmem:[%s2 + $0x18] sm:$0xff]
    %v91 = vld [vmem:[%s2 + $0x20] sm:$0xff]
    %v92 = vld [vmem:[%s2 + $0x28] sm:$0xff]
    %v93 = vld [vmem:[%s2 + $0x30] sm:$0xff]
    %v94 = vld [vmem:[%s2 + $0x38] sm:$0xff]
    %v95 = vld [vmem:[%s2 + $0x40] sm:$0xff]
    %v96 = vld [vmem:[%s2 + $0x48] sm:$0xff]
    %v97 = vld [vmem:[%s2 + $0x50] sm:$0xff]
    %v98 = vld [vmem:[%s2 + $0x58] sm:$0xff]
    %v99 = vld [vmem:[%s2 + $0x60] sm:$0xff]
    %v100 = vld [vmem:[%s2 + $0x68] sm:$0xff]
    %v101 = vld [vmem:[%s2 + $0x70] sm:$0xff]
    %v102 = vld [vmem:[%s2 + $0x78] sm:$0xff]
    %v103 = vld [vmem:[%s2 + $0x80] sm:$0xff]
    %v104 = vld [vmem:[%s2 + $0x88] sm:$0xff]
    %v105 = vld [vmem:[%s2 + $0x90] sm:$0xff]
    %v106 = vld [vmem:[%s2 + $0x98] sm:$0xff]
    %v107 = vld [vmem:[%s2 + $0xa0] sm:$0xff]
    %v108 = vld [vmem:[%s2 + $0xa8] sm:$0xff]
    %v109 = vld [vmem:[%s2 + $0xb0] sm:$0xff]
    %v110 = vld [vmem:[%s2 + $0xb8] sm:$0xff]
    %v111 = vld [vmem:[%s2 + $0xc0] sm:$0xff]
    %v112 = vld [vmem:[%s2 + $0xc8] sm:$0xff]
    %v113 = vld [vmem:[%s2 + $0xd0] sm:$0xff]
    %v114 = vld [vmem:[%s2 + $0xd8] sm:$0xff]
    %v115 = vld [vmem:[%s2 + $0xe0] sm:$0xff]
    %v116 = vld [vmem:[%s2 + $0xe8] sm:$0xff]
    %v117 = vld [vmem:[%s2 + $0xf0] sm:$0xff]
    %v118 = vld [vmem:[%s2 + $0xf8] sm:$0xff]
    %v119 = vld [vmem:[#allocation6] sm:$0xff]
    %v120 = vld [vmem:[#allocation6 + $0x8] sm:$0xff]
    %v121 = vld [vmem:[#allocation6 + $0x10] sm:$0xff]
    %v122 = vld [vmem:[#allocation6 + $0x18] sm:$0xff]
    %v123 = vld [vmem:[#allocation6 + $0x20] sm:$0xff]
    %v124 = vld [vmem:[#allocation6 + $0x28] sm:$0xff]
    %v125 = vld [vmem:[#allocation6 + $0x30] sm:$0xff]
    %v126 = vld [vmem:[#allocation6 + $0x38] sm:$0xff]
    %v127 = vld [vmem:[#allocation6 + $0x40] sm:$0xff]
    %v128 = vld [vmem:[#allocation6 + $0x48] sm:$0xff]
    %v129 = vld [vmem:[#allocation6 + $0x50] sm:$0xff]
    %v130 = vld [vmem:[#allocation6 + $0x58] sm:$0xff]
    %v131 = vld [vmem:[#allocation6 + $0x60] sm:$0xff]
    %v132 = vld [vmem:[#allocation6 + $0x68] sm:$0xff]
    %v133 = vld [vmem:[#allocation6 + $0x70] sm:$0xff]
    %v134 = vld [vmem:[#allocation6 + $0x78] sm:$0xff]
    %v135 = vld [vmem:[#allocation6 + $0x80] sm:$0xff]
    %v136 = vld [vmem:[#allocation6 + $0x88] sm:$0xff]
    %v137 = vld [vmem:[#allocation6 + $0x90] sm:$0xff]
    %v138 = vld [vmem:[#allocation6 + $0x98] sm:$0xff]
    %v139 = vld [vmem:[#allocation6 + $0xa0] sm:$0xff]
    %v140 = vld [vmem:[#allocation6 + $0xa8] sm:$0xff]
    %v141 = vld [vmem:[#allocation6 + $0xb0] sm:$0xff]
    %v142 = vld [vmem:[#allocation6 + $0xb8] sm:$0xff]
    %v143 = vld [vmem:[#allocation6 + $0xc0] sm:$0xff]
    %v144 = vld [vmem:[#allocation6 + $0xc8] sm:$0xff]
    %v145 = vld [vmem:[#allocation6 + $0xd0] sm:$0xff]
    %v146 = vld [vmem:[#allocation6 + $0xd8] sm:$0xff]
    %v147 = vld [vmem:[#allocation6 + $0xe0] sm:$0xff]
    %v148 = vld [vmem:[#allocation6 + $0xe8] sm:$0xff]
    %v149 = vld [vmem:[#allocation6 + $0xf0] sm:$0xff]
    %v150 = vld [vmem:[#allocation6 + $0xf8] sm:$0xff]
    %v151 = vld [vmem:[#allocation2] sm:$0xff]
    %v152 = vld [vmem:[#allocation2 + $0x8] sm:$0xff]
    %v153 = vld [vmem:[#allocation3] sm:$0xff]
    %v154 = vld [vmem:[#allocation3 + $0x8] sm:$0xff]
    %v155 = vld [vmem:[#allocation4] sm:$0xff]
    %v156 = vld [vmem:[#allocation4 + $0x8] sm:$0xff]
    %v157 = vld [vmem:[#allocation5] sm:$0xff]
    %v158 = vld [vmem:[#allocation5 + $0x8] sm:$0xff]
    loop: start=0, step=1, limit=4
    $region26: #{model_forward.7} parent=1 // loop_pre_header
      _
    $region27: #{model_forward.7} parent=1 // loop_header
      %s160 = sphi 0, %s164
      %p161 = scmp.ge.s32.totalorder %s160, 4
      %v165 = vphi %v151, %v994
      %v166 = vphi %v152, %v995
      %v167 = vphi %v153, %v990
      %v168 = vphi %v154, %v991
      %v169 = vphi %v155, %v1164
      %v170 = vphi %v156, %v1165
      %v171 = vphi %v157, %v1160
      %v172 = vphi %v158, %v1161
    $region28: #{model_forward.7} parent=1 // loop_header_branch
      %163 = sbr.rel (%p161) target = $region32
    $region29: #{model_forward.7} parent=1 // loop_body
      %s173 = smul.u32 %s160, 2
      %s174 = sadd.s32 %s173, 1
      %s175 = ssub.s32 7, %s173
      %s176 = smul.u32 %s173, 8
      %s177 = smul.addr %s176, 4
      %s178 = scalar_lea.vmem %s0, %s177
      %v179 = vld [vmem:[%s178] sm:$0xff]
      %v180 = vld [vmem:[%s178 + $0x8] sm:$0xff]
      %v181 = vld [vmem:[%s178 + $0x10] sm:$0xff]
      %v182 = vld [vmem:[%s178 + $0x18] sm:$0xff]
      %v183 = vunpack.c.l.bf16 %v179
      %v184 = vunpack.c.h.bf16 %v179
      %v185 = vunpack.c.l.bf16 %v180
      %v186 = vunpack.c.h.bf16 %v180
      %v187 = vunpack.c.l.bf16 %v181
      %v188 = vunpack.c.h.bf16 %v181
      %v189 = vunpack.c.l.bf16 %v182
      %v190 = vunpack.c.h.bf16 %v182
      %v191 = vpack.c.bf16 %v166, %v165
      %v224 = vunpack.c.l.b16 %v87
      %v225 = vunpack.c.h.b16 %v87
      %v226 = vunpack.c.l.b16 %v88
      %v227 = vunpack.c.h.b16 %v88
      %v228 = vunpack.c.l.b16 %v89
      %v229 = vunpack.c.h.b16 %v89
      %v230 = vunpack.c.l.b16 %v90
      %v231 = vunpack.c.h.b16 %v90
      %v232 = vunpack.c.l.b16 %v91
      %v233 = vunpack.c.h.b16 %v91
      %v234 = vunpack.c.l.b16 %v92
      %v235 = vunpack.c.h.b16 %v92
      %v236 = vunpack.c.l.b16 %v93
      %v237 = vunpack.c.h.b16 %v93
      %v238 = vunpack.c.l.b16 %v94
      %v239 = vunpack.c.h.b16 %v94
      %v240 = vunpack.c.l.b16 %v95
      %v241 = vunpack.c.h.b16 %v95
      %v242 = vunpack.c.l.b16 %v96
      %v243 = vunpack.c.h.b16 %v96
      %v244 = vunpack.c.l.b16 %v97
      %v245 = vunpack.c.h.b16 %v97
      %v246 = vunpack.c.l.b16 %v98
      %v247 = vunpack.c.h.b16 %v98
      %v248 = vunpack.c.l.b16 %v99
      %v249 = vunpack.c.h.b16 %v99
      %v250 = vunpack.c.l.b16 %v100
      %v251 = vunpack.c.h.b16 %v100
      %v252 = vunpack.c.l.b16 %v101
      %v253 = vunpack.c.h.b16 %v101
      %v254 = vunpack.c.l.b16 %v102
      %v255 = vunpack.c.h.b16 %v102
      %v256 = vunpack.c.l.b16 %v103
      %v257 = vunpack.c.h.b16 %v103
      %v258 = vunpack.c.l.b16 %v104
      %v259 = vunpack.c.h.b16 %v104
      %v260 = vunpack.c.l.b16 %v105
      %v261 = vunpack.c.h.b16 %v105
      %v262 = vunpack.c.l.b16 %v106
      %v263 = vunpack.c.h.b16 %v106
      %v264 = vunpack.c.l.b16 %v107
      %v265 = vunpack.c.h.b16 %v107
      %v266 = vunpack.c.l.b16 %v108
      %v267 = vunpack.c.h.b16 %v108
      %v268 = vunpack.c.l.b16 %v109
      %v269 = vunpack.c.h.b16 %v109
      %v270 = vunpack.c.l.b16 %v110
      %v271 = vunpack.c.h.b16 %v110
      %v272 = vunpack.c.l.b16 %v111
      %v273 = vunpack.c.h.b16 %v111
      %v274 = vunpack.c.l.b16 %v112
      %v275 = vunpack.c.h.b16 %v112
      %v276 = vunpack.c.l.b16 %v113
      %v277 = vunpack.c.h.b16 %v113
      %v278 = vunpack.c.l.b16 %v114
      %v279 = vunpack.c.h.b16 %v114
      %v280 = vunpack.c.l.b16 %v115
      %v281 = vunpack.c.h.b16 %v115
      %v282 = vunpack.c.l.b16 %v116
      %v283 = vunpack.c.h.b16 %v116
      %v284 = vunpack.c.l.b16 %v117
      %v285 = vunpack.c.h.b16 %v117
      %v286 = vunpack.c.l.b16 %v118
      %v287 = vunpack.c.h.b16 %v118
      %v288 = vpack.c.b16 %v228, %v224
      %v289 = vpack.c.b16 %v229, %v225
      %v290 = vpack.c.b16 %v230, %v226
      %v291 = vpack.c.b16 %v231, %v227
      %v292 = vpack.c.b16 %v236, %v232
      %v293 = vpack.c.b16 %v237, %v233
      %v294 = vpack.c.b16 %v238, %v234
      %v295 = vpack.c.b16 %v239, %v235
      %v296 = vpack.c.b16 %v244, %v240
      %v297 = vpack.c.b16 %v245, %v241
      %v298 = vpack.c.b16 %v246, %v242
      %v299 = vpack.c.b16 %v247, %v243
      %v300 = vpack.c.b16 %v252, %v248
      %v301 = vpack.c.b16 %v253, %v249
      %v302 = vpack.c.b16 %v254, %v250
      %v303 = vpack.c.b16 %v255, %v251
      %v304 = vpack.c.b16 %v260, %v256
      %v305 = vpack.c.b16 %v261, %v257
      %v306 = vpack.c.b16 %v262, %v258
      %v307 = vpack.c.b16 %v263, %v259
      %v308 = vpack.c.b16 %v268, %v264
      %v309 = vpack.c.b16 %v269, %v265
      %v310 = vpack.c.b16 %v270, %v266
      %v311 = vpack.c.b16 %v271, %v267
      %v312 = vpack.c.b16 %v276, %v272
      %v313 = vpack.c.b16 %v277, %v273
      %v314 = vpack.c.b16 %v278, %v274
      %v315 = vpack.c.b16 %v279, %v275
      %v316 = vpack.c.b16 %v284, %v280
      %v317 = vpack.c.b16 %v285, %v281
      %v318 = vpack.c.b16 %v286, %v282
      %v319 = vpack.c.b16 %v287, %v283
      %352 = vmatprep.subr.bf16.mxu0 %v289
      %353 = vmatpush1.bf16.msra.mxu0 %v288
      %354 = vmatprep.subr.bf16.mxu0 %v293
      %355 = vmatpush1.bf16.msra.mxu0 %v292
      %356 = vmatprep.subr.bf16.mxu0 %v297
      %357 = vmatpush1.bf16.msra.mxu0 %v296
      %358 = vmatprep.subr.bf16.mxu0 %v301
      %359 = vmatpush1.bf16.msra.mxu0 %v300
      %360 = vmatprep.subr.bf16.mxu0 %v305
      %361 = vmatpush1.bf16.msra.mxu0 %v304
      %362 = vmatprep.subr.bf16.mxu0 %v309
      %363 = vmatpush1.bf16.msra.mxu0 %v308
      %364 = vmatprep.subr.bf16.mxu0 %v313
      %365 = vmatpush1.bf16.msra.mxu0 %v312
      %366 = vmatprep.subr.bf16.mxu0 %v317
      %367 = vmatpush1.bf16.msra.mxu0 %v316
      %368 = vmatprep.subr.bf16.mxu0 0
      %369 = vmatpush1.bf16.msra.mxu0 0
      %370 = vmatprep.subr.bf16.mxu0 0
      %371 = vmatpush1.bf16.msra.mxu0 0
      %372 = vmatprep.subr.bf16.mxu0 0
      %373 = vmatpush1.bf16.msra.mxu0 0
      %374 = vmatprep.subr.bf16.mxu0 0
      %375 = vmatpush1.bf16.msra.mxu0 0
      %376 = vmatprep.subr.bf16.mxu0 0
      %377 = vmatpush1.bf16.msra.mxu0 0
      %378 = vmatprep.subr.bf16.mxu0 0
      %379 = vmatpush1.bf16.msra.mxu0 0
      %380 = vmatprep.subr.bf16.mxu0 0
      %381 = vmatpush1.bf16.msra.mxu0 0
      %382 = vmatprep.subr.bf16.mxu0 0
      %383 = vmatpush1.bf16.msra.mxu0 0
      %384 = vmatprep.mubr.bf16.mxu0 0
      %385 = vmatmul.mubr.bf16.gmra.mrb[0].mxu0 %v191
      %v386 = vpop.f32.mrb[0].mxu0
      %v387 = vadd.f32 0.0, %v386
      %v388 = vpop.f32.mrb[0].mxu0
      %v389 = vadd.f32 0.0, %v388
      %v390 = vpop.f32.mrb[0].mxu0
      %v391 = vadd.f32 0.0, %v390
      %v392 = vpop.f32.mrb[0].mxu0
      %v393 = vadd.f32 0.0, %v392
      %394 = vdwg.mxu0
      %395 = vmatprep.subr.bf16.mxu0 %v291
      %396 = vmatpush1.bf16.msra.mxu0 %v290
      %397 = vmatprep.subr.bf16.mxu0 %v295
      %398 = vmatpush1.bf16.msra.mxu0 %v294
      %399 = vmatprep.subr.bf16.mxu0 %v299
      %400 = vmatpush1.bf16.msra.mxu0 %v298
      %401 = vmatprep.subr.bf16.mxu0 %v303
      %402 = vmatpush1.bf16.msra.mxu0 %v302
      %403 = vmatprep.subr.bf16.mxu0 %v307
      %404 = vmatpush1.bf16.msra.mxu0 %v306
      %405 = vmatprep.subr.bf16.mxu0 %v311
      %406 = vmatpush1.bf16.msra.mxu0 %v310
      %407 = vmatprep.subr.bf16.mxu0 %v315
      %408 = vmatpush1.bf16.msra.mxu0 %v314
      %409 = vmatprep.subr.bf16.mxu0 %v319
      %410 = vmatpush1.bf16.msra.mxu0 %v318
      %411 = vmatprep.subr.bf16.mxu0 0
      %412 = vmatpush1.bf16.msra.mxu0 0
      %413 = vmatprep.subr.bf16.mxu0 0
      %414 = vmatpush1.bf16.msra.mxu0 0
      %415 = vmatprep.subr.bf16.mxu0 0
      %416 = vmatpush1.bf16.msra.mxu0 0
      %417 = vmatprep.subr.bf16.mxu0 0
      %418 = vmatpush1.bf16.msra.mxu0 0
      %419 = vmatprep.subr.bf16.mxu0 0
      %420 = vmatpush1.bf16.msra.mxu0 0
      %421 = vmatprep.subr.bf16.mxu0 0
      %422 = vmatpush1.bf16.msra.mxu0 0
      %423 = vmatprep.subr.bf16.mxu0 0
      %424 = vmatpush1.bf16.msra.mxu0 0
      %425 = vmatprep.subr.bf16.mxu0 0
      %426 = vmatpush1.bf16.msra.mxu0 0
      %427 = vmatprep.mubr.bf16.mxu0 0
      %428 = vmatmul.mubr.bf16.gmra.mrb[0].mxu0 %v191
      %v429 = vpop.f32.mrb[0].mxu0
      %v430 = vadd.f32 0.0, %v429
      %v431 = vpop.f32.mrb[0].mxu0
      %v432 = vadd.f32 0.0, %v431
      %v433 = vpop.f32.mrb[0].mxu0
      %v434 = vadd.f32 0.0, %v433
      %v435 = vpop.f32.mrb[0].mxu0
      %v436 = vadd.f32 0.0, %v435
      %437 = vdwg.mxu0
      %v438 = vadd.f32 %v183, %v387
      %v439 = vadd.f32 %v184, %v389
      %v440 = vadd.f32 %v185, %v430
      %v441 = vadd.f32 %v186, %v432
      %v442 = vadd.f32 %v187, %v391
      %v443 = vadd.f32 %v188, %v393
      %v444 = vadd.f32 %v189, %v434
      %v445 = vadd.f32 %v190, %v436
      %v446 = vxor.u32 %v438, 2147483648
      %v447 = vxor.u32 %v439, 2147483648
      %v448 = vxor.u32 %v440, 2147483648
      %v449 = vxor.u32 %v442, 2147483648
      %v450 = vxor.u32 %v443, 2147483648
      %v451 = vxor.u32 %v444, 2147483648
      %v452 = vmul.f32 %v446, 1.442695
      %v453 = vpow.pop %v452
      %v454 = vmul.f32 %v447, 1.442695
      %v455 = vpow.pop %v454
      %v456 = vmul.f32 %v448, 1.442695
      %v457 = vpow.pop %v456
      %v458 = vmul.f32 %v449, 1.442695
      %v459 = vpow.pop %v458
      %v460 = vmul.f32 %v450, 1.442695
      %v461 = vpow.pop %v460
      %v462 = vmul.f32 %v451, 1.442695
      %v463 = vpow.pop %v462
      %v464 = vadd.f32 %v453, 1.0
      %v465 = vadd.f32 %v455, 1.0
      %v466 = vadd.f32 %v457, 1.0
      %v467 = vadd.f32 %v459, 1.0
      %v468 = vadd.f32 %v461, 1.0
      %v469 = vadd.f32 %v463, 1.0
      %v470 = vrcp.pop %v464
      %v471 = vmul.f32 1.0, %v470
      %v472 = vrcp.pop %v465
      %v473 = vmul.f32 1.0, %v472
      %v474 = vrcp.pop %v466
      %v475 = vmul.f32 1.0, %v474
      %v476 = vrcp.pop %v467
      %v477 = vmul.f32 1.0, %v476
      %v478 = vrcp.pop %v468
      %v479 = vmul.f32 1.0, %v478
      %v480 = vrcp.pop %v469
      %v481 = vmul.f32 1.0, %v480
      %v482 = vtanh.pop %v441
      %v483 = vtanh.pop %v445
      %v484 = vmul.f32 %v473, %v167
      %v485 = vmul.f32 %v479, %v168
      %v486 = vmul.f32 %v471, %v482
      %v487 = vmul.f32 %v477, %v483
      %v488 = vadd.f32 %v484, %v486
      %v489 = vadd.f32 %v485, %v487
      %v490 = vtanh.pop %v488
      %v491 = vtanh.pop %v489
      %v492 = vmul.f32 %v475, %v490
      %v493 = vmul.f32 %v481, %v491
      %v494 = vpack.c.bf16 %v493, %v492
      %v496 = vunpack.c.l.b16 %v494
      %v497 = vunpack.c.h.b16 %v494
      %v498 = vpack.c.b16 %v496, %v496
      %v499 = vpack.c.b16 %v497, %v497
      %s502 = smul.u32 %s173, 2
      %s503 = smul.addr %s502, 4
      %s504 = scalar_lea.vmem %s4, %s503
      %505 = vst [vmem:[%s504] sm:$0xf] %v498
      %506 = vst [vmem:[%s504 + $0x4] sm:$0xf] %v499
      %s507 = smul.u32 %s175, 8
      %s508 = smul.addr %s507, 4
      %s509 = scalar_lea.vmem %s62, %s508
      %v510 = vld [vmem:[%s509] sm:$0xff]
      %v511 = vld [vmem:[%s509 + $0x8] sm:$0xff]
      %v512 = vld [vmem:[%s509 + $0x10] sm:$0xff]
      %v513 = vld [vmem:[%s509 + $0x18] sm:$0xff]
      %v514 = vunpack.c.l.bf16 %v510
      %v515 = vunpack.c.h.bf16 %v510
      %v516 = vunpack.c.l.bf16 %v511
      %v517 = vunpack.c.h.bf16 %v511
      %v518 = vunpack.c.l.bf16 %v512
      %v519 = vunpack.c.h.bf16 %v512
      %v520 = vunpack.c.l.bf16 %v513
      %v521 = vunpack.c.h.bf16 %v513
      %v522 = vpack.c.bf16 %v170, %v169
      %v555 = vunpack.c.l.b16 %v119
      %v556 = vunpack.c.h.b16 %v119
      %v557 = vunpack.c.l.b16 %v120
      %v558 = vunpack.c.h.b16 %v120
      %v559 = vunpack.c.l.b16 %v121
      %v560 = vunpack.c.h.b16 %v121
      %v561 = vunpack.c.l.b16 %v122
      %v562 = vunpack.c.h.b16 %v122
      %v563 = vunpack.c.l.b16 %v123
      %v564 = vunpack.c.h.b16 %v123
      %v565 = vunpack.c.l.b16 %v124
      %v566 = vunpack.c.h.b16 %v124
      %v567 = vunpack.c.l.b16 %v125
      %v568 = vunpack.c.h.b16 %v125
      %v569 = vunpack.c.l.b16 %v126
      %v570 = vunpack.c.h.b16 %v126
      %v571 = vunpack.c.l.b16 %v127
      %v572 = vunpack.c.h.b16 %v127
      %v573 = vunpack.c.l.b16 %v128
      %v574 = vunpack.c.h.b16 %v128
      %v575 = vunpack.c.l.b16 %v129
      %v576 = vunpack.c.h.b16 %v129
      %v577 = vunpack.c.l.b16 %v130
      %v578 = vunpack.c.h.b16 %v130
      %v579 = vunpack.c.l.b16 %v131
      %v580 = vunpack.c.h.b16 %v131
      %v581 = vunpack.c.l.b16 %v132
      %v582 = vunpack.c.h.b16 %v132
      %v583 = vunpack.c.l.b16 %v133
      %v584 = vunpack.c.h.b16 %v133
      %v585 = vunpack.c.l.b16 %v134
      %v586 = vunpack.c.h.b16 %v134
      %v587 = vunpack.c.l.b16 %v135
      %v588 = vunpack.c.h.b16 %v135
      %v589 = vunpack.c.l.b16 %v136
      %v590 = vunpack.c.h.b16 %v136
      %v591 = vunpack.c.l.b16 %v137
      %v592 = vunpack.c.h.b16 %v137
      %v593 = vunpack.c.l.b16 %v138
      %v594 = vunpack.c.h.b16 %v138
      %v595 = vunpack.c.l.b16 %v139
      %v596 = vunpack.c.h.b16 %v139
      %v597 = vunpack.c.l.b16 %v140
      %v598 = vunpack.c.h.b16 %v140
      %v599 = vunpack.c.l.b16 %v141
      %v600 = vunpack.c.h.b16 %v141
      %v601 = vunpack.c.l.b16 %v142
      %v602 = vunpack.c.h.b16 %v142
      %v603 = vunpack.c.l.b16 %v143
      %v604 = vunpack.c.h.b16 %v143
      %v605 = vunpack.c.l.b16 %v144
      %v606 = vunpack.c.h.b16 %v144
      %v607 = vunpack.c.l.b16 %v145
      %v608 = vunpack.c.h.b16 %v145
      %v609 = vunpack.c.l.b16 %v146
      %v610 = vunpack.c.h.b16 %v146
      %v611 = vunpack.c.l.b16 %v147
      %v612 = vunpack.c.h.b16 %v147
      %v613 = vunpack.c.l.b16 %v148
      %v614 = vunpack.c.h.b16 %v148
      %v615 = vunpack.c.l.b16 %v149
      %v616 = vunpack.c.h.b16 %v149
      %v617 = vunpack.c.l.b16 %v150
      %v618 = vunpack.c.h.b16 %v150
      %v619 = vpack.c.b16 %v559, %v555
      %v620 = vpack.c.b16 %v560, %v556
      %v621 = vpack.c.b16 %v561, %v557
      %v622 = vpack.c.b16 %v562, %v558
      %v623 = vpack.c.b16 %v567, %v563
      %v624 = vpack.c.b16 %v568, %v564
      %v625 = vpack.c.b16 %v569, %v565
      %v626 = vpack.c.b16 %v570, %v566
      %v627 = vpack.c.b16 %v575, %v571
      %v628 = vpack.c.b16 %v576, %v572
      %v629 = vpack.c.b16 %v577, %v573
      %v630 = vpack.c.b16 %v578, %v574
      %v631 = vpack.c.b16 %v583, %v579
      %v632 = vpack.c.b16 %v584, %v580
      %v633 = vpack.c.b16 %v585, %v581
      %v634 = vpack.c.b16 %v586, %v582
      %v635 = vpack.c.b16 %v591, %v587
      %v636 = vpack.c.b16 %v592, %v588
      %v637 = vpack.c.b16 %v593, %v589
      %v638 = vpack.c.b16 %v594, %v590
      %v639 = vpack.c.b16 %v599, %v595
      %v640 = vpack.c.b16 %v600, %v596
      %v641 = vpack.c.b16 %v601, %v597
      %v642 = vpack.c.b16 %v602, %v598
      %v643 = vpack.c.b16 %v607, %v603
      %v644 = vpack.c.b16 %v608, %v604
      %v645 = vpack.c.b16 %v609, %v605
      %v646 = vpack.c.b16 %v610, %v606
      %v647 = vpack.c.b16 %v615, %v611
      %v648 = vpack.c.b16 %v616, %v612
      %v649 = vpack.c.b16 %v617, %v613
      %v650 = vpack.c.b16 %v618, %v614
      %683 = vmatprep.subr.bf16.mxu0 %v620
      %684 = vmatpush1.bf16.msra.mxu0 %v619
      %685 = vmatprep.subr.bf16.mxu0 %v624
      %686 = vmatpush1.bf16.msra.mxu0 %v623
      %687 = vmatprep.subr.bf16.mxu0 %v628
      %688 = vmatpush1.bf16.msra.mxu0 %v627
      %689 = vmatprep.subr.bf16.mxu0 %v632
      %690 = vmatpush1.bf16.msra.mxu0 %v631
      %691 = vmatprep.subr.bf16.mxu0 %v636
      %692 = vmatpush1.bf16.msra.mxu0 %v635
      %693 = vmatprep.subr.bf16.mxu0 %v640
      %694 = vmatpush1.bf16.msra.mxu0 %v639
      %695 = vmatprep.subr.bf16.mxu0 %v644
      %696 = vmatpush1.bf16.msra.mxu0 %v643
      %697 = vmatprep.subr.bf16.mxu0 %v648
      %698 = vmatpush1.bf16.msra.mxu0 %v647
      %699 = vmatprep.subr.bf16.mxu0 0
      %700 = vmatpush1.bf16.msra.mxu0 0
      %701 = vmatprep.subr.bf16.mxu0 0
      %702 = vmatpush1.bf16.msra.mxu0 0
      %703 = vmatprep.subr.bf16.mxu0 0
      %704 = vmatpush1.bf16.msra.mxu0 0
      %705 = vmatprep.subr.bf16.mxu0 0
      %706 = vmatpush1.bf16.msra.mxu0 0
      %707 = vmatprep.subr.bf16.mxu0 0
      %708 = vmatpush1.bf16.msra.mxu0 0
      %709 = vmatprep.subr.bf16.mxu0 0
      %710 = vmatpush1.bf16.msra.mxu0 0
      %711 = vmatprep.subr.bf16.mxu0 0
      %712 = vmatpush1.bf16.msra.mxu0 0
      %713 = vmatprep.subr.bf16.mxu0 0
      %714 = vmatpush1.bf16.msra.mxu0 0
      %715 = vmatprep.mubr.bf16.mxu0 0
      %716 = vmatmul.mubr.bf16.gmra.mrb[0].mxu0 %v522
      %v717 = vpop.f32.mrb[0].mxu0
      %v718 = vadd.f32 0.0, %v717
      %v719 = vpop.f32.mrb[0].mxu0
      %v720 = vadd.f32 0.0, %v719
      %v721 = vpop.f32.mrb[0].mxu0
      %v722 = vadd.f32 0.0, %v721
      %v723 = vpop.f32.mrb[0].mxu0
      %v724 = vadd.f32 0.0, %v723
      %725 = vdwg.mxu0
      %726 = vmatprep.subr.bf16.mxu0 %v622
      %727 = vmatpush1.bf16.msra.mxu0 %v621
      %728 = vmatprep.subr.bf16.mxu0 %v626
      %729 = vmatpush1.bf16.msra.mxu0 %v625
      %730 = vmatprep.subr.bf16.mxu0 %v630
      %731 = vmatpush1.bf16.msra.mxu0 %v629
      %732 = vmatprep.subr.bf16.mxu0 %v634
      %733 = vmatpush1.bf16.msra.mxu0 %v633
      %734 = vmatprep.subr.bf16.mxu0 %v638
      %735 = vmatpush1.bf16.msra.mxu0 %v637
      %736 = vmatprep.subr.bf16.mxu0 %v642
      %737 = vmatpush1.bf16.msra.mxu0 %v641
      %738 = vmatprep.subr.bf16.mxu0 %v646
      %739 = vmatpush1.bf16.msra.mxu0 %v645
      %740 = vmatprep.subr.bf16.mxu0 %v650
      %741 = vmatpush1.bf16.msra.mxu0 %v649
      %742 = vmatprep.subr.bf16.mxu0 0
      %743 = vmatpush1.bf16.msra.mxu0 0
      %744 = vmatprep.subr.bf16.mxu0 0
      %745 = vmatpush1.bf16.msra.mxu0 0
      %746 = vmatprep.subr.bf16.mxu0 0
      %747 = vmatpush1.bf16.msra.mxu0 0
      %748 = vmatprep.subr.bf16.mxu0 0
      %749 = vmatpush1.bf16.msra.mxu0 0
      %750 = vmatprep.subr.bf16.mxu0 0
      %751 = vmatpush1.bf16.msra.mxu0 0
      %752 = vmatprep.subr.bf16.mxu0 0
      %753 = vmatpush1.bf16.msra.mxu0 0
      %754 = vmatprep.subr.bf16.mxu0 0
      %755 = vmatpush1.bf16.msra.mxu0 0
      %756 = vmatprep.subr.bf16.mxu0 0
      %757 = vmatpush1.bf16.msra.mxu0 0
      %758 = vmatprep.mubr.bf16.mxu0 0
      %759 = vmatmul.mubr.bf16.gmra.mrb[0].mxu0 %v522
      %v760 = vpop.f32.mrb[0].mxu0
      %v761 = vadd.f32 0.0, %v760
      %v762 = vpop.f32.mrb[0].mxu0
      %v763 = vadd.f32 0.0, %v762
      %v764 = vpop.f32.mrb[0].mxu0
      %v765 = vadd.f32 0.0, %v764
      %v766 = vpop.f32.mrb[0].mxu0
      %v767 = vadd.f32 0.0, %v766
      %768 = vdwg.mxu0
      %v769 = vadd.f32 %v514, %v718
      %v770 = vadd.f32 %v515, %v720
      %v771 = vadd.f32 %v516, %v761
      %v772 = vadd.f32 %v517, %v763
      %v773 = vadd.f32 %v518, %v722
      %v774 = vadd.f32 %v519, %v724
      %v775 = vadd.f32 %v520, %v765
      %v776 = vadd.f32 %v521, %v767
      %v777 = vxor.u32 %v769, 2147483648
      %v778 = vxor.u32 %v770, 2147483648
      %v779 = vxor.u32 %v771, 2147483648
      %v780 = vxor.u32 %v773, 2147483648
      %v781 = vxor.u32 %v774, 2147483648
      %v782 = vxor.u32 %v775, 2147483648
      %v783 = vmul.f32 %v777, 1.442695
      %v784 = vpow.pop %v783
      %v785 = vmul.f32 %v778, 1.442695
      %v786 = vpow.pop %v785
      %v787 = vmul.f32 %v779, 1.442695
      %v788 = vpow.pop %v787
      %v789 = vmul.f32 %v780, 1.442695
      %v790 = vpow.pop %v789
      %v791 = vmul.f32 %v781, 1.442695
      %v792 = vpow.pop %v791
      %v793 = vmul.f32 %v782, 1.442695
      %v794 = vpow.pop %v793
      %v795 = vadd.f32 %v784, 1.0
      %v796 = vadd.f32 %v786, 1.0
      %v797 = vadd.f32 %v788, 1.0
      %v798 = vadd.f32 %v790, 1.0
      %v799 = vadd.f32 %v792, 1.0
      %v800 = vadd.f32 %v794, 1.0
      %v801 = vrcp.pop %v795
      %v802 = vmul.f32 1.0, %v801
      %v803 = vrcp.pop %v796
      %v804 = vmul.f32 1.0, %v803
      %v805 = vrcp.pop %v797
      %v806 = vmul.f32 1.0, %v805
      %v807 = vrcp.pop %v798
      %v808 = vmul.f32 1.0, %v807
      %v809 = vrcp.pop %v799
      %v810 = vmul.f32 1.0, %v809
      %v811 = vrcp.pop %v800
      %v812 = vmul.f32 1.0, %v811
      %v813 = vtanh.pop %v772
      %v814 = vtanh.pop %v776
      %v815 = vmul.f32 %v804, %v171
      %v816 = vmul.f32 %v810, %v172
      %v817 = vmul.f32 %v802, %v813
      %v818 = vmul.f32 %v808, %v814
      %v819 = vadd.f32 %v815, %v817
      %v820 = vadd.f32 %v816, %v818
      %v821 = vtanh.pop %v819
      %v822 = vtanh.pop %v820
      %v823 = vmul.f32 %v806, %v821
      %v824 = vmul.f32 %v812, %v822
      %v825 = vpack.c.bf16 %v824, %v823
      %v827 = vunpack.c.l.b16 %v825
      %v828 = vunpack.c.h.b16 %v825
      %v829 = vpack.c.b16 %v827, %v827
      %v830 = vpack.c.b16 %v828, %v828
      %s833 = smul.u32 %s175, 2
      %s834 = smul.addr %s833, 4
      %s835 = scalar_lea.vmem %s71, %s834
      %836 = vst [vmem:[%s835] sm:$0xf] %v829
      %837 = vst [vmem:[%s835 + $0x4] sm:$0xf] %v830
      %s838 = ssub.s32 6, %s173
      %s839 = smul.u32 %s174, 8
      %s840 = smul.addr %s839, 4
      %s841 = scalar_lea.vmem %s0, %s840
      %v842 = vld [vmem:[%s841] sm:$0xff]
      %v843 = vld [vmem:[%s841 + $0x8] sm:$0xff]
      %v844 = vld [vmem:[%s841 + $0x10] sm:$0xff]
      %v845 = vld [vmem:[%s841 + $0x18] sm:$0xff]
      %v846 = vunpack.c.l.bf16 %v842
      %v847 = vunpack.c.h.bf16 %v842
      %v848 = vunpack.c.l.bf16 %v843
      %v849 = vunpack.c.h.bf16 %v843
      %v850 = vunpack.c.l.bf16 %v844
      %v851 = vunpack.c.h.bf16 %v844
      %v852 = vunpack.c.l.bf16 %v845
      %v853 = vunpack.c.h.bf16 %v845
      %854 = vmatprep.subr.bf16.mxu0 %v289
      %855 = vmatpush1.bf16.msra.mxu0 %v288
      %856 = vmatprep.subr.bf16.mxu0 %v293
      %857 = vmatpush1.bf16.msra.mxu0 %v292
      %858 = vmatprep.subr.bf16.mxu0 %v297
      %859 = vmatpush1.bf16.msra.mxu0 %v296
      %860 = vmatprep.subr.bf16.mxu0 %v301
      %861 = vmatpush1.bf16.msra.mxu0 %v300
      %862 = vmatprep.subr.bf16.mxu0 %v305
      %863 = vmatpush1.bf16.msra.mxu0 %v304
      %864 = vmatprep.subr.bf16.mxu0 %v309
      %865 = vmatpush1.bf16.msra.mxu0 %v308
      %866 = vmatprep.subr.bf16.mxu0 %v313
      %867 = vmatpush1.bf16.msra.mxu0 %v312
      %868 = vmatprep.subr.bf16.mxu0 %v317
      %869 = vmatpush1.bf16.msra.mxu0 %v316
      %870 = vmatprep.subr.bf16.mxu0 0
      %871 = vmatpush1.bf16.msra.mxu0 0
      %872 = vmatprep.subr.bf16.mxu0 0
      %873 = vmatpush1.bf16.msra.mxu0 0
      %874 = vmatprep.subr.bf16.mxu0 0
      %875 = vmatpush1.bf16.msra.mxu0 0
      %876 = vmatprep.subr.bf16.mxu0 0
      %877 = vmatpush1.bf16.msra.mxu0 0
      %878 = vmatprep.subr.bf16.mxu0 0
      %879 = vmatpush1.bf16.msra.mxu0 0
      %880 = vmatprep.subr.bf16.mxu0 0
      %881 = vmatpush1.bf16.msra.mxu0 0
      %882 = vmatprep.subr.bf16.mxu0 0
      %883 = vmatpush1.bf16.msra.mxu0 0
      %884 = vmatprep.subr.bf16.mxu0 0
      %885 = vmatpush1.bf16.msra.mxu0 0
      %886 = vmatprep.mubr.bf16.mxu0 0
      %887 = vmatmul.mubr.bf16.gmra.mrb[0].mxu0 %v494
      %v888 = vpop.f32.mrb[0].mxu0
      %v889 = vadd.f32 0.0, %v888
      %v890 = vpop.f32.mrb[0].mxu0
      %v891 = vadd.f32 0.0, %v890
      %v892 = vpop.f32.mrb[0].mxu0
      %v893 = vadd.f32 0.0, %v892
      %v894 = vpop.f32.mrb[0].mxu0
      %v895 = vadd.f32 0.0, %v894
      %896 = vdwg.mxu0
      %897 = vmatprep.subr.bf16.mxu0 %v291
      %898 = vmatpush1.bf16.msra.mxu0 %v290
      %899 = vmatprep.subr.bf16.mxu0 %v295
      %900 = vmatpush1.bf16.msra.mxu0 %v294
      %901 = vmatprep.subr.bf16.mxu0 %v299
      %902 = vmatpush1.bf16.msra.mxu0 %v298
      %903 = vmatprep.subr.bf16.mxu0 %v303
      %904 = vmatpush1.bf16.msra.mxu0 %v302
      %905 = vmatprep.subr.bf16.mxu0 %v307
      %906 = vmatpush1.bf16.msra.mxu0 %v306
      %907 = vmatprep.subr.bf16.mxu0 %v311
      %908 = vmatpush1.bf16.msra.mxu0 %v310
      %909 = vmatprep.subr.bf16.mxu0 %v315
      %910 = vmatpush1.bf16.msra.mxu0 %v314
      %911 = vmatprep.subr.bf16.mxu0 %v319
      %912 = vmatpush1.bf16.msra.mxu0 %v318
      %913 = vmatprep.subr.bf16.mxu0 0
      %914 = vmatpush1.bf16.msra.mxu0 0
      %915 = vmatprep.subr.bf16.mxu0 0
      %916 = vmatpush1.bf16.msra.mxu0 0
      %917 = vmatprep.subr.bf16.mxu0 0
      %918 = vmatpush1.bf16.msra.mxu0 0
      %919 = vmatprep.subr.bf16.mxu0 0
      %920 = vmatpush1.bf16.msra.mxu0 0
      %921 = vmatprep.subr.bf16.mxu0 0
      %922 = vmatpush1.bf16.msra.mxu0 0
      %923 = vmatprep.subr.bf16.mxu0 0
      %924 = vmatpush1.bf16.msra.mxu0 0
      %925 = vmatprep.subr.bf16.mxu0 0
      %926 = vmatpush1.bf16.msra.mxu0 0
      %927 = vmatprep.subr.bf16.mxu0 0
      %928 = vmatpush1.bf16.msra.mxu0 0
      %929 = vmatprep.mubr.bf16.mxu0 0
      %930 = vmatmul.mubr.bf16.gmra.mrb[0].mxu0 %v494
      %v931 = vpop.f32.mrb[0].mxu0
      %v932 = vadd.f32 0.0, %v931
      %v933 = vpop.f32.mrb[0].mxu0
      %v934 = vadd.f32 0.0, %v933
      %v935 = vpop.f32.mrb[0].mxu0
      %v936 = vadd.f32 0.0, %v935
      %v937 = vpop.f32.mrb[0].mxu0
      %v938 = vadd.f32 0.0, %v937
      %939 = vdwg.mxu0
      %v940 = vadd.f32 %v846, %v889
      %v941 = vadd.f32 %v847, %v891
      %v942 = vadd.f32 %v848, %v932
      %v943 = vadd.f32 %v849, %v934
      %v944 = vadd.f32 %v850, %v893
      %v945 = vadd.f32 %v851, %v895
      %v946 = vadd.f32 %v852, %v936
      %v947 = vadd.f32 %v853, %v938
      %v948 = vxor.u32 %v940, 2147483648
      %v949 = vxor.u32 %v941, 2147483648
      %v950 = vxor.u32 %v942, 2147483648
      %v951 = vxor.u32 %v944, 2147483648
      %v952 = vxor.u32 %v945, 2147483648
      %v953 = vxor.u32 %v946, 2147483648
      %v954 = vmul.f32 %v948, 1.442695
      %v955 = vpow.pop %v954
      %v956 = vmul.f32 %v949, 1.442695
      %v957 = vpow.pop %v956
      %v958 = vmul.f32 %v950, 1.442695
      %v959 = vpow.pop %v958
      %v960 = vmul.f32 %v951, 1.442695
      %v961 = vpow.pop %v960
      %v962 = vmul.f32 %v952, 1.442695
      %v963 = vpow.pop %v962
      %v964 = vmul.f32 %v953, 1.442695
      %v965 = vpow.pop %v964
      %v966 = vadd.f32 %v955, 1.0
      %v967 = vadd.f32 %v957, 1.0
      %v968 = vadd.f32 %v959, 1.0
      %v969 = vadd.f32 %v961, 1.0
      %v970 = vadd.f32 %v963, 1.0
      %v971 = vadd.f32 %v965, 1.0
      %v972 = vrcp.pop %v966
      %v973 = vmul.f32 1.0, %v972
      %v974 = vrcp.pop %v967
      %v975 = vmul.f32 1.0, %v974
      %v976 = vrcp.pop %v968
      %v977 = vmul.f32 1.0, %v976
      %v978 = vrcp.pop %v969
      %v979 = vmul.f32 1.0, %v978
      %v980 = vrcp.pop %v970
      %v981 = vmul.f32 1.0, %v980
      %v982 = vrcp.pop %v971
      %v983 = vmul.f32 1.0, %v982
      %v984 = vtanh.pop %v943
      %v985 = vtanh.pop %v947
      %v986 = vmul.f32 %v975, %v488
      %v987 = vmul.f32 %v981, %v489
      %v988 = vmul.f32 %v973, %v984
      %v989 = vmul.f32 %v979, %v985
      %v990 = vadd.f32 %v986, %v988
      %v991 = vadd.f32 %v987, %v989
      %v992 = vtanh.pop %v990
      %v993 = vtanh.pop %v991
      %v994 = vmul.f32 %v977, %v992
      %v995 = vmul.f32 %v983, %v993
      %v996 = vpack.c.bf16 %v995, %v994
      %v998 = vunpack.c.l.b16 %v996
      %v999 = vunpack.c.h.b16 %v996
      %v1000 = vpack.c.b16 %v998, %v998
      %v1001 = vpack.c.b16 %v999, %v999
      %s1004 = smul.u32 %s174, 2
      %s1005 = smul.addr %s1004, 4
      %s1006 = scalar_lea.vmem %s4, %s1005
      %1007 = vst [vmem:[%s1006] sm:$0xf] %v1000
      %1008 = vst [vmem:[%s1006 + $0x4] sm:$0xf] %v1001
      %s1009 = smul.u32 %s838, 8
      %s1010 = smul.addr %s1009, 4
      %s1011 = scalar_lea.vmem %s62, %s1010
      %v1012 = vld [vmem:[%s1011] sm:$0xff]
      %v1013 = vld [vmem:[%s1011 + $0x8] sm:$0xff]
      %v1014 = vld [vmem:[%s1011 + $0x10] sm:$0xff]
      %v1015 = vld [vmem:[%s1011 + $0x18] sm:$0xff]
      %v1016 = vunpack.c.l.bf16 %v1012
      %v1017 = vunpack.c.h.bf16 %v1012
      %v1018 = vunpack.c.l.bf16 %v1013
      %v1019 = vunpack.c.h.bf16 %v1013
      %v1020 = vunpack.c.l.bf16 %v1014
      %v1021 = vunpack.c.h.bf16 %v1014
      %v1022 = vunpack.c.l.bf16 %v1015
      %v1023 = vunpack.c.h.bf16 %v1015
      %1024 = vmatprep.subr.bf16.mxu0 %v620
      %1025 = vmatpush1.bf16.msra.mxu0 %v619
      %1026 = vmatprep.subr.bf16.mxu0 %v624
      %1027 = vmatpush1.bf16.msra.mxu0 %v623
      %1028 = vmatprep.subr.bf16.mxu0 %v628
      %1029 = vmatpush1.bf16.msra.mxu0 %v627
      %1030 = vmatprep.subr.bf16.mxu0 %v632
      %1031 = vmatpush1.bf16.msra.mxu0 %v631
      %1032 = vmatprep.subr.bf16.mxu0 %v636
      %1033 = vmatpush1.bf16.msra.mxu0 %v635
      %1034 = vmatprep.subr.bf16.mxu0 %v640
      %1035 = vmatpush1.bf16.msra.mxu0 %v639
      %1036 = vmatprep.subr.bf16.mxu0 %v644
      %1037 = vmatpush1.bf16.msra.mxu0 %v643
      %1038 = vmatprep.subr.bf16.mxu0 %v648
      %1039 = vmatpush1.bf16.msra.mxu0 %v647
      %1040 = vmatprep.subr.bf16.mxu0 0
      %1041 = vmatpush1.bf16.msra.mxu0 0
      %1042 = vmatprep.subr.bf16.mxu0 0
      %1043 = vmatpush1.bf16.msra.mxu0 0
      %1044 = vmatprep.subr.bf16.mxu0 0
      %1045 = vmatpush1.bf16.msra.mxu0 0
      %1046 = vmatprep.subr.bf16.mxu0 0
      %1047 = vmatpush1.bf16.msra.mxu0 0
      %1048 = vmatprep.subr.bf16.mxu0 0
      %1049 = vmatpush1.bf16.msra.mxu0 0
      %1050 = vmatprep.subr.bf16.mxu0 0
      %1051 = vmatpush1.bf16.msra.mxu0 0
      %1052 = vmatprep.subr.bf16.mxu0 0
      %1053 = vmatpush1.bf16.msra.mxu0 0
      %1054 = vmatprep.subr.bf16.mxu0 0
      %1055 = vmatpush1.bf16.msra.mxu0 0
      %1056 = vmatprep.mubr.bf16.mxu0 0
      %1057 = vmatmul.mubr.bf16.gmra.mrb[0].mxu0 %v825
      %v1058 = vpop.f32.mrb[0].mxu0
      %v1059 = vadd.f32 0.0, %v1058
      %v1060 = vpop.f32.mrb[0].mxu0
      %v1061 = vadd.f32 0.0, %v1060
      %v1062 = vpop.f32.mrb[0].mxu0
      %v1063 = vadd.f32 0.0, %v1062
      %v1064 = vpop.f32.mrb[0].mxu0
      %v1065 = vadd.f32 0.0, %v1064
      %1066 = vdwg.mxu0
      %1067 = vmatprep.subr.bf16.mxu0 %v622
      %1068 = vmatpush1.bf16.msra.mxu0 %v621
      %1069 = vmatprep.subr.bf16.mxu0 %v626
      %1070 = vmatpush1.bf16.msra.mxu0 %v625
      %1071 = vmatprep.subr.bf16.mxu0 %v630
      %1072 = vmatpush1.bf16.msra.mxu0 %v629
      %1073 = vmatprep.subr.bf16.mxu0 %v634
      %1074 = vmatpush1.bf16.msra.mxu0 %v633
      %1075 = vmatprep.subr.bf16.mxu0 %v638
      %1076 = vmatpush1.bf16.msra.mxu0 %v637
      %1077 = vmatprep.subr.bf16.mxu0 %v642
      %1078 = vmatpush1.bf16.msra.mxu0 %v641
      %1079 = vmatprep.subr.bf16.mxu0 %v646
      %1080 = vmatpush1.bf16.msra.mxu0 %v645
      %1081 = vmatprep.subr.bf16.mxu0 %v650
      %1082 = vmatpush1.bf16.msra.mxu0 %v649
      %1083 = vmatprep.subr.bf16.mxu0 0
      %1084 = vmatpush1.bf16.msra.mxu0 0
      %1085 = vmatprep.subr.bf16.mxu0 0
      %1086 = vmatpush1.bf16.msra.mxu0 0
      %1087 = vmatprep.subr.bf16.mxu0 0
      %1088 = vmatpush1.bf16.msra.mxu0 0
      %1089 = vmatprep.subr.bf16.mxu0 0
      %1090 = vmatpush1.bf16.msra.mxu0 0
      %1091 = vmatprep.subr.bf16.mxu0 0
      %1092 = vmatpush1.bf16.msra.mxu0 0
      %1093 = vmatprep.subr.bf16.mxu0 0
      %1094 = vmatpush1.bf16.msra.mxu0 0
      %1095 = vmatprep.subr.bf16.mxu0 0
      %1096 = vmatpush1.bf16.msra.mxu0 0
      %1097 = vmatprep.subr.bf16.mxu0 0
      %1098 = vmatpush1.bf16.msra.mxu0 0
      %1099 = vmatprep.mubr.bf16.mxu0 0
      %1100 = vmatmul.mubr.bf16.gmra.mrb[0].mxu0 %v825
      %v1101 = vpop.f32.mrb[0].mxu0
      %v1102 = vadd.f32 0.0, %v1101
      %v1103 = vpop.f32.mrb[0].mxu0
      %v1104 = vadd.f32 0.0, %v1103
      %v1105 = vpop.f32.mrb[0].mxu0
      %v1106 = vadd.f32 0.0, %v1105
      %v1107 = vpop.f32.mrb[0].mxu0
      %v1108 = vadd.f32 0.0, %v1107
      %1109 = vdwg.mxu0
      %v1110 = vadd.f32 %v1016, %v1059
      %v1111 = vadd.f32 %v1017, %v1061
      %v1112 = vadd.f32 %v1018, %v1102
      %v1113 = vadd.f32 %v1019, %v1104
      %v1114 = vadd.f32 %v1020, %v1063
      %v1115 = vadd.f32 %v1021, %v1065
      %v1116 = vadd.f32 %v1022, %v1106
      %v1117 = vadd.f32 %v1023, %v1108
      %v1118 = vxor.u32 %v1110, 2147483648
      %v1119 = vxor.u32 %v1111, 2147483648
      %v1120 = vxor.u32 %v1112, 2147483648
      %v1121 = vxor.u32 %v1114, 2147483648
      %v1122 = vxor.u32 %v1115, 2147483648
      %v1123 = vxor.u32 %v1116, 2147483648
      %v1124 = vmul.f32 %v1118, 1.442695
      %v1125 = vpow.pop %v1124
      %v1126 = vmul.f32 %v1119, 1.442695
      %v1127 = vpow.pop %v1126
      %v1128 = vmul.f32 %v1120, 1.442695
      %v1129 = vpow.pop %v1128
      %v1130 = vmul.f32 %v1121, 1.442695
      %v1131 = vpow.pop %v1130
      %v1132 = vmul.f32 %v1122, 1.442695
      %v1133 = vpow.pop %v1132
      %v1134 = vmul.f32 %v1123, 1.442695
      %v1135 = vpow.pop %v1134
      %v1136 = vadd.f32 %v1125, 1.0
      %v1137 = vadd.f32 %v1127, 1.0
      %v1138 = vadd.f32 %v1129, 1.0
      %v1139 = vadd.f32 %v1131, 1.0
      %v1140 = vadd.f32 %v1133, 1.0
      %v1141 = vadd.f32 %v1135, 1.0
      %v1142 = vrcp.pop %v1136
      %v1143 = vmul.f32 1.0, %v1142
      %v1144 = vrcp.pop %v1137
      %v1145 = vmul.f32 1.0, %v1144
      %v1146 = vrcp.pop %v1138
      %v1147 = vmul.f32 1.0, %v1146
      %v1148 = vrcp.pop %v1139
      %v1149 = vmul.f32 1.0, %v1148
      %v1150 = vrcp.pop %v1140
      %v1151 = vmul.f32 1.0, %v1150
      %v1152 = vrcp.pop %v1141
      %v1153 = vmul.f32 1.0, %v1152
      %v1154 = vtanh.pop %v1113
      %v1155 = vtanh.pop %v1117
      %v1156 = vmul.f32 %v1145, %v819
      %v1157 = vmul.f32 %v1151, %v820
      %v1158 = vmul.f32 %v1143, %v1154
      %v1159 = vmul.f32 %v1149, %v1155
      %v1160 = vadd.f32 %v1156, %v1158
      %v1161 = vadd.f32 %v1157, %v1159
      %v1162 = vtanh.pop %v1160
      %v1163 = vtanh.pop %v1161
      %v1164 = vmul.f32 %v1147, %v1162
      %v1165 = vmul.f32 %v1153, %v1163
      %v1166 = vpack.c.bf16 %v1165, %v1164
      %v1168 = vunpack.c.l.b16 %v1166
      %v1169 = vunpack.c.h.b16 %v1166
      %v1170 = vpack.c.b16 %v1168, %v1168
      %v1171 = vpack.c.b16 %v1169, %v1169
      %s1174 = smul.u32 %s838, 2
      %s1175 = smul.addr %s1174, 4
      %s1176 = scalar_lea.vmem %s71, %s1175
      %1177 = vst [vmem:[%s1176] sm:$0xf] %v1170
      %1178 = vst [vmem:[%s1176 + $0x4] sm:$0xf] %v1171
    $region30: #{model_forward.7} parent=1 // loop_footer
      %s164 = sadd.s32 1, %s160
    $region31: #{model_forward.7} parent=1 // loop_footer_branch
      %159 = sbr.rel target = $region27
    $region32: #{model_forward.7} parent=1 // loop_exit
      _
    %1179 = vst [vmem:[#allocation2] sm:$0xff] %v165
    %1180 = vst [vmem:[#allocation2 + $0x8] sm:$0xff] %v166
    %1181 = vst [vmem:[#allocation3] sm:$0xff] %v167
    %1182 = vst [vmem:[#allocation3 + $0x8] sm:$0xff] %v168
    %1183 = vst [vmem:[#allocation4] sm:$0xff] %v169
    %1184 = vst [vmem:[#allocation4 + $0x8] sm:$0xff] %v170
    %1185 = vst [vmem:[#allocation5] sm:$0xff] %v171
    %1186 = vst [vmem:[#allocation5 + $0x8] sm:$0xff] %v172
    %s1187 = ssub.s32 0, 0
    %s1188 = smul.u32 8, %s1187
    %p1189 = scmp.lt.s32.totalorder %s1188, 7
    %s1190 = scalar_select %p1189, %s1188, 7
    %s1191 = smul.addr %s1190, 2
    %s1192 = smul.addr %s1191, 4
    %s1193 = scalar_lea.vmem %s5, %s1192
    // Predicated region
    $region33: #{model_forward.7} parent=1 // pred_check
      _
    $region34: #{model_forward.7} parent=1 // pred_check_branch
      %1195 = sbr.rel (0) target = $region36
    $region35: #{model_forward.7} parent=1 // pred_region
      _
    $region36: #{model_forward.7} parent=1 // pred_fallthru
      _
    // Predicated region
    $region37: #{model_forward.7} parent=1 // pred_check
      _
    $region38: #{model_forward.7} parent=1 // pred_check_branch
      %1197 = sbr.rel (0) target = $region40
    $region39: #{model_forward.7} parent=1 // pred_region
      %s1198 = ssub.s32 0, 0
      %s1199 = smul.u32 8, %s1198
    $region40: #{model_forward.7} parent=1 // pred_fallthru
      _
    // Predicated region
    $region41: #{model_forward.7} parent=1 // pred_check
      _
    $region42: #{model_forward.7} parent=1 // pred_check_branch
      %1201 = sbr.rel (0) target = $region44
    $region43: #{model_forward.7} parent=1 // pred_region
      _
    $region44: #{model_forward.7} parent=1 // pred_fallthru
      _
    // Predicated region
    $region45: #{model_forward.7} parent=1 // pred_check
      _
    $region46: #{model_forward.7} parent=1 // pred_check_branch
      %1203 = sbr.rel (0) target = $region48
    $region47: #{model_forward.7} parent=1 // pred_region
      %s1204 = ssub.s32 0, 0
      %s1205 = smul.u32 8, %s1204
      %p1206 = scmp.lt.s32.totalorder %s1205, 7
      %s1207 = scalar_select %p1206, %s1205, 7
      %s1208 = smul.addr %s1207, 2
      %s1209 = smul.addr %s1208, 4
      %s1210 = scalar_lea.vmem %s5, %s1209
    $region48: #{model_forward.7} parent=1 // pred_fallthru
      _
    %1211 = vsyncpa [#allocation7], 1

// kernel: model_forward.6
$region0: #{model_forward.6}
  #allocation0 [shape = 'u32[]', space=smem, size = 0x4, offset = 0x4, fixed_abs, tag = 'smem constant byte address 0x4 - core index']
  #allocation1 [shape = 'u32[144,128]{1,0:T(1,128)}', space=vmem, size = 0x12000, scoped, tag = 'internal scratch']
  %s0 = inlined_call_operand.vmem [shape: bf16[128,16], index: 0, kind: input, shape index: {}]
  %s1 = inlined_call_operand.vmem [shape: bf16[16,512], index: 1, kind: input, shape index: {}]
  %s2 = inlined_call_operand.vmem [shape: bf16[16,512], index: 2, kind: input, shape index: {}]
  %s3 = inlined_call_operand.vmem [shape: f32[1,512], index: 3, kind: input, shape index: {}]
  %s4 = inlined_call_operand.vmem [shape: f32[1,512], index: 4, kind: input, shape index: {}]
  %s5 = inlined_call_operand.vmem [shape: bf16[128,512], index: 5, kind: output, shape index: {0}]
  %s6 = inlined_call_operand.vmem [shape: bf16[128,512], index: 6, kind: output, shape index: {1}]
  %7 = xla_tuple %s5, %s6
  %s8 = sld [smem:[#allocation0]]
  $region38: #{model_forward.6} parent=0
    _
  %s10 = ssub.s32 1, %s8
  %s11 = scalar_select 0, %s10, %s8
  // Predicated region
  $region2: #{model_forward.6} parent=0 // pred_check
    _
  $region3: #{model_forward.6} parent=0 // pred_check_branch
    %13 = sbr.rel (0) target = $region5
  $region4: #{model_forward.6} parent=0 // pred_region
    _
  $region5: #{model_forward.6} parent=0 // pred_fallthru
    _
  // Predicated region
  $region6: #{model_forward.6} parent=0 // pred_check
    _
  $region7: #{model_forward.6} parent=0 // pred_check_branch
    %15 = sbr.rel (0) target = $region9
  $region8: #{model_forward.6} parent=0 // pred_region
    _
  $region9: #{model_forward.6} parent=0 // pred_fallthru
    _
  // Predicated region
  $region10: #{model_forward.6} parent=0 // pred_check
    _
  $region11: #{model_forward.6} parent=0 // pred_check_branch
    %17 = sbr.rel (0) target = $region13
  $region12: #{model_forward.6} parent=0 // pred_region
    _
  $region13: #{model_forward.6} parent=0 // pred_fallthru
    _
  // Predicated region
  $region14: #{model_forward.6} parent=0 // pred_check
    _
  $region15: #{model_forward.6} parent=0 // pred_check_branch
    %19 = sbr.rel (0) target = $region17
  $region16: #{model_forward.6} parent=0 // pred_region
    _
  $region17: #{model_forward.6} parent=0 // pred_fallthru
    _
  // Predicated region
  $region18: #{model_forward.6} parent=0 // pred_check
    _
  $region19: #{model_forward.6} parent=0 // pred_check_branch
    %21 = sbr.rel (0) target = $region21
  $region20: #{model_forward.6} parent=0 // pred_region
    _
  $region21: #{model_forward.6} parent=0 // pred_fallthru
    _
  %v23 = vld [vmem:[%s0] sm:$0xf]
  %v24 = vld [vmem:[%s0 + $0x4] sm:$0xf]
  %v25 = vld [vmem:[%s0 + $0x8] sm:$0xf]
  %v26 = vld [vmem:[%s0 + $0xc] sm:$0xf]
  %v27 = vld [vmem:[%s0 + $0x10] sm:$0xf]
  %v28 = vld [vmem:[%s0 + $0x14] sm:$0xf]
  %v29 = vld [vmem:[%s0 + $0x18] sm:$0xf]
  %v30 = vld [vmem:[%s0 + $0x1c] sm:$0xf]
  %v31 = vld [vmem:[%s0 + $0x20] sm:$0xf]
  %v32 = vld [vmem:[%s0 + $0x24] sm:$0xf]
  %v33 = vld [vmem:[%s0 + $0x28] sm:$0xf]
  %v34 = vld [vmem:[%s0 + $0x2c] sm:$0xf]
  %v35 = vld [vmem:[%s0 + $0x30] sm:$0xf]
  %v36 = vld [vmem:[%s0 + $0x34] sm:$0xf]
  %v37 = vld [vmem:[%s0 + $0x38] sm:$0xf]
  %v38 = vld [vmem:[%s0 + $0x3c] sm:$0xf]
  %v39 = vld [vmem:[%s1] sm:$0xff]
  %v40 = vld [vmem:[%s1 + $0x8] sm:$0xff]
  %v41 = vld [vmem:[%s1 + $0x10] sm:$0xff]
  %v42 = vld [vmem:[%s1 + $0x18] sm:$0xff]
  %v43 = vld [vmem:[%s3] sm:$0xf]
  %v45 = vlaneseq
  %v46 = vshrl.u32 %v45, 7
  %v47 = vsub.s32 0, %v46
  %v48 = vrot.slane %v43, %v47
  %v49 = vlaneseq
  %v50 = vshrl.u32 %v49, 7
  %v51 = vsub.s32 1, %v50
  %v52 = vrot.slane %v43, %v51
  %v53 = vlaneseq
  %v54 = vshrl.u32 %v53, 7
  %v55 = vsub.s32 2, %v54
  %v56 = vrot.slane %v43, %v55
  %v57 = vlaneseq
  %v58 = vshrl.u32 %v57, 7
  %v59 = vsub.s32 3, %v58
  %v60 = vrot.slane %v43, %v59
  %v81 = vunpack.c.l.b16 %v23
  %v82 = vunpack.c.l.b16 %v24
  %v83 = vunpack.c.l.b16 %v25
  %v84 = vunpack.c.l.b16 %v26
  %v85 = vunpack.c.l.b16 %v27
  %v86 = vunpack.c.l.b16 %v28
  %v87 = vunpack.c.l.b16 %v29
  %v88 = vunpack.c.l.b16 %v30
  %v89 = vunpack.c.l.b16 %v31
  %v90 = vunpack.c.l.b16 %v32
  %v91 = vunpack.c.l.b16 %v33
  %v92 = vunpack.c.l.b16 %v34
  %v93 = vunpack.c.l.b16 %v35
  %v94 = vunpack.c.l.b16 %v36
  %v95 = vunpack.c.l.b16 %v37
  %v96 = vunpack.c.l.b16 %v38
  %v97 = vpack.c.b16 %v82, %v81
  %v98 = vpack.c.b16 %v84, %v83
  %v99 = vpack.c.b16 %v86, %v85
  %v100 = vpack.c.b16 %v88, %v87
  %v101 = vpack.c.b16 %v90, %v89
  %v102 = vpack.c.b16 %v92, %v91
  %v103 = vpack.c.b16 %v94, %v93
  %v104 = vpack.c.b16 %v96, %v95
  %v109 = vunpack.c.l.b16 %v39
  %v110 = vunpack.c.h.b16 %v39
  %v111 = vunpack.c.l.b16 %v40
  %v112 = vunpack.c.h.b16 %v40
  %v113 = vunpack.c.l.b16 %v41
  %v114 = vunpack.c.h.b16 %v41
  %v115 = vunpack.c.l.b16 %v42
  %v116 = vunpack.c.h.b16 %v42
  %v117 = vpack.c.b16 %v113, %v109
  %v118 = vpack.c.b16 %v114, %v110
  %v119 = vpack.c.b16 %v115, %v111
  %v120 = vpack.c.b16 %v116, %v112
  %vm125 = vcmask 130048
  %v127 = vsel %vm125, %v97, 0
  %v130 = vsel %vm125, %v98, 0
  %v133 = vsel %vm125, %v99, 0
  %v136 = vsel %vm125, %v100, 0
  %v139 = vsel %vm125, %v101, 0
  %v142 = vsel %vm125, %v102, 0
  %v145 = vsel %vm125, %v103, 0
  %v148 = vsel %vm125, %v104, 0
  %150 = vmatprep.subr.bf16.mxu0 %v118
  %151 = vmatpush1.bf16.msra.mxu0 %v117
  %152 = vmatprep.subr.bf16.mxu0 0
  %153 = vmatpush1.bf16.msra.mxu0 0
  %154 = vmatprep.subr.bf16.mxu0 0
  %155 = vmatpush1.bf16.msra.mxu0 0
  %156 = vmatprep.subr.bf16.mxu0 0
  %157 = vmatpush1.bf16.msra.mxu0 0
  %158 = vmatprep.subr.bf16.mxu0 0
  %159 = vmatpush1.bf16.msra.mxu0 0
  %160 = vmatprep.subr.bf16.mxu0 0
  %161 = vmatpush1.bf16.msra.mxu0 0
  %162 = vmatprep.subr.bf16.mxu0 0
  %163 = vmatpush1.bf16.msra.mxu0 0
  %164 = vmatprep.subr.bf16.mxu0 0
  %165 = vmatpush1.bf16.msra.mxu0 0
  %166 = vmatprep.subr.bf16.mxu0 0
  %167 = vmatpush1.bf16.msra.mxu0 0
  %168 = vmatprep.subr.bf16.mxu0 0
  %169 = vmatpush1.bf16.msra.mxu0 0
  %170 = vmatprep.subr.bf16.mxu0 0
  %171 = vmatpush1.bf16.msra.mxu0 0
  %172 = vmatprep.subr.bf16.mxu0 0
  %173 = vmatpush1.bf16.msra.mxu0 0
  %174 = vmatprep.subr.bf16.mxu0 0
  %175 = vmatpush1.bf16.msra.mxu0 0
  %176 = vmatprep.subr.bf16.mxu0 0
  %177 = vmatpush1.bf16.msra.mxu0 0
  %178 = vmatprep.subr.bf16.mxu0 0
  %179 = vmatpush1.bf16.msra.mxu0 0
  %180 = vmatprep.subr.bf16.mxu0 0
  %181 = vmatpush1.bf16.msra.mxu0 0
  %182 = vmatprep.mubr.bf16.mxu0 0
  %183 = vmatmul.mubr.bf16.gmra.mrb[0].mxu0 %v127
  %v184 = vpop.f32.mrb[0].mxu0
  %v185 = vadd.f32 %v48, %v184
  %v186 = vpop.f32.mrb[0].mxu0
  %v187 = vadd.f32 %v52, %v186
  %v188 = vpop.f32.mrb[0].mxu0
  %v189 = vadd.f32 %v48, %v188
  %v190 = vpop.f32.mrb[0].mxu0
  %v191 = vadd.f32 %v52, %v190
  %192 = vmatprep.mubr.bf16.mxu0 0
  %193 = vmatmul.mubr.bf16.gmra.mrb[0].mxu0 %v130
  %v194 = vpop.f32.mrb[0].mxu0
  %v195 = vadd.f32 %v48, %v194
  %v196 = vpop.f32.mrb[0].mxu0
  %v197 = vadd.f32 %v52, %v196
  %v198 = vpop.f32.mrb[0].mxu0
  %v199 = vadd.f32 %v48, %v198
  %v200 = vpop.f32.mrb[0].mxu0
  %v201 = vadd.f32 %v52, %v200
  %202 = vmatprep.mubr.bf16.mxu0 0
  %203 = vmatmul.mubr.bf16.gmra.mrb[0].mxu0 %v133
  %v204 = vpop.f32.mrb[0].mxu0
  %v205 = vadd.f32 %v48, %v204
  %v206 = vpop.f32.mrb[0].mxu0
  %v207 = vadd.f32 %v52, %v206
  %v208 = vpop.f32.mrb[0].mxu0
  %v209 = vadd.f32 %v48, %v208
  %v210 = vpop.f32.mrb[0].mxu0
  %v211 = vadd.f32 %v52, %v210
  %212 = vmatprep.mubr.bf16.mxu0 0
  %213 = vmatmul.mubr.bf16.gmra.mrb[0].mxu0 %v136
  %v214 = vpop.f32.mrb[0].mxu0
  %v215 = vadd.f32 %v48, %v214
  %v216 = vpop.f32.mrb[0].mxu0
  %v217 = vadd.f32 %v52, %v216
  %v218 = vpop.f32.mrb[0].mxu0
  %v219 = vadd.f32 %v48, %v218
  %v220 = vpop.f32.mrb[0].mxu0
  %v221 = vadd.f32 %v52, %v220
  %222 = vmatprep.mubr.bf16.mxu0 0
  %223 = vmatmul.mubr.bf16.gmra.mrb[0].mxu0 %v139
  %v224 = vpop.f32.mrb[0].mxu0
  %v225 = vadd.f32 %v48, %v224
  %v226 = vpop.f32.mrb[0].mxu0
  %v227 = vadd.f32 %v52, %v226
  %v228 = vpop.f32.mrb[0].mxu0
  %v229 = vadd.f32 %v48, %v228
  %v230 = vpop.f32.mrb[0].mxu0
  %v231 = vadd.f32 %v52, %v230
  %232 = vmatprep.mubr.bf16.mxu0 0
  %233 = vmatmul.mubr.bf16.gmra.mrb[0].mxu0 %v142
  %v234 = vpop.f32.mrb[0].mxu0
  %v235 = vadd.f32 %v48, %v234
  %v236 = vpop.f32.mrb[0].mxu0
  %v237 = vadd.f32 %v52, %v236
  %v238 = vpop.f32.mrb[0].mxu0
  %v239 = vadd.f32 %v48, %v238
  %v240 = vpop.f32.mrb[0].mxu0
  %v241 = vadd.f32 %v52, %v240
  %242 = vmatprep.mubr.bf16.mxu0 0
  %243 = vmatmul.mubr.bf16.gmra.mrb[0].mxu0 %v145
  %v244 = vpop.f32.mrb[0].mxu0
  %v245 = vadd.f32 %v48, %v244
  %v246 = vpop.f32.mrb[0].mxu0
  %v247 = vadd.f32 %v52, %v246
  %v248 = vpop.f32.mrb[0].mxu0
  %v249 = vadd.f32 %v48, %v248
  %v250 = vpop.f32.mrb[0].mxu0
  %v251 = vadd.f32 %v52, %v250
  %252 = vmatprep.mubr.bf16.mxu0 0
  %253 = vmatmul.mubr.bf16.gmra.mrb[0].mxu0 %v148
  %v254 = vpop.f32.mrb[0].mxu0
  %v255 = vadd.f32 %v48, %v254
  %v256 = vpop.f32.mrb[0].mxu0
  %v257 = vadd.f32 %v52, %v256
  %v258 = vpop.f32.mrb[0].mxu0
  %v259 = vadd.f32 %v48, %v258
  %v260 = vpop.f32.mrb[0].mxu0
  %v261 = vadd.f32 %v52, %v260
  %262 = vdwg.mxu0
  %263 = vmatprep.subr.bf16.mxu0 %v120
  %264 = vmatpush1.bf16.msra.mxu0 %v119
  %265 = vmatprep.subr.bf16.mxu0 0
  %266 = vmatpush1.bf16.msra.mxu0 0
  %267 = vmatprep.subr.bf16.mxu0 0
  %268 = vmatpush1.bf16.msra.mxu0 0
  %269 = vmatprep.subr.bf16.mxu0 0
  %270 = vmatpush1.bf16.msra.mxu0 0
  %271 = vmatprep.subr.bf16.mxu0 0
  %272 = vmatpush1.bf16.msra.mxu0 0
  %273 = vmatprep.subr.bf16.mxu0 0
  %274 = vmatpush1.bf16.msra.mxu0 0
  %275 = vmatprep.subr.bf16.mxu0 0
  %276 = vmatpush1.bf16.msra.mxu0 0
  %277 = vmatprep.subr.bf16.mxu0 0
  %278 = vmatpush1.bf16.msra.mxu0 0
  %279 = vmatprep.subr.bf16.mxu0 0
  %280 = vmatpush1.bf16.msra.mxu0 0
  %281 = vmatprep.subr.bf16.mxu0 0
  %282 = vmatpush1.bf16.msra.mxu0 0
  %283 = vmatprep.subr.bf16.mxu0 0
  %284 = vmatpush1.bf16.msra.mxu0 0
  %285 = vmatprep.subr.bf16.mxu0 0
  %286 = vmatpush1.bf16.msra.mxu0 0
  %287 = vmatprep.subr.bf16.mxu0 0
  %288 = vmatpush1.bf16.msra.mxu0 0
  %289 = vmatprep.subr.bf16.mxu0 0
  %290 = vmatpush1.bf16.msra.mxu0 0
  %291 = vmatprep.subr.bf16.mxu0 0
  %292 = vmatpush1.bf16.msra.mxu0 0
  %293 = vmatprep.subr.bf16.mxu0 0
  %294 = vmatpush1.bf16.msra.mxu0 0
  %295 = vmatprep.mubr.bf16.mxu0 0
  %296 = vmatmul.mubr.bf16.gmra.mrb[0].mxu0 %v127
  %v297 = vpop.f32.mrb[0].mxu0
  %v298 = vadd.f32 %v56, %v297
  %v299 = vpop.f32.mrb[0].mxu0
  %v300 = vadd.f32 %v60, %v299
  %v301 = vpop.f32.mrb[0].mxu0
  %v302 = vadd.f32 %v56, %v301
  %v303 = vpop.f32.mrb[0].mxu0
  %v304 = vadd.f32 %v60, %v303
  %305 = vmatprep.mubr.bf16.mxu0 0
  %306 = vmatmul.mubr.bf16.gmra.mrb[0].mxu0 %v130
  %v307 = vpop.f32.mrb[0].mxu0
  %v308 = vadd.f32 %v56, %v307
  %v309 = vpop.f32.mrb[0].mxu0
  %v310 = vadd.f32 %v60, %v309
  %v311 = vpop.f32.mrb[0].mxu0
  %v312 = vadd.f32 %v56, %v311
  %v313 = vpop.f32.mrb[0].mxu0
  %v314 = vadd.f32 %v60, %v313
  %315 = vmatprep.mubr.bf16.mxu0 0
  %316 = vmatmul.mubr.bf16.gmra.mrb[0].mxu0 %v133
  %v317 = vpop.f32.mrb[0].mxu0
  %v318 = vadd.f32 %v56, %v317
  %v319 = vpop.f32.mrb[0].mxu0
  %v320 = vadd.f32 %v60, %v319
  %v321 = vpop.f32.mrb[0].mxu0
  %v322 = vadd.f32 %v56, %v321
  %v323 = vpop.f32.mrb[0].mxu0
  %v324 = vadd.f32 %v60, %v323
  %325 = vmatprep.mubr.bf16.mxu0 0
  %326 = vmatmul.mubr.bf16.gmra.mrb[0].mxu0 %v136
  %v327 = vpop.f32.mrb[0].mxu0
  %v328 = vadd.f32 %v56, %v327
  %v329 = vpop.f32.mrb[0].mxu0
  %v330 = vadd.f32 %v60, %v329
  %v331 = vpop.f32.mrb[0].mxu0
  %v332 = vadd.f32 %v56, %v331
  %v333 = vpop.f32.mrb[0].mxu0
  %v334 = vadd.f32 %v60, %v333
  %335 = vmatprep.mubr.bf16.mxu0 0
  %336 = vmatmul.mubr.bf16.gmra.mrb[0].mxu0 %v139
  %v337 = vpop.f32.mrb[0].mxu0
  %v338 = vadd.f32 %v56, %v337
  %v339 = vpop.f32.mrb[0].mxu0
  %v340 = vadd.f32 %v60, %v339
  %v341 = vpop.f32.mrb[0].mxu0
  %v342 = vadd.f32 %v56, %v341
  %v343 = vpop.f32.mrb[0].mxu0
  %v344 = vadd.f32 %v60, %v343
  %345 = vmatprep.mubr.bf16.mxu0 0
  %346 = vmatmul.mubr.bf16.gmra.mrb[0].mxu0 %v142
  %v347 = vpop.f32.mrb[0].mxu0
  %v348 = vadd.f32 %v56, %v347
  %v349 = vpop.f32.mrb[0].mxu0
  %v350 = vadd.f32 %v60, %v349
  %v351 = vpop.f32.mrb[0].mxu0
  %v352 = vadd.f32 %v56, %v351
  %v353 = vpop.f32.mrb[0].mxu0
  %v354 = vadd.f32 %v60, %v353
  %355 = vmatprep.mubr.bf16.mxu0 0
  %356 = vmatmul.mubr.bf16.gmra.mrb[0].mxu0 %v145
  %v357 = vpop.f32.mrb[0].mxu0
  %v358 = vadd.f32 %v56, %v357
  %v359 = vpop.f32.mrb[0].mxu0
  %v360 = vadd.f32 %v60, %v359
  %v361 = vpop.f32.mrb[0].mxu0
  %v362 = vadd.f32 %v56, %v361
  %v363 = vpop.f32.mrb[0].mxu0
  %v364 = vadd.f32 %v60, %v363
  %365 = vmatprep.mubr.bf16.mxu0 0
  %366 = vmatmul.mubr.bf16.gmra.mrb[0].mxu0 %v148
  %v367 = vpop.f32.mrb[0].mxu0
  %v368 = vadd.f32 %v56, %v367
  %v369 = vpop.f32.mrb[0].mxu0
  %v370 = vadd.f32 %v60, %v369
  %v371 = vpop.f32.mrb[0].mxu0
  %v372 = vadd.f32 %v56, %v371
  %v373 = vpop.f32.mrb[0].mxu0
  %v374 = vadd.f32 %v60, %v373
  %375 = vdwg.mxu0
  %v376 = vpack.c.bf16 %v189, %v185
  %v377 = vpack.c.bf16 %v191, %v187
  %v378 = vpack.c.bf16 %v302, %v298
  %v379 = vpack.c.bf16 %v304, %v300
  %v380 = vpack.c.bf16 %v199, %v195
  %v381 = vpack.c.bf16 %v201, %v197
  %v382 = vpack.c.bf16 %v312, %v308
  %v383 = vpack.c.bf16 %v314, %v310
  %v384 = vpack.c.bf16 %v209, %v205
  %v385 = vpack.c.bf16 %v211, %v207
  %v386 = vpack.c.bf16 %v322, %v318
  %v387 = vpack.c.bf16 %v324, %v320
  %v388 = vpack.c.bf16 %v219, %v215
  %v389 = vpack.c.bf16 %v221, %v217
  %v390 = vpack.c.bf16 %v332, %v328
  %v391 = vpack.c.bf16 %v334, %v330
  %v392 = vpack.c.bf16 %v229, %v225
  %v393 = vpack.c.bf16 %v231, %v227
  %v394 = vpack.c.bf16 %v342, %v338
  %v395 = vpack.c.bf16 %v344, %v340
  %v396 = vpack.c.bf16 %v239, %v235
  %v397 = vpack.c.bf16 %v241, %v237
  %v398 = vpack.c.bf16 %v352, %v348
  %v399 = vpack.c.bf16 %v354, %v350
  %v400 = vpack.c.bf16 %v249, %v245
  %v401 = vpack.c.bf16 %v251, %v247
  %v402 = vpack.c.bf16 %v362, %v358
  %v403 = vpack.c.bf16 %v364, %v360
  %v404 = vpack.c.bf16 %v259, %v255
  %v405 = vpack.c.bf16 %v261, %v257
  %v406 = vpack.c.bf16 %v372, %v368
  %v407 = vpack.c.bf16 %v374, %v370
  %v440 = vunpack.c.l.b16 %v376
  %v441 = vunpack.c.l.b16 %v377
  %v442 = vunpack.c.l.b16 %v378
  %v443 = vunpack.c.l.b16 %v379
  %v444 = vunpack.c.h.b16 %v376
  %v445 = vunpack.c.h.b16 %v377
  %v446 = vunpack.c.h.b16 %v378
  %v447 = vunpack.c.h.b16 %v379
  %v448 = vunpack.c.l.b16 %v380
  %v449 = vunpack.c.l.b16 %v381
  %v450 = vunpack.c.l.b16 %v382
  %v451 = vunpack.c.l.b16 %v383
  %v452 = vunpack.c.h.b16 %v380
  %v453 = vunpack.c.h.b16 %v381
  %v454 = vunpack.c.h.b16 %v382
  %v455 = vunpack.c.h.b16 %v383
  %v456 = vunpack.c.l.b16 %v384
  %v457 = vunpack.c.l.b16 %v385
  %v458 = vunpack.c.l.b16 %v386
  %v459 = vunpack.c.l.b16 %v387
  %v460 = vunpack.c.h.b16 %v384
  %v461 = vunpack.c.h.b16 %v385
  %v462 = vunpack.c.h.b16 %v386
  %v463 = vunpack.c.h.b16 %v387
  %v464 = vunpack.c.l.b16 %v388
  %v465 = vunpack.c.l.b16 %v389
  %v466 = vunpack.c.l.b16 %v390
  %v467 = vunpack.c.l.b16 %v391
  %v468 = vunpack.c.h.b16 %v388
  %v469 = vunpack.c.h.b16 %v389
  %v470 = vunpack.c.h.b16 %v390
  %v471 = vunpack.c.h.b16 %v391
  %v472 = vunpack.c.l.b16 %v392
  %v473 = vunpack.c.l.b16 %v393
  %v474 = vunpack.c.l.b16 %v394
  %v475 = vunpack.c.l.b16 %v395
  %v476 = vunpack.c.h.b16 %v392
  %v477 = vunpack.c.h.b16 %v393
  %v478 = vunpack.c.h.b16 %v394
  %v479 = vunpack.c.h.b16 %v395
  %v480 = vunpack.c.l.b16 %v396
  %v481 = vunpack.c.l.b16 %v397
  %v482 = vunpack.c.l.b16 %v398
  %v483 = vunpack.c.l.b16 %v399
  %v484 = vunpack.c.h.b16 %v396
  %v485 = vunpack.c.h.b16 %v397
  %v486 = vunpack.c.h.b16 %v398
  %v487 = vunpack.c.h.b16 %v399
  %v488 = vunpack.c.l.b16 %v400
  %v489 = vunpack.c.l.b16 %v401
  %v490 = vunpack.c.l.b16 %v402
  %v491 = vunpack.c.l.b16 %v403
  %v492 = vunpack.c.h.b16 %v400
  %v493 = vunpack.c.h.b16 %v401
  %v494 = vunpack.c.h.b16 %v402
  %v495 = vunpack.c.h.b16 %v403
  %v496 = vunpack.c.l.b16 %v404
  %v497 = vunpack.c.l.b16 %v405
  %v498 = vunpack.c.l.b16 %v406
  %v499 = vunpack.c.l.b16 %v407
  %v500 = vunpack.c.h.b16 %v404
  %v501 = vunpack.c.h.b16 %v405
  %v502 = vunpack.c.h.b16 %v406
  %v503 = vunpack.c.h.b16 %v407
  %v504 = vpack.c.b16 %v441, %v440
  %v505 = vpack.c.b16 %v443, %v442
  %v506 = vpack.c.b16 %v445, %v444
  %v507 = vpack.c.b16 %v447, %v446
  %v508 = vpack.c.b16 %v449, %v448
  %v509 = vpack.c.b16 %v451, %v450
  %v510 = vpack.c.b16 %v453, %v452
  %v511 = vpack.c.b16 %v455, %v454
  %v512 = vpack.c.b16 %v457, %v456
  %v513 = vpack.c.b16 %v459, %v458
  %v514 = vpack.c.b16 %v461, %v460
  %v515 = vpack.c.b16 %v463, %v462
  %v516 = vpack.c.b16 %v465, %v464
  %v517 = vpack.c.b16 %v467, %v466
  %v518 = vpack.c.b16 %v469, %v468
  %v519 = vpack.c.b16 %v471, %v470
  %v520 = vpack.c.b16 %v473, %v472
  %v521 = vpack.c.b16 %v475, %v474
  %v522 = vpack.c.b16 %v477, %v476
  %v523 = vpack.c.b16 %v479, %v478
  %v524 = vpack.c.b16 %v481, %v480
  %v525 = vpack.c.b16 %v483, %v482
  %v526 = vpack.c.b16 %v485, %v484
  %v527 = vpack.c.b16 %v487, %v486
  %v528 = vpack.c.b16 %v489, %v488
  %v529 = vpack.c.b16 %v491, %v490
  %v530 = vpack.c.b16 %v493, %v492
  %v531 = vpack.c.b16 %v495, %v494
  %v532 = vpack.c.b16 %v497, %v496
  %v533 = vpack.c.b16 %v499, %v498
  %v534 = vpack.c.b16 %v501, %v500
  %v535 = vpack.c.b16 %v503, %v502
  %568 = vst [vmem:[%s5] sm:$0xff] %v504
  %569 = vst [vmem:[%s5 + $0x8] sm:$0xff] %v505
  %570 = vst [vmem:[%s5 + $0x10] sm:$0xff] %v506
  %571 = vst [vmem:[%s5 + $0x18] sm:$0xff] %v507
  %572 = vst [vmem:[%s5 + $0x20] sm:$0xff] %v508
  %573 = vst [vmem:[%s5 + $0x28] sm:$0xff] %v509
  %574 = vst [vmem:[%s5 + $0x30] sm:$0xff] %v510
  %575 = vst [vmem:[%s5 + $0x38] sm:$0xff] %v511
  %576 = vst [vmem:[%s5 + $0x40] sm:$0xff] %v512
  %577 = vst [vmem:[%s5 + $0x48] sm:$0xff] %v513
  %578 = vst [vmem:[%s5 + $0x50] sm:$0xff] %v514
  %579 = vst [vmem:[%s5 + $0x58] sm:$0xff] %v515
  %580 = vst [vmem:[%s5 + $0x60] sm:$0xff] %v516
  %581 = vst [vmem:[%s5 + $0x68] sm:$0xff] %v517
  %582 = vst [vmem:[%s5 + $0x70] sm:$0xff] %v518
  %583 = vst [vmem:[%s5 + $0x78] sm:$0xff] %v519
  %584 = vst [vmem:[%s5 + $0x80] sm:$0xff] %v520
  %585 = vst [vmem:[%s5 + $0x88] sm:$0xff] %v521
  %586 = vst [vmem:[%s5 + $0x90] sm:$0xff] %v522
  %587 = vst [vmem:[%s5 + $0x98] sm:$0xff] %v523
  %588 = vst [vmem:[%s5 + $0xa0] sm:$0xff] %v524
  %589 = vst [vmem:[%s5 + $0xa8] sm:$0xff] %v525
  %590 = vst [vmem:[%s5 + $0xb0] sm:$0xff] %v526
  %591 = vst [vmem:[%s5 + $0xb8] sm:$0xff] %v527
  %592 = vst [vmem:[%s5 + $0xc0] sm:$0xff] %v528
  %593 = vst [vmem:[%s5 + $0xc8] sm:$0xff] %v529
  %594 = vst [vmem:[%s5 + $0xd0] sm:$0xff] %v530
  %595 = vst [vmem:[%s5 + $0xd8] sm:$0xff] %v531
  %596 = vst [vmem:[%s5 + $0xe0] sm:$0xff] %v532
  %597 = vst [vmem:[%s5 + $0xe8] sm:$0xff] %v533
  %598 = vst [vmem:[%s5 + $0xf0] sm:$0xff] %v534
  %599 = vst [vmem:[%s5 + $0xf8] sm:$0xff] %v535
  %v600 = vld [vmem:[%s2] sm:$0xff]
  %v601 = vld [vmem:[%s2 + $0x8] sm:$0xff]
  %v602 = vld [vmem:[%s2 + $0x10] sm:$0xff]
  %v603 = vld [vmem:[%s2 + $0x18] sm:$0xff]
  %v604 = vld [vmem:[%s4] sm:$0xf]
  %v606 = vlaneseq
  %v607 = vshrl.u32 %v606, 7
  %v608 = vsub.s32 0, %v607
  %v609 = vrot.slane %v604, %v608
  %v610 = vlaneseq
  %v611 = vshrl.u32 %v610, 7
  %v612 = vsub.s32 1, %v611
  %v613 = vrot.slane %v604, %v612
  %v614 = vlaneseq
  %v615 = vshrl.u32 %v614, 7
  %v616 = vsub.s32 2, %v615
  %v617 = vrot.slane %v604, %v616
  %v618 = vlaneseq
  %v619 = vshrl.u32 %v618, 7
  %v620 = vsub.s32 3, %v619
  %v621 = vrot.slane %v604, %v620
  %v630 = vunpack.c.l.b16 %v600
  %v631 = vunpack.c.h.b16 %v600
  %v632 = vunpack.c.l.b16 %v601
  %v633 = vunpack.c.h.b16 %v601
  %v634 = vunpack.c.l.b16 %v602
  %v635 = vunpack.c.h.b16 %v602
  %v636 = vunpack.c.l.b16 %v603
  %v637 = vunpack.c.h.b16 %v603
  %v638 = vpack.c.b16 %v634, %v630
  %v639 = vpack.c.b16 %v635, %v631
  %v640 = vpack.c.b16 %v636, %v632
  %v641 = vpack.c.b16 %v637, %v633
  %646 = vmatprep.subr.bf16.mxu0 %v639
  %647 = vmatpush1.bf16.msra.mxu0 %v638
  %648 = vmatprep.subr.bf16.mxu0 0
  %649 = vmatpush1.bf16.msra.mxu0 0
  %650 = vmatprep.subr.bf16.mxu0 0
  %651 = vmatpush1.bf16.msra.mxu0 0
  %652 = vmatprep.subr.bf16.mxu0 0
  %653 = vmatpush1.bf16.msra.mxu0 0
  %654 = vmatprep.subr.bf16.mxu0 0
  %655 = vmatpush1.bf16.msra.mxu0 0
  %656 = vmatprep.subr.bf16.mxu0 0
  %657 = vmatpush1.bf16.msra.mxu0 0
  %658 = vmatprep.subr.bf16.mxu0 0
  %659 = vmatpush1.bf16.msra.mxu0 0
  %660 = vmatprep.subr.bf16.mxu0 0
  %661 = vmatpush1.bf16.msra.mxu0 0
  %662 = vmatprep.subr.bf16.mxu0 0
  %663 = vmatpush1.bf16.msra.mxu0 0
  %664 = vmatprep.subr.bf16.mxu0 0
  %665 = vmatpush1.bf16.msra.mxu0 0
  %666 = vmatprep.subr.bf16.mxu0 0
  %667 = vmatpush1.bf16.msra.mxu0 0
  %668 = vmatprep.subr.bf16.mxu0 0
  %669 = vmatpush1.bf16.msra.mxu0 0
  %670 = vmatprep.subr.bf16.mxu0 0
  %671 = vmatpush1.bf16.msra.mxu0 0
  %672 = vmatprep.subr.bf16.mxu0 0
  %673 = vmatpush1.bf16.msra.mxu0 0
  %674 = vmatprep.subr.bf16.mxu0 0
  %675 = vmatpush1.bf16.msra.mxu0 0
  %676 = vmatprep.subr.bf16.mxu0 0
  %677 = vmatpush1.bf16.msra.mxu0 0
  %678 = vmatprep.mubr.bf16.mxu0 0
  %679 = vmatmul.mubr.bf16.gmra.mrb[0].mxu0 %v127
  %v680 = vpop.f32.mrb[0].mxu0
  %v681 = vadd.f32 %v609, %v680
  %v682 = vpop.f32.mrb[0].mxu0
  %v683 = vadd.f32 %v613, %v682
  %v684 = vpop.f32.mrb[0].mxu0
  %v685 = vadd.f32 %v609, %v684
  %v686 = vpop.f32.mrb[0].mxu0
  %v687 = vadd.f32 %v613, %v686
  %688 = vmatprep.mubr.bf16.mxu0 0
  %689 = vmatmul.mubr.bf16.gmra.mrb[0].mxu0 %v130
  %v690 = vpop.f32.mrb[0].mxu0
  %v691 = vadd.f32 %v609, %v690
  %v692 = vpop.f32.mrb[0].mxu0
  %v693 = vadd.f32 %v613, %v692
  %v694 = vpop.f32.mrb[0].mxu0
  %v695 = vadd.f32 %v609, %v694
  %v696 = vpop.f32.mrb[0].mxu0
  %v697 = vadd.f32 %v613, %v696
  %698 = vmatprep.mubr.bf16.mxu0 0
  %699 = vmatmul.mubr.bf16.gmra.mrb[0].mxu0 %v133
  %v700 = vpop.f32.mrb[0].mxu0
  %v701 = vadd.f32 %v609, %v700
  %v702 = vpop.f32.mrb[0].mxu0
  %v703 = vadd.f32 %v613, %v702
  %v704 = vpop.f32.mrb[0].mxu0
  %v705 = vadd.f32 %v609, %v704
  %v706 = vpop.f32.mrb[0].mxu0
  %v707 = vadd.f32 %v613, %v706
  %708 = vmatprep.mubr.bf16.mxu0 0
  %709 = vmatmul.mubr.bf16.gmra.mrb[0].mxu0 %v136
  %v710 = vpop.f32.mrb[0].mxu0
  %v711 = vadd.f32 %v609, %v710
  %v712 = vpop.f32.mrb[0].mxu0
  %v713 = vadd.f32 %v613, %v712
  %v714 = vpop.f32.mrb[0].mxu0
  %v715 = vadd.f32 %v609, %v714
  %v716 = vpop.f32.mrb[0].mxu0
  %v717 = vadd.f32 %v613, %v716
  %718 = vmatprep.mubr.bf16.mxu0 0
  %719 = vmatmul.mubr.bf16.gmra.mrb[0].mxu0 %v139
  %v720 = vpop.f32.mrb[0].mxu0
  %v721 = vadd.f32 %v609, %v720
  %v722 = vpop.f32.mrb[0].mxu0
  %v723 = vadd.f32 %v613, %v722
  %v724 = vpop.f32.mrb[0].mxu0
  %v725 = vadd.f32 %v609, %v724
  %v726 = vpop.f32.mrb[0].mxu0
  %v727 = vadd.f32 %v613, %v726
  %728 = vmatprep.mubr.bf16.mxu0 0
  %729 = vmatmul.mubr.bf16.gmra.mrb[0].mxu0 %v142
  %v730 = vpop.f32.mrb[0].mxu0
  %v731 = vadd.f32 %v609, %v730
  %v732 = vpop.f32.mrb[0].mxu0
  %v733 = vadd.f32 %v613, %v732
  %v734 = vpop.f32.mrb[0].mxu0
  %v735 = vadd.f32 %v609, %v734
  %v736 = vpop.f32.mrb[0].mxu0
  %v737 = vadd.f32 %v613, %v736
  %738 = vmatprep.mubr.bf16.mxu0 0
  %739 = vmatmul.mubr.bf16.gmra.mrb[0].mxu0 %v145
  %v740 = vpop.f32.mrb[0].mxu0
  %v741 = vadd.f32 %v609, %v740
  %v742 = vpop.f32.mrb[0].mxu0
  %v743 = vadd.f32 %v613, %v742
  %v744 = vpop.f32.mrb[0].mxu0
  %v745 = vadd.f32 %v609, %v744
  %v746 = vpop.f32.mrb[0].mxu0
  %v747 = vadd.f32 %v613, %v746
  %748 = vmatprep.mubr.bf16.mxu0 0
  %749 = vmatmul.mubr.bf16.gmra.mrb[0].mxu0 %v148
  %v750 = vpop.f32.mrb[0].mxu0
  %v751 = vadd.f32 %v609, %v750
  %v752 = vpop.f32.mrb[0].mxu0
  %v753 = vadd.f32 %v613, %v752
  %v754 = vpop.f32.mrb[0].mxu0
  %v755 = vadd.f32 %v609, %v754
  %v756 = vpop.f32.mrb[0].mxu0
  %v757 = vadd.f32 %v613, %v756
  %758 = vdwg.mxu0
  %759 = vmatprep.subr.bf16.mxu0 %v641
  %760 = vmatpush1.bf16.msra.mxu0 %v640
  %761 = vmatprep.subr.bf16.mxu0 0
  %762 = vmatpush1.bf16.msra.mxu0 0
  %763 = vmatprep.subr.bf16.mxu0 0
  %764 = vmatpush1.bf16.msra.mxu0 0
  %765 = vmatprep.subr.bf16.mxu0 0
  %766 = vmatpush1.bf16.msra.mxu0 0
  %767 = vmatprep.subr.bf16.mxu0 0
  %768 = vmatpush1.bf16.msra.mxu0 0
  %769 = vmatprep.subr.bf16.mxu0 0
  %770 = vmatpush1.bf16.msra.mxu0 0
  %771 = vmatprep.subr.bf16.mxu0 0
  %772 = vmatpush1.bf16.msra.mxu0 0
  %773 = vmatprep.subr.bf16.mxu0 0
  %774 = vmatpush1.bf16.msra.mxu0 0
  %775 = vmatprep.subr.bf16.mxu0 0
  %776 = vmatpush1.bf16.msra.mxu0 0
  %777 = vmatprep.subr.bf16.mxu0 0
  %778 = vmatpush1.bf16.msra.mxu0 0
  %779 = vmatprep.subr.bf16.mxu0 0
  %780 = vmatpush1.bf16.msra.mxu0 0
  %781 = vmatprep.subr.bf16.mxu0 0
  %782 = vmatpush1.bf16.msra.mxu0 0
  %783 = vmatprep.subr.bf16.mxu0 0
  %784 = vmatpush1.bf16.msra.mxu0 0
  %785 = vmatprep.subr.bf16.mxu0 0
  %786 = vmatpush1.bf16.msra.mxu0 0
  %787 = vmatprep.subr.bf16.mxu0 0
  %788 = vmatpush1.bf16.msra.mxu0 0
  %789 = vmatprep.subr.bf16.mxu0 0
  %790 = vmatpush1.bf16.msra.mxu0 0
  %791 = vmatprep.mubr.bf16.mxu0 0
  %792 = vmatmul.mubr.bf16.gmra.mrb[0].mxu0 %v127
  %v793 = vpop.f32.mrb[0].mxu0
  %v794 = vadd.f32 %v617, %v793
  %v795 = vpop.f32.mrb[0].mxu0
  %v796 = vadd.f32 %v621, %v795
  %v797 = vpop.f32.mrb[0].mxu0
  %v798 = vadd.f32 %v617, %v797
  %v799 = vpop.f32.mrb[0].mxu0
  %v800 = vadd.f32 %v621, %v799
  %801 = vmatprep.mubr.bf16.mxu0 0
  %802 = vmatmul.mubr.bf16.gmra.mrb[0].mxu0 %v130
  %v803 = vpop.f32.mrb[0].mxu0
  %v804 = vadd.f32 %v617, %v803
  %v805 = vpop.f32.mrb[0].mxu0
  %v806 = vadd.f32 %v621, %v805
  %v807 = vpop.f32.mrb[0].mxu0
  %v808 = vadd.f32 %v617, %v807
  %v809 = vpop.f32.mrb[0].mxu0
  %v810 = vadd.f32 %v621, %v809
  %811 = vmatprep.mubr.bf16.mxu0 0
  %812 = vmatmul.mubr.bf16.gmra.mrb[0].mxu0 %v133
  %v813 = vpop.f32.mrb[0].mxu0
  %v814 = vadd.f32 %v617, %v813
  %v815 = vpop.f32.mrb[0].mxu0
  %v816 = vadd.f32 %v621, %v815
  %v817 = vpop.f32.mrb[0].mxu0
  %v818 = vadd.f32 %v617, %v817
  %v819 = vpop.f32.mrb[0].mxu0
  %v820 = vadd.f32 %v621, %v819
  %821 = vmatprep.mubr.bf16.mxu0 0
  %822 = vmatmul.mubr.bf16.gmra.mrb[0].mxu0 %v136
  %v823 = vpop.f32.mrb[0].mxu0
  %v824 = vadd.f32 %v617, %v823
  %v825 = vpop.f32.mrb[0].mxu0
  %v826 = vadd.f32 %v621, %v825
  %v827 = vpop.f32.mrb[0].mxu0
  %v828 = vadd.f32 %v617, %v827
  %v829 = vpop.f32.mrb[0].mxu0
  %v830 = vadd.f32 %v621, %v829
  %831 = vmatprep.mubr.bf16.mxu0 0
  %832 = vmatmul.mubr.bf16.gmra.mrb[0].mxu0 %v139
  %v833 = vpop.f32.mrb[0].mxu0
  %v834 = vadd.f32 %v617, %v833
  %v835 = vpop.f32.mrb[0].mxu0
  %v836 = vadd.f32 %v621, %v835
  %v837 = vpop.f32.mrb[0].mxu0
  %v838 = vadd.f32 %v617, %v837
  %v839 = vpop.f32.mrb[0].mxu0
  %v840 = vadd.f32 %v621, %v839
  %841 = vmatprep.mubr.bf16.mxu0 0
  %842 = vmatmul.mubr.bf16.gmra.mrb[0].mxu0 %v142
  %v843 = vpop.f32.mrb[0].mxu0
  %v844 = vadd.f32 %v617, %v843
  %v845 = vpop.f32.mrb[0].mxu0
  %v846 = vadd.f32 %v621, %v845
  %v847 = vpop.f32.mrb[0].mxu0
  %v848 = vadd.f32 %v617, %v847
  %v849 = vpop.f32.mrb[0].mxu0
  %v850 = vadd.f32 %v621, %v849
  %851 = vmatprep.mubr.bf16.mxu0 0
  %852 = vmatmul.mubr.bf16.gmra.mrb[0].mxu0 %v145
  %v853 = vpop.f32.mrb[0].mxu0
  %v854 = vadd.f32 %v617, %v853
  %v855 = vpop.f32.mrb[0].mxu0
  %v856 = vadd.f32 %v621, %v855
  %v857 = vpop.f32.mrb[0].mxu0
  %v858 = vadd.f32 %v617, %v857
  %v859 = vpop.f32.mrb[0].mxu0
  %v860 = vadd.f32 %v621, %v859
  %861 = vmatprep.mubr.bf16.mxu0 0
  %862 = vmatmul.mubr.bf16.gmra.mrb[0].mxu0 %v148
  %v863 = vpop.f32.mrb[0].mxu0
  %v864 = vadd.f32 %v617, %v863
  %v865 = vpop.f32.mrb[0].mxu0
  %v866 = vadd.f32 %v621, %v865
  %v867 = vpop.f32.mrb[0].mxu0
  %v868 = vadd.f32 %v617, %v867
  %v869 = vpop.f32.mrb[0].mxu0
  %v870 = vadd.f32 %v621, %v869
  %871 = vdwg.mxu0
  %v872 = vpack.c.bf16 %v685, %v681
  %v873 = vpack.c.bf16 %v687, %v683
  %v874 = vpack.c.bf16 %v798, %v794
  %v875 = vpack.c.bf16 %v800, %v796
  %v876 = vpack.c.bf16 %v695, %v691
  %v877 = vpack.c.bf16 %v697, %v693
  %v878 = vpack.c.bf16 %v808, %v804
  %v879 = vpack.c.bf16 %v810, %v806
  %v880 = vpack.c.bf16 %v705, %v701
  %v881 = vpack.c.bf16 %v707, %v703
  %v882 = vpack.c.bf16 %v818, %v814
  %v883 = vpack.c.bf16 %v820, %v816
  %v884 = vpack.c.bf16 %v715, %v711
  %v885 = vpack.c.bf16 %v717, %v713
  %v886 = vpack.c.bf16 %v828, %v824
  %v887 = vpack.c.bf16 %v830, %v826
  %v888 = vpack.c.bf16 %v725, %v721
  %v889 = vpack.c.bf16 %v727, %v723
  %v890 = vpack.c.bf16 %v838, %v834
  %v891 = vpack.c.bf16 %v840, %v836
  %v892 = vpack.c.bf16 %v735, %v731
  %v893 = vpack.c.bf16 %v737, %v733
  %v894 = vpack.c.bf16 %v848, %v844
  %v895 = vpack.c.bf16 %v850, %v846
  %v896 = vpack.c.bf16 %v745, %v741
  %v897 = vpack.c.bf16 %v747, %v743
  %v898 = vpack.c.bf16 %v858, %v854
  %v899 = vpack.c.bf16 %v860, %v856
  %v900 = vpack.c.bf16 %v755, %v751
  %v901 = vpack.c.bf16 %v757, %v753
  %v902 = vpack.c.bf16 %v868, %v864
  %v903 = vpack.c.bf16 %v870, %v866
  %v936 = vunpack.c.l.b16 %v872
  %v937 = vunpack.c.l.b16 %v873
  %v938 = vunpack.c.l.b16 %v874
  %v939 = vunpack.c.l.b16 %v875
  %v940 = vunpack.c.h.b16 %v872
  %v941 = vunpack.c.h.b16 %v873
  %v942 = vunpack.c.h.b16 %v874
  %v943 = vunpack.c.h.b16 %v875
  %v944 = vunpack.c.l.b16 %v876
  %v945 = vunpack.c.l.b16 %v877
  %v946 = vunpack.c.l.b16 %v878
  %v947 = vunpack.c.l.b16 %v879
  %v948 = vunpack.c.h.b16 %v876
  %v949 = vunpack.c.h.b16 %v877
  %v950 = vunpack.c.h.b16 %v878
  %v951 = vunpack.c.h.b16 %v879
  %v952 = vunpack.c.l.b16 %v880
  %v953 = vunpack.c.l.b16 %v881
  %v954 = vunpack.c.l.b16 %v882
  %v955 = vunpack.c.l.b16 %v883
  %v956 = vunpack.c.h.b16 %v880
  %v957 = vunpack.c.h.b16 %v881
  %v958 = vunpack.c.h.b16 %v882
  %v959 = vunpack.c.h.b16 %v883
  %v960 = vunpack.c.l.b16 %v884
  %v961 = vunpack.c.l.b16 %v885
  %v962 = vunpack.c.l.b16 %v886
  %v963 = vunpack.c.l.b16 %v887
  %v964 = vunpack.c.h.b16 %v884
  %v965 = vunpack.c.h.b16 %v885
  %v966 = vunpack.c.h.b16 %v886
  %v967 = vunpack.c.h.b16 %v887
  %v968 = vunpack.c.l.b16 %v888
  %v969 = vunpack.c.l.b16 %v889
  %v970 = vunpack.c.l.b16 %v890
  %v971 = vunpack.c.l.b16 %v891
  %v972 = vunpack.c.h.b16 %v888
  %v973 = vunpack.c.h.b16 %v889
  %v974 = vunpack.c.h.b16 %v890
  %v975 = vunpack.c.h.b16 %v891
  %v976 = vunpack.c.l.b16 %v892
  %v977 = vunpack.c.l.b16 %v893
  %v978 = vunpack.c.l.b16 %v894
  %v979 = vunpack.c.l.b16 %v895
  %v980 = vunpack.c.h.b16 %v892
  %v981 = vunpack.c.h.b16 %v893
  %v982 = vunpack.c.h.b16 %v894
  %v983 = vunpack.c.h.b16 %v895
  %v984 = vunpack.c.l.b16 %v896
  %v985 = vunpack.c.l.b16 %v897
  %v986 = vunpack.c.l.b16 %v898
  %v987 = vunpack.c.l.b16 %v899
  %v988 = vunpack.c.h.b16 %v896
  %v989 = vunpack.c.h.b16 %v897
  %v990 = vunpack.c.h.b16 %v898
  %v991 = vunpack.c.h.b16 %v899
  %v992 = vunpack.c.l.b16 %v900
  %v993 = vunpack.c.l.b16 %v901
  %v994 = vunpack.c.l.b16 %v902
  %v995 = vunpack.c.l.b16 %v903
  %v996 = vunpack.c.h.b16 %v900
  %v997 = vunpack.c.h.b16 %v901
  %v998 = vunpack.c.h.b16 %v902
  %v999 = vunpack.c.h.b16 %v903
  %v1000 = vpack.c.b16 %v937, %v936
  %v1001 = vpack.c.b16 %v939, %v938
  %v1002 = vpack.c.b16 %v941, %v940
  %v1003 = vpack.c.b16 %v943, %v942
  %v1004 = vpack.c.b16 %v945, %v944
  %v1005 = vpack.c.b16 %v947, %v946
  %v1006 = vpack.c.b16 %v949, %v948
  %v1007 = vpack.c.b16 %v951, %v950
  %v1008 = vpack.c.b16 %v953, %v952
  %v1009 = vpack.c.b16 %v955, %v954
  %v1010 = vpack.c.b16 %v957, %v956
  %v1011 = vpack.c.b16 %v959, %v958
  %v1012 = vpack.c.b16 %v961, %v960
  %v1013 = vpack.c.b16 %v963, %v962
  %v1014 = vpack.c.b16 %v965, %v964
  %v1015 = vpack.c.b16 %v967, %v966
  %v1016 = vpack.c.b16 %v969, %v968
  %v1017 = vpack.c.b16 %v971, %v970
  %v1018 = vpack.c.b16 %v973, %v972
  %v1019 = vpack.c.b16 %v975, %v974
  %v1020 = vpack.c.b16 %v977, %v976
  %v1021 = vpack.c.b16 %v979, %v978
  %v1022 = vpack.c.b16 %v981, %v980
  %v1023 = vpack.c.b16 %v983, %v982
  %v1024 = vpack.c.b16 %v985, %v984
  %v1025 = vpack.c.b16 %v987, %v986
  %v1026 = vpack.c.b16 %v989, %v988
  %v1027 = vpack.c.b16 %v991, %v990
  %v1028 = vpack.c.b16 %v993, %v992
  %v1029 = vpack.c.b16 %v995, %v994
  %v1030 = vpack.c.b16 %v997, %v996
  %v1031 = vpack.c.b16 %v999, %v998
  %1064 = vst [vmem:[%s6] sm:$0xff] %v1000
  %1065 = vst [vmem:[%s6 + $0x8] sm:$0xff] %v1001
  %1066 = vst [vmem:[%s6 + $0x10] sm:$0xff] %v1002
  %1067 = vst [vmem:[%s6 + $0x18] sm:$0xff] %v1003
  %1068 = vst [vmem:[%s6 + $0x20] sm:$0xff] %v1004
  %1069 = vst [vmem:[%s6 + $0x28] sm:$0xff] %v1005
  %1070 = vst [vmem:[%s6 + $0x30] sm:$0xff] %v1006
  %1071 = vst [vmem:[%s6 + $0x38] sm:$0xff] %v1007
  %1072 = vst [vmem:[%s6 + $0x40] sm:$0xff] %v1008
  %1073 = vst [vmem:[%s6 + $0x48] sm:$0xff] %v1009
  %1074 = vst [vmem:[%s6 + $0x50] sm:$0xff] %v1010
  %1075 = vst [vmem:[%s6 + $0x58] sm:$0xff] %v1011
  %1076 = vst [vmem:[%s6 + $0x60] sm:$0xff] %v1012
  %1077 = vst [vmem:[%s6 + $0x68] sm:$0xff] %v1013
  %1078 = vst [vmem:[%s6 + $0x70] sm:$0xff] %v1014
  %1079 = vst [vmem:[%s6 + $0x78] sm:$0xff] %v1015
  %1080 = vst [vmem:[%s6 + $0x80] sm:$0xff] %v1016
  %1081 = vst [vmem:[%s6 + $0x88] sm:$0xff] %v1017
  %1082 = vst [vmem:[%s6 + $0x90] sm:$0xff] %v1018
  %1083 = vst [vmem:[%s6 + $0x98] sm:$0xff] %v1019
  %1084 = vst [vmem:[%s6 + $0xa0] sm:$0xff] %v1020
  %1085 = vst [vmem:[%s6 + $0xa8] sm:$0xff] %v1021
  %1086 = vst [vmem:[%s6 + $0xb0] sm:$0xff] %v1022
  %1087 = vst [vmem:[%s6 + $0xb8] sm:$0xff] %v1023
  %1088 = vst [vmem:[%s6 + $0xc0] sm:$0xff] %v1024
  %1089 = vst [vmem:[%s6 + $0xc8] sm:$0xff] %v1025
  %1090 = vst [vmem:[%s6 + $0xd0] sm:$0xff] %v1026
  %1091 = vst [vmem:[%s6 + $0xd8] sm:$0xff] %v1027
  %1092 = vst [vmem:[%s6 + $0xe0] sm:$0xff] %v1028
  %1093 = vst [vmem:[%s6 + $0xe8] sm:$0xff] %v1029
  %1094 = vst [vmem:[%s6 + $0xf0] sm:$0xff] %v1030
  %1095 = vst [vmem:[%s6 + $0xf8] sm:$0xff] %v1031
  // Predicated region
  $region22: #{model_forward.6} parent=0 // pred_check
    _
  $region23: #{model_forward.6} parent=0 // pred_check_branch
    %1097 = sbr.rel (0) target = $region25
  $region24: #{model_forward.6} parent=0 // pred_region
    _
  $region25: #{model_forward.6} parent=0 // pred_fallthru
    _
  // Predicated region
  $region26: #{model_forward.6} parent=0 // pred_check
    _
  $region27: #{model_forward.6} parent=0 // pred_check_branch
    %1099 = sbr.rel (0) target = $region29
  $region28: #{model_forward.6} parent=0 // pred_region
    _
  $region29: #{model_forward.6} parent=0 // pred_fallthru
    _
  // Predicated region
  $region30: #{model_forward.6} parent=0 // pred_check
    _
  $region31: #{model_forward.6} parent=0 // pred_check_branch
    %1101 = sbr.rel (0) target = $region33
  $region32: #{model_forward.6} parent=0 // pred_region
    _
  $region33: #{model_forward.6} parent=0 // pred_fallthru
    _
  // Predicated region
  $region34: #{model_forward.6} parent=0 // pred_check
    _
  $region35: #{model_forward.6} parent=0 // pred_check_branch
    %1103 = sbr.rel (0) target = $region37
  $region36: #{model_forward.6} parent=0 // pred_region
    _
  $region37: #{model_forward.6} parent=0 // pred_fallthru
    _

// kernel: model_forward.9
$region0: #{model_forward.9}
  #allocation0 [shape = 'u32[]', space=smem, size = 0x4, offset = 0x4, fixed_abs, tag = 'smem constant byte address 0x4 - core index']
  #allocation1 [shape = 'u32[144,128]{1,0:T(1,128)}', space=vmem, size = 0x12000, scoped, tag = 'internal scratch']
  #allocation2 [shape = 'f32[16,128]{1,0:T(8,128)}', space=vmem, size = 0x2000, scoped, tag = 'scratch operand']
  #allocation3 [shape = 'f32[16,128]{1,0:T(8,128)}', space=vmem, size = 0x2000, scoped, tag = 'scratch operand']
  #allocation4 [shape = 'f32[16,128]{1,0:T(8,128)}', space=vmem, size = 0x2000, scoped, tag = 'scratch operand']
  #allocation5 [shape = 'f32[16,128]{1,0:T(8,128)}', space=vmem, size = 0x2000, scoped, tag = 'scratch operand']
  %s0 = inlined_call_operand.vmem [shape: bf16[8,16,512], index: 0, kind: input, shape index: {}]
  %s1 = inlined_call_operand.vmem [shape: bf16[8,16,512], index: 1, kind: input, shape index: {}]
  %s2 = inlined_call_operand.vmem [shape: bf16[128,512], index: 2, kind: input, shape index: {}]
  %s3 = inlined_call_operand.vmem [shape: bf16[128,512], index: 3, kind: input, shape index: {}]
  %s4 = inlined_call_operand.vmem [shape: bf16[8,16,128], index: 4, kind: output, shape index: {0}]
  %s5 = inlined_call_operand.vmem [shape: bf16[8,16,128], index: 5, kind: output, shape index: {1}]
  %6 = xla_tuple %s4, %s5
  %s7 = sld [smem:[#allocation0]]
  $region45: #{model_forward.9} parent=0
    _
  %s9 = ssub.s32 1, %s7
  %s10 = scalar_select 0, %s9, %s7
  // Predicated region
  $region2: #{model_forward.9} parent=0 // pred_check
    _
  $region3: #{model_forward.9} parent=0 // pred_check_branch
    %12 = sbr.rel (0) target = $region5
  $region4: #{model_forward.9} parent=0 // pred_region
    _
  $region5: #{model_forward.9} parent=0 // pred_fallthru
    _
  // Predicated region
  $region6: #{model_forward.9} parent=0 // pred_check
    _
  $region7: #{model_forward.9} parent=0 // pred_check_branch
    %14 = sbr.rel (0) target = $region9
  $region8: #{model_forward.9} parent=0 // pred_region
    %s15 = ssub.s32 0, 0
    %s16 = smul.u32 8, %s15
    %p17 = scmp.lt.s32.totalorder %s16, 7
    %s18 = scalar_select %p17, %s16, 7
    %s19 = smul.addr %s18, 8
    %s20 = smul.addr %s19, 4
    %s21 = scalar_lea.vmem %s1, %s20
    %s22 = ssub.s32 0, 0
    %s23 = smul.u32 8, %s22
  $region9: #{model_forward.9} parent=0 // pred_fallthru
    _
  // Predicated region
  $region10: #{model_forward.9} parent=0 // pred_check
    _
  $region11: #{model_forward.9} parent=0 // pred_check_branch
    %25 = sbr.rel (0) target = $region13
  $region12: #{model_forward.9} parent=0 // pred_region
    _
  $region13: #{model_forward.9} parent=0 // pred_fallthru
    _
  // Predicated region
  $region14: #{model_forward.9} parent=0 // pred_check
    _
  $region15: #{model_forward.9} parent=0 // pred_check_branch
    %27 = sbr.rel (0) target = $region17
  $region16: #{model_forward.9} parent=0 // pred_region
    _
  $region17: #{model_forward.9} parent=0 // pred_fallthru
    _
  %s28 = ssub.s32 0, 0
  %s29 = smul.u32 8, %s28
  %p30 = scmp.lt.s32.totalorder %s29, 7
  %s31 = scalar_select %p30, %s29, 7
  %s32 = smul.addr %s31, 8
  %s33 = smul.addr %s32, 4
  %s34 = scalar_lea.vmem %s1, %s33
  %s35 = ssub.s32 0, 0
  %s36 = smul.u32 8, %s35
  %p37 = scmp.lt.s32.totalorder %s36, 7
  %s38 = scalar_select %p37, %s36, 7
  %s39 = smul.addr %s38, 2
  %s40 = smul.addr %s39, 4
  %s41 = scalar_lea.vmem %s5, %s40
  %s42 = ssub.s32 0, 0
  %s43 = smul.u32 8, %s42
  %p44 = scmp.lt.s32.totalorder %s43, 7
  %s45 = scalar_select %p44, %s43, 7
  %s46 = smul.addr %s45, 8
  %s47 = smul.addr %s46, 4
  %s48 = scalar_lea.vmem %s1, %s47
  %s49 = ssub.s32 0, 0
  %s50 = smul.u32 8, %s49
  %s51 = ssub.s32 0, 0
  %s52 = smul.u32 8, %s51
  %p53 = scmp.lt.s32.totalorder %s52, 7
  %s54 = scalar_select %p53, %s52, 7
  %s55 = smul.addr %s54, 2
  %s56 = smul.addr %s55, 4
  %s57 = scalar_lea.vmem %s5, %s56
  %s58 = ssub.s32 0, 0
  %s59 = smul.u32 8, %s58
  %p61 = scmp.eq.s32.totalorder 0, 0
  // Predicated region
  $region18: #{model_forward.9} parent=0 // pred_check
    %p62 = pneg %p61
  $region19: #{model_forward.9} parent=0 // pred_check_branch
    %64 = sbr.rel (%p62) target = $region21
  $region20: #{model_forward.9} parent=0 // pred_region
    %65 = vst [vmem:[#allocation2] sm:$0xff] 0.0
    %66 = vst [vmem:[#allocation2 + $0x8] sm:$0xff] 0.0
    %67 = vst [vmem:[#allocation3] sm:$0xff] 0.0
    %68 = vst [vmem:[#allocation3 + $0x8] sm:$0xff] 0.0
    %69 = vst [vmem:[#allocation4] sm:$0xff] 0.0
    %70 = vst [vmem:[#allocation4 + $0x8] sm:$0xff] 0.0
    %71 = vst [vmem:[#allocation5] sm:$0xff] 0.0
    %72 = vst [vmem:[#allocation5 + $0x8] sm:$0xff] 0.0
  $region21: #{model_forward.9} parent=0 // pred_fallthru
    _
  %v73 = vld [vmem:[%s2] sm:$0xff]
  %v74 = vld [vmem:[%s2 + $0x8] sm:$0xff]
  %v75 = vld [vmem:[%s2 + $0x10] sm:$0xff]
  %v76 = vld [vmem:[%s2 + $0x18] sm:$0xff]
  %v77 = vld [vmem:[%s2 + $0x20] sm:$0xff]
  %v78 = vld [vmem:[%s2 + $0x28] sm:$0xff]
  %v79 = vld [vmem:[%s2 + $0x30] sm:$0xff]
  %v80 = vld [vmem:[%s2 + $0x38] sm:$0xff]
  %v81 = vld [vmem:[%s2 + $0x40] sm:$0xff]
  %v82 = vld [vmem:[%s2 + $0x48] sm:$0xff]
  %v83 = vld [vmem:[%s2 + $0x50] sm:$0xff]
  %v84 = vld [vmem:[%s2 + $0x58] sm:$0xff]
  %v85 = vld [vmem:[%s2 + $0x60] sm:$0xff]
  %v86 = vld [vmem:[%s2 + $0x68] sm:$0xff]
  %v87 = vld [vmem:[%s2 + $0x70] sm:$0xff]
  %v88 = vld [vmem:[%s2 + $0x78] sm:$0xff]
  %v89 = vld [vmem:[%s2 + $0x80] sm:$0xff]
  %v90 = vld [vmem:[%s2 + $0x88] sm:$0xff]
  %v91 = vld [vmem:[%s2 + $0x90] sm:$0xff]
  %v92 = vld [vmem:[%s2 + $0x98] sm:$0xff]
  %v93 = vld [vmem:[%s2 + $0xa0] sm:$0xff]
  %v94 = vld [vmem:[%s2 + $0xa8] sm:$0xff]
  %v95 = vld [vmem:[%s2 + $0xb0] sm:$0xff]
  %v96 = vld [vmem:[%s2 + $0xb8] sm:$0xff]
  %v97 = vld [vmem:[%s2 + $0xc0] sm:$0xff]
  %v98 = vld [vmem:[%s2 + $0xc8] sm:$0xff]
  %v99 = vld [vmem:[%s2 + $0xd0] sm:$0xff]
  %v100 = vld [vmem:[%s2 + $0xd8] sm:$0xff]
  %v101 = vld [vmem:[%s2 + $0xe0] sm:$0xff]
  %v102 = vld [vmem:[%s2 + $0xe8] sm:$0xff]
  %v103 = vld [vmem:[%s2 + $0xf0] sm:$0xff]
  %v104 = vld [vmem:[%s2 + $0xf8] sm:$0xff]
  %v105 = vld [vmem:[%s3] sm:$0xff]
  %v106 = vld [vmem:[%s3 + $0x8] sm:$0xff]
  %v107 = vld [vmem:[%s3 + $0x10] sm:$0xff]
  %v108 = vld [vmem:[%s3 + $0x18] sm:$0xff]
  %v109 = vld [vmem:[%s3 + $0x20] sm:$0xff]
  %v110 = vld [vmem:[%s3 + $0x28] sm:$0xff]
  %v111 = vld [vmem:[%s3 + $0x30] sm:$0xff]
  %v112 = vld [vmem:[%s3 + $0x38] sm:$0xff]
  %v113 = vld [vmem:[%s3 + $0x40] sm:$0xff]
  %v114 = vld [vmem:[%s3 + $0x48] sm:$0xff]
  %v115 = vld [vmem:[%s3 + $0x50] sm:$0xff]
  %v116 = vld [vmem:[%s3 + $0x58] sm:$0xff]
  %v117 = vld [vmem:[%s3 + $0x60] sm:$0xff]
  %v118 = vld [vmem:[%s3 + $0x68] sm:$0xff]
  %v119 = vld [vmem:[%s3 + $0x70] sm:$0xff]
  %v120 = vld [vmem:[%s3 + $0x78] sm:$0xff]
  %v121 = vld [vmem:[%s3 + $0x80] sm:$0xff]
  %v122 = vld [vmem:[%s3 + $0x88] sm:$0xff]
  %v123 = vld [vmem:[%s3 + $0x90] sm:$0xff]
  %v124 = vld [vmem:[%s3 + $0x98] sm:$0xff]
  %v125 = vld [vmem:[%s3 + $0xa0] sm:$0xff]
  %v126 = vld [vmem:[%s3 + $0xa8] sm:$0xff]
  %v127 = vld [vmem:[%s3 + $0xb0] sm:$0xff]
  %v128 = vld [vmem:[%s3 + $0xb8] sm:$0xff]
  %v129 = vld [vmem:[%s3 + $0xc0] sm:$0xff]
  %v130 = vld [vmem:[%s3 + $0xc8] sm:$0xff]
  %v131 = vld [vmem:[%s3 + $0xd0] sm:$0xff]
  %v132 = vld [vmem:[%s3 + $0xd8] sm:$0xff]
  %v133 = vld [vmem:[%s3 + $0xe0] sm:$0xff]
  %v134 = vld [vmem:[%s3 + $0xe8] sm:$0xff]
  %v135 = vld [vmem:[%s3 + $0xf0] sm:$0xff]
  %v136 = vld [vmem:[%s3 + $0xf8] sm:$0xff]
  %v137 = vld [vmem:[#allocation2] sm:$0xff]
  %v138 = vld [vmem:[#allocation2 + $0x8] sm:$0xff]
  %v139 = vld [vmem:[#allocation3] sm:$0xff]
  %v140 = vld [vmem:[#allocation3 + $0x8] sm:$0xff]
  %v141 = vld [vmem:[#allocation4] sm:$0xff]
  %v142 = vld [vmem:[#allocation4 + $0x8] sm:$0xff]
  %v143 = vld [vmem:[#allocation5] sm:$0xff]
  %v144 = vld [vmem:[#allocation5 + $0x8] sm:$0xff]
  loop: start=0, step=1, limit=4
  $region22: #{model_forward.9} parent=0 // loop_pre_header
    _
  $region23: #{model_forward.9} parent=0 // loop_header
    %s146 = sphi 0, %s150
    %p147 = scmp.ge.s32.totalorder %s146, 4
    %v151 = vphi %v137, %v980
    %v152 = vphi %v138, %v981
    %v153 = vphi %v139, %v976
    %v154 = vphi %v140, %v977
    %v155 = vphi %v141, %v1150
    %v156 = vphi %v142, %v1151
    %v157 = vphi %v143, %v1146
    %v158 = vphi %v144, %v1147
  $region24: #{model_forward.9} parent=0 // loop_header_branch
    %149 = sbr.rel (%p147) target = $region28
  $region25: #{model_forward.9} parent=0 // loop_body
    %s159 = smul.u32 %s146, 2
    %s160 = sadd.s32 %s159, 1
    %s161 = ssub.s32 7, %s159
    %s162 = smul.u32 %s159, 8
    %s163 = smul.addr %s162, 4
    %s164 = scalar_lea.vmem %s0, %s163
    %v165 = vld [vmem:[%s164] sm:$0xff]
    %v166 = vld [vmem:[%s164 + $0x8] sm:$0xff]
    %v167 = vld [vmem:[%s164 + $0x10] sm:$0xff]
    %v168 = vld [vmem:[%s164 + $0x18] sm:$0xff]
    %v169 = vunpack.c.l.bf16 %v165
    %v170 = vunpack.c.h.bf16 %v165
    %v171 = vunpack.c.l.bf16 %v166
    %v172 = vunpack.c.h.bf16 %v166
    %v173 = vunpack.c.l.bf16 %v167
    %v174 = vunpack.c.h.bf16 %v167
    %v175 = vunpack.c.l.bf16 %v168
    %v176 = vunpack.c.h.bf16 %v168
    %v177 = vpack.c.bf16 %v152, %v151
    %v210 = vunpack.c.l.b16 %v73
    %v211 = vunpack.c.h.b16 %v73
    %v212 = vunpack.c.l.b16 %v74
    %v213 = vunpack.c.h.b16 %v74
    %v214 = vunpack.c.l.b16 %v75
    %v215 = vunpack.c.h.b16 %v75
    %v216 = vunpack.c.l.b16 %v76
    %v217 = vunpack.c.h.b16 %v76
    %v218 = vunpack.c.l.b16 %v77
    %v219 = vunpack.c.h.b16 %v77
    %v220 = vunpack.c.l.b16 %v78
    %v221 = vunpack.c.h.b16 %v78
    %v222 = vunpack.c.l.b16 %v79
    %v223 = vunpack.c.h.b16 %v79
    %v224 = vunpack.c.l.b16 %v80
    %v225 = vunpack.c.h.b16 %v80
    %v226 = vunpack.c.l.b16 %v81
    %v227 = vunpack.c.h.b16 %v81
    %v228 = vunpack.c.l.b16 %v82
    %v229 = vunpack.c.h.b16 %v82
    %v230 = vunpack.c.l.b16 %v83
    %v231 = vunpack.c.h.b16 %v83
    %v232 = vunpack.c.l.b16 %v84
    %v233 = vunpack.c.h.b16 %v84
    %v234 = vunpack.c.l.b16 %v85
    %v235 = vunpack.c.h.b16 %v85
    %v236 = vunpack.c.l.b16 %v86
    %v237 = vunpack.c.h.b16 %v86
    %v238 = vunpack.c.l.b16 %v87
    %v239 = vunpack.c.h.b16 %v87
    %v240 = vunpack.c.l.b16 %v88
    %v241 = vunpack.c.h.b16 %v88
    %v242 = vunpack.c.l.b16 %v89
    %v243 = vunpack.c.h.b16 %v89
    %v244 = vunpack.c.l.b16 %v90
    %v245 = vunpack.c.h.b16 %v90
    %v246 = vunpack.c.l.b16 %v91
    %v247 = vunpack.c.h.b16 %v91
    %v248 = vunpack.c.l.b16 %v92
    %v249 = vunpack.c.h.b16 %v92
    %v250 = vunpack.c.l.b16 %v93
    %v251 = vunpack.c.h.b16 %v93
    %v252 = vunpack.c.l.b16 %v94
    %v253 = vunpack.c.h.b16 %v94
    %v254 = vunpack.c.l.b16 %v95
    %v255 = vunpack.c.h.b16 %v95
    %v256 = vunpack.c.l.b16 %v96
    %v257 = vunpack.c.h.b16 %v96
    %v258 = vunpack.c.l.b16 %v97
    %v259 = vunpack.c.h.b16 %v97
    %v260 = vunpack.c.l.b16 %v98
    %v261 = vunpack.c.h.b16 %v98
    %v262 = vunpack.c.l.b16 %v99
    %v263 = vunpack.c.h.b16 %v99
    %v264 = vunpack.c.l.b16 %v100
    %v265 = vunpack.c.h.b16 %v100
    %v266 = vunpack.c.l.b16 %v101
    %v267 = vunpack.c.h.b16 %v101
    %v268 = vunpack.c.l.b16 %v102
    %v269 = vunpack.c.h.b16 %v102
    %v270 = vunpack.c.l.b16 %v103
    %v271 = vunpack.c.h.b16 %v103
    %v272 = vunpack.c.l.b16 %v104
    %v273 = vunpack.c.h.b16 %v104
    %v274 = vpack.c.b16 %v214, %v210
    %v275 = vpack.c.b16 %v215, %v211
    %v276 = vpack.c.b16 %v216, %v212
    %v277 = vpack.c.b16 %v217, %v213
    %v278 = vpack.c.b16 %v222, %v218
    %v279 = vpack.c.b16 %v223, %v219
    %v280 = vpack.c.b16 %v224, %v220
    %v281 = vpack.c.b16 %v225, %v221
    %v282 = vpack.c.b16 %v230, %v226
    %v283 = vpack.c.b16 %v231, %v227
    %v284 = vpack.c.b16 %v232, %v228
    %v285 = vpack.c.b16 %v233, %v229
    %v286 = vpack.c.b16 %v238, %v234
    %v287 = vpack.c.b16 %v239, %v235
    %v288 = vpack.c.b16 %v240, %v236
    %v289 = vpack.c.b16 %v241, %v237
    %v290 = vpack.c.b16 %v246, %v242
    %v291 = vpack.c.b16 %v247, %v243
    %v292 = vpack.c.b16 %v248, %v244
    %v293 = vpack.c.b16 %v249, %v245
    %v294 = vpack.c.b16 %v254, %v250
    %v295 = vpack.c.b16 %v255, %v251
    %v296 = vpack.c.b16 %v256, %v252
    %v297 = vpack.c.b16 %v257, %v253
    %v298 = vpack.c.b16 %v262, %v258
    %v299 = vpack.c.b16 %v263, %v259
    %v300 = vpack.c.b16 %v264, %v260
    %v301 = vpack.c.b16 %v265, %v261
    %v302 = vpack.c.b16 %v270, %v266
    %v303 = vpack.c.b16 %v271, %v267
    %v304 = vpack.c.b16 %v272, %v268
    %v305 = vpack.c.b16 %v273, %v269
    %338 = vmatprep.subr.bf16.mxu0 %v275
    %339 = vmatpush1.bf16.msra.mxu0 %v274
    %340 = vmatprep.subr.bf16.mxu0 %v279
    %341 = vmatpush1.bf16.msra.mxu0 %v278
    %342 = vmatprep.subr.bf16.mxu0 %v283
    %343 = vmatpush1.bf16.msra.mxu0 %v282
    %344 = vmatprep.subr.bf16.mxu0 %v287
    %345 = vmatpush1.bf16.msra.mxu0 %v286
    %346 = vmatprep.subr.bf16.mxu0 %v291
    %347 = vmatpush1.bf16.msra.mxu0 %v290
    %348 = vmatprep.subr.bf16.mxu0 %v295
    %349 = vmatpush1.bf16.msra.mxu0 %v294
    %350 = vmatprep.subr.bf16.mxu0 %v299
    %351 = vmatpush1.bf16.msra.mxu0 %v298
    %352 = vmatprep.subr.bf16.mxu0 %v303
    %353 = vmatpush1.bf16.msra.mxu0 %v302
    %354 = vmatprep.subr.bf16.mxu0 0
    %355 = vmatpush1.bf16.msra.mxu0 0
    %356 = vmatprep.subr.bf16.mxu0 0
    %357 = vmatpush1.bf16.msra.mxu0 0
    %358 = vmatprep.subr.bf16.mxu0 0
    %359 = vmatpush1.bf16.msra.mxu0 0
    %360 = vmatprep.subr.bf16.mxu0 0
    %361 = vmatpush1.bf16.msra.mxu0 0
    %362 = vmatprep.subr.bf16.mxu0 0
    %363 = vmatpush1.bf16.msra.mxu0 0
    %364 = vmatprep.subr.bf16.mxu0 0
    %365 = vmatpush1.bf16.msra.mxu0 0
    %366 = vmatprep.subr.bf16.mxu0 0
    %367 = vmatpush1.bf16.msra.mxu0 0
    %368 = vmatprep.subr.bf16.mxu0 0
    %369 = vmatpush1.bf16.msra.mxu0 0
    %370 = vmatprep.mubr.bf16.mxu0 0
    %371 = vmatmul.mubr.bf16.gmra.mrb[0].mxu0 %v177
    %v372 = vpop.f32.mrb[0].mxu0
    %v373 = vadd.f32 0.0, %v372
    %v374 = vpop.f32.mrb[0].mxu0
    %v375 = vadd.f32 0.0, %v374
    %v376 = vpop.f32.mrb[0].mxu0
    %v377 = vadd.f32 0.0, %v376
    %v378 = vpop.f32.mrb[0].mxu0
    %v379 = vadd.f32 0.0, %v378
    %380 = vdwg.mxu0
    %381 = vmatprep.subr.bf16.mxu0 %v277
    %382 = vmatpush1.bf16.msra.mxu0 %v276
    %383 = vmatprep.subr.bf16.mxu0 %v281
    %384 = vmatpush1.bf16.msra.mxu0 %v280
    %385 = vmatprep.subr.bf16.mxu0 %v285
    %386 = vmatpush1.bf16.msra.mxu0 %v284
    %387 = vmatprep.subr.bf16.mxu0 %v289
    %388 = vmatpush1.bf16.msra.mxu0 %v288
    %389 = vmatprep.subr.bf16.mxu0 %v293
    %390 = vmatpush1.bf16.msra.mxu0 %v292
    %391 = vmatprep.subr.bf16.mxu0 %v297
    %392 = vmatpush1.bf16.msra.mxu0 %v296
    %393 = vmatprep.subr.bf16.mxu0 %v301
    %394 = vmatpush1.bf16.msra.mxu0 %v300
    %395 = vmatprep.subr.bf16.mxu0 %v305
    %396 = vmatpush1.bf16.msra.mxu0 %v304
    %397 = vmatprep.subr.bf16.mxu0 0
    %398 = vmatpush1.bf16.msra.mxu0 0
    %399 = vmatprep.subr.bf16.mxu0 0
    %400 = vmatpush1.bf16.msra.mxu0 0
    %401 = vmatprep.subr.bf16.mxu0 0
    %402 = vmatpush1.bf16.msra.mxu0 0
    %403 = vmatprep.subr.bf16.mxu0 0
    %404 = vmatpush1.bf16.msra.mxu0 0
    %405 = vmatprep.subr.bf16.mxu0 0
    %406 = vmatpush1.bf16.msra.mxu0 0
    %407 = vmatprep.subr.bf16.mxu0 0
    %408 = vmatpush1.bf16.msra.mxu0 0
    %409 = vmatprep.subr.bf16.mxu0 0
    %410 = vmatpush1.bf16.msra.mxu0 0
    %411 = vmatprep.subr.bf16.mxu0 0
    %412 = vmatpush1.bf16.msra.mxu0 0
    %413 = vmatprep.mubr.bf16.mxu0 0
    %414 = vmatmul.mubr.bf16.gmra.mrb[0].mxu0 %v177
    %v415 = vpop.f32.mrb[0].mxu0
    %v416 = vadd.f32 0.0, %v415
    %v417 = vpop.f32.mrb[0].mxu0
    %v418 = vadd.f32 0.0, %v417
    %v419 = vpop.f32.mrb[0].mxu0
    %v420 = vadd.f32 0.0, %v419
    %v421 = vpop.f32.mrb[0].mxu0
    %v422 = vadd.f32 0.0, %v421
    %423 = vdwg.mxu0
    %v424 = vadd.f32 %v169, %v373
    %v425 = vadd.f32 %v170, %v375
    %v426 = vadd.f32 %v171, %v416
    %v427 = vadd.f32 %v172, %v418
    %v428 = vadd.f32 %v173, %v377
    %v429 = vadd.f32 %v174, %v379
    %v430 = vadd.f32 %v175, %v420
    %v431 = vadd.f32 %v176, %v422
    %v432 = vxor.u32 %v424, 2147483648
    %v433 = vxor.u32 %v425, 2147483648
    %v434 = vxor.u32 %v426, 2147483648
    %v435 = vxor.u32 %v428, 2147483648
    %v436 = vxor.u32 %v429, 2147483648
    %v437 = vxor.u32 %v430, 2147483648
    %v438 = vmul.f32 %v432, 1.442695
    %v439 = vpow.pop %v438
    %v440 = vmul.f32 %v433, 1.442695
    %v441 = vpow.pop %v440
    %v442 = vmul.f32 %v434, 1.442695
    %v443 = vpow.pop %v442
    %v444 = vmul.f32 %v435, 1.442695
    %v445 = vpow.pop %v444
    %v446 = vmul.f32 %v436, 1.442695
    %v447 = vpow.pop %v446
    %v448 = vmul.f32 %v437, 1.442695
    %v449 = vpow.pop %v448
    %v450 = vadd.f32 %v439, 1.0
    %v451 = vadd.f32 %v441, 1.0
    %v452 = vadd.f32 %v443, 1.0
    %v453 = vadd.f32 %v445, 1.0
    %v454 = vadd.f32 %v447, 1.0
    %v455 = vadd.f32 %v449, 1.0
    %v456 = vrcp.pop %v450
    %v457 = vmul.f32 1.0, %v456
    %v458 = vrcp.pop %v451
    %v459 = vmul.f32 1.0, %v458
    %v460 = vrcp.pop %v452
    %v461 = vmul.f32 1.0, %v460
    %v462 = vrcp.pop %v453
    %v463 = vmul.f32 1.0, %v462
    %v464 = vrcp.pop %v454
    %v465 = vmul.f32 1.0, %v464
    %v466 = vrcp.pop %v455
    %v467 = vmul.f32 1.0, %v466
    %v468 = vtanh.pop %v427
    %v469 = vtanh.pop %v431
    %v470 = vmul.f32 %v459, %v153
    %v471 = vmul.f32 %v465, %v154
    %v472 = vmul.f32 %v457, %v468
    %v473 = vmul.f32 %v463, %v469
    %v474 = vadd.f32 %v470, %v472
    %v475 = vadd.f32 %v471, %v473
    %v476 = vtanh.pop %v474
    %v477 = vtanh.pop %v475
    %v478 = vmul.f32 %v461, %v476
    %v479 = vmul.f32 %v467, %v477
    %v480 = vpack.c.bf16 %v479, %v478
    %v482 = vunpack.c.l.b16 %v480
    %v483 = vunpack.c.h.b16 %v480
    %v484 = vpack.c.b16 %v482, %v482
    %v485 = vpack.c.b16 %v483, %v483
    %s488 = smul.u32 %s159, 2
    %s489 = smul.addr %s488, 4
    %s490 = scalar_lea.vmem %s4, %s489
    %491 = vst [vmem:[%s490] sm:$0xf] %v484
    %492 = vst [vmem:[%s490 + $0x4] sm:$0xf] %v485
    %s493 = smul.u32 %s161, 8
    %s494 = smul.addr %s493, 4
    %s495 = scalar_lea.vmem %s48, %s494
    %v496 = vld [vmem:[%s495] sm:$0xff]
    %v497 = vld [vmem:[%s495 + $0x8] sm:$0xff]
    %v498 = vld [vmem:[%s495 + $0x10] sm:$0xff]
    %v499 = vld [vmem:[%s495 + $0x18] sm:$0xff]
    %v500 = vunpack.c.l.bf16 %v496
    %v501 = vunpack.c.h.bf16 %v496
    %v502 = vunpack.c.l.bf16 %v497
    %v503 = vunpack.c.h.bf16 %v497
    %v504 = vunpack.c.l.bf16 %v498
    %v505 = vunpack.c.h.bf16 %v498
    %v506 = vunpack.c.l.bf16 %v499
    %v507 = vunpack.c.h.bf16 %v499
    %v508 = vpack.c.bf16 %v156, %v155
    %v541 = vunpack.c.l.b16 %v105
    %v542 = vunpack.c.h.b16 %v105
    %v543 = vunpack.c.l.b16 %v106
    %v544 = vunpack.c.h.b16 %v106
    %v545 = vunpack.c.l.b16 %v107
    %v546 = vunpack.c.h.b16 %v107
    %v547 = vunpack.c.l.b16 %v108
    %v548 = vunpack.c.h.b16 %v108
    %v549 = vunpack.c.l.b16 %v109
    %v550 = vunpack.c.h.b16 %v109
    %v551 = vunpack.c.l.b16 %v110
    %v552 = vunpack.c.h.b16 %v110
    %v553 = vunpack.c.l.b16 %v111
    %v554 = vunpack.c.h.b16 %v111
    %v555 = vunpack.c.l.b16 %v112
    %v556 = vunpack.c.h.b16 %v112
    %v557 = vunpack.c.l.b16 %v113
    %v558 = vunpack.c.h.b16 %v113
    %v559 = vunpack.c.l.b16 %v114
    %v560 = vunpack.c.h.b16 %v114
    %v561 = vunpack.c.l.b16 %v115
    %v562 = vunpack.c.h.b16 %v115
    %v563 = vunpack.c.l.b16 %v116
    %v564 = vunpack.c.h.b16 %v116
    %v565 = vunpack.c.l.b16 %v117
    %v566 = vunpack.c.h.b16 %v117
    %v567 = vunpack.c.l.b16 %v118
    %v568 = vunpack.c.h.b16 %v118
    %v569 = vunpack.c.l.b16 %v119
    %v570 = vunpack.c.h.b16 %v119
    %v571 = vunpack.c.l.b16 %v120
    %v572 = vunpack.c.h.b16 %v120
    %v573 = vunpack.c.l.b16 %v121
    %v574 = vunpack.c.h.b16 %v121
    %v575 = vunpack.c.l.b16 %v122
    %v576 = vunpack.c.h.b16 %v122
    %v577 = vunpack.c.l.b16 %v123
    %v578 = vunpack.c.h.b16 %v123
    %v579 = vunpack.c.l.b16 %v124
    %v580 = vunpack.c.h.b16 %v124
    %v581 = vunpack.c.l.b16 %v125
    %v582 = vunpack.c.h.b16 %v125
    %v583 = vunpack.c.l.b16 %v126
    %v584 = vunpack.c.h.b16 %v126
    %v585 = vunpack.c.l.b16 %v127
    %v586 = vunpack.c.h.b16 %v127
    %v587 = vunpack.c.l.b16 %v128
    %v588 = vunpack.c.h.b16 %v128
    %v589 = vunpack.c.l.b16 %v129
    %v590 = vunpack.c.h.b16 %v129
    %v591 = vunpack.c.l.b16 %v130
    %v592 = vunpack.c.h.b16 %v130
    %v593 = vunpack.c.l.b16 %v131
    %v594 = vunpack.c.h.b16 %v131
    %v595 = vunpack.c.l.b16 %v132
    %v596 = vunpack.c.h.b16 %v132
    %v597 = vunpack.c.l.b16 %v133
    %v598 = vunpack.c.h.b16 %v133
    %v599 = vunpack.c.l.b16 %v134
    %v600 = vunpack.c.h.b16 %v134
    %v601 = vunpack.c.l.b16 %v135
    %v602 = vunpack.c.h.b16 %v135
    %v603 = vunpack.c.l.b16 %v136
    %v604 = vunpack.c.h.b16 %v136
    %v605 = vpack.c.b16 %v545, %v541
    %v606 = vpack.c.b16 %v546, %v542
    %v607 = vpack.c.b16 %v547, %v543
    %v608 = vpack.c.b16 %v548, %v544
    %v609 = vpack.c.b16 %v553, %v549
    %v610 = vpack.c.b16 %v554, %v550
    %v611 = vpack.c.b16 %v555, %v551
    %v612 = vpack.c.b16 %v556, %v552
    %v613 = vpack.c.b16 %v561, %v557
    %v614 = vpack.c.b16 %v562, %v558
    %v615 = vpack.c.b16 %v563, %v559
    %v616 = vpack.c.b16 %v564, %v560
    %v617 = vpack.c.b16 %v569, %v565
    %v618 = vpack.c.b16 %v570, %v566
    %v619 = vpack.c.b16 %v571, %v567
    %v620 = vpack.c.b16 %v572, %v568
    %v621 = vpack.c.b16 %v577, %v573
    %v622 = vpack.c.b16 %v578, %v574
    %v623 = vpack.c.b16 %v579, %v575
    %v624 = vpack.c.b16 %v580, %v576
    %v625 = vpack.c.b16 %v585, %v581
    %v626 = vpack.c.b16 %v586, %v582
    %v627 = vpack.c.b16 %v587, %v583
    %v628 = vpack.c.b16 %v588, %v584
    %v629 = vpack.c.b16 %v593, %v589
    %v630 = vpack.c.b16 %v594, %v590
    %v631 = vpack.c.b16 %v595, %v591
    %v632 = vpack.c.b16 %v596, %v592
    %v633 = vpack.c.b16 %v601, %v597
    %v634 = vpack.c.b16 %v602, %v598
    %v635 = vpack.c.b16 %v603, %v599
    %v636 = vpack.c.b16 %v604, %v600
    %669 = vmatprep.subr.bf16.mxu0 %v606
    %670 = vmatpush1.bf16.msra.mxu0 %v605
    %671 = vmatprep.subr.bf16.mxu0 %v610
    %672 = vmatpush1.bf16.msra.mxu0 %v609
    %673 = vmatprep.subr.bf16.mxu0 %v614
    %674 = vmatpush1.bf16.msra.mxu0 %v613
    %675 = vmatprep.subr.bf16.mxu0 %v618
    %676 = vmatpush1.bf16.msra.mxu0 %v617
    %677 = vmatprep.subr.bf16.mxu0 %v622
    %678 = vmatpush1.bf16.msra.mxu0 %v621
    %679 = vmatprep.subr.bf16.mxu0 %v626
    %680 = vmatpush1.bf16.msra.mxu0 %v625
    %681 = vmatprep.subr.bf16.mxu0 %v630
    %682 = vmatpush1.bf16.msra.mxu0 %v629
    %683 = vmatprep.subr.bf16.mxu0 %v634
    %684 = vmatpush1.bf16.msra.mxu0 %v633
    %685 = vmatprep.subr.bf16.mxu0 0
    %686 = vmatpush1.bf16.msra.mxu0 0
    %687 = vmatprep.subr.bf16.mxu0 0
    %688 = vmatpush1.bf16.msra.mxu0 0
    %689 = vmatprep.subr.bf16.mxu0 0
    %690 = vmatpush1.bf16.msra.mxu0 0
    %691 = vmatprep.subr.bf16.mxu0 0
    %692 = vmatpush1.bf16.msra.mxu0 0
    %693 = vmatprep.subr.bf16.mxu0 0
    %694 = vmatpush1.bf16.msra.mxu0 0
    %695 = vmatprep.subr.bf16.mxu0 0
    %696 = vmatpush1.bf16.msra.mxu0 0
    %697 = vmatprep.subr.bf16.mxu0 0
    %698 = vmatpush1.bf16.msra.mxu0 0
    %699 = vmatprep.subr.bf16.mxu0 0
    %700 = vmatpush1.bf16.msra.mxu0 0
    %701 = vmatprep.mubr.bf16.mxu0 0
    %702 = vmatmul.mubr.bf16.gmra.mrb[0].mxu0 %v508
    %v703 = vpop.f32.mrb[0].mxu0
    %v704 = vadd.f32 0.0, %v703
    %v705 = vpop.f32.mrb[0].mxu0
    %v706 = vadd.f32 0.0, %v705
    %v707 = vpop.f32.mrb[0].mxu0
    %v708 = vadd.f32 0.0, %v707
    %v709 = vpop.f32.mrb[0].mxu0
    %v710 = vadd.f32 0.0, %v709
    %711 = vdwg.mxu0
    %712 = vmatprep.subr.bf16.mxu0 %v608
    %713 = vmatpush1.bf16.msra.mxu0 %v607
    %714 = vmatprep.subr.bf16.mxu0 %v612
    %715 = vmatpush1.bf16.msra.mxu0 %v611
    %716 = vmatprep.subr.bf16.mxu0 %v616
    %717 = vmatpush1.bf16.msra.mxu0 %v615
    %718 = vmatprep.subr.bf16.mxu0 %v620
    %719 = vmatpush1.bf16.msra.mxu0 %v619
    %720 = vmatprep.subr.bf16.mxu0 %v624
    %721 = vmatpush1.bf16.msra.mxu0 %v623
    %722 = vmatprep.subr.bf16.mxu0 %v628
    %723 = vmatpush1.bf16.msra.mxu0 %v627
    %724 = vmatprep.subr.bf16.mxu0 %v632
    %725 = vmatpush1.bf16.msra.mxu0 %v631
    %726 = vmatprep.subr.bf16.mxu0 %v636
    %727 = vmatpush1.bf16.msra.mxu0 %v635
    %728 = vmatprep.subr.bf16.mxu0 0
    %729 = vmatpush1.bf16.msra.mxu0 0
    %730 = vmatprep.subr.bf16.mxu0 0
    %731 = vmatpush1.bf16.msra.mxu0 0
    %732 = vmatprep.subr.bf16.mxu0 0
    %733 = vmatpush1.bf16.msra.mxu0 0
    %734 = vmatprep.subr.bf16.mxu0 0
    %735 = vmatpush1.bf16.msra.mxu0 0
    %736 = vmatprep.subr.bf16.mxu0 0
    %737 = vmatpush1.bf16.msra.mxu0 0
    %738 = vmatprep.subr.bf16.mxu0 0
    %739 = vmatpush1.bf16.msra.mxu0 0
    %740 = vmatprep.subr.bf16.mxu0 0
    %741 = vmatpush1.bf16.msra.mxu0 0
    %742 = vmatprep.subr.bf16.mxu0 0
    %743 = vmatpush1.bf16.msra.mxu0 0
    %744 = vmatprep.mubr.bf16.mxu0 0
    %745 = vmatmul.mubr.bf16.gmra.mrb[0].mxu0 %v508
    %v746 = vpop.f32.mrb[0].mxu0
    %v747 = vadd.f32 0.0, %v746
    %v748 = vpop.f32.mrb[0].mxu0
    %v749 = vadd.f32 0.0, %v748
    %v750 = vpop.f32.mrb[0].mxu0
    %v751 = vadd.f32 0.0, %v750
    %v752 = vpop.f32.mrb[0].mxu0
    %v753 = vadd.f32 0.0, %v752
    %754 = vdwg.mxu0
    %v755 = vadd.f32 %v500, %v704
    %v756 = vadd.f32 %v501, %v706
    %v757 = vadd.f32 %v502, %v747
    %v758 = vadd.f32 %v503, %v749
    %v759 = vadd.f32 %v504, %v708
    %v760 = vadd.f32 %v505, %v710
    %v761 = vadd.f32 %v506, %v751
    %v762 = vadd.f32 %v507, %v753
    %v763 = vxor.u32 %v755, 2147483648
    %v764 = vxor.u32 %v756, 2147483648
    %v765 = vxor.u32 %v757, 2147483648
    %v766 = vxor.u32 %v759, 2147483648
    %v767 = vxor.u32 %v760, 2147483648
    %v768 = vxor.u32 %v761, 2147483648
    %v769 = vmul.f32 %v763, 1.442695
    %v770 = vpow.pop %v769
    %v771 = vmul.f32 %v764, 1.442695
    %v772 = vpow.pop %v771
    %v773 = vmul.f32 %v765, 1.442695
    %v774 = vpow.pop %v773
    %v775 = vmul.f32 %v766, 1.442695
    %v776 = vpow.pop %v775
    %v777 = vmul.f32 %v767, 1.442695
    %v778 = vpow.pop %v777
    %v779 = vmul.f32 %v768, 1.442695
    %v780 = vpow.pop %v779
    %v781 = vadd.f32 %v770, 1.0
    %v782 = vadd.f32 %v772, 1.0
    %v783 = vadd.f32 %v774, 1.0
    %v784 = vadd.f32 %v776, 1.0
    %v785 = vadd.f32 %v778, 1.0
    %v786 = vadd.f32 %v780, 1.0
    %v787 = vrcp.pop %v781
    %v788 = vmul.f32 1.0, %v787
    %v789 = vrcp.pop %v782
    %v790 = vmul.f32 1.0, %v789
    %v791 = vrcp.pop %v783
    %v792 = vmul.f32 1.0, %v791
    %v793 = vrcp.pop %v784
    %v794 = vmul.f32 1.0, %v793
    %v795 = vrcp.pop %v785
    %v796 = vmul.f32 1.0, %v795
    %v797 = vrcp.pop %v786
    %v798 = vmul.f32 1.0, %v797
    %v799 = vtanh.pop %v758
    %v800 = vtanh.pop %v762
    %v801 = vmul.f32 %v790, %v157
    %v802 = vmul.f32 %v796, %v158
    %v803 = vmul.f32 %v788, %v799
    %v804 = vmul.f32 %v794, %v800
    %v805 = vadd.f32 %v801, %v803
    %v806 = vadd.f32 %v802, %v804
    %v807 = vtanh.pop %v805
    %v808 = vtanh.pop %v806
    %v809 = vmul.f32 %v792, %v807
    %v810 = vmul.f32 %v798, %v808
    %v811 = vpack.c.bf16 %v810, %v809
    %v813 = vunpack.c.l.b16 %v811
    %v814 = vunpack.c.h.b16 %v811
    %v815 = vpack.c.b16 %v813, %v813
    %v816 = vpack.c.b16 %v814, %v814
    %s819 = smul.u32 %s161, 2
    %s820 = smul.addr %s819, 4
    %s821 = scalar_lea.vmem %s57, %s820
    %822 = vst [vmem:[%s821] sm:$0xf] %v815
    %823 = vst [vmem:[%s821 + $0x4] sm:$0xf] %v816
    %s824 = ssub.s32 6, %s159
    %s825 = smul.u32 %s160, 8
    %s826 = smul.addr %s825, 4
    %s827 = scalar_lea.vmem %s0, %s826
    %v828 = vld [vmem:[%s827] sm:$0xff]
    %v829 = vld [vmem:[%s827 + $0x8] sm:$0xff]
    %v830 = vld [vmem:[%s827 + $0x10] sm:$0xff]
    %v831 = vld [vmem:[%s827 + $0x18] sm:$0xff]
    %v832 = vunpack.c.l.bf16 %v828
    %v833 = vunpack.c.h.bf16 %v828
    %v834 = vunpack.c.l.bf16 %v829
    %v835 = vunpack.c.h.bf16 %v829
    %v836 = vunpack.c.l.bf16 %v830
    %v837 = vunpack.c.h.bf16 %v830
    %v838 = vunpack.c.l.bf16 %v831
    %v839 = vunpack.c.h.bf16 %v831
    %840 = vmatprep.subr.bf16.mxu0 %v275
    %841 = vmatpush1.bf16.msra.mxu0 %v274
    %842 = vmatprep.subr.bf16.mxu0 %v279
    %843 = vmatpush1.bf16.msra.mxu0 %v278
    %844 = vmatprep.subr.bf16.mxu0 %v283
    %845 = vmatpush1.bf16.msra.mxu0 %v282
    %846 = vmatprep.subr.bf16.mxu0 %v287
    %847 = vmatpush1.bf16.msra.mxu0 %v286
    %848 = vmatprep.subr.bf16.mxu0 %v291
    %849 = vmatpush1.bf16.msra.mxu0 %v290
    %850 = vmatprep.subr.bf16.mxu0 %v295
    %851 = vmatpush1.bf16.msra.mxu0 %v294
    %852 = vmatprep.subr.bf16.mxu0 %v299
    %853 = vmatpush1.bf16.msra.mxu0 %v298
    %854 = vmatprep.subr.bf16.mxu0 %v303
    %855 = vmatpush1.bf16.msra.mxu0 %v302
    %856 = vmatprep.subr.bf16.mxu0 0
    %857 = vmatpush1.bf16.msra.mxu0 0
    %858 = vmatprep.subr.bf16.mxu0 0
    %859 = vmatpush1.bf16.msra.mxu0 0
    %860 = vmatprep.subr.bf16.mxu0 0
    %861 = vmatpush1.bf16.msra.mxu0 0
    %862 = vmatprep.subr.bf16.mxu0 0
    %863 = vmatpush1.bf16.msra.mxu0 0
    %864 = vmatprep.subr.bf16.mxu0 0
    %865 = vmatpush1.bf16.msra.mxu0 0
    %866 = vmatprep.subr.bf16.mxu0 0
    %867 = vmatpush1.bf16.msra.mxu0 0
    %868 = vmatprep.subr.bf16.mxu0 0
    %869 = vmatpush1.bf16.msra.mxu0 0
    %870 = vmatprep.subr.bf16.mxu0 0
    %871 = vmatpush1.bf16.msra.mxu0 0
    %872 = vmatprep.mubr.bf16.mxu0 0
    %873 = vmatmul.mubr.bf16.gmra.mrb[0].mxu0 %v480
    %v874 = vpop.f32.mrb[0].mxu0
    %v875 = vadd.f32 0.0, %v874
    %v876 = vpop.f32.mrb[0].mxu0
    %v877 = vadd.f32 0.0, %v876
    %v878 = vpop.f32.mrb[0].mxu0
    %v879 = vadd.f32 0.0, %v878
    %v880 = vpop.f32.mrb[0].mxu0
    %v881 = vadd.f32 0.0, %v880
    %882 = vdwg.mxu0
    %883 = vmatprep.subr.bf16.mxu0 %v277
    %884 = vmatpush1.bf16.msra.mxu0 %v276
    %885 = vmatprep.subr.bf16.mxu0 %v281
    %886 = vmatpush1.bf16.msra.mxu0 %v280
    %887 = vmatprep.subr.bf16.mxu0 %v285
    %888 = vmatpush1.bf16.msra.mxu0 %v284
    %889 = vmatprep.subr.bf16.mxu0 %v289
    %890 = vmatpush1.bf16.msra.mxu0 %v288
    %891 = vmatprep.subr.bf16.mxu0 %v293
    %892 = vmatpush1.bf16.msra.mxu0 %v292
    %893 = vmatprep.subr.bf16.mxu0 %v297
    %894 = vmatpush1.bf16.msra.mxu0 %v296
    %895 = vmatprep.subr.bf16.mxu0 %v301
    %896 = vmatpush1.bf16.msra.mxu0 %v300
    %897 = vmatprep.subr.bf16.mxu0 %v305
    %898 = vmatpush1.bf16.msra.mxu0 %v304
    %899 = vmatprep.subr.bf16.mxu0 0
    %900 = vmatpush1.bf16.msra.mxu0 0
    %901 = vmatprep.subr.bf16.mxu0 0
    %902 = vmatpush1.bf16.msra.mxu0 0
    %903 = vmatprep.subr.bf16.mxu0 0
    %904 = vmatpush1.bf16.msra.mxu0 0
    %905 = vmatprep.subr.bf16.mxu0 0
    %906 = vmatpush1.bf16.msra.mxu0 0
    %907 = vmatprep.subr.bf16.mxu0 0
    %908 = vmatpush1.bf16.msra.mxu0 0
    %909 = vmatprep.subr.bf16.mxu0 0
    %910 = vmatpush1.bf16.msra.mxu0 0
    %911 = vmatprep.subr.bf16.mxu0 0
    %912 = vmatpush1.bf16.msra.mxu0 0
    %913 = vmatprep.subr.bf16.mxu0 0
    %914 = vmatpush1.bf16.msra.mxu0 0
    %915 = vmatprep.mubr.bf16.mxu0 0
    %916 = vmatmul.mubr.bf16.gmra.mrb[0].mxu0 %v480
    %v917 = vpop.f32.mrb[0].mxu0
    %v918 = vadd.f32 0.0, %v917
    %v919 = vpop.f32.mrb[0].mxu0
    %v920 = vadd.f32 0.0, %v919
    %v921 = vpop.f32.mrb[0].mxu0
    %v922 = vadd.f32 0.0, %v921
    %v923 = vpop.f32.mrb[0].mxu0
    %v924 = vadd.f32 0.0, %v923
    %925 = vdwg.mxu0
    %v926 = vadd.f32 %v832, %v875
    %v927 = vadd.f32 %v833, %v877
    %v928 = vadd.f32 %v834, %v918
    %v929 = vadd.f32 %v835, %v920
    %v930 = vadd.f32 %v836, %v879
    %v931 = vadd.f32 %v837, %v881
    %v932 = vadd.f32 %v838, %v922
    %v933 = vadd.f32 %v839, %v924
    %v934 = vxor.u32 %v926, 2147483648
    %v935 = vxor.u32 %v927, 2147483648
    %v936 = vxor.u32 %v928, 2147483648
    %v937 = vxor.u32 %v930, 2147483648
    %v938 = vxor.u32 %v931, 2147483648
    %v939 = vxor.u32 %v932, 2147483648
    %v940 = vmul.f32 %v934, 1.442695
    %v941 = vpow.pop %v940
    %v942 = vmul.f32 %v935, 1.442695
    %v943 = vpow.pop %v942
    %v944 = vmul.f32 %v936, 1.442695
    %v945 = vpow.pop %v944
    %v946 = vmul.f32 %v937, 1.442695
    %v947 = vpow.pop %v946
    %v948 = vmul.f32 %v938, 1.442695
    %v949 = vpow.pop %v948
    %v950 = vmul.f32 %v939, 1.442695
    %v951 = vpow.pop %v950
    %v952 = vadd.f32 %v941, 1.0
    %v953 = vadd.f32 %v943, 1.0
    %v954 = vadd.f32 %v945, 1.0
    %v955 = vadd.f32 %v947, 1.0
    %v956 = vadd.f32 %v949, 1.0
    %v957 = vadd.f32 %v951, 1.0
    %v958 = vrcp.pop %v952
    %v959 = vmul.f32 1.0, %v958
    %v960 = vrcp.pop %v953
    %v961 = vmul.f32 1.0, %v960
    %v962 = vrcp.pop %v954
    %v963 = vmul.f32 1.0, %v962
    %v964 = vrcp.pop %v955
    %v965 = vmul.f32 1.0, %v964
    %v966 = vrcp.pop %v956
    %v967 = vmul.f32 1.0, %v966
    %v968 = vrcp.pop %v957
    %v969 = vmul.f32 1.0, %v968
    %v970 = vtanh.pop %v929
    %v971 = vtanh.pop %v933
    %v972 = vmul.f32 %v961, %v474
    %v973 = vmul.f32 %v967, %v475
    %v974 = vmul.f32 %v959, %v970
    %v975 = vmul.f32 %v965, %v971
    %v976 = vadd.f32 %v972, %v974
    %v977 = vadd.f32 %v973, %v975
    %v978 = vtanh.pop %v976
    %v979 = vtanh.pop %v977
    %v980 = vmul.f32 %v963, %v978
    %v981 = vmul.f32 %v969, %v979
    %v982 = vpack.c.bf16 %v981, %v980
    %v984 = vunpack.c.l.b16 %v982
    %v985 = vunpack.c.h.b16 %v982
    %v986 = vpack.c.b16 %v984, %v984
    %v987 = vpack.c.b16 %v985, %v985
    %s990 = smul.u32 %s160, 2
    %s991 = smul.addr %s990, 4
    %s992 = scalar_lea.vmem %s4, %s991
    %993 = vst [vmem:[%s992] sm:$0xf] %v986
    %994 = vst [vmem:[%s992 + $0x4] sm:$0xf] %v987
    %s995 = smul.u32 %s824, 8
    %s996 = smul.addr %s995, 4
    %s997 = scalar_lea.vmem %s48, %s996
    %v998 = vld [vmem:[%s997] sm:$0xff]
    %v999 = vld [vmem:[%s997 + $0x8] sm:$0xff]
    %v1000 = vld [vmem:[%s997 + $0x10] sm:$0xff]
    %v1001 = vld [vmem:[%s997 + $0x18] sm:$0xff]
    %v1002 = vunpack.c.l.bf16 %v998
    %v1003 = vunpack.c.h.bf16 %v998
    %v1004 = vunpack.c.l.bf16 %v999
    %v1005 = vunpack.c.h.bf16 %v999
    %v1006 = vunpack.c.l.bf16 %v1000
    %v1007 = vunpack.c.h.bf16 %v1000
    %v1008 = vunpack.c.l.bf16 %v1001
    %v1009 = vunpack.c.h.bf16 %v1001
    %1010 = vmatprep.subr.bf16.mxu0 %v606
    %1011 = vmatpush1.bf16.msra.mxu0 %v605
    %1012 = vmatprep.subr.bf16.mxu0 %v610
    %1013 = vmatpush1.bf16.msra.mxu0 %v609
    %1014 = vmatprep.subr.bf16.mxu0 %v614
    %1015 = vmatpush1.bf16.msra.mxu0 %v613
    %1016 = vmatprep.subr.bf16.mxu0 %v618
    %1017 = vmatpush1.bf16.msra.mxu0 %v617
    %1018 = vmatprep.subr.bf16.mxu0 %v622
    %1019 = vmatpush1.bf16.msra.mxu0 %v621
    %1020 = vmatprep.subr.bf16.mxu0 %v626
    %1021 = vmatpush1.bf16.msra.mxu0 %v625
    %1022 = vmatprep.subr.bf16.mxu0 %v630
    %1023 = vmatpush1.bf16.msra.mxu0 %v629
    %1024 = vmatprep.subr.bf16.mxu0 %v634
    %1025 = vmatpush1.bf16.msra.mxu0 %v633
    %1026 = vmatprep.subr.bf16.mxu0 0
    %1027 = vmatpush1.bf16.msra.mxu0 0
    %1028 = vmatprep.subr.bf16.mxu0 0
    %1029 = vmatpush1.bf16.msra.mxu0 0
    %1030 = vmatprep.subr.bf16.mxu0 0
    %1031 = vmatpush1.bf16.msra.mxu0 0
    %1032 = vmatprep.subr.bf16.mxu0 0
    %1033 = vmatpush1.bf16.msra.mxu0 0
    %1034 = vmatprep.subr.bf16.mxu0 0
    %1035 = vmatpush1.bf16.msra.mxu0 0
    %1036 = vmatprep.subr.bf16.mxu0 0
    %1037 = vmatpush1.bf16.msra.mxu0 0
    %1038 = vmatprep.subr.bf16.mxu0 0
    %1039 = vmatpush1.bf16.msra.mxu0 0
    %1040 = vmatprep.subr.bf16.mxu0 0
    %1041 = vmatpush1.bf16.msra.mxu0 0
    %1042 = vmatprep.mubr.bf16.mxu0 0
    %1043 = vmatmul.mubr.bf16.gmra.mrb[0].mxu0 %v811
    %v1044 = vpop.f32.mrb[0].mxu0
    %v1045 = vadd.f32 0.0, %v1044
    %v1046 = vpop.f32.mrb[0].mxu0
    %v1047 = vadd.f32 0.0, %v1046
    %v1048 = vpop.f32.mrb[0].mxu0
    %v1049 = vadd.f32 0.0, %v1048
    %v1050 = vpop.f32.mrb[0].mxu0
    %v1051 = vadd.f32 0.0, %v1050
    %1052 = vdwg.mxu0
    %1053 = vmatprep.subr.bf16.mxu0 %v608
    %1054 = vmatpush1.bf16.msra.mxu0 %v607
    %1055 = vmatprep.subr.bf16.mxu0 %v612
    %1056 = vmatpush1.bf16.msra.mxu0 %v611
    %1057 = vmatprep.subr.bf16.mxu0 %v616
    %1058 = vmatpush1.bf16.msra.mxu0 %v615
    %1059 = vmatprep.subr.bf16.mxu0 %v620
    %1060 = vmatpush1.bf16.msra.mxu0 %v619
    %1061 = vmatprep.subr.bf16.mxu0 %v624
    %1062 = vmatpush1.bf16.msra.mxu0 %v623
    %1063 = vmatprep.subr.bf16.mxu0 %v628
    %1064 = vmatpush1.bf16.msra.mxu0 %v627
    %1065 = vmatprep.subr.bf16.mxu0 %v632
    %1066 = vmatpush1.bf16.msra.mxu0 %v631
    %1067 = vmatprep.subr.bf16.mxu0 %v636
    %1068 = vmatpush1.bf16.msra.mxu0 %v635
    %1069 = vmatprep.subr.bf16.mxu0 0
    %1070 = vmatpush1.bf16.msra.mxu0 0
    %1071 = vmatprep.subr.bf16.mxu0 0
    %1072 = vmatpush1.bf16.msra.mxu0 0
    %1073 = vmatprep.subr.bf16.mxu0 0
    %1074 = vmatpush1.bf16.msra.mxu0 0
    %1075 = vmatprep.subr.bf16.mxu0 0
    %1076 = vmatpush1.bf16.msra.mxu0 0
    %1077 = vmatprep.subr.bf16.mxu0 0
    %1078 = vmatpush1.bf16.msra.mxu0 0
    %1079 = vmatprep.subr.bf16.mxu0 0
    %1080 = vmatpush1.bf16.msra.mxu0 0
    %1081 = vmatprep.subr.bf16.mxu0 0
    %1082 = vmatpush1.bf16.msra.mxu0 0
    %1083 = vmatprep.subr.bf16.mxu0 0
    %1084 = vmatpush1.bf16.msra.mxu0 0
    %1085 = vmatprep.mubr.bf16.mxu0 0
    %1086 = vmatmul.mubr.bf16.gmra.mrb[0].mxu0 %v811
    %v1087 = vpop.f32.mrb[0].mxu0
    %v1088 = vadd.f32 0.0, %v1087
    %v1089 = vpop.f32.mrb[0].mxu0
    %v1090 = vadd.f32 0.0, %v1089
    %v1091 = vpop.f32.mrb[0].mxu0
    %v1092 = vadd.f32 0.0, %v1091
    %v1093 = vpop.f32.mrb[0].mxu0
    %v1094 = vadd.f32 0.0, %v1093
    %1095 = vdwg.mxu0
    %v1096 = vadd.f32 %v1002, %v1045
    %v1097 = vadd.f32 %v1003, %v1047
    %v1098 = vadd.f32 %v1004, %v1088
    %v1099 = vadd.f32 %v1005, %v1090
    %v1100 = vadd.f32 %v1006, %v1049
    %v1101 = vadd.f32 %v1007, %v1051
    %v1102 = vadd.f32 %v1008, %v1092
    %v1103 = vadd.f32 %v1009, %v1094
    %v1104 = vxor.u32 %v1096, 2147483648
    %v1105 = vxor.u32 %v1097, 2147483648
    %v1106 = vxor.u32 %v1098, 2147483648
    %v1107 = vxor.u32 %v1100, 2147483648
    %v1108 = vxor.u32 %v1101, 2147483648
    %v1109 = vxor.u32 %v1102, 2147483648
    %v1110 = vmul.f32 %v1104, 1.442695
    %v1111 = vpow.pop %v1110
    %v1112 = vmul.f32 %v1105, 1.442695
    %v1113 = vpow.pop %v1112
    %v1114 = vmul.f32 %v1106, 1.442695
    %v1115 = vpow.pop %v1114
    %v1116 = vmul.f32 %v1107, 1.442695
    %v1117 = vpow.pop %v1116
    %v1118 = vmul.f32 %v1108, 1.442695
    %v1119 = vpow.pop %v1118
    %v1120 = vmul.f32 %v1109, 1.442695
    %v1121 = vpow.pop %v1120
    %v1122 = vadd.f32 %v1111, 1.0
    %v1123 = vadd.f32 %v1113, 1.0
    %v1124 = vadd.f32 %v1115, 1.0
    %v1125 = vadd.f32 %v1117, 1.0
    %v1126 = vadd.f32 %v1119, 1.0
    %v1127 = vadd.f32 %v1121, 1.0
    %v1128 = vrcp.pop %v1122
    %v1129 = vmul.f32 1.0, %v1128
    %v1130 = vrcp.pop %v1123
    %v1131 = vmul.f32 1.0, %v1130
    %v1132 = vrcp.pop %v1124
    %v1133 = vmul.f32 1.0, %v1132
    %v1134 = vrcp.pop %v1125
    %v1135 = vmul.f32 1.0, %v1134
    %v1136 = vrcp.pop %v1126
    %v1137 = vmul.f32 1.0, %v1136
    %v1138 = vrcp.pop %v1127
    %v1139 = vmul.f32 1.0, %v1138
    %v1140 = vtanh.pop %v1099
    %v1141 = vtanh.pop %v1103
    %v1142 = vmul.f32 %v1131, %v805
    %v1143 = vmul.f32 %v1137, %v806
    %v1144 = vmul.f32 %v1129, %v1140
    %v1145 = vmul.f32 %v1135, %v1141
    %v1146 = vadd.f32 %v1142, %v1144
    %v1147 = vadd.f32 %v1143, %v1145
    %v1148 = vtanh.pop %v1146
    %v1149 = vtanh.pop %v1147
    %v1150 = vmul.f32 %v1133, %v1148
    %v1151 = vmul.f32 %v1139, %v1149
    %v1152 = vpack.c.bf16 %v1151, %v1150
    %v1154 = vunpack.c.l.b16 %v1152
    %v1155 = vunpack.c.h.b16 %v1152
    %v1156 = vpack.c.b16 %v1154, %v1154
    %v1157 = vpack.c.b16 %v1155, %v1155
    %s1160 = smul.u32 %s824, 2
    %s1161 = smul.addr %s1160, 4
    %s1162 = scalar_lea.vmem %s57, %s1161
    %1163 = vst [vmem:[%s1162] sm:$0xf] %v1156
    %1164 = vst [vmem:[%s1162 + $0x4] sm:$0xf] %v1157
  $region26: #{model_forward.9} parent=0 // loop_footer
    %s150 = sadd.s32 1, %s146
  $region27: #{model_forward.9} parent=0 // loop_footer_branch
    %145 = sbr.rel target = $region23
  $region28: #{model_forward.9} parent=0 // loop_exit
    _
  %1165 = vst [vmem:[#allocation2] sm:$0xff] %v151
  %1166 = vst [vmem:[#allocation2 + $0x8] sm:$0xff] %v152
  %1167 = vst [vmem:[#allocation3] sm:$0xff] %v153
  %1168 = vst [vmem:[#allocation3 + $0x8] sm:$0xff] %v154
  %1169 = vst [vmem:[#allocation4] sm:$0xff] %v155
  %1170 = vst [vmem:[#allocation4 + $0x8] sm:$0xff] %v156
  %1171 = vst [vmem:[#allocation5] sm:$0xff] %v157
  %1172 = vst [vmem:[#allocation5 + $0x8] sm:$0xff] %v158
  %s1173 = ssub.s32 0, 0
  %s1174 = smul.u32 8, %s1173
  %p1175 = scmp.lt.s32.totalorder %s1174, 7
  %s1176 = scalar_select %p1175, %s1174, 7
  %s1177 = smul.addr %s1176, 2
  %s1178 = smul.addr %s1177, 4
  %s1179 = scalar_lea.vmem %s5, %s1178
  // Predicated region
  $region29: #{model_forward.9} parent=0 // pred_check
    _
  $region30: #{model_forward.9} parent=0 // pred_check_branch
    %1181 = sbr.rel (0) target = $region32
  $region31: #{model_forward.9} parent=0 // pred_region
    _
  $region32: #{model_forward.9} parent=0 // pred_fallthru
    _
  // Predicated region
  $region33: #{model_forward.9} parent=0 // pred_check
    _
  $region34: #{model_forward.9} parent=0 // pred_check_branch
    %1183 = sbr.rel (0) target = $region36
  $region35: #{model_forward.9} parent=0 // pred_region
    %s1184 = ssub.s32 0, 0
    %s1185 = smul.u32 8, %s1184
  $region36: #{model_forward.9} parent=0 // pred_fallthru
    _
  // Predicated region
  $region37: #{model_forward.9} parent=0 // pred_check
    _
  $region38: #{model_forward.9} parent=0 // pred_check_branch
    %1187 = sbr.rel (0) target = $region40
  $region39: #{model_forward.9} parent=0 // pred_region
    _
  $region40: #{model_forward.9} parent=0 // pred_fallthru
    _
  // Predicated region
  $region41: #{model_forward.9} parent=0 // pred_check
    _
  $region42: #{model_forward.9} parent=0 // pred_check_branch
    %1189 = sbr.rel (0) target = $region44
  $region43: #{model_forward.9} parent=0 // pred_region
    %s1190 = ssub.s32 0, 0
    %s1191 = smul.u32 8, %s1190
    %p1192 = scmp.lt.s32.totalorder %s1191, 7
    %s1193 = scalar_select %p1192, %s1191, 7
    %s1194 = smul.addr %s1193, 2
    %s1195 = smul.addr %s1194, 4
    %s1196 = scalar_lea.vmem %s5, %s1195
  $region44: #{model_forward.9} parent=0 // pred_fallthru
    _

// kernel: model_forward.8
$region0: #{model_forward.8}
  #allocation0 [shape = 'u32[]', space=smem, size = 0x4, offset = 0x4, fixed_abs, tag = 'smem constant byte address 0x4 - core index']
  #allocation1 [shape = 'u32[144,128]{1,0:T(1,128)}', space=vmem, size = 0x12000, scoped, tag = 'internal scratch']
  %s0 = inlined_call_operand.vmem [shape: bf16[128,128], index: 0, kind: input, shape index: {}]
  %s1 = inlined_call_operand.vmem [shape: bf16[128,128], index: 1, kind: input, shape index: {}]
  %s2 = inlined_call_operand.vmem [shape: bf16[256,512], index: 2, kind: input, shape index: {}]
  %s3 = inlined_call_operand.vmem [shape: bf16[256,512], index: 3, kind: input, shape index: {}]
  %s4 = inlined_call_operand.vmem [shape: f32[1,512], index: 4, kind: input, shape index: {}]
  %s5 = inlined_call_operand.vmem [shape: f32[1,512], index: 5, kind: input, shape index: {}]
  %s6 = inlined_call_operand.vmem [shape: bf16[128,512], index: 6, kind: output, shape index: {0}]
  %s7 = inlined_call_operand.vmem [shape: bf16[128,512], index: 7, kind: output, shape index: {1}]
  %8 = xla_tuple %s6, %s7
  %s9 = sld [smem:[#allocation0]]
  $region42: #{model_forward.8} parent=0
    _
  %s11 = ssub.s32 1, %s9
  %s12 = scalar_select 0, %s11, %s9
  // Predicated region
  $region2: #{model_forward.8} parent=0 // pred_check
    _
  $region3: #{model_forward.8} parent=0 // pred_check_branch
    %14 = sbr.rel (0) target = $region5
  $region4: #{model_forward.8} parent=0 // pred_region
    _
  $region5: #{model_forward.8} parent=0 // pred_fallthru
    _
  // Predicated region
  $region6: #{model_forward.8} parent=0 // pred_check
    _
  $region7: #{model_forward.8} parent=0 // pred_check_branch
    %16 = sbr.rel (0) target = $region9
  $region8: #{model_forward.8} parent=0 // pred_region
    _
  $region9: #{model_forward.8} parent=0 // pred_fallthru
    _
  // Predicated region
  $region10: #{model_forward.8} parent=0 // pred_check
    _
  $region11: #{model_forward.8} parent=0 // pred_check_branch
    %18 = sbr.rel (0) target = $region13
  $region12: #{model_forward.8} parent=0 // pred_region
    _
  $region13: #{model_forward.8} parent=0 // pred_fallthru
    _
  // Predicated region
  $region14: #{model_forward.8} parent=0 // pred_check
    _
  $region15: #{model_forward.8} parent=0 // pred_check_branch
    %20 = sbr.rel (0) target = $region17
  $region16: #{model_forward.8} parent=0 // pred_region
    _
  $region17: #{model_forward.8} parent=0 // pred_fallthru
    _
  // Predicated region
  $region18: #{model_forward.8} parent=0 // pred_check
    _
  $region19: #{model_forward.8} parent=0 // pred_check_branch
    %22 = sbr.rel (0) target = $region21
  $region20: #{model_forward.8} parent=0 // pred_region
    _
  $region21: #{model_forward.8} parent=0 // pred_fallthru
    _
  // Predicated region
  $region22: #{model_forward.8} parent=0 // pred_check
    _
  $region23: #{model_forward.8} parent=0 // pred_check_branch
    %24 = sbr.rel (0) target = $region25
  $region24: #{model_forward.8} parent=0 // pred_region
    _
  $region25: #{model_forward.8} parent=0 // pred_fallthru
    _
  %v26 = vld [vmem:[%s0] sm:$0xf]
  %v27 = vld [vmem:[%s0 + $0x4] sm:$0xf]
  %v28 = vld [vmem:[%s0 + $0x8] sm:$0xf]
  %v29 = vld [vmem:[%s0 + $0xc] sm:$0xf]
  %v30 = vld [vmem:[%s0 + $0x10] sm:$0xf]
  %v31 = vld [vmem:[%s0 + $0x14] sm:$0xf]
  %v32 = vld [vmem:[%s0 + $0x18] sm:$0xf]
  %v33 = vld [vmem:[%s0 + $0x1c] sm:$0xf]
  %v34 = vld [vmem:[%s0 + $0x20] sm:$0xf]
  %v35 = vld [vmem:[%s0 + $0x24] sm:$0xf]
  %v36 = vld [vmem:[%s0 + $0x28] sm:$0xf]
  %v37 = vld [vmem:[%s0 + $0x2c] sm:$0xf]
  %v38 = vld [vmem:[%s0 + $0x30] sm:$0xf]
  %v39 = vld [vmem:[%s0 + $0x34] sm:$0xf]
  %v40 = vld [vmem:[%s0 + $0x38] sm:$0xf]
  %v41 = vld [vmem:[%s0 + $0x3c] sm:$0xf]
  %v42 = vld [vmem:[%s1] sm:$0xf]
  %v43 = vld [vmem:[%s1 + $0x4] sm:$0xf]
  %v44 = vld [vmem:[%s1 + $0x8] sm:$0xf]
  %v45 = vld [vmem:[%s1 + $0xc] sm:$0xf]
  %v46 = vld [vmem:[%s1 + $0x10] sm:$0xf]
  %v47 = vld [vmem:[%s1 + $0x14] sm:$0xf]
  %v48 = vld [vmem:[%s1 + $0x18] sm:$0xf]
  %v49 = vld [vmem:[%s1 + $0x1c] sm:$0xf]
  %v50 = vld [vmem:[%s1 + $0x20] sm:$0xf]
  %v51 = vld [vmem:[%s1 + $0x24] sm:$0xf]
  %v52 = vld [vmem:[%s1 + $0x28] sm:$0xf]
  %v53 = vld [vmem:[%s1 + $0x2c] sm:$0xf]
  %v54 = vld [vmem:[%s1 + $0x30] sm:$0xf]
  %v55 = vld [vmem:[%s1 + $0x34] sm:$0xf]
  %v56 = vld [vmem:[%s1 + $0x38] sm:$0xf]
  %v57 = vld [vmem:[%s1 + $0x3c] sm:$0xf]
  %v58 = vld [vmem:[%s2] sm:$0xff]
  %v59 = vld [vmem:[%s2 + $0x8] sm:$0xff]
  %v60 = vld [vmem:[%s2 + $0x10] sm:$0xff]
  %v61 = vld [vmem:[%s2 + $0x18] sm:$0xff]
  %v62 = vld [vmem:[%s2 + $0x20] sm:$0xff]
  %v63 = vld [vmem:[%s2 + $0x28] sm:$0xff]
  %v64 = vld [vmem:[%s2 + $0x30] sm:$0xff]
  %v65 = vld [vmem:[%s2 + $0x38] sm:$0xff]
  %v66 = vld [vmem:[%s2 + $0x40] sm:$0xff]
  %v67 = vld [vmem:[%s2 + $0x48] sm:$0xff]
  %v68 = vld [vmem:[%s2 + $0x50] sm:$0xff]
  %v69 = vld [vmem:[%s2 + $0x58] sm:$0xff]
  %v70 = vld [vmem:[%s2 + $0x60] sm:$0xff]
  %v71 = vld [vmem:[%s2 + $0x68] sm:$0xff]
  %v72 = vld [vmem:[%s2 + $0x70] sm:$0xff]
  %v73 = vld [vmem:[%s2 + $0x78] sm:$0xff]
  %v74 = vld [vmem:[%s2 + $0x80] sm:$0xff]
  %v75 = vld [vmem:[%s2 + $0x88] sm:$0xff]
  %v76 = vld [vmem:[%s2 + $0x90] sm:$0xff]
  %v77 = vld [vmem:[%s2 + $0x98] sm:$0xff]
  %v78 = vld [vmem:[%s2 + $0xa0] sm:$0xff]
  %v79 = vld [vmem:[%s2 + $0xa8] sm:$0xff]
  %v80 = vld [vmem:[%s2 + $0xb0] sm:$0xff]
  %v81 = vld [vmem:[%s2 + $0xb8] sm:$0xff]
  %v82 = vld [vmem:[%s2 + $0xc0] sm:$0xff]
  %v83 = vld [vmem:[%s2 + $0xc8] sm:$0xff]
  %v84 = vld [vmem:[%s2 + $0xd0] sm:$0xff]
  %v85 = vld [vmem:[%s2 + $0xd8] sm:$0xff]
  %v86 = vld [vmem:[%s2 + $0xe0] sm:$0xff]
  %v87 = vld [vmem:[%s2 + $0xe8] sm:$0xff]
  %v88 = vld [vmem:[%s2 + $0xf0] sm:$0xff]
  %v89 = vld [vmem:[%s2 + $0xf8] sm:$0xff]
  %v90 = vld [vmem:[%s2 + $0x100] sm:$0xff]
  %v91 = vld [vmem:[%s2 + $0x108] sm:$0xff]
  %v92 = vld [vmem:[%s2 + $0x110] sm:$0xff]
  %v93 = vld [vmem:[%s2 + $0x118] sm:$0xff]
  %v94 = vld [vmem:[%s2 + $0x120] sm:$0xff]
  %v95 = vld [vmem:[%s2 + $0x128] sm:$0xff]
  %v96 = vld [vmem:[%s2 + $0x130] sm:$0xff]
  %v97 = vld [vmem:[%s2 + $0x138] sm:$0xff]
  %v98 = vld [vmem:[%s2 + $0x140] sm:$0xff]
  %v99 = vld [vmem:[%s2 + $0x148] sm:$0xff]
  %v100 = vld [vmem:[%s2 + $0x150] sm:$0xff]
  %v101 = vld [vmem:[%s2 + $0x158] sm:$0xff]
  %v102 = vld [vmem:[%s2 + $0x160] sm:$0xff]
  %v103 = vld [vmem:[%s2 + $0x168] sm:$0xff]
  %v104 = vld [vmem:[%s2 + $0x170] sm:$0xff]
  %v105 = vld [vmem:[%s2 + $0x178] sm:$0xff]
  %v106 = vld [vmem:[%s2 + $0x180] sm:$0xff]
  %v107 = vld [vmem:[%s2 + $0x188] sm:$0xff]
  %v108 = vld [vmem:[%s2 + $0x190] sm:$0xff]
  %v109 = vld [vmem:[%s2 + $0x198] sm:$0xff]
  %v110 = vld [vmem:[%s2 + $0x1a0] sm:$0xff]
  %v111 = vld [vmem:[%s2 + $0x1a8] sm:$0xff]
  %v112 = vld [vmem:[%s2 + $0x1b0] sm:$0xff]
  %v113 = vld [vmem:[%s2 + $0x1b8] sm:$0xff]
  %v114 = vld [vmem:[%s2 + $0x1c0] sm:$0xff]
  %v115 = vld [vmem:[%s2 + $0x1c8] sm:$0xff]
  %v116 = vld [vmem:[%s2 + $0x1d0] sm:$0xff]
  %v117 = vld [vmem:[%s2 + $0x1d8] sm:$0xff]
  %v118 = vld [vmem:[%s2 + $0x1e0] sm:$0xff]
  %v119 = vld [vmem:[%s2 + $0x1e8] sm:$0xff]
  %v120 = vld [vmem:[%s2 + $0x1f0] sm:$0xff]
  %v121 = vld [vmem:[%s2 + $0x1f8] sm:$0xff]
  %v138 = vunpack.c.l.b16 %v42
  %v139 = vunpack.c.l.b16 %v43
  %v140 = vunpack.c.l.b16 %v44
  %v141 = vunpack.c.l.b16 %v45
  %v142 = vunpack.c.l.b16 %v46
  %v143 = vunpack.c.l.b16 %v47
  %v144 = vunpack.c.l.b16 %v48
  %v145 = vunpack.c.l.b16 %v49
  %v146 = vunpack.c.l.b16 %v50
  %v147 = vunpack.c.l.b16 %v51
  %v148 = vunpack.c.l.b16 %v52
  %v149 = vunpack.c.l.b16 %v53
  %v150 = vunpack.c.l.b16 %v54
  %v151 = vunpack.c.l.b16 %v55
  %v152 = vunpack.c.l.b16 %v56
  %v153 = vunpack.c.l.b16 %v57
  %v154 = vpack.c.b16 %v139, %v138
  %v155 = vpack.c.b16 %v141, %v140
  %v156 = vpack.c.b16 %v143, %v142
  %v157 = vpack.c.b16 %v145, %v144
  %v158 = vpack.c.b16 %v147, %v146
  %v159 = vpack.c.b16 %v149, %v148
  %v160 = vpack.c.b16 %v151, %v150
  %v161 = vpack.c.b16 %v153, %v152
  %v202 = vunpack.c.l.b16 %v90
  %v203 = vunpack.c.h.b16 %v90
  %v204 = vunpack.c.l.b16 %v91
  %v205 = vunpack.c.h.b16 %v91
  %v206 = vunpack.c.l.b16 %v92
  %v207 = vunpack.c.h.b16 %v92
  %v208 = vunpack.c.l.b16 %v93
  %v209 = vunpack.c.h.b16 %v93
  %v210 = vunpack.c.l.b16 %v94
  %v211 = vunpack.c.h.b16 %v94
  %v212 = vunpack.c.l.b16 %v95
  %v213 = vunpack.c.h.b16 %v95
  %v214 = vunpack.c.l.b16 %v96
  %v215 = vunpack.c.h.b16 %v96
  %v216 = vunpack.c.l.b16 %v97
  %v217 = vunpack.c.h.b16 %v97
  %v218 = vunpack.c.l.b16 %v98
  %v219 = vunpack.c.h.b16 %v98
  %v220 = vunpack.c.l.b16 %v99
  %v221 = vunpack.c.h.b16 %v99
  %v222 = vunpack.c.l.b16 %v100
  %v223 = vunpack.c.h.b16 %v100
  %v224 = vunpack.c.l.b16 %v101
  %v225 = vunpack.c.h.b16 %v101
  %v226 = vunpack.c.l.b16 %v102
  %v227 = vunpack.c.h.b16 %v102
  %v228 = vunpack.c.l.b16 %v103
  %v229 = vunpack.c.h.b16 %v103
  %v230 = vunpack.c.l.b16 %v104
  %v231 = vunpack.c.h.b16 %v104
  %v232 = vunpack.c.l.b16 %v105
  %v233 = vunpack.c.h.b16 %v105
  %v234 = vunpack.c.l.b16 %v106
  %v235 = vunpack.c.h.b16 %v106
  %v236 = vunpack.c.l.b16 %v107
  %v237 = vunpack.c.h.b16 %v107
  %v238 = vunpack.c.l.b16 %v108
  %v239 = vunpack.c.h.b16 %v108
  %v240 = vunpack.c.l.b16 %v109
  %v241 = vunpack.c.h.b16 %v109
  %v242 = vunpack.c.l.b16 %v110
  %v243 = vunpack.c.h.b16 %v110
  %v244 = vunpack.c.l.b16 %v111
  %v245 = vunpack.c.h.b16 %v111
  %v246 = vunpack.c.l.b16 %v112
  %v247 = vunpack.c.h.b16 %v112
  %v248 = vunpack.c.l.b16 %v113
  %v249 = vunpack.c.h.b16 %v113
  %v250 = vunpack.c.l.b16 %v114
  %v251 = vunpack.c.h.b16 %v114
  %v252 = vunpack.c.l.b16 %v115
  %v253 = vunpack.c.h.b16 %v115
  %v254 = vunpack.c.l.b16 %v116
  %v255 = vunpack.c.h.b16 %v116
  %v256 = vunpack.c.l.b16 %v117
  %v257 = vunpack.c.h.b16 %v117
  %v258 = vunpack.c.l.b16 %v118
  %v259 = vunpack.c.h.b16 %v118
  %v260 = vunpack.c.l.b16 %v119
  %v261 = vunpack.c.h.b16 %v119
  %v262 = vunpack.c.l.b16 %v120
  %v263 = vunpack.c.h.b16 %v120
  %v264 = vunpack.c.l.b16 %v121
  %v265 = vunpack.c.h.b16 %v121
  %v266 = vpack.c.b16 %v206, %v202
  %v267 = vpack.c.b16 %v207, %v203
  %v268 = vpack.c.b16 %v208, %v204
  %v269 = vpack.c.b16 %v209, %v205
  %v270 = vpack.c.b16 %v214, %v210
  %v271 = vpack.c.b16 %v215, %v211
  %v272 = vpack.c.b16 %v216, %v212
  %v273 = vpack.c.b16 %v217, %v213
  %v274 = vpack.c.b16 %v222, %v218
  %v275 = vpack.c.b16 %v223, %v219
  %v276 = vpack.c.b16 %v224, %v220
  %v277 = vpack.c.b16 %v225, %v221
  %v278 = vpack.c.b16 %v230, %v226
  %v279 = vpack.c.b16 %v231, %v227
  %v280 = vpack.c.b16 %v232, %v228
  %v281 = vpack.c.b16 %v233, %v229
  %v282 = vpack.c.b16 %v238, %v234
  %v283 = vpack.c.b16 %v239, %v235
  %v284 = vpack.c.b16 %v240, %v236
  %v285 = vpack.c.b16 %v241, %v237
  %v286 = vpack.c.b16 %v246, %v242
  %v287 = vpack.c.b16 %v247, %v243
  %v288 = vpack.c.b16 %v248, %v244
  %v289 = vpack.c.b16 %v249, %v245
  %v290 = vpack.c.b16 %v254, %v250
  %v291 = vpack.c.b16 %v255, %v251
  %v292 = vpack.c.b16 %v256, %v252
  %v293 = vpack.c.b16 %v257, %v253
  %v294 = vpack.c.b16 %v262, %v258
  %v295 = vpack.c.b16 %v263, %v259
  %v296 = vpack.c.b16 %v264, %v260
  %v297 = vpack.c.b16 %v265, %v261
  %330 = vmatprep.subr.bf16.mxu0 %v267
  %331 = vmatpush1.bf16.msra.mxu0 %v266
  %332 = vmatprep.subr.bf16.mxu0 %v271
  %333 = vmatpush1.bf16.msra.mxu0 %v270
  %334 = vmatprep.subr.bf16.mxu0 %v275
  %335 = vmatpush1.bf16.msra.mxu0 %v274
  %336 = vmatprep.subr.bf16.mxu0 %v279
  %337 = vmatpush1.bf16.msra.mxu0 %v278
  %338 = vmatprep.subr.bf16.mxu0 %v283
  %339 = vmatpush1.bf16.msra.mxu0 %v282
  %340 = vmatprep.subr.bf16.mxu0 %v287
  %341 = vmatpush1.bf16.msra.mxu0 %v286
  %342 = vmatprep.subr.bf16.mxu0 %v291
  %343 = vmatpush1.bf16.msra.mxu0 %v290
  %344 = vmatprep.subr.bf16.mxu0 %v295
  %345 = vmatpush1.bf16.msra.mxu0 %v294
  %346 = vmatprep.subr.bf16.mxu0 0
  %347 = vmatpush1.bf16.msra.mxu0 0
  %348 = vmatprep.subr.bf16.mxu0 0
  %349 = vmatpush1.bf16.msra.mxu0 0
  %350 = vmatprep.subr.bf16.mxu0 0
  %351 = vmatpush1.bf16.msra.mxu0 0
  %352 = vmatprep.subr.bf16.mxu0 0
  %353 = vmatpush1.bf16.msra.mxu0 0
  %354 = vmatprep.subr.bf16.mxu0 0
  %355 = vmatpush1.bf16.msra.mxu0 0
  %356 = vmatprep.subr.bf16.mxu0 0
  %357 = vmatpush1.bf16.msra.mxu0 0
  %358 = vmatprep.subr.bf16.mxu0 0
  %359 = vmatpush1.bf16.msra.mxu0 0
  %360 = vmatprep.subr.bf16.mxu0 0
  %361 = vmatpush1.bf16.msra.mxu0 0
  %362 = vmatprep.mubr.bf16.mxu0 0
  %363 = vmatmul.mubr.bf16.gmra.mrb[0].mxu0 %v154
  %v364 = vpop.f32.mrb[0].mxu0
  %v365 = vadd.f32 0.0, %v364
  %v366 = vpop.f32.mrb[0].mxu0
  %v367 = vadd.f32 0.0, %v366
  %v368 = vpop.f32.mrb[0].mxu0
  %v369 = vadd.f32 0.0, %v368
  %v370 = vpop.f32.mrb[0].mxu0
  %v371 = vadd.f32 0.0, %v370
  %372 = vmatprep.mubr.bf16.mxu0 0
  %373 = vmatmul.mubr.bf16.gmra.mrb[0].mxu0 %v155
  %v374 = vpop.f32.mrb[0].mxu0
  %v375 = vadd.f32 0.0, %v374
  %v376 = vpop.f32.mrb[0].mxu0
  %v377 = vadd.f32 0.0, %v376
  %v378 = vpop.f32.mrb[0].mxu0
  %v379 = vadd.f32 0.0, %v378
  %v380 = vpop.f32.mrb[0].mxu0
  %v381 = vadd.f32 0.0, %v380
  %382 = vmatprep.mubr.bf16.mxu0 0
  %383 = vmatmul.mubr.bf16.gmra.mrb[0].mxu0 %v156
  %v384 = vpop.f32.mrb[0].mxu0
  %v385 = vadd.f32 0.0, %v384
  %v386 = vpop.f32.mrb[0].mxu0
  %v387 = vadd.f32 0.0, %v386
  %v388 = vpop.f32.mrb[0].mxu0
  %v389 = vadd.f32 0.0, %v388
  %v390 = vpop.f32.mrb[0].mxu0
  %v391 = vadd.f32 0.0, %v390
  %392 = vmatprep.mubr.bf16.mxu0 0
  %393 = vmatmul.mubr.bf16.gmra.mrb[0].mxu0 %v157
  %v394 = vpop.f32.mrb[0].mxu0
  %v395 = vadd.f32 0.0, %v394
  %v396 = vpop.f32.mrb[0].mxu0
  %v397 = vadd.f32 0.0, %v396
  %v398 = vpop.f32.mrb[0].mxu0
  %v399 = vadd.f32 0.0, %v398
  %v400 = vpop.f32.mrb[0].mxu0
  %v401 = vadd.f32 0.0, %v400
  %402 = vmatprep.mubr.bf16.mxu0 0
  %403 = vmatmul.mubr.bf16.gmra.mrb[0].mxu0 %v158
  %v404 = vpop.f32.mrb[0].mxu0
  %v405 = vadd.f32 0.0, %v404
  %v406 = vpop.f32.mrb[0].mxu0
  %v407 = vadd.f32 0.0, %v406
  %v408 = vpop.f32.mrb[0].mxu0
  %v409 = vadd.f32 0.0, %v408
  %v410 = vpop.f32.mrb[0].mxu0
  %v411 = vadd.f32 0.0, %v410
  %412 = vmatprep.mubr.bf16.mxu0 0
  %413 = vmatmul.mubr.bf16.gmra.mrb[0].mxu0 %v159
  %v414 = vpop.f32.mrb[0].mxu0
  %v415 = vadd.f32 0.0, %v414
  %v416 = vpop.f32.mrb[0].mxu0
  %v417 = vadd.f32 0.0, %v416
  %v418 = vpop.f32.mrb[0].mxu0
  %v419 = vadd.f32 0.0, %v418
  %v420 = vpop.f32.mrb[0].mxu0
  %v421 = vadd.f32 0.0, %v420
  %422 = vmatprep.mubr.bf16.mxu0 0
  %423 = vmatmul.mubr.bf16.gmra.mrb[0].mxu0 %v160
  %v424 = vpop.f32.mrb[0].mxu0
  %v425 = vadd.f32 0.0, %v424
  %v426 = vpop.f32.mrb[0].mxu0
  %v427 = vadd.f32 0.0, %v426
  %v428 = vpop.f32.mrb[0].mxu0
  %v429 = vadd.f32 0.0, %v428
  %v430 = vpop.f32.mrb[0].mxu0
  %v431 = vadd.f32 0.0, %v430
  %432 = vmatprep.mubr.bf16.mxu0 0
  %433 = vmatmul.mubr.bf16.gmra.mrb[0].mxu0 %v161
  %v434 = vpop.f32.mrb[0].mxu0
  %v435 = vadd.f32 0.0, %v434
  %v436 = vpop.f32.mrb[0].mxu0
  %v437 = vadd.f32 0.0, %v436
  %v438 = vpop.f32.mrb[0].mxu0
  %v439 = vadd.f32 0.0, %v438
  %v440 = vpop.f32.mrb[0].mxu0
  %v441 = vadd.f32 0.0, %v440
  %442 = vdwg.mxu0
  %443 = vmatprep.subr.bf16.mxu0 %v269
  %444 = vmatpush1.bf16.msra.mxu0 %v268
  %445 = vmatprep.subr.bf16.mxu0 %v273
  %446 = vmatpush1.bf16.msra.mxu0 %v272
  %447 = vmatprep.subr.bf16.mxu0 %v277
  %448 = vmatpush1.bf16.msra.mxu0 %v276
  %449 = vmatprep.subr.bf16.mxu0 %v281
  %450 = vmatpush1.bf16.msra.mxu0 %v280
  %451 = vmatprep.subr.bf16.mxu0 %v285
  %452 = vmatpush1.bf16.msra.mxu0 %v284
  %453 = vmatprep.subr.bf16.mxu0 %v289
  %454 = vmatpush1.bf16.msra.mxu0 %v288
  %455 = vmatprep.subr.bf16.mxu0 %v293
  %456 = vmatpush1.bf16.msra.mxu0 %v292
  %457 = vmatprep.subr.bf16.mxu0 %v297
  %458 = vmatpush1.bf16.msra.mxu0 %v296
  %459 = vmatprep.subr.bf16.mxu0 0
  %460 = vmatpush1.bf16.msra.mxu0 0
  %461 = vmatprep.subr.bf16.mxu0 0
  %462 = vmatpush1.bf16.msra.mxu0 0
  %463 = vmatprep.subr.bf16.mxu0 0
  %464 = vmatpush1.bf16.msra.mxu0 0
  %465 = vmatprep.subr.bf16.mxu0 0
  %466 = vmatpush1.bf16.msra.mxu0 0
  %467 = vmatprep.subr.bf16.mxu0 0
  %468 = vmatpush1.bf16.msra.mxu0 0
  %469 = vmatprep.subr.bf16.mxu0 0
  %470 = vmatpush1.bf16.msra.mxu0 0
  %471 = vmatprep.subr.bf16.mxu0 0
  %472 = vmatpush1.bf16.msra.mxu0 0
  %473 = vmatprep.subr.bf16.mxu0 0
  %474 = vmatpush1.bf16.msra.mxu0 0
  %475 = vmatprep.mubr.bf16.mxu0 0
  %476 = vmatmul.mubr.bf16.gmra.mrb[0].mxu0 %v154
  %v477 = vpop.f32.mrb[0].mxu0
  %v478 = vadd.f32 0.0, %v477
  %v479 = vpop.f32.mrb[0].mxu0
  %v480 = vadd.f32 0.0, %v479
  %v481 = vpop.f32.mrb[0].mxu0
  %v482 = vadd.f32 0.0, %v481
  %v483 = vpop.f32.mrb[0].mxu0
  %v484 = vadd.f32 0.0, %v483
  %485 = vmatprep.mubr.bf16.mxu0 0
  %486 = vmatmul.mubr.bf16.gmra.mrb[0].mxu0 %v155
  %v487 = vpop.f32.mrb[0].mxu0
  %v488 = vadd.f32 0.0, %v487
  %v489 = vpop.f32.mrb[0].mxu0
  %v490 = vadd.f32 0.0, %v489
  %v491 = vpop.f32.mrb[0].mxu0
  %v492 = vadd.f32 0.0, %v491
  %v493 = vpop.f32.mrb[0].mxu0
  %v494 = vadd.f32 0.0, %v493
  %495 = vmatprep.mubr.bf16.mxu0 0
  %496 = vmatmul.mubr.bf16.gmra.mrb[0].mxu0 %v156
  %v497 = vpop.f32.mrb[0].mxu0
  %v498 = vadd.f32 0.0, %v497
  %v499 = vpop.f32.mrb[0].mxu0
  %v500 = vadd.f32 0.0, %v499
  %v501 = vpop.f32.mrb[0].mxu0
  %v502 = vadd.f32 0.0, %v501
  %v503 = vpop.f32.mrb[0].mxu0
  %v504 = vadd.f32 0.0, %v503
  %505 = vmatprep.mubr.bf16.mxu0 0
  %506 = vmatmul.mubr.bf16.gmra.mrb[0].mxu0 %v157
  %v507 = vpop.f32.mrb[0].mxu0
  %v508 = vadd.f32 0.0, %v507
  %v509 = vpop.f32.mrb[0].mxu0
  %v510 = vadd.f32 0.0, %v509
  %v511 = vpop.f32.mrb[0].mxu0
  %v512 = vadd.f32 0.0, %v511
  %v513 = vpop.f32.mrb[0].mxu0
  %v514 = vadd.f32 0.0, %v513
  %515 = vmatprep.mubr.bf16.mxu0 0
  %516 = vmatmul.mubr.bf16.gmra.mrb[0].mxu0 %v158
  %v517 = vpop.f32.mrb[0].mxu0
  %v518 = vadd.f32 0.0, %v517
  %v519 = vpop.f32.mrb[0].mxu0
  %v520 = vadd.f32 0.0, %v519
  %v521 = vpop.f32.mrb[0].mxu0
  %v522 = vadd.f32 0.0, %v521
  %v523 = vpop.f32.mrb[0].mxu0
  %v524 = vadd.f32 0.0, %v523
  %525 = vmatprep.mubr.bf16.mxu0 0
  %526 = vmatmul.mubr.bf16.gmra.mrb[0].mxu0 %v159
  %v527 = vpop.f32.mrb[0].mxu0
  %v528 = vadd.f32 0.0, %v527
  %v529 = vpop.f32.mrb[0].mxu0
  %v530 = vadd.f32 0.0, %v529
  %v531 = vpop.f32.mrb[0].mxu0
  %v532 = vadd.f32 0.0, %v531
  %v533 = vpop.f32.mrb[0].mxu0
  %v534 = vadd.f32 0.0, %v533
  %535 = vmatprep.mubr.bf16.mxu0 0
  %536 = vmatmul.mubr.bf16.gmra.mrb[0].mxu0 %v160
  %v537 = vpop.f32.mrb[0].mxu0
  %v538 = vadd.f32 0.0, %v537
  %v539 = vpop.f32.mrb[0].mxu0
  %v540 = vadd.f32 0.0, %v539
  %v541 = vpop.f32.mrb[0].mxu0
  %v542 = vadd.f32 0.0, %v541
  %v543 = vpop.f32.mrb[0].mxu0
  %v544 = vadd.f32 0.0, %v543
  %545 = vmatprep.mubr.bf16.mxu0 0
  %546 = vmatmul.mubr.bf16.gmra.mrb[0].mxu0 %v161
  %v547 = vpop.f32.mrb[0].mxu0
  %v548 = vadd.f32 0.0, %v547
  %v549 = vpop.f32.mrb[0].mxu0
  %v550 = vadd.f32 0.0, %v549
  %v551 = vpop.f32.mrb[0].mxu0
  %v552 = vadd.f32 0.0, %v551
  %v553 = vpop.f32.mrb[0].mxu0
  %v554 = vadd.f32 0.0, %v553
  %555 = vdwg.mxu0
  %v572 = vunpack.c.l.b16 %v26
  %v573 = vunpack.c.l.b16 %v27
  %v574 = vunpack.c.l.b16 %v28
  %v575 = vunpack.c.l.b16 %v29
  %v576 = vunpack.c.l.b16 %v30
  %v577 = vunpack.c.l.b16 %v31
  %v578 = vunpack.c.l.b16 %v32
  %v579 = vunpack.c.l.b16 %v33
  %v580 = vunpack.c.l.b16 %v34
  %v581 = vunpack.c.l.b16 %v35
  %v582 = vunpack.c.l.b16 %v36
  %v583 = vunpack.c.l.b16 %v37
  %v584 = vunpack.c.l.b16 %v38
  %v585 = vunpack.c.l.b16 %v39
  %v586 = vunpack.c.l.b16 %v40
  %v587 = vunpack.c.l.b16 %v41
  %v588 = vpack.c.b16 %v573, %v572
  %v589 = vpack.c.b16 %v575, %v574
  %v590 = vpack.c.b16 %v577, %v576
  %v591 = vpack.c.b16 %v579, %v578
  %v592 = vpack.c.b16 %v581, %v580
  %v593 = vpack.c.b16 %v583, %v582
  %v594 = vpack.c.b16 %v585, %v584
  %v595 = vpack.c.b16 %v587, %v586
  %v636 = vunpack.c.l.b16 %v58
  %v637 = vunpack.c.h.b16 %v58
  %v638 = vunpack.c.l.b16 %v59
  %v639 = vunpack.c.h.b16 %v59
  %v640 = vunpack.c.l.b16 %v60
  %v641 = vunpack.c.h.b16 %v60
  %v642 = vunpack.c.l.b16 %v61
  %v643 = vunpack.c.h.b16 %v61
  %v644 = vunpack.c.l.b16 %v62
  %v645 = vunpack.c.h.b16 %v62
  %v646 = vunpack.c.l.b16 %v63
  %v647 = vunpack.c.h.b16 %v63
  %v648 = vunpack.c.l.b16 %v64
  %v649 = vunpack.c.h.b16 %v64
  %v650 = vunpack.c.l.b16 %v65
  %v651 = vunpack.c.h.b16 %v65
  %v652 = vunpack.c.l.b16 %v66
  %v653 = vunpack.c.h.b16 %v66
  %v654 = vunpack.c.l.b16 %v67
  %v655 = vunpack.c.h.b16 %v67
  %v656 = vunpack.c.l.b16 %v68
  %v657 = vunpack.c.h.b16 %v68
  %v658 = vunpack.c.l.b16 %v69
  %v659 = vunpack.c.h.b16 %v69
  %v660 = vunpack.c.l.b16 %v70
  %v661 = vunpack.c.h.b16 %v70
  %v662 = vunpack.c.l.b16 %v71
  %v663 = vunpack.c.h.b16 %v71
  %v664 = vunpack.c.l.b16 %v72
  %v665 = vunpack.c.h.b16 %v72
  %v666 = vunpack.c.l.b16 %v73
  %v667 = vunpack.c.h.b16 %v73
  %v668 = vunpack.c.l.b16 %v74
  %v669 = vunpack.c.h.b16 %v74
  %v670 = vunpack.c.l.b16 %v75
  %v671 = vunpack.c.h.b16 %v75
  %v672 = vunpack.c.l.b16 %v76
  %v673 = vunpack.c.h.b16 %v76
  %v674 = vunpack.c.l.b16 %v77
  %v675 = vunpack.c.h.b16 %v77
  %v676 = vunpack.c.l.b16 %v78
  %v677 = vunpack.c.h.b16 %v78
  %v678 = vunpack.c.l.b16 %v79
  %v679 = vunpack.c.h.b16 %v79
  %v680 = vunpack.c.l.b16 %v80
  %v681 = vunpack.c.h.b16 %v80
  %v682 = vunpack.c.l.b16 %v81
  %v683 = vunpack.c.h.b16 %v81
  %v684 = vunpack.c.l.b16 %v82
  %v685 = vunpack.c.h.b16 %v82
  %v686 = vunpack.c.l.b16 %v83
  %v687 = vunpack.c.h.b16 %v83
  %v688 = vunpack.c.l.b16 %v84
  %v689 = vunpack.c.h.b16 %v84
  %v690 = vunpack.c.l.b16 %v85
  %v691 = vunpack.c.h.b16 %v85
  %v692 = vunpack.c.l.b16 %v86
  %v693 = vunpack.c.h.b16 %v86
  %v694 = vunpack.c.l.b16 %v87
  %v695 = vunpack.c.h.b16 %v87
  %v696 = vunpack.c.l.b16 %v88
  %v697 = vunpack.c.h.b16 %v88
  %v698 = vunpack.c.l.b16 %v89
  %v699 = vunpack.c.h.b16 %v89
  %v700 = vpack.c.b16 %v640, %v636
  %v701 = vpack.c.b16 %v641, %v637
  %v702 = vpack.c.b16 %v642, %v638
  %v703 = vpack.c.b16 %v643, %v639
  %v704 = vpack.c.b16 %v648, %v644
  %v705 = vpack.c.b16 %v649, %v645
  %v706 = vpack.c.b16 %v650, %v646
  %v707 = vpack.c.b16 %v651, %v647
  %v708 = vpack.c.b16 %v656, %v652
  %v709 = vpack.c.b16 %v657, %v653
  %v710 = vpack.c.b16 %v658, %v654
  %v711 = vpack.c.b16 %v659, %v655
  %v712 = vpack.c.b16 %v664, %v660
  %v713 = vpack.c.b16 %v665, %v661
  %v714 = vpack.c.b16 %v666, %v662
  %v715 = vpack.c.b16 %v667, %v663
  %v716 = vpack.c.b16 %v672, %v668
  %v717 = vpack.c.b16 %v673, %v669
  %v718 = vpack.c.b16 %v674, %v670
  %v719 = vpack.c.b16 %v675, %v671
  %v720 = vpack.c.b16 %v680, %v676
  %v721 = vpack.c.b16 %v681, %v677
  %v722 = vpack.c.b16 %v682, %v678
  %v723 = vpack.c.b16 %v683, %v679
  %v724 = vpack.c.b16 %v688, %v684
  %v725 = vpack.c.b16 %v689, %v685
  %v726 = vpack.c.b16 %v690, %v686
  %v727 = vpack.c.b16 %v691, %v687
  %v728 = vpack.c.b16 %v696, %v692
  %v729 = vpack.c.b16 %v697, %v693
  %v730 = vpack.c.b16 %v698, %v694
  %v731 = vpack.c.b16 %v699, %v695
  %764 = vmatprep.subr.bf16.mxu0 %v701
  %765 = vmatpush1.bf16.msra.mxu0 %v700
  %766 = vmatprep.subr.bf16.mxu0 %v705
  %767 = vmatpush1.bf16.msra.mxu0 %v704
  %768 = vmatprep.subr.bf16.mxu0 %v709
  %769 = vmatpush1.bf16.msra.mxu0 %v708
  %770 = vmatprep.subr.bf16.mxu0 %v713
  %771 = vmatpush1.bf16.msra.mxu0 %v712
  %772 = vmatprep.subr.bf16.mxu0 %v717
  %773 = vmatpush1.bf16.msra.mxu0 %v716
  %774 = vmatprep.subr.bf16.mxu0 %v721
  %775 = vmatpush1.bf16.msra.mxu0 %v720
  %776 = vmatprep.subr.bf16.mxu0 %v725
  %777 = vmatpush1.bf16.msra.mxu0 %v724
  %778 = vmatprep.subr.bf16.mxu0 %v729
  %779 = vmatpush1.bf16.msra.mxu0 %v728
  %780 = vmatprep.subr.bf16.mxu0 0
  %781 = vmatpush1.bf16.msra.mxu0 0
  %782 = vmatprep.subr.bf16.mxu0 0
  %783 = vmatpush1.bf16.msra.mxu0 0
  %784 = vmatprep.subr.bf16.mxu0 0
  %785 = vmatpush1.bf16.msra.mxu0 0
  %786 = vmatprep.subr.bf16.mxu0 0
  %787 = vmatpush1.bf16.msra.mxu0 0
  %788 = vmatprep.subr.bf16.mxu0 0
  %789 = vmatpush1.bf16.msra.mxu0 0
  %790 = vmatprep.subr.bf16.mxu0 0
  %791 = vmatpush1.bf16.msra.mxu0 0
  %792 = vmatprep.subr.bf16.mxu0 0
  %793 = vmatpush1.bf16.msra.mxu0 0
  %794 = vmatprep.subr.bf16.mxu0 0
  %795 = vmatpush1.bf16.msra.mxu0 0
  %796 = vmatprep.mubr.bf16.mxu0 0
  %797 = vmatmul.mubr.bf16.gmra.mrb[0].mxu0 %v588
  %v798 = vpop.f32.mrb[0].mxu0
  %v799 = vadd.f32 %v365, %v798
  %v800 = vpop.f32.mrb[0].mxu0
  %v801 = vadd.f32 %v367, %v800
  %v802 = vpop.f32.mrb[0].mxu0
  %v803 = vadd.f32 %v369, %v802
  %v804 = vpop.f32.mrb[0].mxu0
  %v805 = vadd.f32 %v371, %v804
  %806 = vmatprep.mubr.bf16.mxu0 0
  %807 = vmatmul.mubr.bf16.gmra.mrb[0].mxu0 %v589
  %v808 = vpop.f32.mrb[0].mxu0
  %v809 = vadd.f32 %v375, %v808
  %v810 = vpop.f32.mrb[0].mxu0
  %v811 = vadd.f32 %v377, %v810
  %v812 = vpop.f32.mrb[0].mxu0
  %v813 = vadd.f32 %v379, %v812
  %v814 = vpop.f32.mrb[0].mxu0
  %v815 = vadd.f32 %v381, %v814
  %816 = vmatprep.mubr.bf16.mxu0 0
  %817 = vmatmul.mubr.bf16.gmra.mrb[0].mxu0 %v590
  %v818 = vpop.f32.mrb[0].mxu0
  %v819 = vadd.f32 %v385, %v818
  %v820 = vpop.f32.mrb[0].mxu0
  %v821 = vadd.f32 %v387, %v820
  %v822 = vpop.f32.mrb[0].mxu0
  %v823 = vadd.f32 %v389, %v822
  %v824 = vpop.f32.mrb[0].mxu0
  %v825 = vadd.f32 %v391, %v824
  %826 = vmatprep.mubr.bf16.mxu0 0
  %827 = vmatmul.mubr.bf16.gmra.mrb[0].mxu0 %v591
  %v828 = vpop.f32.mrb[0].mxu0
  %v829 = vadd.f32 %v395, %v828
  %v830 = vpop.f32.mrb[0].mxu0
  %v831 = vadd.f32 %v397, %v830
  %v832 = vpop.f32.mrb[0].mxu0
  %v833 = vadd.f32 %v399, %v832
  %v834 = vpop.f32.mrb[0].mxu0
  %v835 = vadd.f32 %v401, %v834
  %836 = vmatprep.mubr.bf16.mxu0 0
  %837 = vmatmul.mubr.bf16.gmra.mrb[0].mxu0 %v592
  %v838 = vpop.f32.mrb[0].mxu0
  %v839 = vadd.f32 %v405, %v838
  %v840 = vpop.f32.mrb[0].mxu0
  %v841 = vadd.f32 %v407, %v840
  %v842 = vpop.f32.mrb[0].mxu0
  %v843 = vadd.f32 %v409, %v842
  %v844 = vpop.f32.mrb[0].mxu0
  %v845 = vadd.f32 %v411, %v844
  %846 = vmatprep.mubr.bf16.mxu0 0
  %847 = vmatmul.mubr.bf16.gmra.mrb[0].mxu0 %v593
  %v848 = vpop.f32.mrb[0].mxu0
  %v849 = vadd.f32 %v415, %v848
  %v850 = vpop.f32.mrb[0].mxu0
  %v851 = vadd.f32 %v417, %v850
  %v852 = vpop.f32.mrb[0].mxu0
  %v853 = vadd.f32 %v419, %v852
  %v854 = vpop.f32.mrb[0].mxu0
  %v855 = vadd.f32 %v421, %v854
  %856 = vmatprep.mubr.bf16.mxu0 0
  %857 = vmatmul.mubr.bf16.gmra.mrb[0].mxu0 %v594
  %v858 = vpop.f32.mrb[0].mxu0
  %v859 = vadd.f32 %v425, %v858
  %v860 = vpop.f32.mrb[0].mxu0
  %v861 = vadd.f32 %v427, %v860
  %v862 = vpop.f32.mrb[0].mxu0
  %v863 = vadd.f32 %v429, %v862
  %v864 = vpop.f32.mrb[0].mxu0
  %v865 = vadd.f32 %v431, %v864
  %866 = vmatprep.mubr.bf16.mxu0 0
  %867 = vmatmul.mubr.bf16.gmra.mrb[0].mxu0 %v595
  %v868 = vpop.f32.mrb[0].mxu0
  %v869 = vadd.f32 %v435, %v868
  %v870 = vpop.f32.mrb[0].mxu0
  %v871 = vadd.f32 %v437, %v870
  %v872 = vpop.f32.mrb[0].mxu0
  %v873 = vadd.f32 %v439, %v872
  %v874 = vpop.f32.mrb[0].mxu0
  %v875 = vadd.f32 %v441, %v874
  %876 = vdwg.mxu0
  %877 = vmatprep.subr.bf16.mxu0 %v703
  %878 = vmatpush1.bf16.msra.mxu0 %v702
  %879 = vmatprep.subr.bf16.mxu0 %v707
  %880 = vmatpush1.bf16.msra.mxu0 %v706
  %881 = vmatprep.subr.bf16.mxu0 %v711
  %882 = vmatpush1.bf16.msra.mxu0 %v710
  %883 = vmatprep.subr.bf16.mxu0 %v715
  %884 = vmatpush1.bf16.msra.mxu0 %v714
  %885 = vmatprep.subr.bf16.mxu0 %v719
  %886 = vmatpush1.bf16.msra.mxu0 %v718
  %887 = vmatprep.subr.bf16.mxu0 %v723
  %888 = vmatpush1.bf16.msra.mxu0 %v722
  %889 = vmatprep.subr.bf16.mxu0 %v727
  %890 = vmatpush1.bf16.msra.mxu0 %v726
  %891 = vmatprep.subr.bf16.mxu0 %v731
  %892 = vmatpush1.bf16.msra.mxu0 %v730
  %893 = vmatprep.subr.bf16.mxu0 0
  %894 = vmatpush1.bf16.msra.mxu0 0
  %895 = vmatprep.subr.bf16.mxu0 0
  %896 = vmatpush1.bf16.msra.mxu0 0
  %897 = vmatprep.subr.bf16.mxu0 0
  %898 = vmatpush1.bf16.msra.mxu0 0
  %899 = vmatprep.subr.bf16.mxu0 0
  %900 = vmatpush1.bf16.msra.mxu0 0
  %901 = vmatprep.subr.bf16.mxu0 0
  %902 = vmatpush1.bf16.msra.mxu0 0
  %903 = vmatprep.subr.bf16.mxu0 0
  %904 = vmatpush1.bf16.msra.mxu0 0
  %905 = vmatprep.subr.bf16.mxu0 0
  %906 = vmatpush1.bf16.msra.mxu0 0
  %907 = vmatprep.subr.bf16.mxu0 0
  %908 = vmatpush1.bf16.msra.mxu0 0
  %909 = vmatprep.mubr.bf16.mxu0 0
  %910 = vmatmul.mubr.bf16.gmra.mrb[0].mxu0 %v588
  %v911 = vpop.f32.mrb[0].mxu0
  %v912 = vadd.f32 %v478, %v911
  %v913 = vpop.f32.mrb[0].mxu0
  %v914 = vadd.f32 %v480, %v913
  %v915 = vpop.f32.mrb[0].mxu0
  %v916 = vadd.f32 %v482, %v915
  %v917 = vpop.f32.mrb[0].mxu0
  %v918 = vadd.f32 %v484, %v917
  %919 = vmatprep.mubr.bf16.mxu0 0
  %920 = vmatmul.mubr.bf16.gmra.mrb[0].mxu0 %v589
  %v921 = vpop.f32.mrb[0].mxu0
  %v922 = vadd.f32 %v488, %v921
  %v923 = vpop.f32.mrb[0].mxu0
  %v924 = vadd.f32 %v490, %v923
  %v925 = vpop.f32.mrb[0].mxu0
  %v926 = vadd.f32 %v492, %v925
  %v927 = vpop.f32.mrb[0].mxu0
  %v928 = vadd.f32 %v494, %v927
  %929 = vmatprep.mubr.bf16.mxu0 0
  %930 = vmatmul.mubr.bf16.gmra.mrb[0].mxu0 %v590
  %v931 = vpop.f32.mrb[0].mxu0
  %v932 = vadd.f32 %v498, %v931
  %v933 = vpop.f32.mrb[0].mxu0
  %v934 = vadd.f32 %v500, %v933
  %v935 = vpop.f32.mrb[0].mxu0
  %v936 = vadd.f32 %v502, %v935
  %v937 = vpop.f32.mrb[0].mxu0
  %v938 = vadd.f32 %v504, %v937
  %939 = vmatprep.mubr.bf16.mxu0 0
  %940 = vmatmul.mubr.bf16.gmra.mrb[0].mxu0 %v591
  %v941 = vpop.f32.mrb[0].mxu0
  %v942 = vadd.f32 %v508, %v941
  %v943 = vpop.f32.mrb[0].mxu0
  %v944 = vadd.f32 %v510, %v943
  %v945 = vpop.f32.mrb[0].mxu0
  %v946 = vadd.f32 %v512, %v945
  %v947 = vpop.f32.mrb[0].mxu0
  %v948 = vadd.f32 %v514, %v947
  %949 = vmatprep.mubr.bf16.mxu0 0
  %950 = vmatmul.mubr.bf16.gmra.mrb[0].mxu0 %v592
  %v951 = vpop.f32.mrb[0].mxu0
  %v952 = vadd.f32 %v518, %v951
  %v953 = vpop.f32.mrb[0].mxu0
  %v954 = vadd.f32 %v520, %v953
  %v955 = vpop.f32.mrb[0].mxu0
  %v956 = vadd.f32 %v522, %v955
  %v957 = vpop.f32.mrb[0].mxu0
  %v958 = vadd.f32 %v524, %v957
  %959 = vmatprep.mubr.bf16.mxu0 0
  %960 = vmatmul.mubr.bf16.gmra.mrb[0].mxu0 %v593
  %v961 = vpop.f32.mrb[0].mxu0
  %v962 = vadd.f32 %v528, %v961
  %v963 = vpop.f32.mrb[0].mxu0
  %v964 = vadd.f32 %v530, %v963
  %v965 = vpop.f32.mrb[0].mxu0
  %v966 = vadd.f32 %v532, %v965
  %v967 = vpop.f32.mrb[0].mxu0
  %v968 = vadd.f32 %v534, %v967
  %969 = vmatprep.mubr.bf16.mxu0 0
  %970 = vmatmul.mubr.bf16.gmra.mrb[0].mxu0 %v594
  %v971 = vpop.f32.mrb[0].mxu0
  %v972 = vadd.f32 %v538, %v971
  %v973 = vpop.f32.mrb[0].mxu0
  %v974 = vadd.f32 %v540, %v973
  %v975 = vpop.f32.mrb[0].mxu0
  %v976 = vadd.f32 %v542, %v975
  %v977 = vpop.f32.mrb[0].mxu0
  %v978 = vadd.f32 %v544, %v977
  %979 = vmatprep.mubr.bf16.mxu0 0
  %980 = vmatmul.mubr.bf16.gmra.mrb[0].mxu0 %v595
  %v981 = vpop.f32.mrb[0].mxu0
  %v982 = vadd.f32 %v548, %v981
  %v983 = vpop.f32.mrb[0].mxu0
  %v984 = vadd.f32 %v550, %v983
  %v985 = vpop.f32.mrb[0].mxu0
  %v986 = vadd.f32 %v552, %v985
  %v987 = vpop.f32.mrb[0].mxu0
  %v988 = vadd.f32 %v554, %v987
  %989 = vdwg.mxu0
  %v990 = vld [vmem:[%s4] sm:$0xf]
  %v992 = vlaneseq
  %v993 = vshrl.u32 %v992, 7
  %v994 = vsub.s32 0, %v993
  %v995 = vrot.slane %v990, %v994
  %v996 = vlaneseq
  %v997 = vshrl.u32 %v996, 7
  %v998 = vsub.s32 1, %v997
  %v999 = vrot.slane %v990, %v998
  %v1000 = vlaneseq
  %v1001 = vshrl.u32 %v1000, 7
  %v1002 = vsub.s32 2, %v1001
  %v1003 = vrot.slane %v990, %v1002
  %v1004 = vlaneseq
  %v1005 = vshrl.u32 %v1004, 7
  %v1006 = vsub.s32 3, %v1005
  %v1007 = vrot.slane %v990, %v1006
  %v1012 = vadd.f32 %v799, %v995
  %v1013 = vadd.f32 %v801, %v999
  %v1014 = vadd.f32 %v912, %v1003
  %v1015 = vadd.f32 %v914, %v1007
  %v1016 = vadd.f32 %v803, %v995
  %v1017 = vadd.f32 %v805, %v999
  %v1018 = vadd.f32 %v916, %v1003
  %v1019 = vadd.f32 %v918, %v1007
  %v1020 = vadd.f32 %v809, %v995
  %v1021 = vadd.f32 %v811, %v999
  %v1022 = vadd.f32 %v922, %v1003
  %v1023 = vadd.f32 %v924, %v1007
  %v1024 = vadd.f32 %v813, %v995
  %v1025 = vadd.f32 %v815, %v999
  %v1026 = vadd.f32 %v926, %v1003
  %v1027 = vadd.f32 %v928, %v1007
  %v1028 = vadd.f32 %v819, %v995
  %v1029 = vadd.f32 %v821, %v999
  %v1030 = vadd.f32 %v932, %v1003
  %v1031 = vadd.f32 %v934, %v1007
  %v1032 = vadd.f32 %v823, %v995
  %v1033 = vadd.f32 %v825, %v999
  %v1034 = vadd.f32 %v936, %v1003
  %v1035 = vadd.f32 %v938, %v1007
  %v1036 = vadd.f32 %v829, %v995
  %v1037 = vadd.f32 %v831, %v999
  %v1038 = vadd.f32 %v942, %v1003
  %v1039 = vadd.f32 %v944, %v1007
  %v1040 = vadd.f32 %v833, %v995
  %v1041 = vadd.f32 %v835, %v999
  %v1042 = vadd.f32 %v946, %v1003
  %v1043 = vadd.f32 %v948, %v1007
  %v1044 = vadd.f32 %v839, %v995
  %v1045 = vadd.f32 %v841, %v999
  %v1046 = vadd.f32 %v952, %v1003
  %v1047 = vadd.f32 %v954, %v1007
  %v1048 = vadd.f32 %v843, %v995
  %v1049 = vadd.f32 %v845, %v999
  %v1050 = vadd.f32 %v956, %v1003
  %v1051 = vadd.f32 %v958, %v1007
  %v1052 = vadd.f32 %v849, %v995
  %v1053 = vadd.f32 %v851, %v999
  %v1054 = vadd.f32 %v962, %v1003
  %v1055 = vadd.f32 %v964, %v1007
  %v1056 = vadd.f32 %v853, %v995
  %v1057 = vadd.f32 %v855, %v999
  %v1058 = vadd.f32 %v966, %v1003
  %v1059 = vadd.f32 %v968, %v1007
  %v1060 = vadd.f32 %v859, %v995
  %v1061 = vadd.f32 %v861, %v999
  %v1062 = vadd.f32 %v972, %v1003
  %v1063 = vadd.f32 %v974, %v1007
  %v1064 = vadd.f32 %v863, %v995
  %v1065 = vadd.f32 %v865, %v999
  %v1066 = vadd.f32 %v976, %v1003
  %v1067 = vadd.f32 %v978, %v1007
  %v1068 = vadd.f32 %v869, %v995
  %v1069 = vadd.f32 %v871, %v999
  %v1070 = vadd.f32 %v982, %v1003
  %v1071 = vadd.f32 %v984, %v1007
  %v1072 = vadd.f32 %v873, %v995
  %v1073 = vadd.f32 %v875, %v999
  %v1074 = vadd.f32 %v986, %v1003
  %v1075 = vadd.f32 %v988, %v1007
  %v1076 = vpack.c.bf16 %v1016, %v1012
  %v1077 = vpack.c.bf16 %v1017, %v1013
  %v1078 = vpack.c.bf16 %v1018, %v1014
  %v1079 = vpack.c.bf16 %v1019, %v1015
  %v1080 = vpack.c.bf16 %v1024, %v1020
  %v1081 = vpack.c.bf16 %v1025, %v1021
  %v1082 = vpack.c.bf16 %v1026, %v1022
  %v1083 = vpack.c.bf16 %v1027, %v1023
  %v1084 = vpack.c.bf16 %v1032, %v1028
  %v1085 = vpack.c.bf16 %v1033, %v1029
  %v1086 = vpack.c.bf16 %v1034, %v1030
  %v1087 = vpack.c.bf16 %v1035, %v1031
  %v1088 = vpack.c.bf16 %v1040, %v1036
  %v1089 = vpack.c.bf16 %v1041, %v1037
  %v1090 = vpack.c.bf16 %v1042, %v1038
  %v1091 = vpack.c.bf16 %v1043, %v1039
  %v1092 = vpack.c.bf16 %v1048, %v1044
  %v1093 = vpack.c.bf16 %v1049, %v1045
  %v1094 = vpack.c.bf16 %v1050, %v1046
  %v1095 = vpack.c.bf16 %v1051, %v1047
  %v1096 = vpack.c.bf16 %v1056, %v1052
  %v1097 = vpack.c.bf16 %v1057, %v1053
  %v1098 = vpack.c.bf16 %v1058, %v1054
  %v1099 = vpack.c.bf16 %v1059, %v1055
  %v1100 = vpack.c.bf16 %v1064, %v1060
  %v1101 = vpack.c.bf16 %v1065, %v1061
  %v1102 = vpack.c.bf16 %v1066, %v1062
  %v1103 = vpack.c.bf16 %v1067, %v1063
  %v1104 = vpack.c.bf16 %v1072, %v1068
  %v1105 = vpack.c.bf16 %v1073, %v1069
  %v1106 = vpack.c.bf16 %v1074, %v1070
  %v1107 = vpack.c.bf16 %v1075, %v1071
  %v1140 = vunpack.c.l.b16 %v1076
  %v1141 = vunpack.c.l.b16 %v1077
  %v1142 = vunpack.c.l.b16 %v1078
  %v1143 = vunpack.c.l.b16 %v1079
  %v1144 = vunpack.c.h.b16 %v1076
  %v1145 = vunpack.c.h.b16 %v1077
  %v1146 = vunpack.c.h.b16 %v1078
  %v1147 = vunpack.c.h.b16 %v1079
  %v1148 = vunpack.c.l.b16 %v1080
  %v1149 = vunpack.c.l.b16 %v1081
  %v1150 = vunpack.c.l.b16 %v1082
  %v1151 = vunpack.c.l.b16 %v1083
  %v1152 = vunpack.c.h.b16 %v1080
  %v1153 = vunpack.c.h.b16 %v1081
  %v1154 = vunpack.c.h.b16 %v1082
  %v1155 = vunpack.c.h.b16 %v1083
  %v1156 = vunpack.c.l.b16 %v1084
  %v1157 = vunpack.c.l.b16 %v1085
  %v1158 = vunpack.c.l.b16 %v1086
  %v1159 = vunpack.c.l.b16 %v1087
  %v1160 = vunpack.c.h.b16 %v1084
  %v1161 = vunpack.c.h.b16 %v1085
  %v1162 = vunpack.c.h.b16 %v1086
  %v1163 = vunpack.c.h.b16 %v1087
  %v1164 = vunpack.c.l.b16 %v1088
  %v1165 = vunpack.c.l.b16 %v1089
  %v1166 = vunpack.c.l.b16 %v1090
  %v1167 = vunpack.c.l.b16 %v1091
  %v1168 = vunpack.c.h.b16 %v1088
  %v1169 = vunpack.c.h.b16 %v1089
  %v1170 = vunpack.c.h.b16 %v1090
  %v1171 = vunpack.c.h.b16 %v1091
  %v1172 = vunpack.c.l.b16 %v1092
  %v1173 = vunpack.c.l.b16 %v1093
  %v1174 = vunpack.c.l.b16 %v1094
  %v1175 = vunpack.c.l.b16 %v1095
  %v1176 = vunpack.c.h.b16 %v1092
  %v1177 = vunpack.c.h.b16 %v1093
  %v1178 = vunpack.c.h.b16 %v1094
  %v1179 = vunpack.c.h.b16 %v1095
  %v1180 = vunpack.c.l.b16 %v1096
  %v1181 = vunpack.c.l.b16 %v1097
  %v1182 = vunpack.c.l.b16 %v1098
  %v1183 = vunpack.c.l.b16 %v1099
  %v1184 = vunpack.c.h.b16 %v1096
  %v1185 = vunpack.c.h.b16 %v1097
  %v1186 = vunpack.c.h.b16 %v1098
  %v1187 = vunpack.c.h.b16 %v1099
  %v1188 = vunpack.c.l.b16 %v1100
  %v1189 = vunpack.c.l.b16 %v1101
  %v1190 = vunpack.c.l.b16 %v1102
  %v1191 = vunpack.c.l.b16 %v1103
  %v1192 = vunpack.c.h.b16 %v1100
  %v1193 = vunpack.c.h.b16 %v1101
  %v1194 = vunpack.c.h.b16 %v1102
  %v1195 = vunpack.c.h.b16 %v1103
  %v1196 = vunpack.c.l.b16 %v1104
  %v1197 = vunpack.c.l.b16 %v1105
  %v1198 = vunpack.c.l.b16 %v1106
  %v1199 = vunpack.c.l.b16 %v1107
  %v1200 = vunpack.c.h.b16 %v1104
  %v1201 = vunpack.c.h.b16 %v1105
  %v1202 = vunpack.c.h.b16 %v1106
  %v1203 = vunpack.c.h.b16 %v1107
  %v1204 = vpack.c.b16 %v1141, %v1140
  %v1205 = vpack.c.b16 %v1143, %v1142
  %v1206 = vpack.c.b16 %v1145, %v1144
  %v1207 = vpack.c.b16 %v1147, %v1146
  %v1208 = vpack.c.b16 %v1149, %v1148
  %v1209 = vpack.c.b16 %v1151, %v1150
  %v1210 = vpack.c.b16 %v1153, %v1152
  %v1211 = vpack.c.b16 %v1155, %v1154
  %v1212 = vpack.c.b16 %v1157, %v1156
  %v1213 = vpack.c.b16 %v1159, %v1158
  %v1214 = vpack.c.b16 %v1161, %v1160
  %v1215 = vpack.c.b16 %v1163, %v1162
  %v1216 = vpack.c.b16 %v1165, %v1164
  %v1217 = vpack.c.b16 %v1167, %v1166
  %v1218 = vpack.c.b16 %v1169, %v1168
  %v1219 = vpack.c.b16 %v1171, %v1170
  %v1220 = vpack.c.b16 %v1173, %v1172
  %v1221 = vpack.c.b16 %v1175, %v1174
  %v1222 = vpack.c.b16 %v1177, %v1176
  %v1223 = vpack.c.b16 %v1179, %v1178
  %v1224 = vpack.c.b16 %v1181, %v1180
  %v1225 = vpack.c.b16 %v1183, %v1182
  %v1226 = vpack.c.b16 %v1185, %v1184
  %v1227 = vpack.c.b16 %v1187, %v1186
  %v1228 = vpack.c.b16 %v1189, %v1188
  %v1229 = vpack.c.b16 %v1191, %v1190
  %v1230 = vpack.c.b16 %v1193, %v1192
  %v1231 = vpack.c.b16 %v1195, %v1194
  %v1232 = vpack.c.b16 %v1197, %v1196
  %v1233 = vpack.c.b16 %v1199, %v1198
  %v1234 = vpack.c.b16 %v1201, %v1200
  %v1235 = vpack.c.b16 %v1203, %v1202
  %1268 = vst [vmem:[%s6] sm:$0xff] %v1204
  %1269 = vst [vmem:[%s6 + $0x8] sm:$0xff] %v1205
  %1270 = vst [vmem:[%s6 + $0x10] sm:$0xff] %v1206
  %1271 = vst [vmem:[%s6 + $0x18] sm:$0xff] %v1207
  %1272 = vst [vmem:[%s6 + $0x20] sm:$0xff] %v1208
  %1273 = vst [vmem:[%s6 + $0x28] sm:$0xff] %v1209
  %1274 = vst [vmem:[%s6 + $0x30] sm:$0xff] %v1210
  %1275 = vst [vmem:[%s6 + $0x38] sm:$0xff] %v1211
  %1276 = vst [vmem:[%s6 + $0x40] sm:$0xff] %v1212
  %1277 = vst [vmem:[%s6 + $0x48] sm:$0xff] %v1213
  %1278 = vst [vmem:[%s6 + $0x50] sm:$0xff] %v1214
  %1279 = vst [vmem:[%s6 + $0x58] sm:$0xff] %v1215
  %1280 = vst [vmem:[%s6 + $0x60] sm:$0xff] %v1216
  %1281 = vst [vmem:[%s6 + $0x68] sm:$0xff] %v1217
  %1282 = vst [vmem:[%s6 + $0x70] sm:$0xff] %v1218
  %1283 = vst [vmem:[%s6 + $0x78] sm:$0xff] %v1219
  %1284 = vst [vmem:[%s6 + $0x80] sm:$0xff] %v1220
  %1285 = vst [vmem:[%s6 + $0x88] sm:$0xff] %v1221
  %1286 = vst [vmem:[%s6 + $0x90] sm:$0xff] %v1222
  %1287 = vst [vmem:[%s6 + $0x98] sm:$0xff] %v1223
  %1288 = vst [vmem:[%s6 + $0xa0] sm:$0xff] %v1224
  %1289 = vst [vmem:[%s6 + $0xa8] sm:$0xff] %v1225
  %1290 = vst [vmem:[%s6 + $0xb0] sm:$0xff] %v1226
  %1291 = vst [vmem:[%s6 + $0xb8] sm:$0xff] %v1227
  %1292 = vst [vmem:[%s6 + $0xc0] sm:$0xff] %v1228
  %1293 = vst [vmem:[%s6 + $0xc8] sm:$0xff] %v1229
  %1294 = vst [vmem:[%s6 + $0xd0] sm:$0xff] %v1230
  %1295 = vst [vmem:[%s6 + $0xd8] sm:$0xff] %v1231
  %1296 = vst [vmem:[%s6 + $0xe0] sm:$0xff] %v1232
  %1297 = vst [vmem:[%s6 + $0xe8] sm:$0xff] %v1233
  %1298 = vst [vmem:[%s6 + $0xf0] sm:$0xff] %v1234
  %1299 = vst [vmem:[%s6 + $0xf8] sm:$0xff] %v1235
  %v1300 = vld [vmem:[%s3] sm:$0xff]
  %v1301 = vld [vmem:[%s3 + $0x8] sm:$0xff]
  %v1302 = vld [vmem:[%s3 + $0x10] sm:$0xff]
  %v1303 = vld [vmem:[%s3 + $0x18] sm:$0xff]
  %v1304 = vld [vmem:[%s3 + $0x20] sm:$0xff]
  %v1305 = vld [vmem:[%s3 + $0x28] sm:$0xff]
  %v1306 = vld [vmem:[%s3 + $0x30] sm:$0xff]
  %v1307 = vld [vmem:[%s3 + $0x38] sm:$0xff]
  %v1308 = vld [vmem:[%s3 + $0x40] sm:$0xff]
  %v1309 = vld [vmem:[%s3 + $0x48] sm:$0xff]
  %v1310 = vld [vmem:[%s3 + $0x50] sm:$0xff]
  %v1311 = vld [vmem:[%s3 + $0x58] sm:$0xff]
  %v1312 = vld [vmem:[%s3 + $0x60] sm:$0xff]
  %v1313 = vld [vmem:[%s3 + $0x68] sm:$0xff]
  %v1314 = vld [vmem:[%s3 + $0x70] sm:$0xff]
  %v1315 = vld [vmem:[%s3 + $0x78] sm:$0xff]
  %v1316 = vld [vmem:[%s3 + $0x80] sm:$0xff]
  %v1317 = vld [vmem:[%s3 + $0x88] sm:$0xff]
  %v1318 = vld [vmem:[%s3 + $0x90] sm:$0xff]
  %v1319 = vld [vmem:[%s3 + $0x98] sm:$0xff]
  %v1320 = vld [vmem:[%s3 + $0xa0] sm:$0xff]
  %v1321 = vld [vmem:[%s3 + $0xa8] sm:$0xff]
  %v1322 = vld [vmem:[%s3 + $0xb0] sm:$0xff]
  %v1323 = vld [vmem:[%s3 + $0xb8] sm:$0xff]
  %v1324 = vld [vmem:[%s3 + $0xc0] sm:$0xff]
  %v1325 = vld [vmem:[%s3 + $0xc8] sm:$0xff]
  %v1326 = vld [vmem:[%s3 + $0xd0] sm:$0xff]
  %v1327 = vld [vmem:[%s3 + $0xd8] sm:$0xff]
  %v1328 = vld [vmem:[%s3 + $0xe0] sm:$0xff]
  %v1329 = vld [vmem:[%s3 + $0xe8] sm:$0xff]
  %v1330 = vld [vmem:[%s3 + $0xf0] sm:$0xff]
  %v1331 = vld [vmem:[%s3 + $0xf8] sm:$0xff]
  %v1332 = vld [vmem:[%s3 + $0x100] sm:$0xff]
  %v1333 = vld [vmem:[%s3 + $0x108] sm:$0xff]
  %v1334 = vld [vmem:[%s3 + $0x110] sm:$0xff]
  %v1335 = vld [vmem:[%s3 + $0x118] sm:$0xff]
  %v1336 = vld [vmem:[%s3 + $0x120] sm:$0xff]
  %v1337 = vld [vmem:[%s3 + $0x128] sm:$0xff]
  %v1338 = vld [vmem:[%s3 + $0x130] sm:$0xff]
  %v1339 = vld [vmem:[%s3 + $0x138] sm:$0xff]
  %v1340 = vld [vmem:[%s3 + $0x140] sm:$0xff]
  %v1341 = vld [vmem:[%s3 + $0x148] sm:$0xff]
  %v1342 = vld [vmem:[%s3 + $0x150] sm:$0xff]
  %v1343 = vld [vmem:[%s3 + $0x158] sm:$0xff]
  %v1344 = vld [vmem:[%s3 + $0x160] sm:$0xff]
  %v1345 = vld [vmem:[%s3 + $0x168] sm:$0xff]
  %v1346 = vld [vmem:[%s3 + $0x170] sm:$0xff]
  %v1347 = vld [vmem:[%s3 + $0x178] sm:$0xff]
  %v1348 = vld [vmem:[%s3 + $0x180] sm:$0xff]
  %v1349 = vld [vmem:[%s3 + $0x188] sm:$0xff]
  %v1350 = vld [vmem:[%s3 + $0x190] sm:$0xff]
  %v1351 = vld [vmem:[%s3 + $0x198] sm:$0xff]
  %v1352 = vld [vmem:[%s3 + $0x1a0] sm:$0xff]
  %v1353 = vld [vmem:[%s3 + $0x1a8] sm:$0xff]
  %v1354 = vld [vmem:[%s3 + $0x1b0] sm:$0xff]
  %v1355 = vld [vmem:[%s3 + $0x1b8] sm:$0xff]
  %v1356 = vld [vmem:[%s3 + $0x1c0] sm:$0xff]
  %v1357 = vld [vmem:[%s3 + $0x1c8] sm:$0xff]
  %v1358 = vld [vmem:[%s3 + $0x1d0] sm:$0xff]
  %v1359 = vld [vmem:[%s3 + $0x1d8] sm:$0xff]
  %v1360 = vld [vmem:[%s3 + $0x1e0] sm:$0xff]
  %v1361 = vld [vmem:[%s3 + $0x1e8] sm:$0xff]
  %v1362 = vld [vmem:[%s3 + $0x1f0] sm:$0xff]
  %v1363 = vld [vmem:[%s3 + $0x1f8] sm:$0xff]
  %v1396 = vunpack.c.l.b16 %v1332
  %v1397 = vunpack.c.h.b16 %v1332
  %v1398 = vunpack.c.l.b16 %v1333
  %v1399 = vunpack.c.h.b16 %v1333
  %v1400 = vunpack.c.l.b16 %v1334
  %v1401 = vunpack.c.h.b16 %v1334
  %v1402 = vunpack.c.l.b16 %v1335
  %v1403 = vunpack.c.h.b16 %v1335
  %v1404 = vunpack.c.l.b16 %v1336
  %v1405 = vunpack.c.h.b16 %v1336
  %v1406 = vunpack.c.l.b16 %v1337
  %v1407 = vunpack.c.h.b16 %v1337
  %v1408 = vunpack.c.l.b16 %v1338
  %v1409 = vunpack.c.h.b16 %v1338
  %v1410 = vunpack.c.l.b16 %v1339
  %v1411 = vunpack.c.h.b16 %v1339
  %v1412 = vunpack.c.l.b16 %v1340
  %v1413 = vunpack.c.h.b16 %v1340
  %v1414 = vunpack.c.l.b16 %v1341
  %v1415 = vunpack.c.h.b16 %v1341
  %v1416 = vunpack.c.l.b16 %v1342
  %v1417 = vunpack.c.h.b16 %v1342
  %v1418 = vunpack.c.l.b16 %v1343
  %v1419 = vunpack.c.h.b16 %v1343
  %v1420 = vunpack.c.l.b16 %v1344
  %v1421 = vunpack.c.h.b16 %v1344
  %v1422 = vunpack.c.l.b16 %v1345
  %v1423 = vunpack.c.h.b16 %v1345
  %v1424 = vunpack.c.l.b16 %v1346
  %v1425 = vunpack.c.h.b16 %v1346
  %v1426 = vunpack.c.l.b16 %v1347
  %v1427 = vunpack.c.h.b16 %v1347
  %v1428 = vunpack.c.l.b16 %v1348
  %v1429 = vunpack.c.h.b16 %v1348
  %v1430 = vunpack.c.l.b16 %v1349
  %v1431 = vunpack.c.h.b16 %v1349
  %v1432 = vunpack.c.l.b16 %v1350
  %v1433 = vunpack.c.h.b16 %v1350
  %v1434 = vunpack.c.l.b16 %v1351
  %v1435 = vunpack.c.h.b16 %v1351
  %v1436 = vunpack.c.l.b16 %v1352
  %v1437 = vunpack.c.h.b16 %v1352
  %v1438 = vunpack.c.l.b16 %v1353
  %v1439 = vunpack.c.h.b16 %v1353
  %v1440 = vunpack.c.l.b16 %v1354
  %v1441 = vunpack.c.h.b16 %v1354
  %v1442 = vunpack.c.l.b16 %v1355
  %v1443 = vunpack.c.h.b16 %v1355
  %v1444 = vunpack.c.l.b16 %v1356
  %v1445 = vunpack.c.h.b16 %v1356
  %v1446 = vunpack.c.l.b16 %v1357
  %v1447 = vunpack.c.h.b16 %v1357
  %v1448 = vunpack.c.l.b16 %v1358
  %v1449 = vunpack.c.h.b16 %v1358
  %v1450 = vunpack.c.l.b16 %v1359
  %v1451 = vunpack.c.h.b16 %v1359
  %v1452 = vunpack.c.l.b16 %v1360
  %v1453 = vunpack.c.h.b16 %v1360
  %v1454 = vunpack.c.l.b16 %v1361
  %v1455 = vunpack.c.h.b16 %v1361
  %v1456 = vunpack.c.l.b16 %v1362
  %v1457 = vunpack.c.h.b16 %v1362
  %v1458 = vunpack.c.l.b16 %v1363
  %v1459 = vunpack.c.h.b16 %v1363
  %v1460 = vpack.c.b16 %v1400, %v1396
  %v1461 = vpack.c.b16 %v1401, %v1397
  %v1462 = vpack.c.b16 %v1402, %v1398
  %v1463 = vpack.c.b16 %v1403, %v1399
  %v1464 = vpack.c.b16 %v1408, %v1404
  %v1465 = vpack.c.b16 %v1409, %v1405
  %v1466 = vpack.c.b16 %v1410, %v1406
  %v1467 = vpack.c.b16 %v1411, %v1407
  %v1468 = vpack.c.b16 %v1416, %v1412
  %v1469 = vpack.c.b16 %v1417, %v1413
  %v1470 = vpack.c.b16 %v1418, %v1414
  %v1471 = vpack.c.b16 %v1419, %v1415
  %v1472 = vpack.c.b16 %v1424, %v1420
  %v1473 = vpack.c.b16 %v1425, %v1421
  %v1474 = vpack.c.b16 %v1426, %v1422
  %v1475 = vpack.c.b16 %v1427, %v1423
  %v1476 = vpack.c.b16 %v1432, %v1428
  %v1477 = vpack.c.b16 %v1433, %v1429
  %v1478 = vpack.c.b16 %v1434, %v1430
  %v1479 = vpack.c.b16 %v1435, %v1431
  %v1480 = vpack.c.b16 %v1440, %v1436
  %v1481 = vpack.c.b16 %v1441, %v1437
  %v1482 = vpack.c.b16 %v1442, %v1438
  %v1483 = vpack.c.b16 %v1443, %v1439
  %v1484 = vpack.c.b16 %v1448, %v1444
  %v1485 = vpack.c.b16 %v1449, %v1445
  %v1486 = vpack.c.b16 %v1450, %v1446
  %v1487 = vpack.c.b16 %v1451, %v1447
  %v1488 = vpack.c.b16 %v1456, %v1452
  %v1489 = vpack.c.b16 %v1457, %v1453
  %v1490 = vpack.c.b16 %v1458, %v1454
  %v1491 = vpack.c.b16 %v1459, %v1455
  %1524 = vmatprep.subr.bf16.mxu0 %v1461
  %1525 = vmatpush1.bf16.msra.mxu0 %v1460
  %1526 = vmatprep.subr.bf16.mxu0 %v1465
  %1527 = vmatpush1.bf16.msra.mxu0 %v1464
  %1528 = vmatprep.subr.bf16.mxu0 %v1469
  %1529 = vmatpush1.bf16.msra.mxu0 %v1468
  %1530 = vmatprep.subr.bf16.mxu0 %v1473
  %1531 = vmatpush1.bf16.msra.mxu0 %v1472
  %1532 = vmatprep.subr.bf16.mxu0 %v1477
  %1533 = vmatpush1.bf16.msra.mxu0 %v1476
  %1534 = vmatprep.subr.bf16.mxu0 %v1481
  %1535 = vmatpush1.bf16.msra.mxu0 %v1480
  %1536 = vmatprep.subr.bf16.mxu0 %v1485
  %1537 = vmatpush1.bf16.msra.mxu0 %v1484
  %1538 = vmatprep.subr.bf16.mxu0 %v1489
  %1539 = vmatpush1.bf16.msra.mxu0 %v1488
  %1540 = vmatprep.subr.bf16.mxu0 0
  %1541 = vmatpush1.bf16.msra.mxu0 0
  %1542 = vmatprep.subr.bf16.mxu0 0
  %1543 = vmatpush1.bf16.msra.mxu0 0
  %1544 = vmatprep.subr.bf16.mxu0 0
  %1545 = vmatpush1.bf16.msra.mxu0 0
  %1546 = vmatprep.subr.bf16.mxu0 0
  %1547 = vmatpush1.bf16.msra.mxu0 0
  %1548 = vmatprep.subr.bf16.mxu0 0
  %1549 = vmatpush1.bf16.msra.mxu0 0
  %1550 = vmatprep.subr.bf16.mxu0 0
  %1551 = vmatpush1.bf16.msra.mxu0 0
  %1552 = vmatprep.subr.bf16.mxu0 0
  %1553 = vmatpush1.bf16.msra.mxu0 0
  %1554 = vmatprep.subr.bf16.mxu0 0
  %1555 = vmatpush1.bf16.msra.mxu0 0
  %1556 = vmatprep.mubr.bf16.mxu0 0
  %1557 = vmatmul.mubr.bf16.gmra.mrb[0].mxu0 %v154
  %v1558 = vpop.f32.mrb[0].mxu0
  %v1559 = vadd.f32 0.0, %v1558
  %v1560 = vpop.f32.mrb[0].mxu0
  %v1561 = vadd.f32 0.0, %v1560
  %v1562 = vpop.f32.mrb[0].mxu0
  %v1563 = vadd.f32 0.0, %v1562
  %v1564 = vpop.f32.mrb[0].mxu0
  %v1565 = vadd.f32 0.0, %v1564
  %1566 = vmatprep.mubr.bf16.mxu0 0
  %1567 = vmatmul.mubr.bf16.gmra.mrb[0].mxu0 %v155
  %v1568 = vpop.f32.mrb[0].mxu0
  %v1569 = vadd.f32 0.0, %v1568
  %v1570 = vpop.f32.mrb[0].mxu0
  %v1571 = vadd.f32 0.0, %v1570
  %v1572 = vpop.f32.mrb[0].mxu0
  %v1573 = vadd.f32 0.0, %v1572
  %v1574 = vpop.f32.mrb[0].mxu0
  %v1575 = vadd.f32 0.0, %v1574
  %1576 = vmatprep.mubr.bf16.mxu0 0
  %1577 = vmatmul.mubr.bf16.gmra.mrb[0].mxu0 %v156
  %v1578 = vpop.f32.mrb[0].mxu0
  %v1579 = vadd.f32 0.0, %v1578
  %v1580 = vpop.f32.mrb[0].mxu0
  %v1581 = vadd.f32 0.0, %v1580
  %v1582 = vpop.f32.mrb[0].mxu0
  %v1583 = vadd.f32 0.0, %v1582
  %v1584 = vpop.f32.mrb[0].mxu0
  %v1585 = vadd.f32 0.0, %v1584
  %1586 = vmatprep.mubr.bf16.mxu0 0
  %1587 = vmatmul.mubr.bf16.gmra.mrb[0].mxu0 %v157
  %v1588 = vpop.f32.mrb[0].mxu0
  %v1589 = vadd.f32 0.0, %v1588
  %v1590 = vpop.f32.mrb[0].mxu0
  %v1591 = vadd.f32 0.0, %v1590
  %v1592 = vpop.f32.mrb[0].mxu0
  %v1593 = vadd.f32 0.0, %v1592
  %v1594 = vpop.f32.mrb[0].mxu0
  %v1595 = vadd.f32 0.0, %v1594
  %1596 = vmatprep.mubr.bf16.mxu0 0
  %1597 = vmatmul.mubr.bf16.gmra.mrb[0].mxu0 %v158
  %v1598 = vpop.f32.mrb[0].mxu0
  %v1599 = vadd.f32 0.0, %v1598
  %v1600 = vpop.f32.mrb[0].mxu0
  %v1601 = vadd.f32 0.0, %v1600
  %v1602 = vpop.f32.mrb[0].mxu0
  %v1603 = vadd.f32 0.0, %v1602
  %v1604 = vpop.f32.mrb[0].mxu0
  %v1605 = vadd.f32 0.0, %v1604
  %1606 = vmatprep.mubr.bf16.mxu0 0
  %1607 = vmatmul.mubr.bf16.gmra.mrb[0].mxu0 %v159
  %v1608 = vpop.f32.mrb[0].mxu0
  %v1609 = vadd.f32 0.0, %v1608
  %v1610 = vpop.f32.mrb[0].mxu0
  %v1611 = vadd.f32 0.0, %v1610
  %v1612 = vpop.f32.mrb[0].mxu0
  %v1613 = vadd.f32 0.0, %v1612
  %v1614 = vpop.f32.mrb[0].mxu0
  %v1615 = vadd.f32 0.0, %v1614
  %1616 = vmatprep.mubr.bf16.mxu0 0
  %1617 = vmatmul.mubr.bf16.gmra.mrb[0].mxu0 %v160
  %v1618 = vpop.f32.mrb[0].mxu0
  %v1619 = vadd.f32 0.0, %v1618
  %v1620 = vpop.f32.mrb[0].mxu0
  %v1621 = vadd.f32 0.0, %v1620
  %v1622 = vpop.f32.mrb[0].mxu0
  %v1623 = vadd.f32 0.0, %v1622
  %v1624 = vpop.f32.mrb[0].mxu0
  %v1625 = vadd.f32 0.0, %v1624
  %1626 = vmatprep.mubr.bf16.mxu0 0
  %1627 = vmatmul.mubr.bf16.gmra.mrb[0].mxu0 %v161
  %v1628 = vpop.f32.mrb[0].mxu0
  %v1629 = vadd.f32 0.0, %v1628
  %v1630 = vpop.f32.mrb[0].mxu0
  %v1631 = vadd.f32 0.0, %v1630
  %v1632 = vpop.f32.mrb[0].mxu0
  %v1633 = vadd.f32 0.0, %v1632
  %v1634 = vpop.f32.mrb[0].mxu0
  %v1635 = vadd.f32 0.0, %v1634
  %1636 = vdwg.mxu0
  %1637 = vmatprep.subr.bf16.mxu0 %v1463
  %1638 = vmatpush1.bf16.msra.mxu0 %v1462
  %1639 = vmatprep.subr.bf16.mxu0 %v1467
  %1640 = vmatpush1.bf16.msra.mxu0 %v1466
  %1641 = vmatprep.subr.bf16.mxu0 %v1471
  %1642 = vmatpush1.bf16.msra.mxu0 %v1470
  %1643 = vmatprep.subr.bf16.mxu0 %v1475
  %1644 = vmatpush1.bf16.msra.mxu0 %v1474
  %1645 = vmatprep.subr.bf16.mxu0 %v1479
  %1646 = vmatpush1.bf16.msra.mxu0 %v1478
  %1647 = vmatprep.subr.bf16.mxu0 %v1483
  %1648 = vmatpush1.bf16.msra.mxu0 %v1482
  %1649 = vmatprep.subr.bf16.mxu0 %v1487
  %1650 = vmatpush1.bf16.msra.mxu0 %v1486
  %1651 = vmatprep.subr.bf16.mxu0 %v1491
  %1652 = vmatpush1.bf16.msra.mxu0 %v1490
  %1653 = vmatprep.subr.bf16.mxu0 0
  %1654 = vmatpush1.bf16.msra.mxu0 0
  %1655 = vmatprep.subr.bf16.mxu0 0
  %1656 = vmatpush1.bf16.msra.mxu0 0
  %1657 = vmatprep.subr.bf16.mxu0 0
  %1658 = vmatpush1.bf16.msra.mxu0 0
  %1659 = vmatprep.subr.bf16.mxu0 0
  %1660 = vmatpush1.bf16.msra.mxu0 0
  %1661 = vmatprep.subr.bf16.mxu0 0
  %1662 = vmatpush1.bf16.msra.mxu0 0
  %1663 = vmatprep.subr.bf16.mxu0 0
  %1664 = vmatpush1.bf16.msra.mxu0 0
  %1665 = vmatprep.subr.bf16.mxu0 0
  %1666 = vmatpush1.bf16.msra.mxu0 0
  %1667 = vmatprep.subr.bf16.mxu0 0
  %1668 = vmatpush1.bf16.msra.mxu0 0
  %1669 = vmatprep.mubr.bf16.mxu0 0
  %1670 = vmatmul.mubr.bf16.gmra.mrb[0].mxu0 %v154
  %v1671 = vpop.f32.mrb[0].mxu0
  %v1672 = vadd.f32 0.0, %v1671
  %v1673 = vpop.f32.mrb[0].mxu0
  %v1674 = vadd.f32 0.0, %v1673
  %v1675 = vpop.f32.mrb[0].mxu0
  %v1676 = vadd.f32 0.0, %v1675
  %v1677 = vpop.f32.mrb[0].mxu0
  %v1678 = vadd.f32 0.0, %v1677
  %1679 = vmatprep.mubr.bf16.mxu0 0
  %1680 = vmatmul.mubr.bf16.gmra.mrb[0].mxu0 %v155
  %v1681 = vpop.f32.mrb[0].mxu0
  %v1682 = vadd.f32 0.0, %v1681
  %v1683 = vpop.f32.mrb[0].mxu0
  %v1684 = vadd.f32 0.0, %v1683
  %v1685 = vpop.f32.mrb[0].mxu0
  %v1686 = vadd.f32 0.0, %v1685
  %v1687 = vpop.f32.mrb[0].mxu0
  %v1688 = vadd.f32 0.0, %v1687
  %1689 = vmatprep.mubr.bf16.mxu0 0
  %1690 = vmatmul.mubr.bf16.gmra.mrb[0].mxu0 %v156
  %v1691 = vpop.f32.mrb[0].mxu0
  %v1692 = vadd.f32 0.0, %v1691
  %v1693 = vpop.f32.mrb[0].mxu0
  %v1694 = vadd.f32 0.0, %v1693
  %v1695 = vpop.f32.mrb[0].mxu0
  %v1696 = vadd.f32 0.0, %v1695
  %v1697 = vpop.f32.mrb[0].mxu0
  %v1698 = vadd.f32 0.0, %v1697
  %1699 = vmatprep.mubr.bf16.mxu0 0
  %1700 = vmatmul.mubr.bf16.gmra.mrb[0].mxu0 %v157
  %v1701 = vpop.f32.mrb[0].mxu0
  %v1702 = vadd.f32 0.0, %v1701
  %v1703 = vpop.f32.mrb[0].mxu0
  %v1704 = vadd.f32 0.0, %v1703
  %v1705 = vpop.f32.mrb[0].mxu0
  %v1706 = vadd.f32 0.0, %v1705
  %v1707 = vpop.f32.mrb[0].mxu0
  %v1708 = vadd.f32 0.0, %v1707
  %1709 = vmatprep.mubr.bf16.mxu0 0
  %1710 = vmatmul.mubr.bf16.gmra.mrb[0].mxu0 %v158
  %v1711 = vpop.f32.mrb[0].mxu0
  %v1712 = vadd.f32 0.0, %v1711
  %v1713 = vpop.f32.mrb[0].mxu0
  %v1714 = vadd.f32 0.0, %v1713
  %v1715 = vpop.f32.mrb[0].mxu0
  %v1716 = vadd.f32 0.0, %v1715
  %v1717 = vpop.f32.mrb[0].mxu0
  %v1718 = vadd.f32 0.0, %v1717
  %1719 = vmatprep.mubr.bf16.mxu0 0
  %1720 = vmatmul.mubr.bf16.gmra.mrb[0].mxu0 %v159
  %v1721 = vpop.f32.mrb[0].mxu0
  %v1722 = vadd.f32 0.0, %v1721
  %v1723 = vpop.f32.mrb[0].mxu0
  %v1724 = vadd.f32 0.0, %v1723
  %v1725 = vpop.f32.mrb[0].mxu0
  %v1726 = vadd.f32 0.0, %v1725
  %v1727 = vpop.f32.mrb[0].mxu0
  %v1728 = vadd.f32 0.0, %v1727
  %1729 = vmatprep.mubr.bf16.mxu0 0
  %1730 = vmatmul.mubr.bf16.gmra.mrb[0].mxu0 %v160
  %v1731 = vpop.f32.mrb[0].mxu0
  %v1732 = vadd.f32 0.0, %v1731
  %v1733 = vpop.f32.mrb[0].mxu0
  %v1734 = vadd.f32 0.0, %v1733
  %v1735 = vpop.f32.mrb[0].mxu0
  %v1736 = vadd.f32 0.0, %v1735
  %v1737 = vpop.f32.mrb[0].mxu0
  %v1738 = vadd.f32 0.0, %v1737
  %1739 = vmatprep.mubr.bf16.mxu0 0
  %1740 = vmatmul.mubr.bf16.gmra.mrb[0].mxu0 %v161
  %v1741 = vpop.f32.mrb[0].mxu0
  %v1742 = vadd.f32 0.0, %v1741
  %v1743 = vpop.f32.mrb[0].mxu0
  %v1744 = vadd.f32 0.0, %v1743
  %v1745 = vpop.f32.mrb[0].mxu0
  %v1746 = vadd.f32 0.0, %v1745
  %v1747 = vpop.f32.mrb[0].mxu0
  %v1748 = vadd.f32 0.0, %v1747
  %1749 = vdwg.mxu0
  %v1782 = vunpack.c.l.b16 %v1300
  %v1783 = vunpack.c.h.b16 %v1300
  %v1784 = vunpack.c.l.b16 %v1301
  %v1785 = vunpack.c.h.b16 %v1301
  %v1786 = vunpack.c.l.b16 %v1302
  %v1787 = vunpack.c.h.b16 %v1302
  %v1788 = vunpack.c.l.b16 %v1303
  %v1789 = vunpack.c.h.b16 %v1303
  %v1790 = vunpack.c.l.b16 %v1304
  %v1791 = vunpack.c.h.b16 %v1304
  %v1792 = vunpack.c.l.b16 %v1305
  %v1793 = vunpack.c.h.b16 %v1305
  %v1794 = vunpack.c.l.b16 %v1306
  %v1795 = vunpack.c.h.b16 %v1306
  %v1796 = vunpack.c.l.b16 %v1307
  %v1797 = vunpack.c.h.b16 %v1307
  %v1798 = vunpack.c.l.b16 %v1308
  %v1799 = vunpack.c.h.b16 %v1308
  %v1800 = vunpack.c.l.b16 %v1309
  %v1801 = vunpack.c.h.b16 %v1309
  %v1802 = vunpack.c.l.b16 %v1310
  %v1803 = vunpack.c.h.b16 %v1310
  %v1804 = vunpack.c.l.b16 %v1311
  %v1805 = vunpack.c.h.b16 %v1311
  %v1806 = vunpack.c.l.b16 %v1312
  %v1807 = vunpack.c.h.b16 %v1312
  %v1808 = vunpack.c.l.b16 %v1313
  %v1809 = vunpack.c.h.b16 %v1313
  %v1810 = vunpack.c.l.b16 %v1314
  %v1811 = vunpack.c.h.b16 %v1314
  %v1812 = vunpack.c.l.b16 %v1315
  %v1813 = vunpack.c.h.b16 %v1315
  %v1814 = vunpack.c.l.b16 %v1316
  %v1815 = vunpack.c.h.b16 %v1316
  %v1816 = vunpack.c.l.b16 %v1317
  %v1817 = vunpack.c.h.b16 %v1317
  %v1818 = vunpack.c.l.b16 %v1318
  %v1819 = vunpack.c.h.b16 %v1318
  %v1820 = vunpack.c.l.b16 %v1319
  %v1821 = vunpack.c.h.b16 %v1319
  %v1822 = vunpack.c.l.b16 %v1320
  %v1823 = vunpack.c.h.b16 %v1320
  %v1824 = vunpack.c.l.b16 %v1321
  %v1825 = vunpack.c.h.b16 %v1321
  %v1826 = vunpack.c.l.b16 %v1322
  %v1827 = vunpack.c.h.b16 %v1322
  %v1828 = vunpack.c.l.b16 %v1323
  %v1829 = vunpack.c.h.b16 %v1323
  %v1830 = vunpack.c.l.b16 %v1324
  %v1831 = vunpack.c.h.b16 %v1324
  %v1832 = vunpack.c.l.b16 %v1325
  %v1833 = vunpack.c.h.b16 %v1325
  %v1834 = vunpack.c.l.b16 %v1326
  %v1835 = vunpack.c.h.b16 %v1326
  %v1836 = vunpack.c.l.b16 %v1327
  %v1837 = vunpack.c.h.b16 %v1327
  %v1838 = vunpack.c.l.b16 %v1328
  %v1839 = vunpack.c.h.b16 %v1328
  %v1840 = vunpack.c.l.b16 %v1329
  %v1841 = vunpack.c.h.b16 %v1329
  %v1842 = vunpack.c.l.b16 %v1330
  %v1843 = vunpack.c.h.b16 %v1330
  %v1844 = vunpack.c.l.b16 %v1331
  %v1845 = vunpack.c.h.b16 %v1331
  %v1846 = vpack.c.b16 %v1786, %v1782
  %v1847 = vpack.c.b16 %v1787, %v1783
  %v1848 = vpack.c.b16 %v1788, %v1784
  %v1849 = vpack.c.b16 %v1789, %v1785
  %v1850 = vpack.c.b16 %v1794, %v1790
  %v1851 = vpack.c.b16 %v1795, %v1791
  %v1852 = vpack.c.b16 %v1796, %v1792
  %v1853 = vpack.c.b16 %v1797, %v1793
  %v1854 = vpack.c.b16 %v1802, %v1798
  %v1855 = vpack.c.b16 %v1803, %v1799
  %v1856 = vpack.c.b16 %v1804, %v1800
  %v1857 = vpack.c.b16 %v1805, %v1801
  %v1858 = vpack.c.b16 %v1810, %v1806
  %v1859 = vpack.c.b16 %v1811, %v1807
  %v1860 = vpack.c.b16 %v1812, %v1808
  %v1861 = vpack.c.b16 %v1813, %v1809
  %v1862 = vpack.c.b16 %v1818, %v1814
  %v1863 = vpack.c.b16 %v1819, %v1815
  %v1864 = vpack.c.b16 %v1820, %v1816
  %v1865 = vpack.c.b16 %v1821, %v1817
  %v1866 = vpack.c.b16 %v1826, %v1822
  %v1867 = vpack.c.b16 %v1827, %v1823
  %v1868 = vpack.c.b16 %v1828, %v1824
  %v1869 = vpack.c.b16 %v1829, %v1825
  %v1870 = vpack.c.b16 %v1834, %v1830
  %v1871 = vpack.c.b16 %v1835, %v1831
  %v1872 = vpack.c.b16 %v1836, %v1832
  %v1873 = vpack.c.b16 %v1837, %v1833
  %v1874 = vpack.c.b16 %v1842, %v1838
  %v1875 = vpack.c.b16 %v1843, %v1839
  %v1876 = vpack.c.b16 %v1844, %v1840
  %v1877 = vpack.c.b16 %v1845, %v1841
  %1910 = vmatprep.subr.bf16.mxu0 %v1847
  %1911 = vmatpush1.bf16.msra.mxu0 %v1846
  %1912 = vmatprep.subr.bf16.mxu0 %v1851
  %1913 = vmatpush1.bf16.msra.mxu0 %v1850
  %1914 = vmatprep.subr.bf16.mxu0 %v1855
  %1915 = vmatpush1.bf16.msra.mxu0 %v1854
  %1916 = vmatprep.subr.bf16.mxu0 %v1859
  %1917 = vmatpush1.bf16.msra.mxu0 %v1858
  %1918 = vmatprep.subr.bf16.mxu0 %v1863
  %1919 = vmatpush1.bf16.msra.mxu0 %v1862
  %1920 = vmatprep.subr.bf16.mxu0 %v1867
  %1921 = vmatpush1.bf16.msra.mxu0 %v1866
  %1922 = vmatprep.subr.bf16.mxu0 %v1871
  %1923 = vmatpush1.bf16.msra.mxu0 %v1870
  %1924 = vmatprep.subr.bf16.mxu0 %v1875
  %1925 = vmatpush1.bf16.msra.mxu0 %v1874
  %1926 = vmatprep.subr.bf16.mxu0 0
  %1927 = vmatpush1.bf16.msra.mxu0 0
  %1928 = vmatprep.subr.bf16.mxu0 0
  %1929 = vmatpush1.bf16.msra.mxu0 0
  %1930 = vmatprep.subr.bf16.mxu0 0
  %1931 = vmatpush1.bf16.msra.mxu0 0
  %1932 = vmatprep.subr.bf16.mxu0 0
  %1933 = vmatpush1.bf16.msra.mxu0 0
  %1934 = vmatprep.subr.bf16.mxu0 0
  %1935 = vmatpush1.bf16.msra.mxu0 0
  %1936 = vmatprep.subr.bf16.mxu0 0
  %1937 = vmatpush1.bf16.msra.mxu0 0
  %1938 = vmatprep.subr.bf16.mxu0 0
  %1939 = vmatpush1.bf16.msra.mxu0 0
  %1940 = vmatprep.subr.bf16.mxu0 0
  %1941 = vmatpush1.bf16.msra.mxu0 0
  %1942 = vmatprep.mubr.bf16.mxu0 0
  %1943 = vmatmul.mubr.bf16.gmra.mrb[0].mxu0 %v588
  %v1944 = vpop.f32.mrb[0].mxu0
  %v1945 = vadd.f32 %v1559, %v1944
  %v1946 = vpop.f32.mrb[0].mxu0
  %v1947 = vadd.f32 %v1561, %v1946
  %v1948 = vpop.f32.mrb[0].mxu0
  %v1949 = vadd.f32 %v1563, %v1948
  %v1950 = vpop.f32.mrb[0].mxu0
  %v1951 = vadd.f32 %v1565, %v1950
  %1952 = vmatprep.mubr.bf16.mxu0 0
  %1953 = vmatmul.mubr.bf16.gmra.mrb[0].mxu0 %v589
  %v1954 = vpop.f32.mrb[0].mxu0
  %v1955 = vadd.f32 %v1569, %v1954
  %v1956 = vpop.f32.mrb[0].mxu0
  %v1957 = vadd.f32 %v1571, %v1956
  %v1958 = vpop.f32.mrb[0].mxu0
  %v1959 = vadd.f32 %v1573, %v1958
  %v1960 = vpop.f32.mrb[0].mxu0
  %v1961 = vadd.f32 %v1575, %v1960
  %1962 = vmatprep.mubr.bf16.mxu0 0
  %1963 = vmatmul.mubr.bf16.gmra.mrb[0].mxu0 %v590
  %v1964 = vpop.f32.mrb[0].mxu0
  %v1965 = vadd.f32 %v1579, %v1964
  %v1966 = vpop.f32.mrb[0].mxu0
  %v1967 = vadd.f32 %v1581, %v1966
  %v1968 = vpop.f32.mrb[0].mxu0
  %v1969 = vadd.f32 %v1583, %v1968
  %v1970 = vpop.f32.mrb[0].mxu0
  %v1971 = vadd.f32 %v1585, %v1970
  %1972 = vmatprep.mubr.bf16.mxu0 0
  %1973 = vmatmul.mubr.bf16.gmra.mrb[0].mxu0 %v591
  %v1974 = vpop.f32.mrb[0].mxu0
  %v1975 = vadd.f32 %v1589, %v1974
  %v1976 = vpop.f32.mrb[0].mxu0
  %v1977 = vadd.f32 %v1591, %v1976
  %v1978 = vpop.f32.mrb[0].mxu0
  %v1979 = vadd.f32 %v1593, %v1978
  %v1980 = vpop.f32.mrb[0].mxu0
  %v1981 = vadd.f32 %v1595, %v1980
  %1982 = vmatprep.mubr.bf16.mxu0 0
  %1983 = vmatmul.mubr.bf16.gmra.mrb[0].mxu0 %v592
  %v1984 = vpop.f32.mrb[0].mxu0
  %v1985 = vadd.f32 %v1599, %v1984
  %v1986 = vpop.f32.mrb[0].mxu0
  %v1987 = vadd.f32 %v1601, %v1986
  %v1988 = vpop.f32.mrb[0].mxu0
  %v1989 = vadd.f32 %v1603, %v1988
  %v1990 = vpop.f32.mrb[0].mxu0
  %v1991 = vadd.f32 %v1605, %v1990
  %1992 = vmatprep.mubr.bf16.mxu0 0
  %1993 = vmatmul.mubr.bf16.gmra.mrb[0].mxu0 %v593
  %v1994 = vpop.f32.mrb[0].mxu0
  %v1995 = vadd.f32 %v1609, %v1994
  %v1996 = vpop.f32.mrb[0].mxu0
  %v1997 = vadd.f32 %v1611, %v1996
  %v1998 = vpop.f32.mrb[0].mxu0
  %v1999 = vadd.f32 %v1613, %v1998
  %v2000 = vpop.f32.mrb[0].mxu0
  %v2001 = vadd.f32 %v1615, %v2000
  %2002 = vmatprep.mubr.bf16.mxu0 0
  %2003 = vmatmul.mubr.bf16.gmra.mrb[0].mxu0 %v594
  %v2004 = vpop.f32.mrb[0].mxu0
  %v2005 = vadd.f32 %v1619, %v2004
  %v2006 = vpop.f32.mrb[0].mxu0
  %v2007 = vadd.f32 %v1621, %v2006
  %v2008 = vpop.f32.mrb[0].mxu0
  %v2009 = vadd.f32 %v1623, %v2008
  %v2010 = vpop.f32.mrb[0].mxu0
  %v2011 = vadd.f32 %v1625, %v2010
  %2012 = vmatprep.mubr.bf16.mxu0 0
  %2013 = vmatmul.mubr.bf16.gmra.mrb[0].mxu0 %v595
  %v2014 = vpop.f32.mrb[0].mxu0
  %v2015 = vadd.f32 %v1629, %v2014
  %v2016 = vpop.f32.mrb[0].mxu0
  %v2017 = vadd.f32 %v1631, %v2016
  %v2018 = vpop.f32.mrb[0].mxu0
  %v2019 = vadd.f32 %v1633, %v2018
  %v2020 = vpop.f32.mrb[0].mxu0
  %v2021 = vadd.f32 %v1635, %v2020
  %2022 = vdwg.mxu0
  %2023 = vmatprep.subr.bf16.mxu0 %v1849
  %2024 = vmatpush1.bf16.msra.mxu0 %v1848
  %2025 = vmatprep.subr.bf16.mxu0 %v1853
  %2026 = vmatpush1.bf16.msra.mxu0 %v1852
  %2027 = vmatprep.subr.bf16.mxu0 %v1857
  %2028 = vmatpush1.bf16.msra.mxu0 %v1856
  %2029 = vmatprep.subr.bf16.mxu0 %v1861
  %2030 = vmatpush1.bf16.msra.mxu0 %v1860
  %2031 = vmatprep.subr.bf16.mxu0 %v1865
  %2032 = vmatpush1.bf16.msra.mxu0 %v1864
  %2033 = vmatprep.subr.bf16.mxu0 %v1869
  %2034 = vmatpush1.bf16.msra.mxu0 %v1868
  %2035 = vmatprep.subr.bf16.mxu0 %v1873
  %2036 = vmatpush1.bf16.msra.mxu0 %v1872
  %2037 = vmatprep.subr.bf16.mxu0 %v1877
  %2038 = vmatpush1.bf16.msra.mxu0 %v1876
  %2039 = vmatprep.subr.bf16.mxu0 0
  %2040 = vmatpush1.bf16.msra.mxu0 0
  %2041 = vmatprep.subr.bf16.mxu0 0
  %2042 = vmatpush1.bf16.msra.mxu0 0
  %2043 = vmatprep.subr.bf16.mxu0 0
  %2044 = vmatpush1.bf16.msra.mxu0 0
  %2045 = vmatprep.subr.bf16.mxu0 0
  %2046 = vmatpush1.bf16.msra.mxu0 0
  %2047 = vmatprep.subr.bf16.mxu0 0
  %2048 = vmatpush1.bf16.msra.mxu0 0
  %2049 = vmatprep.subr.bf16.mxu0 0
  %2050 = vmatpush1.bf16.msra.mxu0 0
  %2051 = vmatprep.subr.bf16.mxu0 0
  %2052 = vmatpush1.bf16.msra.mxu0 0
  %2053 = vmatprep.subr.bf16.mxu0 0
  %2054 = vmatpush1.bf16.msra.mxu0 0
  %2055 = vmatprep.mubr.bf16.mxu0 0
  %2056 = vmatmul.mubr.bf16.gmra.mrb[0].mxu0 %v588
  %v2057 = vpop.f32.mrb[0].mxu0
  %v2058 = vadd.f32 %v1672, %v2057
  %v2059 = vpop.f32.mrb[0].mxu0
  %v2060 = vadd.f32 %v1674, %v2059
  %v2061 = vpop.f32.mrb[0].mxu0
  %v2062 = vadd.f32 %v1676, %v2061
  %v2063 = vpop.f32.mrb[0].mxu0
  %v2064 = vadd.f32 %v1678, %v2063
  %2065 = vmatprep.mubr.bf16.mxu0 0
  %2066 = vmatmul.mubr.bf16.gmra.mrb[0].mxu0 %v589
  %v2067 = vpop.f32.mrb[0].mxu0
  %v2068 = vadd.f32 %v1682, %v2067
  %v2069 = vpop.f32.mrb[0].mxu0
  %v2070 = vadd.f32 %v1684, %v2069
  %v2071 = vpop.f32.mrb[0].mxu0
  %v2072 = vadd.f32 %v1686, %v2071
  %v2073 = vpop.f32.mrb[0].mxu0
  %v2074 = vadd.f32 %v1688, %v2073
  %2075 = vmatprep.mubr.bf16.mxu0 0
  %2076 = vmatmul.mubr.bf16.gmra.mrb[0].mxu0 %v590
  %v2077 = vpop.f32.mrb[0].mxu0
  %v2078 = vadd.f32 %v1692, %v2077
  %v2079 = vpop.f32.mrb[0].mxu0
  %v2080 = vadd.f32 %v1694, %v2079
  %v2081 = vpop.f32.mrb[0].mxu0
  %v2082 = vadd.f32 %v1696, %v2081
  %v2083 = vpop.f32.mrb[0].mxu0
  %v2084 = vadd.f32 %v1698, %v2083
  %2085 = vmatprep.mubr.bf16.mxu0 0
  %2086 = vmatmul.mubr.bf16.gmra.mrb[0].mxu0 %v591
  %v2087 = vpop.f32.mrb[0].mxu0
  %v2088 = vadd.f32 %v1702, %v2087
  %v2089 = vpop.f32.mrb[0].mxu0
  %v2090 = vadd.f32 %v1704, %v2089
  %v2091 = vpop.f32.mrb[0].mxu0
  %v2092 = vadd.f32 %v1706, %v2091
  %v2093 = vpop.f32.mrb[0].mxu0
  %v2094 = vadd.f32 %v1708, %v2093
  %2095 = vmatprep.mubr.bf16.mxu0 0
  %2096 = vmatmul.mubr.bf16.gmra.mrb[0].mxu0 %v592
  %v2097 = vpop.f32.mrb[0].mxu0
  %v2098 = vadd.f32 %v1712, %v2097
  %v2099 = vpop.f32.mrb[0].mxu0
  %v2100 = vadd.f32 %v1714, %v2099
  %v2101 = vpop.f32.mrb[0].mxu0
  %v2102 = vadd.f32 %v1716, %v2101
  %v2103 = vpop.f32.mrb[0].mxu0
  %v2104 = vadd.f32 %v1718, %v2103
  %2105 = vmatprep.mubr.bf16.mxu0 0
  %2106 = vmatmul.mubr.bf16.gmra.mrb[0].mxu0 %v593
  %v2107 = vpop.f32.mrb[0].mxu0
  %v2108 = vadd.f32 %v1722, %v2107
  %v2109 = vpop.f32.mrb[0].mxu0
  %v2110 = vadd.f32 %v1724, %v2109
  %v2111 = vpop.f32.mrb[0].mxu0
  %v2112 = vadd.f32 %v1726, %v2111
  %v2113 = vpop.f32.mrb[0].mxu0
  %v2114 = vadd.f32 %v1728, %v2113
  %2115 = vmatprep.mubr.bf16.mxu0 0
  %2116 = vmatmul.mubr.bf16.gmra.mrb[0].mxu0 %v594
  %v2117 = vpop.f32.mrb[0].mxu0
  %v2118 = vadd.f32 %v1732, %v2117
  %v2119 = vpop.f32.mrb[0].mxu0
  %v2120 = vadd.f32 %v1734, %v2119
  %v2121 = vpop.f32.mrb[0].mxu0
  %v2122 = vadd.f32 %v1736, %v2121
  %v2123 = vpop.f32.mrb[0].mxu0
  %v2124 = vadd.f32 %v1738, %v2123
  %2125 = vmatprep.mubr.bf16.mxu0 0
  %2126 = vmatmul.mubr.bf16.gmra.mrb[0].mxu0 %v595
  %v2127 = vpop.f32.mrb[0].mxu0
  %v2128 = vadd.f32 %v1742, %v2127
  %v2129 = vpop.f32.mrb[0].mxu0
  %v2130 = vadd.f32 %v1744, %v2129
  %v2131 = vpop.f32.mrb[0].mxu0
  %v2132 = vadd.f32 %v1746, %v2131
  %v2133 = vpop.f32.mrb[0].mxu0
  %v2134 = vadd.f32 %v1748, %v2133
  %2135 = vdwg.mxu0
  %v2136 = vld [vmem:[%s5] sm:$0xf]
  %v2138 = vlaneseq
  %v2139 = vshrl.u32 %v2138, 7
  %v2140 = vsub.s32 0, %v2139
  %v2141 = vrot.slane %v2136, %v2140
  %v2142 = vlaneseq
  %v2143 = vshrl.u32 %v2142, 7
  %v2144 = vsub.s32 1, %v2143
  %v2145 = vrot.slane %v2136, %v2144
  %v2146 = vlaneseq
  %v2147 = vshrl.u32 %v2146, 7
  %v2148 = vsub.s32 2, %v2147
  %v2149 = vrot.slane %v2136, %v2148
  %v2150 = vlaneseq
  %v2151 = vshrl.u32 %v2150, 7
  %v2152 = vsub.s32 3, %v2151
  %v2153 = vrot.slane %v2136, %v2152
  %v2158 = vadd.f32 %v1945, %v2141
  %v2159 = vadd.f32 %v1947, %v2145
  %v2160 = vadd.f32 %v2058, %v2149
  %v2161 = vadd.f32 %v2060, %v2153
  %v2162 = vadd.f32 %v1949, %v2141
  %v2163 = vadd.f32 %v1951, %v2145
  %v2164 = vadd.f32 %v2062, %v2149
  %v2165 = vadd.f32 %v2064, %v2153
  %v2166 = vadd.f32 %v1955, %v2141
  %v2167 = vadd.f32 %v1957, %v2145
  %v2168 = vadd.f32 %v2068, %v2149
  %v2169 = vadd.f32 %v2070, %v2153
  %v2170 = vadd.f32 %v1959, %v2141
  %v2171 = vadd.f32 %v1961, %v2145
  %v2172 = vadd.f32 %v2072, %v2149
  %v2173 = vadd.f32 %v2074, %v2153
  %v2174 = vadd.f32 %v1965, %v2141
  %v2175 = vadd.f32 %v1967, %v2145
  %v2176 = vadd.f32 %v2078, %v2149
  %v2177 = vadd.f32 %v2080, %v2153
  %v2178 = vadd.f32 %v1969, %v2141
  %v2179 = vadd.f32 %v1971, %v2145
  %v2180 = vadd.f32 %v2082, %v2149
  %v2181 = vadd.f32 %v2084, %v2153
  %v2182 = vadd.f32 %v1975, %v2141
  %v2183 = vadd.f32 %v1977, %v2145
  %v2184 = vadd.f32 %v2088, %v2149
  %v2185 = vadd.f32 %v2090, %v2153
  %v2186 = vadd.f32 %v1979, %v2141
  %v2187 = vadd.f32 %v1981, %v2145
  %v2188 = vadd.f32 %v2092, %v2149
  %v2189 = vadd.f32 %v2094, %v2153
  %v2190 = vadd.f32 %v1985, %v2141
  %v2191 = vadd.f32 %v1987, %v2145
  %v2192 = vadd.f32 %v2098, %v2149
  %v2193 = vadd.f32 %v2100, %v2153
  %v2194 = vadd.f32 %v1989, %v2141
  %v2195 = vadd.f32 %v1991, %v2145
  %v2196 = vadd.f32 %v2102, %v2149
  %v2197 = vadd.f32 %v2104, %v2153
  %v2198 = vadd.f32 %v1995, %v2141
  %v2199 = vadd.f32 %v1997, %v2145
  %v2200 = vadd.f32 %v2108, %v2149
  %v2201 = vadd.f32 %v2110, %v2153
  %v2202 = vadd.f32 %v1999, %v2141
  %v2203 = vadd.f32 %v2001, %v2145
  %v2204 = vadd.f32 %v2112, %v2149
  %v2205 = vadd.f32 %v2114, %v2153
  %v2206 = vadd.f32 %v2005, %v2141
  %v2207 = vadd.f32 %v2007, %v2145
  %v2208 = vadd.f32 %v2118, %v2149
  %v2209 = vadd.f32 %v2120, %v2153
  %v2210 = vadd.f32 %v2009, %v2141
  %v2211 = vadd.f32 %v2011, %v2145
  %v2212 = vadd.f32 %v2122, %v2149
  %v2213 = vadd.f32 %v2124, %v2153
  %v2214 = vadd.f32 %v2015, %v2141
  %v2215 = vadd.f32 %v2017, %v2145
  %v2216 = vadd.f32 %v2128, %v2149
  %v2217 = vadd.f32 %v2130, %v2153
  %v2218 = vadd.f32 %v2019, %v2141
  %v2219 = vadd.f32 %v2021, %v2145
  %v2220 = vadd.f32 %v2132, %v2149
  %v2221 = vadd.f32 %v2134, %v2153
  %v2222 = vpack.c.bf16 %v2162, %v2158
  %v2223 = vpack.c.bf16 %v2163, %v2159
  %v2224 = vpack.c.bf16 %v2164, %v2160
  %v2225 = vpack.c.bf16 %v2165, %v2161
  %v2226 = vpack.c.bf16 %v2170, %v2166
  %v2227 = vpack.c.bf16 %v2171, %v2167
  %v2228 = vpack.c.bf16 %v2172, %v2168
  %v2229 = vpack.c.bf16 %v2173, %v2169
  %v2230 = vpack.c.bf16 %v2178, %v2174
  %v2231 = vpack.c.bf16 %v2179, %v2175
  %v2232 = vpack.c.bf16 %v2180, %v2176
  %v2233 = vpack.c.bf16 %v2181, %v2177
  %v2234 = vpack.c.bf16 %v2186, %v2182
  %v2235 = vpack.c.bf16 %v2187, %v2183
  %v2236 = vpack.c.bf16 %v2188, %v2184
  %v2237 = vpack.c.bf16 %v2189, %v2185
  %v2238 = vpack.c.bf16 %v2194, %v2190
  %v2239 = vpack.c.bf16 %v2195, %v2191
  %v2240 = vpack.c.bf16 %v2196, %v2192
  %v2241 = vpack.c.bf16 %v2197, %v2193
  %v2242 = vpack.c.bf16 %v2202, %v2198
  %v2243 = vpack.c.bf16 %v2203, %v2199
  %v2244 = vpack.c.bf16 %v2204, %v2200
  %v2245 = vpack.c.bf16 %v2205, %v2201
  %v2246 = vpack.c.bf16 %v2210, %v2206
  %v2247 = vpack.c.bf16 %v2211, %v2207
  %v2248 = vpack.c.bf16 %v2212, %v2208
  %v2249 = vpack.c.bf16 %v2213, %v2209
  %v2250 = vpack.c.bf16 %v2218, %v2214
  %v2251 = vpack.c.bf16 %v2219, %v2215
  %v2252 = vpack.c.bf16 %v2220, %v2216
  %v2253 = vpack.c.bf16 %v2221, %v2217
  %v2286 = vunpack.c.l.b16 %v2222
  %v2287 = vunpack.c.l.b16 %v2223
  %v2288 = vunpack.c.l.b16 %v2224
  %v2289 = vunpack.c.l.b16 %v2225
  %v2290 = vunpack.c.h.b16 %v2222
  %v2291 = vunpack.c.h.b16 %v2223
  %v2292 = vunpack.c.h.b16 %v2224
  %v2293 = vunpack.c.h.b16 %v2225
  %v2294 = vunpack.c.l.b16 %v2226
  %v2295 = vunpack.c.l.b16 %v2227
  %v2296 = vunpack.c.l.b16 %v2228
  %v2297 = vunpack.c.l.b16 %v2229
  %v2298 = vunpack.c.h.b16 %v2226
  %v2299 = vunpack.c.h.b16 %v2227
  %v2300 = vunpack.c.h.b16 %v2228
  %v2301 = vunpack.c.h.b16 %v2229
  %v2302 = vunpack.c.l.b16 %v2230
  %v2303 = vunpack.c.l.b16 %v2231
  %v2304 = vunpack.c.l.b16 %v2232
  %v2305 = vunpack.c.l.b16 %v2233
  %v2306 = vunpack.c.h.b16 %v2230
  %v2307 = vunpack.c.h.b16 %v2231
  %v2308 = vunpack.c.h.b16 %v2232
  %v2309 = vunpack.c.h.b16 %v2233
  %v2310 = vunpack.c.l.b16 %v2234
  %v2311 = vunpack.c.l.b16 %v2235
  %v2312 = vunpack.c.l.b16 %v2236
  %v2313 = vunpack.c.l.b16 %v2237
  %v2314 = vunpack.c.h.b16 %v2234
  %v2315 = vunpack.c.h.b16 %v2235
  %v2316 = vunpack.c.h.b16 %v2236
  %v2317 = vunpack.c.h.b16 %v2237
  %v2318 = vunpack.c.l.b16 %v2238
  %v2319 = vunpack.c.l.b16 %v2239
  %v2320 = vunpack.c.l.b16 %v2240
  %v2321 = vunpack.c.l.b16 %v2241
  %v2322 = vunpack.c.h.b16 %v2238
  %v2323 = vunpack.c.h.b16 %v2239
  %v2324 = vunpack.c.h.b16 %v2240
  %v2325 = vunpack.c.h.b16 %v2241
  %v2326 = vunpack.c.l.b16 %v2242
  %v2327 = vunpack.c.l.b16 %v2243
  %v2328 = vunpack.c.l.b16 %v2244
  %v2329 = vunpack.c.l.b16 %v2245
  %v2330 = vunpack.c.h.b16 %v2242
  %v2331 = vunpack.c.h.b16 %v2243
  %v2332 = vunpack.c.h.b16 %v2244
  %v2333 = vunpack.c.h.b16 %v2245
  %v2334 = vunpack.c.l.b16 %v2246
  %v2335 = vunpack.c.l.b16 %v2247
  %v2336 = vunpack.c.l.b16 %v2248
  %v2337 = vunpack.c.l.b16 %v2249
  %v2338 = vunpack.c.h.b16 %v2246
  %v2339 = vunpack.c.h.b16 %v2247
  %v2340 = vunpack.c.h.b16 %v2248
  %v2341 = vunpack.c.h.b16 %v2249
  %v2342 = vunpack.c.l.b16 %v2250
  %v2343 = vunpack.c.l.b16 %v2251
  %v2344 = vunpack.c.l.b16 %v2252
  %v2345 = vunpack.c.l.b16 %v2253
  %v2346 = vunpack.c.h.b16 %v2250
  %v2347 = vunpack.c.h.b16 %v2251
  %v2348 = vunpack.c.h.b16 %v2252
  %v2349 = vunpack.c.h.b16 %v2253
  %v2350 = vpack.c.b16 %v2287, %v2286
  %v2351 = vpack.c.b16 %v2289, %v2288
  %v2352 = vpack.c.b16 %v2291, %v2290
  %v2353 = vpack.c.b16 %v2293, %v2292
  %v2354 = vpack.c.b16 %v2295, %v2294
  %v2355 = vpack.c.b16 %v2297, %v2296
  %v2356 = vpack.c.b16 %v2299, %v2298
  %v2357 = vpack.c.b16 %v2301, %v2300
  %v2358 = vpack.c.b16 %v2303, %v2302
  %v2359 = vpack.c.b16 %v2305, %v2304
  %v2360 = vpack.c.b16 %v2307, %v2306
  %v2361 = vpack.c.b16 %v2309, %v2308
  %v2362 = vpack.c.b16 %v2311, %v2310
  %v2363 = vpack.c.b16 %v2313, %v2312
  %v2364 = vpack.c.b16 %v2315, %v2314
  %v2365 = vpack.c.b16 %v2317, %v2316
  %v2366 = vpack.c.b16 %v2319, %v2318
  %v2367 = vpack.c.b16 %v2321, %v2320
  %v2368 = vpack.c.b16 %v2323, %v2322
  %v2369 = vpack.c.b16 %v2325, %v2324
  %v2370 = vpack.c.b16 %v2327, %v2326
  %v2371 = vpack.c.b16 %v2329, %v2328
  %v2372 = vpack.c.b16 %v2331, %v2330
  %v2373 = vpack.c.b16 %v2333, %v2332
  %v2374 = vpack.c.b16 %v2335, %v2334
  %v2375 = vpack.c.b16 %v2337, %v2336
  %v2376 = vpack.c.b16 %v2339, %v2338
  %v2377 = vpack.c.b16 %v2341, %v2340
  %v2378 = vpack.c.b16 %v2343, %v2342
  %v2379 = vpack.c.b16 %v2345, %v2344
  %v2380 = vpack.c.b16 %v2347, %v2346
  %v2381 = vpack.c.b16 %v2349, %v2348
  %2414 = vst [vmem:[%s7] sm:$0xff] %v2350
  %2415 = vst [vmem:[%s7 + $0x8] sm:$0xff] %v2351
  %2416 = vst [vmem:[%s7 + $0x10] sm:$0xff] %v2352
  %2417 = vst [vmem:[%s7 + $0x18] sm:$0xff] %v2353
  %2418 = vst [vmem:[%s7 + $0x20] sm:$0xff] %v2354
  %2419 = vst [vmem:[%s7 + $0x28] sm:$0xff] %v2355
  %2420 = vst [vmem:[%s7 + $0x30] sm:$0xff] %v2356
  %2421 = vst [vmem:[%s7 + $0x38] sm:$0xff] %v2357
  %2422 = vst [vmem:[%s7 + $0x40] sm:$0xff] %v2358
  %2423 = vst [vmem:[%s7 + $0x48] sm:$0xff] %v2359
  %2424 = vst [vmem:[%s7 + $0x50] sm:$0xff] %v2360
  %2425 = vst [vmem:[%s7 + $0x58] sm:$0xff] %v2361
  %2426 = vst [vmem:[%s7 + $0x60] sm:$0xff] %v2362
  %2427 = vst [vmem:[%s7 + $0x68] sm:$0xff] %v2363
  %2428 = vst [vmem:[%s7 + $0x70] sm:$0xff] %v2364
  %2429 = vst [vmem:[%s7 + $0x78] sm:$0xff] %v2365
  %2430 = vst [vmem:[%s7 + $0x80] sm:$0xff] %v2366
  %2431 = vst [vmem:[%s7 + $0x88] sm:$0xff] %v2367
  %2432 = vst [vmem:[%s7 + $0x90] sm:$0xff] %v2368
  %2433 = vst [vmem:[%s7 + $0x98] sm:$0xff] %v2369
  %2434 = vst [vmem:[%s7 + $0xa0] sm:$0xff] %v2370
  %2435 = vst [vmem:[%s7 + $0xa8] sm:$0xff] %v2371
  %2436 = vst [vmem:[%s7 + $0xb0] sm:$0xff] %v2372
  %2437 = vst [vmem:[%s7 + $0xb8] sm:$0xff] %v2373
  %2438 = vst [vmem:[%s7 + $0xc0] sm:$0xff] %v2374
  %2439 = vst [vmem:[%s7 + $0xc8] sm:$0xff] %v2375
  %2440 = vst [vmem:[%s7 + $0xd0] sm:$0xff] %v2376
  %2441 = vst [vmem:[%s7 + $0xd8] sm:$0xff] %v2377
  %2442 = vst [vmem:[%s7 + $0xe0] sm:$0xff] %v2378
  %2443 = vst [vmem:[%s7 + $0xe8] sm:$0xff] %v2379
  %2444 = vst [vmem:[%s7 + $0xf0] sm:$0xff] %v2380
  %2445 = vst [vmem:[%s7 + $0xf8] sm:$0xff] %v2381
  // Predicated region
  $region26: #{model_forward.8} parent=0 // pred_check
    _
  $region27: #{model_forward.8} parent=0 // pred_check_branch
    %2447 = sbr.rel (0) target = $region29
  $region28: #{model_forward.8} parent=0 // pred_region
    _
  $region29: #{model_forward.8} parent=0 // pred_fallthru
    _
  // Predicated region
  $region30: #{model_forward.8} parent=0 // pred_check
    _
  $region31: #{model_forward.8} parent=0 // pred_check_branch
    %2449 = sbr.rel (0) target = $region33
  $region32: #{model_forward.8} parent=0 // pred_region
    _
  $region33: #{model_forward.8} parent=0 // pred_fallthru
    _
  // Predicated region
  $region34: #{model_forward.8} parent=0 // pred_check
    _
  $region35: #{model_forward.8} parent=0 // pred_check_branch
    %2451 = sbr.rel (0) target = $region37
  $region36: #{model_forward.8} parent=0 // pred_region
    _
  $region37: #{model_forward.8} parent=0 // pred_fallthru
    _
  // Predicated region
  $region38: #{model_forward.8} parent=0 // pred_check
    _
  $region39: #{model_forward.8} parent=0 // pred_check_branch
    %2453 = sbr.rel (0) target = $region41
  $region40: #{model_forward.8} parent=0 // pred_region
    _
  $region41: #{model_forward.8} parent=0 // pred_fallthru
    _

// kernel: custom-call.4
$region0: #{custom-call.4}
  %s0 = inlined_call_operand.vmem [shape: s32[7,16], index: 0, kind: output, shape index: {}]

// kernel: model_forward.11
$region0: #{model_forward.11}
  #allocation0 [shape = 'u32[]', space=smem, size = 0x4, offset = 0x4, fixed_abs, tag = 'smem constant byte address 0x4 - core index']
  #allocation1 [shape = 'u32[144,128]{1,0:T(1,128)}', space=vmem, size = 0x12000, scoped, tag = 'internal scratch']
  %s0 = inlined_call_operand.vmem [shape: f32[8,16,8], index: 0, kind: input, shape index: {}]
  %s1 = inlined_call_operand.vmem [shape: f32[1,8], index: 1, kind: input, shape index: {}]
  %s2 = inlined_call_operand.vmem [shape: f32[8,8], index: 2, kind: input, shape index: {}]
  %s3 = inlined_call_operand.vmem [shape: f32[1,8], index: 3, kind: input, shape index: {}]
  %s4 = inlined_call_operand.vmem [shape: s32[8,16,8], index: 4, kind: output, shape index: {0}]
  %s5 = inlined_call_operand.vmem [shape: f32[16,8], index: 5, kind: output, shape index: {1}]
  %6 = xla_tuple %s4, %s5
  %s7 = sld [smem:[#allocation0]]
  $region41: #{model_forward.11} parent=0
    _
  %s9 = ssub.s32 1, %s7
  %s10 = scalar_select 0, %s9, %s7
  // Predicated region
  $region2: #{model_forward.11} parent=0 // pred_check
    _
  $region3: #{model_forward.11} parent=0 // pred_check_branch
    %12 = sbr.rel (0) target = $region5
  $region4: #{model_forward.11} parent=0 // pred_region
    _
  $region5: #{model_forward.11} parent=0 // pred_fallthru
    _
  // Predicated region
  $region6: #{model_forward.11} parent=0 // pred_check
    _
  $region7: #{model_forward.11} parent=0 // pred_check_branch
    %14 = sbr.rel (0) target = $region9
  $region8: #{model_forward.11} parent=0 // pred_region
    _
  $region9: #{model_forward.11} parent=0 // pred_fallthru
    _
  // Predicated region
  $region10: #{model_forward.11} parent=0 // pred_check
    _
  $region11: #{model_forward.11} parent=0 // pred_check_branch
    %16 = sbr.rel (0) target = $region13
  $region12: #{model_forward.11} parent=0 // pred_region
    _
  $region13: #{model_forward.11} parent=0 // pred_fallthru
    _
  // Predicated region
  $region14: #{model_forward.11} parent=0 // pred_check
    _
  $region15: #{model_forward.11} parent=0 // pred_check_branch
    %18 = sbr.rel (0) target = $region17
  $region16: #{model_forward.11} parent=0 // pred_region
    _
  $region17: #{model_forward.11} parent=0 // pred_fallthru
    _
  %v19 = vld [vmem:[%s2] sm:$0xff]
  %vm20 = vcmask 64512
  %21 = vst.msk [vmem:[%s4] sm:$0xff] %vm20, 0
  %22 = vst.msk [vmem:[%s4 + $0x8] sm:$0xff] %vm20, 0
  %v23 = vld [vmem:[%s1] sm:$0x1]
  %v24 = vld [vmem:[%s0] sm:$0xff]
  %v25 = vld [vmem:[%s0 + $0x8] sm:$0xff]
  %v27 = vlaneseq
  %v28 = vshrl.u32 %v27, 7
  %v29 = vsub.s32 0, %v28
  %v30 = vrot.slane %v23, %v29
  %v32 = vadd.f32 %v30, %v24
  %v33 = vadd.f32 %v30, %v25
  loop: start=1, step=1, limit=8
  $region18: #{model_forward.11} parent=0 // loop_pre_header
    _
  $region19: #{model_forward.11} parent=0 // loop_header
    %s35 = sphi 1, %s39
    %p36 = scmp.ge.s32.totalorder %s35, 8
    %v40 = vphi %v32, %v932
    %v41 = vphi %v33, %v939
  $region20: #{model_forward.11} parent=0 // loop_header_branch
    %38 = sbr.rel (%p36) target = $region24
  $region21: #{model_forward.11} parent=0 // loop_body
    %v44 = vcombine.high %v40, %v40
    %v46 = vunpack.c.l.s4 1966171168
    %v47 = vunpack.c.0.s8 %v46
    %v48 = vlaneseq
    %v49 = vshrl.u32 %v48, 7
    %v50 = vsub.s32 %v47, %v49
    %v51 = vrot.slane %v40, %v50
    %v53 = vunpack.c.l.s4 1966171168
    %v54 = vunpack.c.0.s8 %v53
    %v55 = vlaneseq
    %v56 = vshrl.u32 %v55, 7
    %v57 = vsub.s32 %v54, %v56
    %v58 = vrot.slane %v44, %v57
    %v59 = vcombine.high %v51, %v51
    %v60 = vcombine.high %v58, %v58
    %v62 = vunpack.c.l.s4 1966171168
    %v63 = vunpack.c.0.s8 %v62
    %v64 = vlaneseq
    %v65 = vshrl.u32 %v64, 7
    %v66 = vsub.s32 %v63, %v65
    %v67 = vrot.slane %v51, %v66
    %v69 = vunpack.c.l.s4 1966171168
    %v70 = vunpack.c.0.s8 %v69
    %v71 = vlaneseq
    %v72 = vshrl.u32 %v71, 7
    %v73 = vsub.s32 %v70, %v72
    %v74 = vrot.slane %v58, %v73
    %v76 = vunpack.c.l.s4 1966171168
    %v77 = vunpack.c.0.s8 %v76
    %v78 = vlaneseq
    %v79 = vshrl.u32 %v78, 7
    %v80 = vsub.s32 %v77, %v79
    %v81 = vrot.slane %v59, %v80
    %v83 = vunpack.c.l.s4 1966171168
    %v84 = vunpack.c.0.s8 %v83
    %v85 = vlaneseq
    %v86 = vshrl.u32 %v85, 7
    %v87 = vsub.s32 %v84, %v86
    %v88 = vrot.slane %v60, %v87
    %v89 = vcombine.high %v67, %v67
    %v90 = vcombine.high %v74, %v74
    %v91 = vcombine.high %v81, %v81
    %v92 = vcombine.high %v88, %v88
    %v93 = vcombine.high %v41, %v41
    %v95 = vunpack.c.l.s4 1966171168
    %v96 = vunpack.c.0.s8 %v95
    %v97 = vlaneseq
    %v98 = vshrl.u32 %v97, 7
    %v99 = vsub.s32 %v96, %v98
    %v100 = vrot.slane %v41, %v99
    %v102 = vunpack.c.l.s4 1966171168
    %v103 = vunpack.c.0.s8 %v102
    %v104 = vlaneseq
    %v105 = vshrl.u32 %v104, 7
    %v106 = vsub.s32 %v103, %v105
    %v107 = vrot.slane %v93, %v106
    %v108 = vcombine.high %v100, %v100
    %v109 = vcombine.high %v107, %v107
    %v111 = vunpack.c.l.s4 1966171168
    %v112 = vunpack.c.0.s8 %v111
    %v113 = vlaneseq
    %v114 = vshrl.u32 %v113, 7
    %v115 = vsub.s32 %v112, %v114
    %v116 = vrot.slane %v100, %v115
    %v118 = vunpack.c.l.s4 1966171168
    %v119 = vunpack.c.0.s8 %v118
    %v120 = vlaneseq
    %v121 = vshrl.u32 %v120, 7
    %v122 = vsub.s32 %v119, %v121
    %v123 = vrot.slane %v107, %v122
    %v125 = vunpack.c.l.s4 1966171168
    %v126 = vunpack.c.0.s8 %v125
    %v127 = vlaneseq
    %v128 = vshrl.u32 %v127, 7
    %v129 = vsub.s32 %v126, %v128
    %v130 = vrot.slane %v108, %v129
    %v132 = vunpack.c.l.s4 1966171168
    %v133 = vunpack.c.0.s8 %v132
    %v134 = vlaneseq
    %v135 = vshrl.u32 %v134, 7
    %v136 = vsub.s32 %v133, %v135
    %v137 = vrot.slane %v109, %v136
    %v138 = vcombine.high %v116, %v116
    %v139 = vcombine.high %v123, %v123
    %v140 = vcombine.high %v130, %v130
    %v141 = vcombine.high %v137, %v137
    %v142 = vlaneseq
    %v143 = vshrl.u32 %v142, 7
    %v144 = vsub.s32 0, %v143
    %v145 = vrot.slane %v67, %v144
    %v146 = vlaneseq
    %v147 = vshrl.u32 %v146, 7
    %v148 = vsub.s32 0, %v147
    %v149 = vrot.slane %v81, %v148
    %v150 = vlaneseq
    %v151 = vshrl.u32 %v150, 7
    %v152 = vsub.s32 0, %v151
    %v153 = vrot.slane %v89, %v152
    %v154 = vlaneseq
    %v155 = vshrl.u32 %v154, 7
    %v156 = vsub.s32 0, %v155
    %v157 = vrot.slane %v91, %v156
    %v158 = vlaneseq
    %v159 = vshrl.u32 %v158, 7
    %v160 = vsub.s32 0, %v159
    %v161 = vrot.slane %v74, %v160
    %v162 = vlaneseq
    %v163 = vshrl.u32 %v162, 7
    %v164 = vsub.s32 0, %v163
    %v165 = vrot.slane %v88, %v164
    %v166 = vlaneseq
    %v167 = vshrl.u32 %v166, 7
    %v168 = vsub.s32 0, %v167
    %v169 = vrot.slane %v90, %v168
    %v170 = vlaneseq
    %v171 = vshrl.u32 %v170, 7
    %v172 = vsub.s32 0, %v171
    %v173 = vrot.slane %v92, %v172
    %v174 = vlaneseq
    %v175 = vshrl.u32 %v174, 7
    %v176 = vsub.s32 0, %v175
    %v177 = vrot.slane %v116, %v176
    %v178 = vlaneseq
    %v179 = vshrl.u32 %v178, 7
    %v180 = vsub.s32 0, %v179
    %v181 = vrot.slane %v130, %v180
    %v182 = vlaneseq
    %v183 = vshrl.u32 %v182, 7
    %v184 = vsub.s32 0, %v183
    %v185 = vrot.slane %v138, %v184
    %v186 = vlaneseq
    %v187 = vshrl.u32 %v186, 7
    %v188 = vsub.s32 0, %v187
    %v189 = vrot.slane %v140, %v188
    %v190 = vlaneseq
    %v191 = vshrl.u32 %v190, 7
    %v192 = vsub.s32 0, %v191
    %v193 = vrot.slane %v123, %v192
    %v194 = vlaneseq
    %v195 = vshrl.u32 %v194, 7
    %v196 = vsub.s32 0, %v195
    %v197 = vrot.slane %v137, %v196
    %v198 = vlaneseq
    %v199 = vshrl.u32 %v198, 7
    %v200 = vsub.s32 0, %v199
    %v201 = vrot.slane %v139, %v200
    %v202 = vlaneseq
    %v203 = vshrl.u32 %v202, 7
    %v204 = vsub.s32 0, %v203
    %v205 = vrot.slane %v141, %v204
    %v222 = vadd.f32 %v145, %v19
    %v223 = vadd.f32 %v149, %v19
    %v224 = vadd.f32 %v153, %v19
    %v225 = vadd.f32 %v157, %v19
    %v226 = vadd.f32 %v161, %v19
    %v227 = vadd.f32 %v165, %v19
    %v228 = vadd.f32 %v169, %v19
    %v229 = vadd.f32 %v173, %v19
    %v230 = vadd.f32 %v177, %v19
    %v231 = vadd.f32 %v181, %v19
    %v232 = vadd.f32 %v185, %v19
    %v233 = vadd.f32 %v189, %v19
    %v234 = vadd.f32 %v193, %v19
    %v235 = vadd.f32 %v197, %v19
    %v236 = vadd.f32 %v201, %v19
    %v237 = vadd.f32 %v205, %v19
    %v238 = vsel %vm20, %v222, -inf
    %239 = vmax.xlane.f32.xlu0 %v238
    %v240 = vpop.xlane.xlu0 %239
    %v241 = vsel %vm20, %v223, -inf
    %242 = vmax.xlane.f32.xlu0 %v241
    %v243 = vpop.xlane.xlu0 %242
    %v244 = vsel %vm20, %v224, -inf
    %245 = vmax.xlane.f32.xlu0 %v244
    %v246 = vpop.xlane.xlu0 %245
    %v247 = vsel %vm20, %v225, -inf
    %248 = vmax.xlane.f32.xlu0 %v247
    %v249 = vpop.xlane.xlu0 %248
    %v250 = vsel %vm20, %v226, -inf
    %251 = vmax.xlane.f32.xlu0 %v250
    %v252 = vpop.xlane.xlu0 %251
    %v253 = vsel %vm20, %v227, -inf
    %254 = vmax.xlane.f32.xlu0 %v253
    %v255 = vpop.xlane.xlu0 %254
    %v256 = vsel %vm20, %v228, -inf
    %257 = vmax.xlane.f32.xlu0 %v256
    %v258 = vpop.xlane.xlu0 %257
    %v259 = vsel %vm20, %v229, -inf
    %260 = vmax.xlane.f32.xlu0 %v259
    %v261 = vpop.xlane.xlu0 %260
    %v262 = vsel %vm20, %v230, -inf
    %263 = vmax.xlane.f32.xlu0 %v262
    %v264 = vpop.xlane.xlu0 %263
    %v265 = vsel %vm20, %v231, -inf
    %266 = vmax.xlane.f32.xlu0 %v265
    %v267 = vpop.xlane.xlu0 %266
    %v268 = vsel %vm20, %v232, -inf
    %269 = vmax.xlane.f32.xlu0 %v268
    %v270 = vpop.xlane.xlu0 %269
    %v271 = vsel %vm20, %v233, -inf
    %272 = vmax.xlane.f32.xlu0 %v271
    %v273 = vpop.xlane.xlu0 %272
    %v274 = vsel %vm20, %v234, -inf
    %275 = vmax.xlane.f32.xlu0 %v274
    %v276 = vpop.xlane.xlu0 %275
    %v277 = vsel %vm20, %v235, -inf
    %278 = vmax.xlane.f32.xlu0 %v277
    %v279 = vpop.xlane.xlu0 %278
    %v280 = vsel %vm20, %v236, -inf
    %281 = vmax.xlane.f32.xlu0 %v280
    %v282 = vpop.xlane.xlu0 %281
    %v283 = vsel %vm20, %v237, -inf
    %284 = vmax.xlane.f32.xlu0 %v283
    %v285 = vpop.xlane.xlu0 %284
    %v286 = vlaneseq
    %v287 = vand.u32 %v286, 127
    %vm288 = vcmp.ge.f32.partialorder %v222, %v240
    %vm289 = vcmp.ge.f32.partialorder %v223, %v243
    %vm290 = vcmp.ge.f32.partialorder %v224, %v246
    %vm291 = vcmp.ge.f32.partialorder %v225, %v249
    %vm292 = vcmp.ge.f32.partialorder %v226, %v252
    %vm293 = vcmp.ge.f32.partialorder %v227, %v255
    %vm294 = vcmp.ge.f32.partialorder %v228, %v258
    %vm295 = vcmp.ge.f32.partialorder %v229, %v261
    %vm296 = vcmp.ge.f32.partialorder %v230, %v264
    %vm297 = vcmp.ge.f32.partialorder %v231, %v267
    %vm298 = vcmp.ge.f32.partialorder %v232, %v270
    %vm299 = vcmp.ge.f32.partialorder %v233, %v273
    %vm300 = vcmp.ge.f32.partialorder %v234, %v276
    %vm301 = vcmp.ge.f32.partialorder %v235, %v279
    %vm302 = vcmp.ge.f32.partialorder %v236, %v282
    %vm303 = vcmp.ge.f32.partialorder %v237, %v285
    %v304 = vsel %vm288, %v287, 8
    %v305 = vsel %vm289, %v287, 8
    %v306 = vsel %vm290, %v287, 8
    %v307 = vsel %vm291, %v287, 8
    %v308 = vsel %vm292, %v287, 8
    %v309 = vsel %vm293, %v287, 8
    %v310 = vsel %vm294, %v287, 8
    %v311 = vsel %vm295, %v287, 8
    %v312 = vsel %vm296, %v287, 8
    %v313 = vsel %vm297, %v287, 8
    %v314 = vsel %vm298, %v287, 8
    %v315 = vsel %vm299, %v287, 8
    %v316 = vsel %vm300, %v287, 8
    %v317 = vsel %vm301, %v287, 8
    %v318 = vsel %vm302, %v287, 8
    %v319 = vsel %vm303, %v287, 8
    %v320 = vsel %vm20, %v304, 2147483647
    %v321 = vand.u32 %v320, 65535
    %v322 = vshra.s32 %v320, 16
    %v323 = vcvt.s32.f32 %v321
    %v324 = vcvt.s32.f32 %v322
    %325 = vmin.xlane.f32.xlu0 %v324
    %v326 = vpop.xlane.xlu0 %325
    %vm327 = vcmp.eq.f32.partialorder %v324, %v326
    %v328 = vsel %vm327, %v323, inf
    %329 = vmin.xlane.f32.xlu0 %v328
    %v330 = vpop.xlane.xlu0 %329
    %v331 = vcvt.f32.s32 %v330
    %v332 = vcvt.f32.s32 %v326
    %v333 = vshll.u32 %v332, 16
    %v334 = vadd.s32 %v333, %v331
    %v335 = vsel %vm20, %v305, 2147483647
    %v336 = vand.u32 %v335, 65535
    %v337 = vshra.s32 %v335, 16
    %v338 = vcvt.s32.f32 %v336
    %v339 = vcvt.s32.f32 %v337
    %340 = vmin.xlane.f32.xlu0 %v339
    %v341 = vpop.xlane.xlu0 %340
    %vm342 = vcmp.eq.f32.partialorder %v339, %v341
    %v343 = vsel %vm342, %v338, inf
    %344 = vmin.xlane.f32.xlu0 %v343
    %v345 = vpop.xlane.xlu0 %344
    %v346 = vcvt.f32.s32 %v345
    %v347 = vcvt.f32.s32 %v341
    %v348 = vshll.u32 %v347, 16
    %v349 = vadd.s32 %v348, %v346
    %v350 = vsel %vm20, %v306, 2147483647
    %v351 = vand.u32 %v350, 65535
    %v352 = vshra.s32 %v350, 16
    %v353 = vcvt.s32.f32 %v351
    %v354 = vcvt.s32.f32 %v352
    %355 = vmin.xlane.f32.xlu0 %v354
    %v356 = vpop.xlane.xlu0 %355
    %vm357 = vcmp.eq.f32.partialorder %v354, %v356
    %v358 = vsel %vm357, %v353, inf
    %359 = vmin.xlane.f32.xlu0 %v358
    %v360 = vpop.xlane.xlu0 %359
    %v361 = vcvt.f32.s32 %v360
    %v362 = vcvt.f32.s32 %v356
    %v363 = vshll.u32 %v362, 16
    %v364 = vadd.s32 %v363, %v361
    %v365 = vsel %vm20, %v307, 2147483647
    %v366 = vand.u32 %v365, 65535
    %v367 = vshra.s32 %v365, 16
    %v368 = vcvt.s32.f32 %v366
    %v369 = vcvt.s32.f32 %v367
    %370 = vmin.xlane.f32.xlu0 %v369
    %v371 = vpop.xlane.xlu0 %370
    %vm372 = vcmp.eq.f32.partialorder %v369, %v371
    %v373 = vsel %vm372, %v368, inf
    %374 = vmin.xlane.f32.xlu0 %v373
    %v375 = vpop.xlane.xlu0 %374
    %v376 = vcvt.f32.s32 %v375
    %v377 = vcvt.f32.s32 %v371
    %v378 = vshll.u32 %v377, 16
    %v379 = vadd.s32 %v378, %v376
    %v380 = vsel %vm20, %v308, 2147483647
    %v381 = vand.u32 %v380, 65535
    %v382 = vshra.s32 %v380, 16
    %v383 = vcvt.s32.f32 %v381
    %v384 = vcvt.s32.f32 %v382
    %385 = vmin.xlane.f32.xlu0 %v384
    %v386 = vpop.xlane.xlu0 %385
    %vm387 = vcmp.eq.f32.partialorder %v384, %v386
    %v388 = vsel %vm387, %v383, inf
    %389 = vmin.xlane.f32.xlu0 %v388
    %v390 = vpop.xlane.xlu0 %389
    %v391 = vcvt.f32.s32 %v390
    %v392 = vcvt.f32.s32 %v386
    %v393 = vshll.u32 %v392, 16
    %v394 = vadd.s32 %v393, %v391
    %v395 = vsel %vm20, %v309, 2147483647
    %v396 = vand.u32 %v395, 65535
    %v397 = vshra.s32 %v395, 16
    %v398 = vcvt.s32.f32 %v396
    %v399 = vcvt.s32.f32 %v397
    %400 = vmin.xlane.f32.xlu0 %v399
    %v401 = vpop.xlane.xlu0 %400
    %vm402 = vcmp.eq.f32.partialorder %v399, %v401
    %v403 = vsel %vm402, %v398, inf
    %404 = vmin.xlane.f32.xlu0 %v403
    %v405 = vpop.xlane.xlu0 %404
    %v406 = vcvt.f32.s32 %v405
    %v407 = vcvt.f32.s32 %v401
    %v408 = vshll.u32 %v407, 16
    %v409 = vadd.s32 %v408, %v406
    %v410 = vsel %vm20, %v310, 2147483647
    %v411 = vand.u32 %v410, 65535
    %v412 = vshra.s32 %v410, 16
    %v413 = vcvt.s32.f32 %v411
    %v414 = vcvt.s32.f32 %v412
    %415 = vmin.xlane.f32.xlu0 %v414
    %v416 = vpop.xlane.xlu0 %415
    %vm417 = vcmp.eq.f32.partialorder %v414, %v416
    %v418 = vsel %vm417, %v413, inf
    %419 = vmin.xlane.f32.xlu0 %v418
    %v420 = vpop.xlane.xlu0 %419
    %v421 = vcvt.f32.s32 %v420
    %v422 = vcvt.f32.s32 %v416
    %v423 = vshll.u32 %v422, 16
    %v424 = vadd.s32 %v423, %v421
    %v425 = vsel %vm20, %v311, 2147483647
    %v426 = vand.u32 %v425, 65535
    %v427 = vshra.s32 %v425, 16
    %v428 = vcvt.s32.f32 %v426
    %v429 = vcvt.s32.f32 %v427
    %430 = vmin.xlane.f32.xlu0 %v429
    %v431 = vpop.xlane.xlu0 %430
    %vm432 = vcmp.eq.f32.partialorder %v429, %v431
    %v433 = vsel %vm432, %v428, inf
    %434 = vmin.xlane.f32.xlu0 %v433
    %v435 = vpop.xlane.xlu0 %434
    %v436 = vcvt.f32.s32 %v435
    %v437 = vcvt.f32.s32 %v431
    %v438 = vshll.u32 %v437, 16
    %v439 = vadd.s32 %v438, %v436
    %v440 = vsel %vm20, %v312, 2147483647
    %v441 = vand.u32 %v440, 65535
    %v442 = vshra.s32 %v440, 16
    %v443 = vcvt.s32.f32 %v441
    %v444 = vcvt.s32.f32 %v442
    %445 = vmin.xlane.f32.xlu0 %v444
    %v446 = vpop.xlane.xlu0 %445
    %vm447 = vcmp.eq.f32.partialorder %v444, %v446
    %v448 = vsel %vm447, %v443, inf
    %449 = vmin.xlane.f32.xlu0 %v448
    %v450 = vpop.xlane.xlu0 %449
    %v451 = vcvt.f32.s32 %v450
    %v452 = vcvt.f32.s32 %v446
    %v453 = vshll.u32 %v452, 16
    %v454 = vadd.s32 %v453, %v451
    %v455 = vsel %vm20, %v313, 2147483647
    %v456 = vand.u32 %v455, 65535
    %v457 = vshra.s32 %v455, 16
    %v458 = vcvt.s32.f32 %v456
    %v459 = vcvt.s32.f32 %v457
    %460 = vmin.xlane.f32.xlu0 %v459
    %v461 = vpop.xlane.xlu0 %460
    %vm462 = vcmp.eq.f32.partialorder %v459, %v461
    %v463 = vsel %vm462, %v458, inf
    %464 = vmin.xlane.f32.xlu0 %v463
    %v465 = vpop.xlane.xlu0 %464
    %v466 = vcvt.f32.s32 %v465
    %v467 = vcvt.f32.s32 %v461
    %v468 = vshll.u32 %v467, 16
    %v469 = vadd.s32 %v468, %v466
    %v470 = vsel %vm20, %v314, 2147483647
    %v471 = vand.u32 %v470, 65535
    %v472 = vshra.s32 %v470, 16
    %v473 = vcvt.s32.f32 %v471
    %v474 = vcvt.s32.f32 %v472
    %475 = vmin.xlane.f32.xlu0 %v474
    %v476 = vpop.xlane.xlu0 %475
    %vm477 = vcmp.eq.f32.partialorder %v474, %v476
    %v478 = vsel %vm477, %v473, inf
    %479 = vmin.xlane.f32.xlu0 %v478
    %v480 = vpop.xlane.xlu0 %479
    %v481 = vcvt.f32.s32 %v480
    %v482 = vcvt.f32.s32 %v476
    %v483 = vshll.u32 %v482, 16
    %v484 = vadd.s32 %v483, %v481
    %v485 = vsel %vm20, %v315, 2147483647
    %v486 = vand.u32 %v485, 65535
    %v487 = vshra.s32 %v485, 16
    %v488 = vcvt.s32.f32 %v486
    %v489 = vcvt.s32.f32 %v487
    %490 = vmin.xlane.f32.xlu0 %v489
    %v491 = vpop.xlane.xlu0 %490
    %vm492 = vcmp.eq.f32.partialorder %v489, %v491
    %v493 = vsel %vm492, %v488, inf
    %494 = vmin.xlane.f32.xlu0 %v493
    %v495 = vpop.xlane.xlu0 %494
    %v496 = vcvt.f32.s32 %v495
    %v497 = vcvt.f32.s32 %v491
    %v498 = vshll.u32 %v497, 16
    %v499 = vadd.s32 %v498, %v496
    %v500 = vsel %vm20, %v316, 2147483647
    %v501 = vand.u32 %v500, 65535
    %v502 = vshra.s32 %v500, 16
    %v503 = vcvt.s32.f32 %v501
    %v504 = vcvt.s32.f32 %v502
    %505 = vmin.xlane.f32.xlu0 %v504
    %v506 = vpop.xlane.xlu0 %505
    %vm507 = vcmp.eq.f32.partialorder %v504, %v506
    %v508 = vsel %vm507, %v503, inf
    %509 = vmin.xlane.f32.xlu0 %v508
    %v510 = vpop.xlane.xlu0 %509
    %v511 = vcvt.f32.s32 %v510
    %v512 = vcvt.f32.s32 %v506
    %v513 = vshll.u32 %v512, 16
    %v514 = vadd.s32 %v513, %v511
    %v515 = vsel %vm20, %v317, 2147483647
    %v516 = vand.u32 %v515, 65535
    %v517 = vshra.s32 %v515, 16
    %v518 = vcvt.s32.f32 %v516
    %v519 = vcvt.s32.f32 %v517
    %520 = vmin.xlane.f32.xlu0 %v519
    %v521 = vpop.xlane.xlu0 %520
    %vm522 = vcmp.eq.f32.partialorder %v519, %v521
    %v523 = vsel %vm522, %v518, inf
    %524 = vmin.xlane.f32.xlu0 %v523
    %v525 = vpop.xlane.xlu0 %524
    %v526 = vcvt.f32.s32 %v525
    %v527 = vcvt.f32.s32 %v521
    %v528 = vshll.u32 %v527, 16
    %v529 = vadd.s32 %v528, %v526
    %v530 = vsel %vm20, %v318, 2147483647
    %v531 = vand.u32 %v530, 65535
    %v532 = vshra.s32 %v530, 16
    %v533 = vcvt.s32.f32 %v531
    %v534 = vcvt.s32.f32 %v532
    %535 = vmin.xlane.f32.xlu0 %v534
    %v536 = vpop.xlane.xlu0 %535
    %vm537 = vcmp.eq.f32.partialorder %v534, %v536
    %v538 = vsel %vm537, %v533, inf
    %539 = vmin.xlane.f32.xlu0 %v538
    %v540 = vpop.xlane.xlu0 %539
    %v541 = vcvt.f32.s32 %v540
    %v542 = vcvt.f32.s32 %v536
    %v543 = vshll.u32 %v542, 16
    %v544 = vadd.s32 %v543, %v541
    %v545 = vsel %vm20, %v319, 2147483647
    %v546 = vand.u32 %v545, 65535
    %v547 = vshra.s32 %v545, 16
    %v548 = vcvt.s32.f32 %v546
    %v549 = vcvt.s32.f32 %v547
    %550 = vmin.xlane.f32.xlu0 %v549
    %v551 = vpop.xlane.xlu0 %550
    %vm552 = vcmp.eq.f32.partialorder %v549, %v551
    %v553 = vsel %vm552, %v548, inf
    %554 = vmin.xlane.f32.xlu0 %v553
    %v555 = vpop.xlane.xlu0 %554
    %v556 = vcvt.f32.s32 %v555
    %v557 = vcvt.f32.s32 %v551
    %v558 = vshll.u32 %v557, 16
    %v559 = vadd.s32 %v558, %v556
    %v560 = vlaneseq
    %v561 = vshrl.u32 %v560, 7
    %v562 = vsub.s32 %v287, %v561
    %v563 = vrot.slane %v334, %v562
    %v564 = vlaneseq
    %v565 = vshrl.u32 %v564, 7
    %v566 = vsub.s32 %v287, %v565
    %v567 = vrot.slane %v349, %v566
    %v568 = vlaneseq
    %v569 = vshrl.u32 %v568, 7
    %v570 = vsub.s32 %v287, %v569
    %v571 = vrot.slane %v364, %v570
    %v572 = vlaneseq
    %v573 = vshrl.u32 %v572, 7
    %v574 = vsub.s32 %v287, %v573
    %v575 = vrot.slane %v379, %v574
    %v576 = vlaneseq
    %v577 = vshrl.u32 %v576, 7
    %v578 = vsub.s32 %v287, %v577
    %v579 = vrot.slane %v394, %v578
    %v580 = vlaneseq
    %v581 = vshrl.u32 %v580, 7
    %v582 = vsub.s32 %v287, %v581
    %v583 = vrot.slane %v409, %v582
    %v584 = vlaneseq
    %v585 = vshrl.u32 %v584, 7
    %v586 = vsub.s32 %v287, %v585
    %v587 = vrot.slane %v424, %v586
    %v588 = vlaneseq
    %v589 = vshrl.u32 %v588, 7
    %v590 = vsub.s32 %v287, %v589
    %v591 = vrot.slane %v439, %v590
    %v592 = vlaneseq
    %v593 = vshrl.u32 %v592, 7
    %v594 = vsub.s32 %v287, %v593
    %v595 = vrot.slane %v454, %v594
    %v596 = vlaneseq
    %v597 = vshrl.u32 %v596, 7
    %v598 = vsub.s32 %v287, %v597
    %v599 = vrot.slane %v469, %v598
    %v600 = vlaneseq
    %v601 = vshrl.u32 %v600, 7
    %v602 = vsub.s32 %v287, %v601
    %v603 = vrot.slane %v484, %v602
    %v604 = vlaneseq
    %v605 = vshrl.u32 %v604, 7
    %v606 = vsub.s32 %v287, %v605
    %v607 = vrot.slane %v499, %v606
    %v608 = vlaneseq
    %v609 = vshrl.u32 %v608, 7
    %v610 = vsub.s32 %v287, %v609
    %v611 = vrot.slane %v514, %v610
    %v612 = vlaneseq
    %v613 = vshrl.u32 %v612, 7
    %v614 = vsub.s32 %v287, %v613
    %v615 = vrot.slane %v529, %v614
    %v616 = vlaneseq
    %v617 = vshrl.u32 %v616, 7
    %v618 = vsub.s32 %v287, %v617
    %v619 = vrot.slane %v544, %v618
    %v620 = vlaneseq
    %v621 = vshrl.u32 %v620, 7
    %v622 = vsub.s32 %v287, %v621
    %v623 = vrot.slane %v559, %v622
    %vm624 = vcmask 1041409
    %v625 = vsel %vm624, %v567, %v563
    %vm626 = vcmask 1042434
    %v627 = vsel %vm626, %v571, %v625
    %vm628 = vcmask 1043459
    %v629 = vsel %vm628, %v575, %v627
    %vm630 = vcmask 1044484
    %v631 = vsel %vm630, %v579, %v629
    %vm632 = vcmask 1045509
    %v633 = vsel %vm632, %v583, %v631
    %vm634 = vcmask 1046534
    %v635 = vsel %vm634, %v587, %v633
    %vm636 = vcmask 1047559
    %v637 = vsel %vm636, %v591, %v635
    %v638 = vsel %vm624, %v599, %v595
    %v639 = vsel %vm626, %v603, %v638
    %v640 = vsel %vm628, %v607, %v639
    %v641 = vsel %vm630, %v611, %v640
    %v642 = vsel %vm632, %v615, %v641
    %v643 = vsel %vm634, %v619, %v642
    %v644 = vsel %vm636, %v623, %v643
    %s645 = smul.u32 %s35, 16
    %s646 = scalar_lea.vmem %s4, %s645
    %647 = vst.msk [vmem:[%s646] sm:$0xff] %vm20, %v637
    %648 = vst.msk [vmem:[%s646 + $0x8] sm:$0xff] %vm20, %v644
    %s649 = scalar_lea.vmem %s0, %s645
    %v650 = vld [vmem:[%s649] sm:$0xff]
    %v651 = vld [vmem:[%s649 + $0x8] sm:$0xff]
    %v654 = vlaneseq
    %v655 = vshrl.u32 %v654, 7
    %v656 = vsub.s32 0, %v655
    %v657 = vrot.slane %v650, %v656
    %659 = vbcast.lane.b32.xlu0 %v657, 256
    %v660 = vpop.permute.xlu0 %659
    %v661 = vlaneseq
    %v662 = vshrl.u32 %v661, 7
    %v663 = vsub.s32 1, %v662
    %v664 = vrot.slane %v650, %v663
    %666 = vbcast.lane.b32.xlu0 %v664, 256
    %v667 = vpop.permute.xlu0 %666
    %v668 = vlaneseq
    %v669 = vshrl.u32 %v668, 7
    %v670 = vsub.s32 2, %v669
    %v671 = vrot.slane %v650, %v670
    %673 = vbcast.lane.b32.xlu0 %v671, 256
    %v674 = vpop.permute.xlu0 %673
    %v675 = vlaneseq
    %v676 = vshrl.u32 %v675, 7
    %v677 = vsub.s32 3, %v676
    %v678 = vrot.slane %v650, %v677
    %680 = vbcast.lane.b32.xlu0 %v678, 256
    %v681 = vpop.permute.xlu0 %680
    %v682 = vlaneseq
    %v683 = vshrl.u32 %v682, 7
    %v684 = vsub.s32 4, %v683
    %v685 = vrot.slane %v650, %v684
    %687 = vbcast.lane.b32.xlu0 %v685, 256
    %v688 = vpop.permute.xlu0 %687
    %v689 = vlaneseq
    %v690 = vshrl.u32 %v689, 7
    %v691 = vsub.s32 5, %v690
    %v692 = vrot.slane %v650, %v691
    %694 = vbcast.lane.b32.xlu0 %v692, 256
    %v695 = vpop.permute.xlu0 %694
    %v696 = vlaneseq
    %v697 = vshrl.u32 %v696, 7
    %v698 = vsub.s32 6, %v697
    %v699 = vrot.slane %v650, %v698
    %701 = vbcast.lane.b32.xlu0 %v699, 256
    %v702 = vpop.permute.xlu0 %701
    %v703 = vlaneseq
    %v704 = vshrl.u32 %v703, 7
    %v705 = vsub.s32 7, %v704
    %v706 = vrot.slane %v650, %v705
    %708 = vbcast.lane.b32.xlu0 %v706, 256
    %v709 = vpop.permute.xlu0 %708
    %v710 = vlaneseq
    %v711 = vshrl.u32 %v710, 7
    %v712 = vsub.s32 0, %v711
    %v713 = vrot.slane %v651, %v712
    %715 = vbcast.lane.b32.xlu0 %v713, 256
    %v716 = vpop.permute.xlu0 %715
    %v717 = vlaneseq
    %v718 = vshrl.u32 %v717, 7
    %v719 = vsub.s32 1, %v718
    %v720 = vrot.slane %v651, %v719
    %722 = vbcast.lane.b32.xlu0 %v720, 256
    %v723 = vpop.permute.xlu0 %722
    %v724 = vlaneseq
    %v725 = vshrl.u32 %v724, 7
    %v726 = vsub.s32 2, %v725
    %v727 = vrot.slane %v651, %v726
    %729 = vbcast.lane.b32.xlu0 %v727, 256
    %v730 = vpop.permute.xlu0 %729
    %v731 = vlaneseq
    %v732 = vshrl.u32 %v731, 7
    %v733 = vsub.s32 3, %v732
    %v734 = vrot.slane %v651, %v733
    %736 = vbcast.lane.b32.xlu0 %v734, 256
    %v737 = vpop.permute.xlu0 %736
    %v738 = vlaneseq
    %v739 = vshrl.u32 %v738, 7
    %v740 = vsub.s32 4, %v739
    %v741 = vrot.slane %v651, %v740
    %743 = vbcast.lane.b32.xlu0 %v741, 256
    %v744 = vpop.permute.xlu0 %743
    %v745 = vlaneseq
    %v746 = vshrl.u32 %v745, 7
    %v747 = vsub.s32 5, %v746
    %v748 = vrot.slane %v651, %v747
    %750 = vbcast.lane.b32.xlu0 %v748, 256
    %v751 = vpop.permute.xlu0 %750
    %v752 = vlaneseq
    %v753 = vshrl.u32 %v752, 7
    %v754 = vsub.s32 6, %v753
    %v755 = vrot.slane %v651, %v754
    %757 = vbcast.lane.b32.xlu0 %v755, 256
    %v758 = vpop.permute.xlu0 %757
    %v759 = vlaneseq
    %v760 = vshrl.u32 %v759, 7
    %v761 = vsub.s32 7, %v760
    %v762 = vrot.slane %v651, %v761
    %764 = vbcast.lane.b32.xlu0 %v762, 256
    %v765 = vpop.permute.xlu0 %764
    %v782 = vadd.f32 %v240, %v660
    %v783 = vadd.f32 %v243, %v667
    %v784 = vadd.f32 %v246, %v674
    %v785 = vadd.f32 %v249, %v681
    %v786 = vadd.f32 %v252, %v688
    %v787 = vadd.f32 %v255, %v695
    %v788 = vadd.f32 %v258, %v702
    %v789 = vadd.f32 %v261, %v709
    %v790 = vadd.f32 %v264, %v716
    %v791 = vadd.f32 %v267, %v723
    %v792 = vadd.f32 %v270, %v730
    %v793 = vadd.f32 %v273, %v737
    %v794 = vadd.f32 %v276, %v744
    %v795 = vadd.f32 %v279, %v751
    %v796 = vadd.f32 %v282, %v758
    %v797 = vadd.f32 %v285, %v765
    %814 = vset.pattern.permute.xlu0 0
    %815 = vperm.xlu0 %814, %v782
    %v816 = vpop.permute.xlu0 %815
    %817 = vset.pattern.permute.xlu0 0
    %818 = vperm.xlu0 %817, %v783
    %v819 = vpop.permute.xlu0 %818
    %820 = vset.pattern.permute.xlu0 0
    %821 = vperm.xlu0 %820, %v784
    %v822 = vpop.permute.xlu0 %821
    %823 = vset.pattern.permute.xlu0 0
    %824 = vperm.xlu0 %823, %v785
    %v825 = vpop.permute.xlu0 %824
    %826 = vset.pattern.permute.xlu0 0
    %827 = vperm.xlu0 %826, %v786
    %v828 = vpop.permute.xlu0 %827
    %829 = vset.pattern.permute.xlu0 0
    %830 = vperm.xlu0 %829, %v787
    %v831 = vpop.permute.xlu0 %830
    %832 = vset.pattern.permute.xlu0 0
    %833 = vperm.xlu0 %832, %v788
    %v834 = vpop.permute.xlu0 %833
    %835 = vset.pattern.permute.xlu0 0
    %836 = vperm.xlu0 %835, %v789
    %v837 = vpop.permute.xlu0 %836
    %838 = vset.pattern.permute.xlu0 0
    %839 = vperm.xlu0 %838, %v790
    %v840 = vpop.permute.xlu0 %839
    %841 = vset.pattern.permute.xlu0 0
    %842 = vperm.xlu0 %841, %v791
    %v843 = vpop.permute.xlu0 %842
    %844 = vset.pattern.permute.xlu0 0
    %845 = vperm.xlu0 %844, %v792
    %v846 = vpop.permute.xlu0 %845
    %847 = vset.pattern.permute.xlu0 0
    %848 = vperm.xlu0 %847, %v793
    %v849 = vpop.permute.xlu0 %848
    %850 = vset.pattern.permute.xlu0 0
    %851 = vperm.xlu0 %850, %v794
    %v852 = vpop.permute.xlu0 %851
    %853 = vset.pattern.permute.xlu0 0
    %854 = vperm.xlu0 %853, %v795
    %v855 = vpop.permute.xlu0 %854
    %856 = vset.pattern.permute.xlu0 0
    %857 = vperm.xlu0 %856, %v796
    %v858 = vpop.permute.xlu0 %857
    %859 = vset.pattern.permute.xlu0 0
    %860 = vperm.xlu0 %859, %v797
    %v861 = vpop.permute.xlu0 %860
    %v862 = vlaneseq
    %v863 = vshrl.u32 %v862, 7
    %v864 = vsub.s32 %v287, %v863
    %v865 = vrot.slane %v816, %v864
    %v866 = vlaneseq
    %v867 = vshrl.u32 %v866, 7
    %v868 = vsub.s32 %v287, %v867
    %v869 = vrot.slane %v819, %v868
    %v870 = vlaneseq
    %v871 = vshrl.u32 %v870, 7
    %v872 = vsub.s32 %v287, %v871
    %v873 = vrot.slane %v822, %v872
    %v874 = vlaneseq
    %v875 = vshrl.u32 %v874, 7
    %v876 = vsub.s32 %v287, %v875
    %v877 = vrot.slane %v825, %v876
    %v878 = vlaneseq
    %v879 = vshrl.u32 %v878, 7
    %v880 = vsub.s32 %v287, %v879
    %v881 = vrot.slane %v828, %v880
    %v882 = vlaneseq
    %v883 = vshrl.u32 %v882, 7
    %v884 = vsub.s32 %v287, %v883
    %v885 = vrot.slane %v831, %v884
    %v886 = vlaneseq
    %v887 = vshrl.u32 %v886, 7
    %v888 = vsub.s32 %v287, %v887
    %v889 = vrot.slane %v834, %v888
    %v890 = vlaneseq
    %v891 = vshrl.u32 %v890, 7
    %v892 = vsub.s32 %v287, %v891
    %v893 = vrot.slane %v837, %v892
    %v894 = vlaneseq
    %v895 = vshrl.u32 %v894, 7
    %v896 = vsub.s32 %v287, %v895
    %v897 = vrot.slane %v840, %v896
    %v898 = vlaneseq
    %v899 = vshrl.u32 %v898, 7
    %v900 = vsub.s32 %v287, %v899
    %v901 = vrot.slane %v843, %v900
    %v902 = vlaneseq
    %v903 = vshrl.u32 %v902, 7
    %v904 = vsub.s32 %v287, %v903
    %v905 = vrot.slane %v846, %v904
    %v906 = vlaneseq
    %v907 = vshrl.u32 %v906, 7
    %v908 = vsub.s32 %v287, %v907
    %v909 = vrot.slane %v849, %v908
    %v910 = vlaneseq
    %v911 = vshrl.u32 %v910, 7
    %v912 = vsub.s32 %v287, %v911
    %v913 = vrot.slane %v852, %v912
    %v914 = vlaneseq
    %v915 = vshrl.u32 %v914, 7
    %v916 = vsub.s32 %v287, %v915
    %v917 = vrot.slane %v855, %v916
    %v918 = vlaneseq
    %v919 = vshrl.u32 %v918, 7
    %v920 = vsub.s32 %v287, %v919
    %v921 = vrot.slane %v858, %v920
    %v922 = vlaneseq
    %v923 = vshrl.u32 %v922, 7
    %v924 = vsub.s32 %v287, %v923
    %v925 = vrot.slane %v861, %v924
    %v926 = vsel %vm624, %v869, %v865
    %v927 = vsel %vm626, %v873, %v926
    %v928 = vsel %vm628, %v877, %v927
    %v929 = vsel %vm630, %v881, %v928
    %v930 = vsel %vm632, %v885, %v929
    %v931 = vsel %vm634, %v889, %v930
    %v932 = vsel %vm636, %v893, %v931
    %v933 = vsel %vm624, %v901, %v897
    %v934 = vsel %vm626, %v905, %v933
    %v935 = vsel %vm628, %v909, %v934
    %v936 = vsel %vm630, %v913, %v935
    %v937 = vsel %vm632, %v917, %v936
    %v938 = vsel %vm634, %v921, %v937
    %v939 = vsel %vm636, %v925, %v938
  $region22: #{model_forward.11} parent=0 // loop_footer
    %s39 = sadd.s32 1, %s35
  $region23: #{model_forward.11} parent=0 // loop_footer_branch
    %34 = sbr.rel target = $region19
  $region24: #{model_forward.11} parent=0 // loop_exit
    _
  %v942 = vld [vmem:[%s3] sm:$0x1]
  %v944 = vlaneseq
  %v945 = vshrl.u32 %v944, 7
  %v946 = vsub.s32 0, %v945
  %v947 = vrot.slane %v942, %v946
  %v949 = vadd.f32 %v40, %v947
  %v950 = vadd.f32 %v41, %v947
  %951 = vst.msk [vmem:[%s5] sm:$0xff] %vm20, %v949
  %952 = vst.msk [vmem:[%s5 + $0x8] sm:$0xff] %vm20, %v950
  // Predicated region
  $region25: #{model_forward.11} parent=0 // pred_check
    _
  $region26: #{model_forward.11} parent=0 // pred_check_branch
    %954 = sbr.rel (0) target = $region28
  $region27: #{model_forward.11} parent=0 // pred_region
    _
  $region28: #{model_forward.11} parent=0 // pred_fallthru
    _
  // Predicated region
  $region29: #{model_forward.11} parent=0 // pred_check
    _
  $region30: #{model_forward.11} parent=0 // pred_check_branch
    %956 = sbr.rel (0) target = $region32
  $region31: #{model_forward.11} parent=0 // pred_region
    _
  $region32: #{model_forward.11} parent=0 // pred_fallthru
    _
  // Predicated region
  $region33: #{model_forward.11} parent=0 // pred_check
    _
  $region34: #{model_forward.11} parent=0 // pred_check_branch
    %958 = sbr.rel (0) target = $region36
  $region35: #{model_forward.11} parent=0 // pred_region
    _
  $region36: #{model_forward.11} parent=0 // pred_fallthru
    _
  // Predicated region
  $region37: #{model_forward.11} parent=0 // pred_check
    _
  $region38: #{model_forward.11} parent=0 // pred_check_branch
    %960 = sbr.rel (0) target = $region40
  $region39: #{model_forward.11} parent=0 // pred_region
    _
  $region40: #{model_forward.11} parent=0 // pred_fallthru
    _

// kernel: model_forward.10
$region0: #{model_forward.10}
  #allocation0 [shape = 'u32[]', space=smem, size = 0x4, offset = 0x4, fixed_abs, tag = 'smem constant byte address 0x4 - core index']
  #allocation1 [shape = 'u32[144,128]{1,0:T(1,128)}', space=vmem, size = 0x12000, scoped, tag = 'internal scratch']
  %s0 = inlined_call_operand.vmem [shape: bf16[128,128], index: 0, kind: input, shape index: {}]
  %s1 = inlined_call_operand.vmem [shape: bf16[128,128], index: 1, kind: input, shape index: {}]
  %s2 = inlined_call_operand.vmem [shape: bf16[256,8], index: 2, kind: input, shape index: {}]
  %s3 = inlined_call_operand.vmem [shape: f32[1,8], index: 3, kind: input, shape index: {}]
  %s4 = inlined_call_operand.vmem [shape: f32[128,8], index: 4, kind: output, shape index: {}]
  %s5 = sld [smem:[#allocation0]]
  $region26: #{model_forward.10} parent=0
    _
  %s7 = ssub.s32 1, %s5
  %s8 = scalar_select 0, %s7, %s5
  // Predicated region
  $region2: #{model_forward.10} parent=0 // pred_check
    _
  $region3: #{model_forward.10} parent=0 // pred_check_branch
    %10 = sbr.rel (0) target = $region5
  $region4: #{model_forward.10} parent=0 // pred_region
    _
  $region5: #{model_forward.10} parent=0 // pred_fallthru
    _
  // Predicated region
  $region6: #{model_forward.10} parent=0 // pred_check
    _
  $region7: #{model_forward.10} parent=0 // pred_check_branch
    %12 = sbr.rel (0) target = $region9
  $region8: #{model_forward.10} parent=0 // pred_region
    _
  $region9: #{model_forward.10} parent=0 // pred_fallthru
    _
  // Predicated region
  $region10: #{model_forward.10} parent=0 // pred_check
    _
  $region11: #{model_forward.10} parent=0 // pred_check_branch
    %14 = sbr.rel (0) target = $region13
  $region12: #{model_forward.10} parent=0 // pred_region
    _
  $region13: #{model_forward.10} parent=0 // pred_fallthru
    _
  // Predicated region
  $region14: #{model_forward.10} parent=0 // pred_check
    _
  $region15: #{model_forward.10} parent=0 // pred_check_branch
    %16 = sbr.rel (0) target = $region17
  $region16: #{model_forward.10} parent=0 // pred_region
    _
  $region17: #{model_forward.10} parent=0 // pred_fallthru
    _
  %v18 = vld [vmem:[%s0] sm:$0xf]
  %v19 = vld [vmem:[%s0 + $0x4] sm:$0xf]
  %v20 = vld [vmem:[%s0 + $0x8] sm:$0xf]
  %v21 = vld [vmem:[%s0 + $0xc] sm:$0xf]
  %v22 = vld [vmem:[%s0 + $0x10] sm:$0xf]
  %v23 = vld [vmem:[%s0 + $0x14] sm:$0xf]
  %v24 = vld [vmem:[%s0 + $0x18] sm:$0xf]
  %v25 = vld [vmem:[%s0 + $0x1c] sm:$0xf]
  %v26 = vld [vmem:[%s0 + $0x20] sm:$0xf]
  %v27 = vld [vmem:[%s0 + $0x24] sm:$0xf]
  %v28 = vld [vmem:[%s0 + $0x28] sm:$0xf]
  %v29 = vld [vmem:[%s0 + $0x2c] sm:$0xf]
  %v30 = vld [vmem:[%s0 + $0x30] sm:$0xf]
  %v31 = vld [vmem:[%s0 + $0x34] sm:$0xf]
  %v32 = vld [vmem:[%s0 + $0x38] sm:$0xf]
  %v33 = vld [vmem:[%s0 + $0x3c] sm:$0xf]
  %v34 = vld [vmem:[%s2] sm:$0xf]
  %v35 = vld [vmem:[%s2 + $0x4] sm:$0xf]
  %v36 = vld [vmem:[%s2 + $0x8] sm:$0xf]
  %v37 = vld [vmem:[%s2 + $0xc] sm:$0xf]
  %v38 = vld [vmem:[%s2 + $0x10] sm:$0xf]
  %v39 = vld [vmem:[%s2 + $0x14] sm:$0xf]
  %v40 = vld [vmem:[%s2 + $0x18] sm:$0xf]
  %v41 = vld [vmem:[%s2 + $0x1c] sm:$0xf]
  %v42 = vld [vmem:[%s2 + $0x20] sm:$0xf]
  %v43 = vld [vmem:[%s2 + $0x24] sm:$0xf]
  %v44 = vld [vmem:[%s2 + $0x28] sm:$0xf]
  %v45 = vld [vmem:[%s2 + $0x2c] sm:$0xf]
  %v46 = vld [vmem:[%s2 + $0x30] sm:$0xf]
  %v47 = vld [vmem:[%s2 + $0x34] sm:$0xf]
  %v48 = vld [vmem:[%s2 + $0x38] sm:$0xf]
  %v49 = vld [vmem:[%s2 + $0x3c] sm:$0xf]
  %v50 = vld [vmem:[%s1] sm:$0xf]
  %v51 = vld [vmem:[%s1 + $0x4] sm:$0xf]
  %v52 = vld [vmem:[%s1 + $0x8] sm:$0xf]
  %v53 = vld [vmem:[%s1 + $0xc] sm:$0xf]
  %v54 = vld [vmem:[%s1 + $0x10] sm:$0xf]
  %v55 = vld [vmem:[%s1 + $0x14] sm:$0xf]
  %v56 = vld [vmem:[%s1 + $0x18] sm:$0xf]
  %v57 = vld [vmem:[%s1 + $0x1c] sm:$0xf]
  %v58 = vld [vmem:[%s1 + $0x20] sm:$0xf]
  %v59 = vld [vmem:[%s1 + $0x24] sm:$0xf]
  %v60 = vld [vmem:[%s1 + $0x28] sm:$0xf]
  %v61 = vld [vmem:[%s1 + $0x2c] sm:$0xf]
  %v62 = vld [vmem:[%s1 + $0x30] sm:$0xf]
  %v63 = vld [vmem:[%s1 + $0x34] sm:$0xf]
  %v64 = vld [vmem:[%s1 + $0x38] sm:$0xf]
  %v65 = vld [vmem:[%s1 + $0x3c] sm:$0xf]
  %v66 = vld [vmem:[%s2 + $0x40] sm:$0xf]
  %v67 = vld [vmem:[%s2 + $0x44] sm:$0xf]
  %v68 = vld [vmem:[%s2 + $0x48] sm:$0xf]
  %v69 = vld [vmem:[%s2 + $0x4c] sm:$0xf]
  %v70 = vld [vmem:[%s2 + $0x50] sm:$0xf]
  %v71 = vld [vmem:[%s2 + $0x54] sm:$0xf]
  %v72 = vld [vmem:[%s2 + $0x58] sm:$0xf]
  %v73 = vld [vmem:[%s2 + $0x5c] sm:$0xf]
  %v74 = vld [vmem:[%s2 + $0x60] sm:$0xf]
  %v75 = vld [vmem:[%s2 + $0x64] sm:$0xf]
  %v76 = vld [vmem:[%s2 + $0x68] sm:$0xf]
  %v77 = vld [vmem:[%s2 + $0x6c] sm:$0xf]
  %v78 = vld [vmem:[%s2 + $0x70] sm:$0xf]
  %v79 = vld [vmem:[%s2 + $0x74] sm:$0xf]
  %v80 = vld [vmem:[%s2 + $0x78] sm:$0xf]
  %v81 = vld [vmem:[%s2 + $0x7c] sm:$0xf]
  %v98 = vunpack.c.l.b16 %v50
  %v99 = vunpack.c.l.b16 %v51
  %v100 = vunpack.c.l.b16 %v52
  %v101 = vunpack.c.l.b16 %v53
  %v102 = vunpack.c.l.b16 %v54
  %v103 = vunpack.c.l.b16 %v55
  %v104 = vunpack.c.l.b16 %v56
  %v105 = vunpack.c.l.b16 %v57
  %v106 = vunpack.c.l.b16 %v58
  %v107 = vunpack.c.l.b16 %v59
  %v108 = vunpack.c.l.b16 %v60
  %v109 = vunpack.c.l.b16 %v61
  %v110 = vunpack.c.l.b16 %v62
  %v111 = vunpack.c.l.b16 %v63
  %v112 = vunpack.c.l.b16 %v64
  %v113 = vunpack.c.l.b16 %v65
  %v114 = vpack.c.b16 %v99, %v98
  %v115 = vpack.c.b16 %v101, %v100
  %v116 = vpack.c.b16 %v103, %v102
  %v117 = vpack.c.b16 %v105, %v104
  %v118 = vpack.c.b16 %v107, %v106
  %v119 = vpack.c.b16 %v109, %v108
  %v120 = vpack.c.b16 %v111, %v110
  %v121 = vpack.c.b16 %v113, %v112
  %v146 = vunpack.c.l.b16 %v66
  %v147 = vunpack.c.l.b16 %v67
  %v148 = vunpack.c.l.b16 %v68
  %v149 = vunpack.c.l.b16 %v69
  %v150 = vunpack.c.l.b16 %v70
  %v151 = vunpack.c.l.b16 %v71
  %v152 = vunpack.c.l.b16 %v72
  %v153 = vunpack.c.l.b16 %v73
  %v154 = vunpack.c.l.b16 %v74
  %v155 = vunpack.c.l.b16 %v75
  %v156 = vunpack.c.l.b16 %v76
  %v157 = vunpack.c.l.b16 %v77
  %v158 = vunpack.c.l.b16 %v78
  %v159 = vunpack.c.l.b16 %v79
  %v160 = vunpack.c.l.b16 %v80
  %v161 = vunpack.c.l.b16 %v81
  %v162 = vpack.c.b16 %v147, %v146
  %v163 = vpack.c.b16 %v149, %v148
  %v164 = vpack.c.b16 %v151, %v150
  %v165 = vpack.c.b16 %v153, %v152
  %v166 = vpack.c.b16 %v155, %v154
  %v167 = vpack.c.b16 %v157, %v156
  %v168 = vpack.c.b16 %v159, %v158
  %v169 = vpack.c.b16 %v161, %v160
  %178 = vmatprep.subr.bf16.mxu0 0
  %179 = vmatpush1.bf16.msra.mxu0 %v162
  %180 = vmatprep.subr.bf16.mxu0 0
  %181 = vmatpush1.bf16.msra.mxu0 %v163
  %182 = vmatprep.subr.bf16.mxu0 0
  %183 = vmatpush1.bf16.msra.mxu0 %v164
  %184 = vmatprep.subr.bf16.mxu0 0
  %185 = vmatpush1.bf16.msra.mxu0 %v165
  %186 = vmatprep.subr.bf16.mxu0 0
  %187 = vmatpush1.bf16.msra.mxu0 %v166
  %188 = vmatprep.subr.bf16.mxu0 0
  %189 = vmatpush1.bf16.msra.mxu0 %v167
  %190 = vmatprep.subr.bf16.mxu0 0
  %191 = vmatpush1.bf16.msra.mxu0 %v168
  %192 = vmatprep.subr.bf16.mxu0 0
  %193 = vmatpush1.bf16.msra.mxu0 %v169
  %194 = vmatprep.subr.bf16.mxu0 0
  %195 = vmatpush1.bf16.msra.mxu0 0
  %196 = vmatprep.subr.bf16.mxu0 0
  %197 = vmatpush1.bf16.msra.mxu0 0
  %198 = vmatprep.subr.bf16.mxu0 0
  %199 = vmatpush1.bf16.msra.mxu0 0
  %200 = vmatprep.subr.bf16.mxu0 0
  %201 = vmatpush1.bf16.msra.mxu0 0
  %202 = vmatprep.subr.bf16.mxu0 0
  %203 = vmatpush1.bf16.msra.mxu0 0
  %204 = vmatprep.subr.bf16.mxu0 0
  %205 = vmatpush1.bf16.msra.mxu0 0
  %206 = vmatprep.subr.bf16.mxu0 0
  %207 = vmatpush1.bf16.msra.mxu0 0
  %208 = vmatprep.subr.bf16.mxu0 0
  %209 = vmatpush1.bf16.msra.mxu0 0
  %210 = vmatprep.mubr.bf16.mxu0 0
  %211 = vmatmul.mubr.bf16.gmra.mrb[0].mxu0 %v114
  %v212 = vpop.f32.mrb[0].mxu0
  %v213 = vadd.f32 0.0, %v212
  %v214 = vpop.f32.mrb[0].mxu0
  %v215 = vpop.f32.mrb[0].mxu0
  %v216 = vadd.f32 0.0, %v215
  %v217 = vpop.f32.mrb[0].mxu0
  %218 = vmatprep.mubr.bf16.mxu0 0
  %219 = vmatmul.mubr.bf16.gmra.mrb[0].mxu0 %v115
  %v220 = vpop.f32.mrb[0].mxu0
  %v221 = vadd.f32 0.0, %v220
  %v222 = vpop.f32.mrb[0].mxu0
  %v223 = vpop.f32.mrb[0].mxu0
  %v224 = vadd.f32 0.0, %v223
  %v225 = vpop.f32.mrb[0].mxu0
  %226 = vmatprep.mubr.bf16.mxu0 0
  %227 = vmatmul.mubr.bf16.gmra.mrb[0].mxu0 %v116
  %v228 = vpop.f32.mrb[0].mxu0
  %v229 = vadd.f32 0.0, %v228
  %v230 = vpop.f32.mrb[0].mxu0
  %v231 = vpop.f32.mrb[0].mxu0
  %v232 = vadd.f32 0.0, %v231
  %v233 = vpop.f32.mrb[0].mxu0
  %234 = vmatprep.mubr.bf16.mxu0 0
  %235 = vmatmul.mubr.bf16.gmra.mrb[0].mxu0 %v117
  %v236 = vpop.f32.mrb[0].mxu0
  %v237 = vadd.f32 0.0, %v236
  %v238 = vpop.f32.mrb[0].mxu0
  %v239 = vpop.f32.mrb[0].mxu0
  %v240 = vadd.f32 0.0, %v239
  %v241 = vpop.f32.mrb[0].mxu0
  %242 = vmatprep.mubr.bf16.mxu0 0
  %243 = vmatmul.mubr.bf16.gmra.mrb[0].mxu0 %v118
  %v244 = vpop.f32.mrb[0].mxu0
  %v245 = vadd.f32 0.0, %v244
  %v246 = vpop.f32.mrb[0].mxu0
  %v247 = vpop.f32.mrb[0].mxu0
  %v248 = vadd.f32 0.0, %v247
  %v249 = vpop.f32.mrb[0].mxu0
  %250 = vmatprep.mubr.bf16.mxu0 0
  %251 = vmatmul.mubr.bf16.gmra.mrb[0].mxu0 %v119
  %v252 = vpop.f32.mrb[0].mxu0
  %v253 = vadd.f32 0.0, %v252
  %v254 = vpop.f32.mrb[0].mxu0
  %v255 = vpop.f32.mrb[0].mxu0
  %v256 = vadd.f32 0.0, %v255
  %v257 = vpop.f32.mrb[0].mxu0
  %258 = vmatprep.mubr.bf16.mxu0 0
  %259 = vmatmul.mubr.bf16.gmra.mrb[0].mxu0 %v120
  %v260 = vpop.f32.mrb[0].mxu0
  %v261 = vadd.f32 0.0, %v260
  %v262 = vpop.f32.mrb[0].mxu0
  %v263 = vpop.f32.mrb[0].mxu0
  %v264 = vadd.f32 0.0, %v263
  %v265 = vpop.f32.mrb[0].mxu0
  %266 = vmatprep.mubr.bf16.mxu0 0
  %267 = vmatmul.mubr.bf16.gmra.mrb[0].mxu0 %v121
  %v268 = vpop.f32.mrb[0].mxu0
  %v269 = vadd.f32 0.0, %v268
  %v270 = vpop.f32.mrb[0].mxu0
  %v271 = vpop.f32.mrb[0].mxu0
  %v272 = vadd.f32 0.0, %v271
  %v273 = vpop.f32.mrb[0].mxu0
  %274 = vdwg.mxu0
  %v291 = vunpack.c.l.b16 %v18
  %v292 = vunpack.c.l.b16 %v19
  %v293 = vunpack.c.l.b16 %v20
  %v294 = vunpack.c.l.b16 %v21
  %v295 = vunpack.c.l.b16 %v22
  %v296 = vunpack.c.l.b16 %v23
  %v297 = vunpack.c.l.b16 %v24
  %v298 = vunpack.c.l.b16 %v25
  %v299 = vunpack.c.l.b16 %v26
  %v300 = vunpack.c.l.b16 %v27
  %v301 = vunpack.c.l.b16 %v28
  %v302 = vunpack.c.l.b16 %v29
  %v303 = vunpack.c.l.b16 %v30
  %v304 = vunpack.c.l.b16 %v31
  %v305 = vunpack.c.l.b16 %v32
  %v306 = vunpack.c.l.b16 %v33
  %v307 = vpack.c.b16 %v292, %v291
  %v308 = vpack.c.b16 %v294, %v293
  %v309 = vpack.c.b16 %v296, %v295
  %v310 = vpack.c.b16 %v298, %v297
  %v311 = vpack.c.b16 %v300, %v299
  %v312 = vpack.c.b16 %v302, %v301
  %v313 = vpack.c.b16 %v304, %v303
  %v314 = vpack.c.b16 %v306, %v305
  %v339 = vunpack.c.l.b16 %v34
  %v340 = vunpack.c.l.b16 %v35
  %v341 = vunpack.c.l.b16 %v36
  %v342 = vunpack.c.l.b16 %v37
  %v343 = vunpack.c.l.b16 %v38
  %v344 = vunpack.c.l.b16 %v39
  %v345 = vunpack.c.l.b16 %v40
  %v346 = vunpack.c.l.b16 %v41
  %v347 = vunpack.c.l.b16 %v42
  %v348 = vunpack.c.l.b16 %v43
  %v349 = vunpack.c.l.b16 %v44
  %v350 = vunpack.c.l.b16 %v45
  %v351 = vunpack.c.l.b16 %v46
  %v352 = vunpack.c.l.b16 %v47
  %v353 = vunpack.c.l.b16 %v48
  %v354 = vunpack.c.l.b16 %v49
  %v355 = vpack.c.b16 %v340, %v339
  %v356 = vpack.c.b16 %v342, %v341
  %v357 = vpack.c.b16 %v344, %v343
  %v358 = vpack.c.b16 %v346, %v345
  %v359 = vpack.c.b16 %v348, %v347
  %v360 = vpack.c.b16 %v350, %v349
  %v361 = vpack.c.b16 %v352, %v351
  %v362 = vpack.c.b16 %v354, %v353
  %371 = vmatprep.subr.bf16.mxu0 0
  %372 = vmatpush1.bf16.msra.mxu0 %v355
  %373 = vmatprep.subr.bf16.mxu0 0
  %374 = vmatpush1.bf16.msra.mxu0 %v356
  %375 = vmatprep.subr.bf16.mxu0 0
  %376 = vmatpush1.bf16.msra.mxu0 %v357
  %377 = vmatprep.subr.bf16.mxu0 0
  %378 = vmatpush1.bf16.msra.mxu0 %v358
  %379 = vmatprep.subr.bf16.mxu0 0
  %380 = vmatpush1.bf16.msra.mxu0 %v359
  %381 = vmatprep.subr.bf16.mxu0 0
  %382 = vmatpush1.bf16.msra.mxu0 %v360
  %383 = vmatprep.subr.bf16.mxu0 0
  %384 = vmatpush1.bf16.msra.mxu0 %v361
  %385 = vmatprep.subr.bf16.mxu0 0
  %386 = vmatpush1.bf16.msra.mxu0 %v362
  %387 = vmatprep.subr.bf16.mxu0 0
  %388 = vmatpush1.bf16.msra.mxu0 0
  %389 = vmatprep.subr.bf16.mxu0 0
  %390 = vmatpush1.bf16.msra.mxu0 0
  %391 = vmatprep.subr.bf16.mxu0 0
  %392 = vmatpush1.bf16.msra.mxu0 0
  %393 = vmatprep.subr.bf16.mxu0 0
  %394 = vmatpush1.bf16.msra.mxu0 0
  %395 = vmatprep.subr.bf16.mxu0 0
  %396 = vmatpush1.bf16.msra.mxu0 0
  %397 = vmatprep.subr.bf16.mxu0 0
  %398 = vmatpush1.bf16.msra.mxu0 0
  %399 = vmatprep.subr.bf16.mxu0 0
  %400 = vmatpush1.bf16.msra.mxu0 0
  %401 = vmatprep.subr.bf16.mxu0 0
  %402 = vmatpush1.bf16.msra.mxu0 0
  %403 = vmatprep.mubr.bf16.mxu0 0
  %404 = vmatmul.mubr.bf16.gmra.mrb[0].mxu0 %v307
  %v405 = vpop.f32.mrb[0].mxu0
  %v406 = vadd.f32 %v213, %v405
  %v407 = vpop.f32.mrb[0].mxu0
  %v408 = vpop.f32.mrb[0].mxu0
  %v409 = vadd.f32 %v216, %v408
  %v410 = vpop.f32.mrb[0].mxu0
  %411 = vmatprep.mubr.bf16.mxu0 0
  %412 = vmatmul.mubr.bf16.gmra.mrb[0].mxu0 %v308
  %v413 = vpop.f32.mrb[0].mxu0
  %v414 = vadd.f32 %v221, %v413
  %v415 = vpop.f32.mrb[0].mxu0
  %v416 = vpop.f32.mrb[0].mxu0
  %v417 = vadd.f32 %v224, %v416
  %v418 = vpop.f32.mrb[0].mxu0
  %419 = vmatprep.mubr.bf16.mxu0 0
  %420 = vmatmul.mubr.bf16.gmra.mrb[0].mxu0 %v309
  %v421 = vpop.f32.mrb[0].mxu0
  %v422 = vadd.f32 %v229, %v421
  %v423 = vpop.f32.mrb[0].mxu0
  %v424 = vpop.f32.mrb[0].mxu0
  %v425 = vadd.f32 %v232, %v424
  %v426 = vpop.f32.mrb[0].mxu0
  %427 = vmatprep.mubr.bf16.mxu0 0
  %428 = vmatmul.mubr.bf16.gmra.mrb[0].mxu0 %v310
  %v429 = vpop.f32.mrb[0].mxu0
  %v430 = vadd.f32 %v237, %v429
  %v431 = vpop.f32.mrb[0].mxu0
  %v432 = vpop.f32.mrb[0].mxu0
  %v433 = vadd.f32 %v240, %v432
  %v434 = vpop.f32.mrb[0].mxu0
  %435 = vmatprep.mubr.bf16.mxu0 0
  %436 = vmatmul.mubr.bf16.gmra.mrb[0].mxu0 %v311
  %v437 = vpop.f32.mrb[0].mxu0
  %v438 = vadd.f32 %v245, %v437
  %v439 = vpop.f32.mrb[0].mxu0
  %v440 = vpop.f32.mrb[0].mxu0
  %v441 = vadd.f32 %v248, %v440
  %v442 = vpop.f32.mrb[0].mxu0
  %443 = vmatprep.mubr.bf16.mxu0 0
  %444 = vmatmul.mubr.bf16.gmra.mrb[0].mxu0 %v312
  %v445 = vpop.f32.mrb[0].mxu0
  %v446 = vadd.f32 %v253, %v445
  %v447 = vpop.f32.mrb[0].mxu0
  %v448 = vpop.f32.mrb[0].mxu0
  %v449 = vadd.f32 %v256, %v448
  %v450 = vpop.f32.mrb[0].mxu0
  %451 = vmatprep.mubr.bf16.mxu0 0
  %452 = vmatmul.mubr.bf16.gmra.mrb[0].mxu0 %v313
  %v453 = vpop.f32.mrb[0].mxu0
  %v454 = vadd.f32 %v261, %v453
  %v455 = vpop.f32.mrb[0].mxu0
  %v456 = vpop.f32.mrb[0].mxu0
  %v457 = vadd.f32 %v264, %v456
  %v458 = vpop.f32.mrb[0].mxu0
  %459 = vmatprep.mubr.bf16.mxu0 0
  %460 = vmatmul.mubr.bf16.gmra.mrb[0].mxu0 %v314
  %v461 = vpop.f32.mrb[0].mxu0
  %v462 = vadd.f32 %v269, %v461
  %v463 = vpop.f32.mrb[0].mxu0
  %v464 = vpop.f32.mrb[0].mxu0
  %v465 = vadd.f32 %v272, %v464
  %v466 = vpop.f32.mrb[0].mxu0
  %467 = vdwg.mxu0
  %v468 = vld [vmem:[%s3] sm:$0x1]
  %v470 = vlaneseq
  %v471 = vshrl.u32 %v470, 7
  %v472 = vsub.s32 0, %v471
  %v473 = vrot.slane %v468, %v472
  %v475 = vadd.f32 %v406, %v473
  %v476 = vadd.f32 %v409, %v473
  %v477 = vadd.f32 %v414, %v473
  %v478 = vadd.f32 %v417, %v473
  %v479 = vadd.f32 %v422, %v473
  %v480 = vadd.f32 %v425, %v473
  %v481 = vadd.f32 %v430, %v473
  %v482 = vadd.f32 %v433, %v473
  %v483 = vadd.f32 %v438, %v473
  %v484 = vadd.f32 %v441, %v473
  %v485 = vadd.f32 %v446, %v473
  %v486 = vadd.f32 %v449, %v473
  %v487 = vadd.f32 %v454, %v473
  %v488 = vadd.f32 %v457, %v473
  %v489 = vadd.f32 %v462, %v473
  %v490 = vadd.f32 %v465, %v473
  %vm491 = vcmask 64512
  %492 = vst.msk [vmem:[%s4] sm:$0xff] %vm491, %v475
  %493 = vst.msk [vmem:[%s4 + $0x8] sm:$0xff] %vm491, %v476
  %494 = vst.msk [vmem:[%s4 + $0x10] sm:$0xff] %vm491, %v477
  %495 = vst.msk [vmem:[%s4 + $0x18] sm:$0xff] %vm491, %v478
  %496 = vst.msk [vmem:[%s4 + $0x20] sm:$0xff] %vm491, %v479
  %497 = vst.msk [vmem:[%s4 + $0x28] sm:$0xff] %vm491, %v480
  %498 = vst.msk [vmem:[%s4 + $0x30] sm:$0xff] %vm491, %v481
  %499 = vst.msk [vmem:[%s4 + $0x38] sm:$0xff] %vm491, %v482
  %500 = vst.msk [vmem:[%s4 + $0x40] sm:$0xff] %vm491, %v483
  %501 = vst.msk [vmem:[%s4 + $0x48] sm:$0xff] %vm491, %v484
  %502 = vst.msk [vmem:[%s4 + $0x50] sm:$0xff] %vm491, %v485
  %503 = vst.msk [vmem:[%s4 + $0x58] sm:$0xff] %vm491, %v486
  %504 = vst.msk [vmem:[%s4 + $0x60] sm:$0xff] %vm491, %v487
  %505 = vst.msk [vmem:[%s4 + $0x68] sm:$0xff] %vm491, %v488
  %506 = vst.msk [vmem:[%s4 + $0x70] sm:$0xff] %vm491, %v489
  %507 = vst.msk [vmem:[%s4 + $0x78] sm:$0xff] %vm491, %v490
  // Predicated region
  $region18: #{model_forward.10} parent=0 // pred_check
    _
  $region19: #{model_forward.10} parent=0 // pred_check_branch
    %509 = sbr.rel (0) target = $region21
  $region20: #{model_forward.10} parent=0 // pred_region
    _
  $region21: #{model_forward.10} parent=0 // pred_fallthru
    _
  // Predicated region
  $region22: #{model_forward.10} parent=0 // pred_check
    _
  $region23: #{model_forward.10} parent=0 // pred_check_branch
    %511 = sbr.rel (0) target = $region25
  $region24: #{model_forward.10} parent=0 // pred_region
    _
  $region25: #{model_forward.10} parent=0 // pred_fallthru
    _

</llo_original>
